<compile_context>
chip_gen: v5e
topology: v5e:2x2
jax: 0.10.0
libtpu: 0.0.40
codegen_flags: <defaults>
</compile_context>

<pallas_src>
import functools

import jax
import jax.numpy as jnp
from jax.experimental import pallas as pl
from jax.experimental.pallas import tpu as pltpu

EPS = 1e-5  # nn.GroupNorm default


# ---------------------------------------------------------------------------
# Fused kernel: conv3x3x3 -> GN -> SiLU -> conv3x3x3 -> GN -> SiLU -> +residual
# ---------------------------------------------------------------------------
def fused_resnet_kernel(*refs, dims, groups, has_res):
    D, H, W, Dp, Hp, Wp, Cin, Cout = dims
    DH = D * H
    G = groups
    cg = Cout // G
    inv_cnt = 1.0 / float(D * H * W * cg)

    if has_res:
        (x_ref, wb1_ref, b1_ref, g1_ref, be1_ref,
         wb2_ref, b2_ref, g2_ref, be2_ref,
         fold_ref, scat_ref, rwb_ref, rb_ref,
         out_ref, xpad_sc, hpad_sc) = refs
    else:
        (x_ref, wb1_ref, b1_ref, g1_ref, be1_ref,
         wb2_ref, b2_ref, g2_ref, be2_ref,
         fold_ref, scat_ref,
         out_ref, xpad_sc, hpad_sc) = refs
        rwb_ref = rb_ref = None

    # Zero the padded scratches (cheap; interiors are fully overwritten below).
    xpad_sc[...] = jnp.zeros_like(xpad_sc)
    hpad_sc[...] = jnp.zeros_like(hpad_sc)

    x_f32 = x_ref[0]                                       # (D*H, W*Cin) f32, lane-dense
    # write x into the interior of the zero-padded scratch: coords shift by +1
    xpad_sc[1:D + 1, 1:H + 1, Cin:(W + 1) * Cin] = x_f32.reshape(D, H, W * Cin)

    fold = fold_ref[...]                                   # (W*Cout, G)  0/1
    scat = scat_ref[...]                                   # (G, W*Cout)  0/1

    def conv_gn_silu(pad_sc, w_ref, c_in, bias_l, gamma_l, beta_l):
        # 3x3x3 conv as 9 MXU matmuls: the W-taps are folded into a
        # block-banded weight -> K = Wp*c_in, N = W*Cout (lane-dense output).
        acc = jnp.zeros((DH, W * Cout), jnp.float32)
        for kd in range(3):
            for kh in range(3):
                plane = pad_sc[kd:kd + D, kh:kh + H, :]    # (D, H, Wp*c_in) f32
                plane = plane.astype(jnp.bfloat16).reshape(DH, Wp * c_in)
                acc = acc + jnp.dot(plane, w_ref[kd * 3 + kh],
                                    preferred_element_type=jnp.float32)
        acc = acc + bias_l

        # GroupNorm (two-pass variance, all f32) + SiLU.
        s1 = jnp.sum(acc, axis=0, keepdims=True)                             # (1, W*Cout)
        mean_g = jnp.dot(s1, fold, preferred_element_type=jnp.float32) * inv_cnt   # (1, G)
        mean_l = jnp.dot(mean_g, scat, preferred_element_type=jnp.float32)   # (1, W*Cout)
        d = acc - mean_l
        s2 = jnp.sum(d * d, axis=0, keepdims=True)
        var_g = jnp.dot(s2, fold, preferred_element_type=jnp.float32) * inv_cnt
        inv_l = jnp.dot(jax.lax.rsqrt(var_g + EPS), scat,
                        preferred_element_type=jnp.float32)
        hn = d * inv_l * gamma_l + beta_l
        return hn * jax.nn.sigmoid(hn)                     # SiLU

    # block1
    h1 = conv_gn_silu(xpad_sc, wb1_ref, Cin, b1_ref[...], g1_ref[...], be1_ref[...])
    # pad h1 into the second scratch (stays in VMEM, never touches HBM)
    hpad_sc[1:D + 1, 1:H + 1, Cout:(W + 1) * Cout] = h1.reshape(D, H, W * Cout)
    # block2
    h2 = conv_gn_silu(hpad_sc, wb2_ref, Cout, b2_ref[...], g2_ref[...], be2_ref[...])

    # residual
    if has_res:
        res = jnp.dot(x_f32.astype(jnp.bfloat16), rwb_ref[...],
                      preferred_element_type=jnp.float32) + rb_ref[...]
    else:
        res = x_f32                                        # identity: exact f32 add

    out_ref[...] = (h2 + res).reshape(1, DH, W * Cout)


# ---------------------------------------------------------------------------
# Wrapper-side weight folding (one-time "glue" work, outside the kernel)
# ---------------------------------------------------------------------------
def _band_conv_weight(w, cin, cout, width, width_p):
    """w: (27, cin, cout) with k = kd*9 + kh*3 + kw  ->  (9, Wp*cin, W*cout)
    block-banded weights: band[p][wi*cin+c, wo*cout+o] = w[kd,kh,wi-wo,c,o]."""
    w5 = w.reshape(3, 3, 3, cin, cout)
    mats = []
    for kd in range(3):
        for kh in range(3):
            m = jnp.zeros((width_p * cin, width * cout), jnp.float32)
            for kw in range(3):
                sel = jnp.eye(width_p, width, k=-kw, dtype=jnp.float32)  # wi == wo + kw
                m = m + jnp.kron(sel, w5[kd, kh, kw])
            mats.append(m)
    return jnp.stack(mats, axis=0)


def _fused_call(x_f, wb1, b1_l, g1_l, be1_l, wb2, b2_l, g2_l, be2_l,
                fold, scat, rwb, rb_l, *, dims, groups, has_res):
    N = x_f.shape[0]
    D, H, W, Dp, Hp, Wp, Cin, Cout = dims
    DH = D * H
    Lin, Lout = W * Cin, W * Cout

    def const_spec(shape):
        nd = len(shape)
        return pl.BlockSpec(shape, lambda n, _nd=nd: (0,) * _nd)

    in_specs = [
        pl.BlockSpec((1, DH, Lin), lambda n: (n, 0, 0)),
        const_spec(wb1.shape), const_spec(b1_l.shape),
        const_spec(g1_l.shape), const_spec(be1_l.shape),
        const_spec(wb2.shape), const_spec(b2_l.shape),
        const_spec(g2_l.shape), const_spec(be2_l.shape),
        const_spec(fold.shape), const_spec(scat.shape),
    ]
    args = [x_f, wb1, b1_l, g1_l, be1_l, wb2, b2_l, g2_l, be2_l, fold, scat]
    if has_res:
        in_specs += [const_spec(rwb.shape), const_spec(rb_l.shape)]
        args += [rwb, rb_l]

    kernel = functools.partial(fused_resnet_kernel, dims=dims, groups=groups,
                               has_res=has_res)
    return pl.pallas_call(
        kernel,
        out_shape=jax.ShapeDtypeStruct((N, DH, Lout), jnp.float32),
        grid=(N,),
        in_specs=in_specs,
        out_specs=pl.BlockSpec((1, DH, Lout), lambda n: (n, 0, 0)),
        scratch_shapes=[
            pltpu.VMEM((Dp, Hp, Wp * Cin), jnp.float32),    # zero-padded input
            pltpu.VMEM((Dp, Hp, Wp * Cout), jnp.float32),   # zero-padded h1
        ],
        compiler_params=pltpu.CompilerParams(dimension_semantics=("parallel",)),
    )(*args)


@functools.partial(jax.jit, static_argnames=("groups",))
def resnet_block(x_ncdhw, params, *, groups=8):
    """Forward of ResnetBlock. x_ncdhw: (N, C_in, D, H, W) float32 (PyTorch NCDHW)."""
    (w1, b1, g1, be1, w2, b2, g2, be2, rw, rb) = params
    N, cin, D, H, W = x_ncdhw.shape
    cout = w1.shape[-1]
    assert cout % groups == 0, "dim_out must be divisible by groups"
    Dp, Hp, Wp = D + 2, H + 2, W + 2
    cg = cout // groups

    # channels-last with W folded into the lane dim: (N, D*H, W*C)
    x_f = jnp.transpose(x_ncdhw, (0, 2, 3, 4, 1)).reshape(N, D * H, W * cin)

    # block-banded conv weights (kw folded into the contraction), bf16 for MXU
    wb1 = _band_conv_weight(w1, cin, cout, W, Wp).astype(jnp.bfloat16)
    wb2 = _band_conv_weight(w2, cout, cout, W, Wp).astype(jnp.bfloat16)

    def lane(p):  # (1, cout) per-channel param -> (1, W*cout) per-lane param
        return jnp.tile(p.reshape(1, cout), (1, W)).astype(jnp.float32)

    b1_l, g1_l, be1_l = lane(b1), lane(g1), lane(be1)
    b2_l, g2_l, be2_l = lane(b2), lane(g2), lane(be2)

    # group fold / scatter matrices for GroupNorm stats (precomputed, tiny)
    cidx = jnp.tile(jnp.arange(cout), W)                                   # (W*cout,)
    fold = (cidx[:, None] // cg == jnp.arange(groups)[None, :]).astype(jnp.float32)
    scat = jnp.transpose(fold)                                             # (G, W*cout)

    has_res = (cin != cout)
    if has_res:
        # 1x1x1 residual conv as a block-diagonal (W-folded) weight
        rwb = jnp.kron(jnp.eye(W, dtype=jnp.float32), rw).astype(jnp.bfloat16)
        rb_l = lane(rb)
    else:
        rwb = rb_l = None

    dims = (D, H, W, Dp, Hp, Wp, cin, cout)
    out = _fused_call(x_f, wb1, b1_l, g1_l, be1_l, wb2, b2_l, g2_l, be2_l,
                      fold, scat, rwb, rb_l, dims=dims, groups=groups,
                      has_res=has_res)
    out = out.reshape(N, D, H, W, cout)
    return jnp.transpose(out, (0, 4, 1, 2, 3))             # back to NCDHW


# ---------------------------------------------------------------------------
# Parameters + pure-JAX f32 reference (for a correctness check)
# ---------------------------------------------------------------------------
def make_params(key, dim, dim_out):
    """Conv weights stored as (27, Cin, Cout), k = kd*9 + kh*3 + kw."""
    ks = jax.random.split(key, 6)
    s1 = 1.0 / (dim * 27) ** 0.5
    w1 = jax.random.normal(ks[0], (27, dim, dim_out), jnp.float32) * s1
    b1 = jax.random.normal(ks[1], (1, dim_out), jnp.float32) * s1
    g1 = jnp.ones((1, dim_out), jnp.float32)
    be1 = jnp.zeros((1, dim_out), jnp.float32)

    s2 = 1.0 / (dim_out * 27) ** 0.5
    w2 = jax.random.normal(ks[2], (27, dim_out, dim_out), jnp.float32) * s2
    b2 = jax.random.normal(ks[3], (1, dim_out), jnp.float32) * s2
    g2 = jnp.ones((1, dim_out), jnp.float32)
    be2 = jnp.zeros((1, dim_out), jnp.float32)

    sr = 1.0 / dim ** 0.5
    rw = jax.random.normal(ks[4], (dim, dim_out), jnp.float32) * sr
    rb = jax.random.normal(ks[5], (1, dim_out), jnp.float32) * sr
    return (w1, b1, g1, be1, w2, b2, g2, be2, rw, rb)


def _ref_forward(x_ncdhw, params, *, groups=8):
    """Pure-JAX f32 reference of the PyTorch module (27 shifted matmuls)."""
    (w1, b1, g1, be1, w2, b2, g2, be2, rw, rb) = params
    N, cin, D, H, W = x_ncdhw.shape
    cout = w1.shape[-1]
    cg = cout // groups
    x = jnp.transpose(x_ncdhw, (0, 2, 3, 4, 1))            # NDHWC

    def conv3(xn, w, b):
        xp = jnp.pad(xn, ((0, 0), (1, 1), (1, 1), (1, 1), (0, 0)))
        acc = jnp.zeros((N, D, H, W, cout), jnp.float32) + b.reshape(1, 1, 1, 1, cout)
        for kd in range(3):
            for kh in range(3):
                for kw in range(3):
                    win = xp[:, kd:kd + D, kh:kh + H, kw:kw + W, :]
                    acc = acc + jnp.einsum('ndhwc,co->ndhwo', win, w[kd * 9 + kh * 3 + kw])
        return acc

    def gn_silu(hn, gamma, beta):
        hg = hn.reshape(N, D, H, W, groups, cg)
        mean = hg.mean(axis=(1, 2, 3, 5), keepdims=True)
        var = ((hg - mean) ** 2).mean(axis=(1, 2, 3, 5), keepdims=True)
        y = ((hg - mean) * jax.lax.rsqrt(var + EPS)).reshape(N, D, H, W, cout)
        y = y * gamma.reshape(1, 1, 1, 1, cout) + beta.reshape(1, 1, 1, 1, cout)
        return y * jax.nn.sigmoid(y)

    h = gn_silu(conv3(x, w1, b1), g1, be1)
    h = gn_silu(conv3(h, w2, b2), g2, be2)
    if cin != cout:
        res = jnp.einsum('ndhwc,co->ndhwo', x, rw) + rb.reshape(1, 1, 1, 1, cout)
    else:
        res = x
    return jnp.transpose(h + res, (0, 4, 1, 2, 3))


if __name__ == "__main__":
    key = jax.random.PRNGKey(0)
    kx, kp, kx2, kp2 = jax.random.split(key, 4)
    D = H = W = 8

    # Case 1: dim != dim_out (real 1x1x1 residual conv)
    N, dim, dim_out, groups = 2, 16, 32, 8
    x = jax.random.normal(kx, (N, dim, D, H, W), jnp.float32)
    params = make_params(kp, dim, dim_out)
    out = resnet_block(x, params, groups=groups)
    jax.block_until_ready(out)
    assert out.shape == (N, dim_out, D, H, W)
    assert bool(jnp.all(jnp.isfinite(out)))
    ref = _ref_forward(x, params, groups=groups)
    err = float(jnp.max(jnp.abs(out - ref)))
    assert err < 1e-1, f"max abs err vs f32 reference: {err}"

    # Case 2: dim == dim_out (identity residual path, exact f32 add)
    N2, dim2 = 1, 32
    x2 = jax.random.normal(kx2, (N2, dim2, D, H, W), jnp.float32)
    params2 = make_params(kp2, dim2, dim2)
    out2 = resnet_block(x2, params2, groups=groups)
    jax.block_until_ready(out2)
    assert out2.shape == (N2, dim2, D, H, W)
    assert bool(jnp.all(jnp.isfinite(out2)))
    ref2 = _ref_forward(x2, params2, groups=groups)
    err2 = float(jnp.max(jnp.abs(out2 - ref2)))
    assert err2 < 1e-1, f"identity-path max abs err vs f32 reference: {err2}"

    print("KERNEL_OK")
</pallas_src>

<mosaic_0001>
module attributes {stable_mosaic.version = 11 : i64} {
  func.func @fused_resnet_kernel(%arg0: i32, %arg1: memref<1x64x128xf32, #tpu.memory_space<vmem>>, %arg2: memref<9x160x256xbf16, #tpu.memory_space<vmem>>, %arg3: memref<1x256xf32, #tpu.memory_space<vmem>>, %arg4: memref<1x256xf32, #tpu.memory_space<vmem>>, %arg5: memref<1x256xf32, #tpu.memory_space<vmem>>, %arg6: memref<9x320x256xbf16, #tpu.memory_space<vmem>>, %arg7: memref<1x256xf32, #tpu.memory_space<vmem>>, %arg8: memref<1x256xf32, #tpu.memory_space<vmem>>, %arg9: memref<1x256xf32, #tpu.memory_space<vmem>>, %arg10: memref<256x8xf32, #tpu.memory_space<vmem>>, %arg11: memref<8x256xf32, #tpu.memory_space<vmem>>, %arg12: memref<128x256xbf16, #tpu.memory_space<vmem>>, %arg13: memref<1x256xf32, #tpu.memory_space<vmem>>, %arg14: memref<1x64x256xf32, #tpu.memory_space<vmem>>, %arg15: memref<10x10x160xf32, #tpu.memory_space<vmem>>, %arg16: memref<10x10x320xf32, #tpu.memory_space<vmem>>) attributes {dimension_semantics = [#tpu.dimension_semantics<parallel>], iteration_bounds = array<i64: 2>, scalar_prefetch = 0 : i64, scratch_operands = 2 : i64, tpu.core_type = #tpu.core_type<tc>, window_params = [{transform_indices = @transform_0, window_bounds = array<i64: 1, 64, 128>}, {pipeline_mode = #tpu.pipeline_mode<synchronous>, transform_indices = @transform_1, window_bounds = array<i64: 9, 160, 256>}, {pipeline_mode = #tpu.pipeline_mode<synchronous>, transform_indices = @transform_2, window_bounds = array<i64: 1, 256>}, {pipeline_mode = #tpu.pipeline_mode<synchronous>, transform_indices = @transform_3, window_bounds = array<i64: 1, 256>}, {pipeline_mode = #tpu.pipeline_mode<synchronous>, transform_indices = @transform_4, window_bounds = array<i64: 1, 256>}, {pipeline_mode = #tpu.pipeline_mode<synchronous>, transform_indices = @transform_5, window_bounds = array<i64: 9, 320, 256>}, {pipeline_mode = #tpu.pipeline_mode<synchronous>, transform_indices = @transform_6, window_bounds = array<i64: 1, 256>}, {pipeline_mode = #tpu.pipeline_mode<synchronous>, transform_indices = @transform_7, window_bounds = array<i64: 1, 256>}, {pipeline_mode = #tpu.pipeline_mode<synchronous>, transform_indices = @transform_8, window_bounds = array<i64: 1, 256>}, {pipeline_mode = #tpu.pipeline_mode<synchronous>, transform_indices = @transform_9, window_bounds = array<i64: 256, 8>}, {pipeline_mode = #tpu.pipeline_mode<synchronous>, transform_indices = @transform_10, window_bounds = array<i64: 8, 256>}, {pipeline_mode = #tpu.pipeline_mode<synchronous>, transform_indices = @transform_11, window_bounds = array<i64: 128, 256>}, {pipeline_mode = #tpu.pipeline_mode<synchronous>, transform_indices = @transform_12, window_bounds = array<i64: 1, 256>}, {transform_indices = @transform_13, window_bounds = array<i64: 1, 64, 256>}]} {
    %cst = arith.constant 0.000000e+00 : f32
    %0 = vector.broadcast %cst : f32 to vector<10x10x160xf32>
    %c0 = arith.constant 0 : index
    %c0_0 = arith.constant 0 : index
    %c0_1 = arith.constant 0 : index
    %1 = vector.load %arg15[%c0, %c0_0, %c0_1] : memref<10x10x160xf32, #tpu.memory_space<vmem>>, vector<10x10x160xf32>
    tpu.vector_store %arg15[%c0, %c0_0, %c0_1], %0 {strides = array<i32>} : memref<10x10x160xf32, #tpu.memory_space<vmem>>, vector<10x10x160xf32>,
    %cst_2 = arith.constant 0.000000e+00 : f32
    %2 = vector.broadcast %cst_2 : f32 to vector<10x10x320xf32>
    %c0_3 = arith.constant 0 : index
    %c0_4 = arith.constant 0 : index
    %c0_5 = arith.constant 0 : index
    %3 = vector.load %arg16[%c0_3, %c0_4, %c0_5] : memref<10x10x320xf32, #tpu.memory_space<vmem>>, vector<10x10x320xf32>
    tpu.vector_store %arg16[%c0_3, %c0_4, %c0_5], %2 {strides = array<i32>} : memref<10x10x320xf32, #tpu.memory_space<vmem>>, vector<10x10x320xf32>,
    %c0_6 = arith.constant 0 : index
    %c0_7 = arith.constant 0 : index
    %c0_8 = arith.constant 0 : index
    %4 = vector.load %arg1[%c0_6, %c0_7, %c0_8] : memref<1x64x128xf32, #tpu.memory_space<vmem>>, vector<1x64x128xf32>
    %5 = vector.shape_cast %4 : vector<1x64x128xf32> to vector<64x128xf32>
    %6 = vector.shape_cast %5 : vector<64x128xf32> to vector<8x8x128xf32>
    %c1 = arith.constant 1 : index
    %c1_9 = arith.constant 1 : index
    %c16 = arith.constant 16 : index
    %7 = vector.load %arg15[%c1, %c1_9, %c16] : memref<10x10x160xf32, #tpu.memory_space<vmem>>, vector<8x8x128xf32>
    tpu.vector_store %arg15[%c1, %c1_9, %c16], %6 {strides = array<i32>} : memref<10x10x160xf32, #tpu.memory_space<vmem>>, vector<8x8x128xf32>,
    %c0_10 = arith.constant 0 : index
    %c0_11 = arith.constant 0 : index
    %8 = vector.load %arg10[%c0_10, %c0_11] : memref<256x8xf32, #tpu.memory_space<vmem>>, vector<256x8xf32>
    %c0_12 = arith.constant 0 : index
    %c0_13 = arith.constant 0 : index
    %9 = vector.load %arg11[%c0_12, %c0_13] : memref<8x256xf32, #tpu.memory_space<vmem>>, vector<8x256xf32>
    %c0_14 = arith.constant 0 : index
    %c0_15 = arith.constant 0 : index
    %10 = vector.load %arg3[%c0_14, %c0_15] : memref<1x256xf32, #tpu.memory_space<vmem>>, vector<1x256xf32>
    %c0_16 = arith.constant 0 : index
    %c0_17 = arith.constant 0 : index
    %11 = vector.load %arg4[%c0_16, %c0_17] : memref<1x256xf32, #tpu.memory_space<vmem>>, vector<1x256xf32>
    %c0_18 = arith.constant 0 : index
    %c0_19 = arith.constant 0 : index
    %12 = vector.load %arg5[%c0_18, %c0_19] : memref<1x256xf32, #tpu.memory_space<vmem>>, vector<1x256xf32>
    %cst_20 = arith.constant 0.000000e+00 : f32
    %13 = vector.broadcast %cst_20 : f32 to vector<64x256xf32>
    %c0_21 = arith.constant 0 : index
    %c0_22 = arith.constant 0 : index
    %c0_23 = arith.constant 0 : index
    %14 = vector.load %arg15[%c0_21, %c0_22, %c0_23] : memref<10x10x160xf32, #tpu.memory_space<vmem>>, vector<8x8x160xf32>
    %15 = arith.truncf %14 : vector<8x8x160xf32> to vector<8x8x160xbf16>
    %16 = vector.shape_cast %15 : vector<8x8x160xbf16> to vector<64x160xbf16>
    %c0_24 = arith.constant 0 : index
    %c0_25 = arith.constant 0 : index
    %c0_26 = arith.constant 0 : index
    %17 = vector.load %arg2[%c0_24, %c0_25, %c0_26] : memref<9x160x256xbf16, #tpu.memory_space<vmem>>, vector<1x160x256xbf16>
    %18 = vector.shape_cast %17 : vector<1x160x256xbf16> to vector<160x256xbf16>
    %cst_27 = arith.constant dense<0.000000e+00> : vector<64x256xf32>
    %19 = tpu.matmul %16, %18, %cst_27 {dimension_numbers = #tpu.dot_dimension_numbers<[1], [0], [0], [1], [0, 0, 1, 1], [], []>} : vector<64x160xbf16>, vector<160x256xbf16>, vector<64x256xf32> -> vector<64x256xf32>
    %20 = arith.addf %13, %19 : vector<64x256xf32>
    %c0_28 = arith.constant 0 : index
    %c1_29 = arith.constant 1 : index
    %c0_30 = arith.constant 0 : index
    %21 = vector.load %arg15[%c0_28, %c1_29, %c0_30] : memref<10x10x160xf32, #tpu.memory_space<vmem>>, vector<8x8x160xf32>
    %22 = arith.truncf %21 : vector<8x8x160xf32> to vector<8x8x160xbf16>
    %23 = vector.shape_cast %22 : vector<8x8x160xbf16> to vector<64x160xbf16>
    %c1_31 = arith.constant 1 : index
    %c0_32 = arith.constant 0 : index
    %c0_33 = arith.constant 0 : index
    %24 = vector.load %arg2[%c1_31, %c0_32, %c0_33] : memref<9x160x256xbf16, #tpu.memory_space<vmem>>, vector<1x160x256xbf16>
    %25 = vector.shape_cast %24 : vector<1x160x256xbf16> to vector<160x256xbf16>
    %cst_34 = arith.constant dense<0.000000e+00> : vector<64x256xf32>
    %26 = tpu.matmul %23, %25, %cst_34 {dimension_numbers = #tpu.dot_dimension_numbers<[1], [0], [0], [1], [0, 0, 1, 1], [], []>} : vector<64x160xbf16>, vector<160x256xbf16>, vector<64x256xf32> -> vector<64x256xf32>
    %27 = arith.addf %20, %26 : vector<64x256xf32>
    %c0_35 = arith.constant 0 : index
    %c2 = arith.constant 2 : index
    %c0_36 = arith.constant 0 : index
    %28 = vector.load %arg15[%c0_35, %c2, %c0_36] : memref<10x10x160xf32, #tpu.memory_space<vmem>>, vector<8x8x160xf32>
    %29 = arith.truncf %28 : vector<8x8x160xf32> to vector<8x8x160xbf16>
    %30 = vector.shape_cast %29 : vector<8x8x160xbf16> to vector<64x160xbf16>
    %c2_37 = arith.constant 2 : index
    %c0_38 = arith.constant 0 : index
    %c0_39 = arith.constant 0 : index
    %31 = vector.load %arg2[%c2_37, %c0_38, %c0_39] : memref<9x160x256xbf16, #tpu.memory_space<vmem>>, vector<1x160x256xbf16>
    %32 = vector.shape_cast %31 : vector<1x160x256xbf16> to vector<160x256xbf16>
    %cst_40 = arith.constant dense<0.000000e+00> : vector<64x256xf32>
    %33 = tpu.matmul %30, %32, %cst_40 {dimension_numbers = #tpu.dot_dimension_numbers<[1], [0], [0], [1], [0, 0, 1, 1], [], []>} : vector<64x160xbf16>, vector<160x256xbf16>, vector<64x256xf32> -> vector<64x256xf32>
    %34 = arith.addf %27, %33 : vector<64x256xf32>
    %c1_41 = arith.constant 1 : index
    %c0_42 = arith.constant 0 : index
    %c0_43 = arith.constant 0 : index
    %35 = vector.load %arg15[%c1_41, %c0_42, %c0_43] : memref<10x10x160xf32, #tpu.memory_space<vmem>>, vector<8x8x160xf32>
    %36 = arith.truncf %35 : vector<8x8x160xf32> to vector<8x8x160xbf16>
    %37 = vector.shape_cast %36 : vector<8x8x160xbf16> to vector<64x160xbf16>
    %c3 = arith.constant 3 : index
    %c0_44 = arith.constant 0 : index
    %c0_45 = arith.constant 0 : index
    %38 = vector.load %arg2[%c3, %c0_44, %c0_45] : memref<9x160x256xbf16, #tpu.memory_space<vmem>>, vector<1x160x256xbf16>
    %39 = vector.shape_cast %38 : vector<1x160x256xbf16> to vector<160x256xbf16>
    %cst_46 = arith.constant dense<0.000000e+00> : vector<64x256xf32>
    %40 = tpu.matmul %37, %39, %cst_46 {dimension_numbers = #tpu.dot_dimension_numbers<[1], [0], [0], [1], [0, 0, 1, 1], [], []>} : vector<64x160xbf16>, vector<160x256xbf16>, vector<64x256xf32> -> vector<64x256xf32>
    %41 = arith.addf %34, %40 : vector<64x256xf32>
    %c1_47 = arith.constant 1 : index
    %c1_48 = arith.constant 1 : index
    %c0_49 = arith.constant 0 : index
    %42 = vector.load %arg15[%c1_47, %c1_48, %c0_49] : memref<10x10x160xf32, #tpu.memory_space<vmem>>, vector<8x8x160xf32>
    %43 = arith.truncf %42 : vector<8x8x160xf32> to vector<8x8x160xbf16>
    %44 = vector.shape_cast %43 : vector<8x8x160xbf16> to vector<64x160xbf16>
    %c4 = arith.constant 4 : index
    %c0_50 = arith.constant 0 : index
    %c0_51 = arith.constant 0 : index
    %45 = vector.load %arg2[%c4, %c0_50, %c0_51] : memref<9x160x256xbf16, #tpu.memory_space<vmem>>, vector<1x160x256xbf16>
    %46 = vector.shape_cast %45 : vector<1x160x256xbf16> to vector<160x256xbf16>
    %cst_52 = arith.constant dense<0.000000e+00> : vector<64x256xf32>
    %47 = tpu.matmul %44, %46, %cst_52 {dimension_numbers = #tpu.dot_dimension_numbers<[1], [0], [0], [1], [0, 0, 1, 1], [], []>} : vector<64x160xbf16>, vector<160x256xbf16>, vector<64x256xf32> -> vector<64x256xf32>
    %48 = arith.addf %41, %47 : vector<64x256xf32>
    %c1_53 = arith.constant 1 : index
    %c2_54 = arith.constant 2 : index
    %c0_55 = arith.constant 0 : index
    %49 = vector.load %arg15[%c1_53, %c2_54, %c0_55] : memref<10x10x160xf32, #tpu.memory_space<vmem>>, vector<8x8x160xf32>
    %50 = arith.truncf %49 : vector<8x8x160xf32> to vector<8x8x160xbf16>
    %51 = vector.shape_cast %50 : vector<8x8x160xbf16> to vector<64x160xbf16>
    %c5 = arith.constant 5 : index
    %c0_56 = arith.constant 0 : index
    %c0_57 = arith.constant 0 : index
    %52 = vector.load %arg2[%c5, %c0_56, %c0_57] : memref<9x160x256xbf16, #tpu.memory_space<vmem>>, vector<1x160x256xbf16>
    %53 = vector.shape_cast %52 : vector<1x160x256xbf16> to vector<160x256xbf16>
    %cst_58 = arith.constant dense<0.000000e+00> : vector<64x256xf32>
    %54 = tpu.matmul %51, %53, %cst_58 {dimension_numbers = #tpu.dot_dimension_numbers<[1], [0], [0], [1], [0, 0, 1, 1], [], []>} : vector<64x160xbf16>, vector<160x256xbf16>, vector<64x256xf32> -> vector<64x256xf32>
    %55 = arith.addf %48, %54 : vector<64x256xf32>
    %c2_59 = arith.constant 2 : index
    %c0_60 = arith.constant 0 : index
    %c0_61 = arith.constant 0 : index
    %56 = vector.load %arg15[%c2_59, %c0_60, %c0_61] : memref<10x10x160xf32, #tpu.memory_space<vmem>>, vector<8x8x160xf32>
    %57 = arith.truncf %56 : vector<8x8x160xf32> to vector<8x8x160xbf16>
    %58 = vector.shape_cast %57 : vector<8x8x160xbf16> to vector<64x160xbf16>
    %c6 = arith.constant 6 : index
    %c0_62 = arith.constant 0 : index
    %c0_63 = arith.constant 0 : index
    %59 = vector.load %arg2[%c6, %c0_62, %c0_63] : memref<9x160x256xbf16, #tpu.memory_space<vmem>>, vector<1x160x256xbf16>
    %60 = vector.shape_cast %59 : vector<1x160x256xbf16> to vector<160x256xbf16>
    %cst_64 = arith.constant dense<0.000000e+00> : vector<64x256xf32>
    %61 = tpu.matmul %58, %60, %cst_64 {dimension_numbers = #tpu.dot_dimension_numbers<[1], [0], [0], [1], [0, 0, 1, 1], [], []>} : vector<64x160xbf16>, vector<160x256xbf16>, vector<64x256xf32> -> vector<64x256xf32>
    %62 = arith.addf %55, %61 : vector<64x256xf32>
    %c2_65 = arith.constant 2 : index
    %c1_66 = arith.constant 1 : index
    %c0_67 = arith.constant 0 : index
    %63 = vector.load %arg15[%c2_65, %c1_66, %c0_67] : memref<10x10x160xf32, #tpu.memory_space<vmem>>, vector<8x8x160xf32>
    %64 = arith.truncf %63 : vector<8x8x160xf32> to vector<8x8x160xbf16>
    %65 = vector.shape_cast %64 : vector<8x8x160xbf16> to vector<64x160xbf16>
    %c7 = arith.constant 7 : index
    %c0_68 = arith.constant 0 : index
    %c0_69 = arith.constant 0 : index
    %66 = vector.load %arg2[%c7, %c0_68, %c0_69] : memref<9x160x256xbf16, #tpu.memory_space<vmem>>, vector<1x160x256xbf16>
    %67 = vector.shape_cast %66 : vector<1x160x256xbf16> to vector<160x256xbf16>
    %cst_70 = arith.constant dense<0.000000e+00> : vector<64x256xf32>
    %68 = tpu.matmul %65, %67, %cst_70 {dimension_numbers = #tpu.dot_dimension_numbers<[1], [0], [0], [1], [0, 0, 1, 1], [], []>} : vector<64x160xbf16>, vector<160x256xbf16>, vector<64x256xf32> -> vector<64x256xf32>
    %69 = arith.addf %62, %68 : vector<64x256xf32>
    %c2_71 = arith.constant 2 : index
    %c2_72 = arith.constant 2 : index
    %c0_73 = arith.constant 0 : index
    %70 = vector.load %arg15[%c2_71, %c2_72, %c0_73] : memref<10x10x160xf32, #tpu.memory_space<vmem>>, vector<8x8x160xf32>
    %71 = arith.truncf %70 : vector<8x8x160xf32> to vector<8x8x160xbf16>
    %72 = vector.shape_cast %71 : vector<8x8x160xbf16> to vector<64x160xbf16>
    %c8 = arith.constant 8 : index
    %c0_74 = arith.constant 0 : index
    %c0_75 = arith.constant 0 : index
    %73 = vector.load %arg2[%c8, %c0_74, %c0_75] : memref<9x160x256xbf16, #tpu.memory_space<vmem>>, vector<1x160x256xbf16>
    %74 = vector.shape_cast %73 : vector<1x160x256xbf16> to vector<160x256xbf16>
    %cst_76 = arith.constant dense<0.000000e+00> : vector<64x256xf32>
    %75 = tpu.matmul %72, %74, %cst_76 {dimension_numbers = #tpu.dot_dimension_numbers<[1], [0], [0], [1], [0, 0, 1, 1], [], []>} : vector<64x160xbf16>, vector<160x256xbf16>, vector<64x256xf32> -> vector<64x256xf32>
    %76 = arith.addf %69, %75 : vector<64x256xf32>
    %77 = vector.broadcast %10 : vector<1x256xf32> to vector<64x256xf32>
    %78 = arith.addf %76, %77 : vector<64x256xf32>
    %cst_77 = arith.constant dense<0.000000e+00> : vector<256xf32>
    %79 = vector.multi_reduction <add>, %78, %cst_77 [0] : vector<64x256xf32> to vector<256xf32>
    %80 = vector.shape_cast %79 : vector<256xf32> to vector<1x256xf32>
    %cst_78 = arith.constant dense<0.000000e+00> : vector<1x8xf32>
    %81 = tpu.matmul %80, %8, %cst_78 {dimension_numbers = #tpu.dot_dimension_numbers<[1], [0], [0], [1], [0, 0, 1, 1], [], []>} : vector<1x256xf32>, vector<256x8xf32>, vector<1x8xf32> -> vector<1x8xf32>
    %cst_79 = arith.constant 4.8828125E-4 : f32
    %82 = vector.broadcast %cst_79 : f32 to vector<1x8xf32>
    %83 = arith.mulf %81, %82 : vector<1x8xf32>
    %cst_80 = arith.constant dense<0.000000e+00> : vector<1x256xf32>
    %84 = tpu.matmul %83, %9, %cst_80 {dimension_numbers = #tpu.dot_dimension_numbers<[1], [0], [0], [1], [0, 0, 1, 1], [], []>} : vector<1x8xf32>, vector<8x256xf32>, vector<1x256xf32> -> vector<1x256xf32>
    %85 = vector.broadcast %84 : vector<1x256xf32> to vector<64x256xf32>
    %86 = arith.subf %78, %85 : vector<64x256xf32>
    %87 = arith.mulf %86, %86 : vector<64x256xf32>
    %cst_81 = arith.constant dense<0.000000e+00> : vector<256xf32>
    %88 = vector.multi_reduction <add>, %87, %cst_81 [0] : vector<64x256xf32> to vector<256xf32>
    %89 = vector.shape_cast %88 : vector<256xf32> to vector<1x256xf32>
    %cst_82 = arith.constant dense<0.000000e+00> : vector<1x8xf32>
    %90 = tpu.matmul %89, %8, %cst_82 {dimension_numbers = #tpu.dot_dimension_numbers<[1], [0], [0], [1], [0, 0, 1, 1], [], []>} : vector<1x256xf32>, vector<256x8xf32>, vector<1x8xf32> -> vector<1x8xf32>
    %cst_83 = arith.constant 4.8828125E-4 : f32
    %91 = vector.broadcast %cst_83 : f32 to vector<1x8xf32>
    %92 = arith.mulf %90, %91 : vector<1x8xf32>
    %cst_84 = arith.constant 9.99999974E-6 : f32
    %93 = vector.broadcast %cst_84 : f32 to vector<1x8xf32>
    %94 = arith.addf %92, %93 : vector<1x8xf32>
    %95 = math.rsqrt %94 : vector<1x8xf32>
    %cst_85 = arith.constant dense<0.000000e+00> : vector<1x256xf32>
    %96 = tpu.matmul %95, %9, %cst_85 {dimension_numbers = #tpu.dot_dimension_numbers<[1], [0], [0], [1], [0, 0, 1, 1], [], []>} : vector<1x8xf32>, vector<8x256xf32>, vector<1x256xf32> -> vector<1x256xf32>
    %97 = vector.broadcast %96 : vector<1x256xf32> to vector<64x256xf32>
    %98 = arith.mulf %86, %97 : vector<64x256xf32>
    %99 = vector.broadcast %11 : vector<1x256xf32> to vector<64x256xf32>
    %100 = arith.mulf %98, %99 : vector<64x256xf32>
    %101 = vector.broadcast %12 : vector<1x256xf32> to vector<64x256xf32>
    %102 = arith.addf %100, %101 : vector<64x256xf32>
    %103 = arith.negf %102 : vector<64x256xf32>
    %104 = math.exp %103 : vector<64x256xf32>
    %cst_86 = arith.constant 1.000000e+00 : f32
    %105 = vector.broadcast %cst_86 : f32 to vector<64x256xf32>
    %106 = arith.addf %105, %104 : vector<64x256xf32>
    %107 = arith.divf %105, %106 : vector<64x256xf32>
    %108 = arith.mulf %102, %107 : vector<64x256xf32>
    %109 = vector.shape_cast %108 : vector<64x256xf32> to vector<8x8x256xf32>
    %c1_87 = arith.constant 1 : index
    %c1_88 = arith.constant 1 : index
    %c32 = arith.constant 32 : index
    %110 = vector.load %arg16[%c1_87, %c1_88, %c32] : memref<10x10x320xf32, #tpu.memory_space<vmem>>, vector<8x8x256xf32>
    tpu.vector_store %arg16[%c1_87, %c1_88, %c32], %109 {strides = array<i32>} : memref<10x10x320xf32, #tpu.memory_space<vmem>>, vector<8x8x256xf32>,
    %c0_89 = arith.constant 0 : index
    %c0_90 = arith.constant 0 : index
    %111 = vector.load %arg7[%c0_89, %c0_90] : memref<1x256xf32, #tpu.memory_space<vmem>>, vector<1x256xf32>
    %c0_91 = arith.constant 0 : index
    %c0_92 = arith.constant 0 : index
    %112 = vector.load %arg8[%c0_91, %c0_92] : memref<1x256xf32, #tpu.memory_space<vmem>>, vector<1x256xf32>
    %c0_93 = arith.constant 0 : index
    %c0_94 = arith.constant 0 : index
    %113 = vector.load %arg9[%c0_93, %c0_94] : memref<1x256xf32, #tpu.memory_space<vmem>>, vector<1x256xf32>
    %cst_95 = arith.constant 0.000000e+00 : f32
    %114 = vector.broadcast %cst_95 : f32 to vector<64x256xf32>
    %c0_96 = arith.constant 0 : index
    %c0_97 = arith.constant 0 : index
    %c0_98 = arith.constant 0 : index
    %115 = vector.load %arg16[%c0_96, %c0_97, %c0_98] : memref<10x10x320xf32, #tpu.memory_space<vmem>>, vector<8x8x320xf32>
    %116 = arith.truncf %115 : vector<8x8x320xf32> to vector<8x8x320xbf16>
    %117 = vector.shape_cast %116 : vector<8x8x320xbf16> to vector<64x320xbf16>
    %c0_99 = arith.constant 0 : index
    %c0_100 = arith.constant 0 : index
    %c0_101 = arith.constant 0 : index
    %118 = vector.load %arg6[%c0_99, %c0_100, %c0_101] : memref<9x320x256xbf16, #tpu.memory_space<vmem>>, vector<1x320x256xbf16>
    %119 = vector.shape_cast %118 : vector<1x320x256xbf16> to vector<320x256xbf16>
    %cst_102 = arith.constant dense<0.000000e+00> : vector<64x256xf32>
    %120 = tpu.matmul %117, %119, %cst_102 {dimension_numbers = #tpu.dot_dimension_numbers<[1], [0], [0], [1], [0, 0, 1, 1], [], []>} : vector<64x320xbf16>, vector<320x256xbf16>, vector<64x256xf32> -> vector<64x256xf32>
    %121 = arith.addf %114, %120 : vector<64x256xf32>
    %c0_103 = arith.constant 0 : index
    %c1_104 = arith.constant 1 : index
    %c0_105 = arith.constant 0 : index
    %122 = vector.load %arg16[%c0_103, %c1_104, %c0_105] : memref<10x10x320xf32, #tpu.memory_space<vmem>>, vector<8x8x320xf32>
    %123 = arith.truncf %122 : vector<8x8x320xf32> to vector<8x8x320xbf16>
    %124 = vector.shape_cast %123 : vector<8x8x320xbf16> to vector<64x320xbf16>
    %c1_106 = arith.constant 1 : index
    %c0_107 = arith.constant 0 : index
    %c0_108 = arith.constant 0 : index
    %125 = vector.load %arg6[%c1_106, %c0_107, %c0_108] : memref<9x320x256xbf16, #tpu.memory_space<vmem>>, vector<1x320x256xbf16>
    %126 = vector.shape_cast %125 : vector<1x320x256xbf16> to vector<320x256xbf16>
    %cst_109 = arith.constant dense<0.000000e+00> : vector<64x256xf32>
    %127 = tpu.matmul %124, %126, %cst_109 {dimension_numbers = #tpu.dot_dimension_numbers<[1], [0], [0], [1], [0, 0, 1, 1], [], []>} : vector<64x320xbf16>, vector<320x256xbf16>, vector<64x256xf32> -> vector<64x256xf32>
    %128 = arith.addf %121, %127 : vector<64x256xf32>
    %c0_110 = arith.constant 0 : index
    %c2_111 = arith.constant 2 : index
    %c0_112 = arith.constant 0 : index
    %129 = vector.load %arg16[%c0_110, %c2_111, %c0_112] : memref<10x10x320xf32, #tpu.memory_space<vmem>>, vector<8x8x320xf32>
    %130 = arith.truncf %129 : vector<8x8x320xf32> to vector<8x8x320xbf16>
    %131 = vector.shape_cast %130 : vector<8x8x320xbf16> to vector<64x320xbf16>
    %c2_113 = arith.constant 2 : index
    %c0_114 = arith.constant 0 : index
    %c0_115 = arith.constant 0 : index
    %132 = vector.load %arg6[%c2_113, %c0_114, %c0_115] : memref<9x320x256xbf16, #tpu.memory_space<vmem>>, vector<1x320x256xbf16>
    %133 = vector.shape_cast %132 : vector<1x320x256xbf16> to vector<320x256xbf16>
    %cst_116 = arith.constant dense<0.000000e+00> : vector<64x256xf32>
    %134 = tpu.matmul %131, %133, %cst_116 {dimension_numbers = #tpu.dot_dimension_numbers<[1], [0], [0], [1], [0, 0, 1, 1], [], []>} : vector<64x320xbf16>, vector<320x256xbf16>, vector<64x256xf32> -> vector<64x256xf32>
    %135 = arith.addf %128, %134 : vector<64x256xf32>
    %c1_117 = arith.constant 1 : index
    %c0_118 = arith.constant 0 : index
    %c0_119 = arith.constant 0 : index
    %136 = vector.load %arg16[%c1_117, %c0_118, %c0_119] : memref<10x10x320xf32, #tpu.memory_space<vmem>>, vector<8x8x320xf32>
    %137 = arith.truncf %136 : vector<8x8x320xf32> to vector<8x8x320xbf16>
    %138 = vector.shape_cast %137 : vector<8x8x320xbf16> to vector<64x320xbf16>
    %c3_120 = arith.constant 3 : index
    %c0_121 = arith.constant 0 : index
    %c0_122 = arith.constant 0 : index
    %139 = vector.load %arg6[%c3_120, %c0_121, %c0_122] : memref<9x320x256xbf16, #tpu.memory_space<vmem>>, vector<1x320x256xbf16>
    %140 = vector.shape_cast %139 : vector<1x320x256xbf16> to vector<320x256xbf16>
    %cst_123 = arith.constant dense<0.000000e+00> : vector<64x256xf32>
    %141 = tpu.matmul %138, %140, %cst_123 {dimension_numbers = #tpu.dot_dimension_numbers<[1], [0], [0], [1], [0, 0, 1, 1], [], []>} : vector<64x320xbf16>, vector<320x256xbf16>, vector<64x256xf32> -> vector<64x256xf32>
    %142 = arith.addf %135, %141 : vector<64x256xf32>
    %c1_124 = arith.constant 1 : index
    %c1_125 = arith.constant 1 : index
    %c0_126 = arith.constant 0 : index
    %143 = vector.load %arg16[%c1_124, %c1_125, %c0_126] : memref<10x10x320xf32, #tpu.memory_space<vmem>>, vector<8x8x320xf32>
    %144 = arith.truncf %143 : vector<8x8x320xf32> to vector<8x8x320xbf16>
    %145 = vector.shape_cast %144 : vector<8x8x320xbf16> to vector<64x320xbf16>
    %c4_127 = arith.constant 4 : index
    %c0_128 = arith.constant 0 : index
    %c0_129 = arith.constant 0 : index
    %146 = vector.load %arg6[%c4_127, %c0_128, %c0_129] : memref<9x320x256xbf16, #tpu.memory_space<vmem>>, vector<1x320x256xbf16>
    %147 = vector.shape_cast %146 : vector<1x320x256xbf16> to vector<320x256xbf16>
    %cst_130 = arith.constant dense<0.000000e+00> : vector<64x256xf32>
    %148 = tpu.matmul %145, %147, %cst_130 {dimension_numbers = #tpu.dot_dimension_numbers<[1], [0], [0], [1], [0, 0, 1, 1], [], []>} : vector<64x320xbf16>, vector<320x256xbf16>, vector<64x256xf32> -> vector<64x256xf32>
    %149 = arith.addf %142, %148 : vector<64x256xf32>
    %c1_131 = arith.constant 1 : index
    %c2_132 = arith.constant 2 : index
    %c0_133 = arith.constant 0 : index
    %150 = vector.load %arg16[%c1_131, %c2_132, %c0_133] : memref<10x10x320xf32, #tpu.memory_space<vmem>>, vector<8x8x320xf32>
    %151 = arith.truncf %150 : vector<8x8x320xf32> to vector<8x8x320xbf16>
    %152 = vector.shape_cast %151 : vector<8x8x320xbf16> to vector<64x320xbf16>
    %c5_134 = arith.constant 5 : index
    %c0_135 = arith.constant 0 : index
    %c0_136 = arith.constant 0 : index
    %153 = vector.load %arg6[%c5_134, %c0_135, %c0_136] : memref<9x320x256xbf16, #tpu.memory_space<vmem>>, vector<1x320x256xbf16>
    %154 = vector.shape_cast %153 : vector<1x320x256xbf16> to vector<320x256xbf16>
    %cst_137 = arith.constant dense<0.000000e+00> : vector<64x256xf32>
    %155 = tpu.matmul %152, %154, %cst_137 {dimension_numbers = #tpu.dot_dimension_numbers<[1], [0], [0], [1], [0, 0, 1, 1], [], []>} : vector<64x320xbf16>, vector<320x256xbf16>, vector<64x256xf32> -> vector<64x256xf32>
    %156 = arith.addf %149, %155 : vector<64x256xf32>
    %c2_138 = arith.constant 2 : index
    %c0_139 = arith.constant 0 : index
    %c0_140 = arith.constant 0 : index
    %157 = vector.load %arg16[%c2_138, %c0_139, %c0_140] : memref<10x10x320xf32, #tpu.memory_space<vmem>>, vector<8x8x320xf32>
    %158 = arith.truncf %157 : vector<8x8x320xf32> to vector<8x8x320xbf16>
    %159 = vector.shape_cast %158 : vector<8x8x320xbf16> to vector<64x320xbf16>
    %c6_141 = arith.constant 6 : index
    %c0_142 = arith.constant 0 : index
    %c0_143 = arith.constant 0 : index
    %160 = vector.load %arg6[%c6_141, %c0_142, %c0_143] : memref<9x320x256xbf16, #tpu.memory_space<vmem>>, vector<1x320x256xbf16>
    %161 = vector.shape_cast %160 : vector<1x320x256xbf16> to vector<320x256xbf16>
    %cst_144 = arith.constant dense<0.000000e+00> : vector<64x256xf32>
    %162 = tpu.matmul %159, %161, %cst_144 {dimension_numbers = #tpu.dot_dimension_numbers<[1], [0], [0], [1], [0, 0, 1, 1], [], []>} : vector<64x320xbf16>, vector<320x256xbf16>, vector<64x256xf32> -> vector<64x256xf32>
    %163 = arith.addf %156, %162 : vector<64x256xf32>
    %c2_145 = arith.constant 2 : index
    %c1_146 = arith.constant 1 : index
    %c0_147 = arith.constant 0 : index
    %164 = vector.load %arg16[%c2_145, %c1_146, %c0_147] : memref<10x10x320xf32, #tpu.memory_space<vmem>>, vector<8x8x320xf32>
    %165 = arith.truncf %164 : vector<8x8x320xf32> to vector<8x8x320xbf16>
    %166 = vector.shape_cast %165 : vector<8x8x320xbf16> to vector<64x320xbf16>
    %c7_148 = arith.constant 7 : index
    %c0_149 = arith.constant 0 : index
    %c0_150 = arith.constant 0 : index
    %167 = vector.load %arg6[%c7_148, %c0_149, %c0_150] : memref<9x320x256xbf16, #tpu.memory_space<vmem>>, vector<1x320x256xbf16>
    %168 = vector.shape_cast %167 : vector<1x320x256xbf16> to vector<320x256xbf16>
    %cst_151 = arith.constant dense<0.000000e+00> : vector<64x256xf32>
    %169 = tpu.matmul %166, %168, %cst_151 {dimension_numbers = #tpu.dot_dimension_numbers<[1], [0], [0], [1], [0, 0, 1, 1], [], []>} : vector<64x320xbf16>, vector<320x256xbf16>, vector<64x256xf32> -> vector<64x256xf32>
    %170 = arith.addf %163, %169 : vector<64x256xf32>
    %c2_152 = arith.constant 2 : index
    %c2_153 = arith.constant 2 : index
    %c0_154 = arith.constant 0 : index
    %171 = vector.load %arg16[%c2_152, %c2_153, %c0_154] : memref<10x10x320xf32, #tpu.memory_space<vmem>>, vector<8x8x320xf32>
    %172 = arith.truncf %171 : vector<8x8x320xf32> to vector<8x8x320xbf16>
    %173 = vector.shape_cast %172 : vector<8x8x320xbf16> to vector<64x320xbf16>
    %c8_155 = arith.constant 8 : index
    %c0_156 = arith.constant 0 : index
    %c0_157 = arith.constant 0 : index
    %174 = vector.load %arg6[%c8_155, %c0_156, %c0_157] : memref<9x320x256xbf16, #tpu.memory_space<vmem>>, vector<1x320x256xbf16>
    %175 = vector.shape_cast %174 : vector<1x320x256xbf16> to vector<320x256xbf16>
    %cst_158 = arith.constant dense<0.000000e+00> : vector<64x256xf32>
    %176 = tpu.matmul %173, %175, %cst_158 {dimension_numbers = #tpu.dot_dimension_numbers<[1], [0], [0], [1], [0, 0, 1, 1], [], []>} : vector<64x320xbf16>, vector<320x256xbf16>, vector<64x256xf32> -> vector<64x256xf32>
    %177 = arith.addf %170, %176 : vector<64x256xf32>
    %178 = vector.broadcast %111 : vector<1x256xf32> to vector<64x256xf32>
    %179 = arith.addf %177, %178 : vector<64x256xf32>
    %cst_159 = arith.constant dense<0.000000e+00> : vector<256xf32>
    %180 = vector.multi_reduction <add>, %179, %cst_159 [0] : vector<64x256xf32> to vector<256xf32>
    %181 = vector.shape_cast %180 : vector<256xf32> to vector<1x256xf32>
    %cst_160 = arith.constant dense<0.000000e+00> : vector<1x8xf32>
    %182 = tpu.matmul %181, %8, %cst_160 {dimension_numbers = #tpu.dot_dimension_numbers<[1], [0], [0], [1], [0, 0, 1, 1], [], []>} : vector<1x256xf32>, vector<256x8xf32>, vector<1x8xf32> -> vector<1x8xf32>
    %cst_161 = arith.constant 4.8828125E-4 : f32
    %183 = vector.broadcast %cst_161 : f32 to vector<1x8xf32>
    %184 = arith.mulf %182, %183 : vector<1x8xf32>
    %cst_162 = arith.constant dense<0.000000e+00> : vector<1x256xf32>
    %185 = tpu.matmul %184, %9, %cst_162 {dimension_numbers = #tpu.dot_dimension_numbers<[1], [0], [0], [1], [0, 0, 1, 1], [], []>} : vector<1x8xf32>, vector<8x256xf32>, vector<1x256xf32> -> vector<1x256xf32>
    %186 = vector.broadcast %185 : vector<1x256xf32> to vector<64x256xf32>
    %187 = arith.subf %179, %186 : vector<64x256xf32>
    %188 = arith.mulf %187, %187 : vector<64x256xf32>
    %cst_163 = arith.constant dense<0.000000e+00> : vector<256xf32>
    %189 = vector.multi_reduction <add>, %188, %cst_163 [0] : vector<64x256xf32> to vector<256xf32>
    %190 = vector.shape_cast %189 : vector<256xf32> to vector<1x256xf32>
    %cst_164 = arith.constant dense<0.000000e+00> : vector<1x8xf32>
    %191 = tpu.matmul %190, %8, %cst_164 {dimension_numbers = #tpu.dot_dimension_numbers<[1], [0], [0], [1], [0, 0, 1, 1], [], []>} : vector<1x256xf32>, vector<256x8xf32>, vector<1x8xf32> -> vector<1x8xf32>
    %cst_165 = arith.constant 4.8828125E-4 : f32
    %192 = vector.broadcast %cst_165 : f32 to vector<1x8xf32>
    %193 = arith.mulf %191, %192 : vector<1x8xf32>
    %cst_166 = arith.constant 9.99999974E-6 : f32
    %194 = vector.broadcast %cst_166 : f32 to vector<1x8xf32>
    %195 = arith.addf %193, %194 : vector<1x8xf32>
    %196 = math.rsqrt %195 : vector<1x8xf32>
    %cst_167 = arith.constant dense<0.000000e+00> : vector<1x256xf32>
    %197 = tpu.matmul %196, %9, %cst_167 {dimension_numbers = #tpu.dot_dimension_numbers<[1], [0], [0], [1], [0, 0, 1, 1], [], []>} : vector<1x8xf32>, vector<8x256xf32>, vector<1x256xf32> -> vector<1x256xf32>
    %198 = vector.broadcast %197 : vector<1x256xf32> to vector<64x256xf32>
    %199 = arith.mulf %187, %198 : vector<64x256xf32>
    %200 = vector.broadcast %112 : vector<1x256xf32> to vector<64x256xf32>
    %201 = arith.mulf %199, %200 : vector<64x256xf32>
    %202 = vector.broadcast %113 : vector<1x256xf32> to vector<64x256xf32>
    %203 = arith.addf %201, %202 : vector<64x256xf32>
    %204 = arith.negf %203 : vector<64x256xf32>
    %205 = math.exp %204 : vector<64x256xf32>
    %cst_168 = arith.constant 1.000000e+00 : f32
    %206 = vector.broadcast %cst_168 : f32 to vector<64x256xf32>
    %207 = arith.addf %206, %205 : vector<64x256xf32>
    %208 = arith.divf %206, %207 : vector<64x256xf32>
    %209 = arith.mulf %203, %208 : vector<64x256xf32>
    %210 = arith.truncf %5 : vector<64x128xf32> to vector<64x128xbf16>
    %c0_169 = arith.constant 0 : index
    %c0_170 = arith.constant 0 : index
    %211 = vector.load %arg12[%c0_169, %c0_170] : memref<128x256xbf16, #tpu.memory_space<vmem>>, vector<128x256xbf16>
    %cst_171 = arith.constant dense<0.000000e+00> : vector<64x256xf32>
    %212 = tpu.matmul %210, %211, %cst_171 {dimension_numbers = #tpu.dot_dimension_numbers<[1], [0], [0], [1], [0, 0, 1, 1], [], []>} : vector<64x128xbf16>, vector<128x256xbf16>, vector<64x256xf32> -> vector<64x256xf32>
    %c0_172 = arith.constant 0 : index
    %c0_173 = arith.constant 0 : index
    %213 = vector.load %arg13[%c0_172, %c0_173] : memref<1x256xf32, #tpu.memory_space<vmem>>, vector<1x256xf32>
    %214 = vector.broadcast %213 : vector<1x256xf32> to vector<64x256xf32>
    %215 = arith.addf %212, %214 : vector<64x256xf32>
    %216 = arith.addf %209, %215 : vector<64x256xf32>
    %217 = vector.shape_cast %216 : vector<64x256xf32> to vector<1x64x256xf32>
    %c0_174 = arith.constant 0 : index
    %c0_175 = arith.constant 0 : index
    %c0_176 = arith.constant 0 : index
    %218 = vector.load %arg14[%c0_174, %c0_175, %c0_176] : memref<1x64x256xf32, #tpu.memory_space<vmem>>, vector<1x64x256xf32>
    tpu.vector_store %arg14[%c0_174, %c0_175, %c0_176], %217 {strides = array<i32>} : memref<1x64x256xf32, #tpu.memory_space<vmem>>, vector<1x64x256xf32>,
    return
  }
  func.func @transform_0(%arg0: i32) -> (i32, i32, i32) {
    %c0_i32 = arith.constant 0 : i32
    %c0_i32_0 = arith.constant 0 : i32
    %c0_i32_1 = arith.constant 0 : i32
    return %arg0, %c0_i32, %c0_i32_0 : i32, i32, i32
  }
  func.func @transform_1(%arg0: i32) -> (i32, i32, i32) {
    %c0_i32 = arith.constant 0 : i32
    %c0_i32_0 = arith.constant 0 : i32
    %c0_i32_1 = arith.constant 0 : i32
    %c0_i32_2 = arith.constant 0 : i32
    return %c0_i32, %c0_i32_0, %c0_i32_1 : i32, i32, i32
  }
  func.func @transform_2(%arg0: i32) -> (i32, i32) {
    %c0_i32 = arith.constant 0 : i32
    %c0_i32_0 = arith.constant 0 : i32
    %c0_i32_1 = arith.constant 0 : i32
    return %c0_i32, %c0_i32_0 : i32, i32
  }
  func.func @transform_3(%arg0: i32) -> (i32, i32) {
    %c0_i32 = arith.constant 0 : i32
    %c0_i32_0 = arith.constant 0 : i32
    %c0_i32_1 = arith.constant 0 : i32
    return %c0_i32, %c0_i32_0 : i32, i32
  }
  func.func @transform_4(%arg0: i32) -> (i32, i32) {
    %c0_i32 = arith.constant 0 : i32
    %c0_i32_0 = arith.constant 0 : i32
    %c0_i32_1 = arith.constant 0 : i32
    return %c0_i32, %c0_i32_0 : i32, i32
  }
  func.func @transform_5(%arg0: i32) -> (i32, i32, i32) {
    %c0_i32 = arith.constant 0 : i32
    %c0_i32_0 = arith.constant 0 : i32
    %c0_i32_1 = arith.constant 0 : i32
    %c0_i32_2 = arith.constant 0 : i32
    return %c0_i32, %c0_i32_0, %c0_i32_1 : i32, i32, i32
  }
  func.func @transform_6(%arg0: i32) -> (i32, i32) {
    %c0_i32 = arith.constant 0 : i32
    %c0_i32_0 = arith.constant 0 : i32
    %c0_i32_1 = arith.constant 0 : i32
    return %c0_i32, %c0_i32_0 : i32, i32
  }
  func.func @transform_7(%arg0: i32) -> (i32, i32) {
    %c0_i32 = arith.constant 0 : i32
    %c0_i32_0 = arith.constant 0 : i32
    %c0_i32_1 = arith.constant 0 : i32
    return %c0_i32, %c0_i32_0 : i32, i32
  }
  func.func @transform_8(%arg0: i32) -> (i32, i32) {
    %c0_i32 = arith.constant 0 : i32
    %c0_i32_0 = arith.constant 0 : i32
    %c0_i32_1 = arith.constant 0 : i32
    return %c0_i32, %c0_i32_0 : i32, i32
  }
  func.func @transform_9(%arg0: i32) -> (i32, i32) {
    %c0_i32 = arith.constant 0 : i32
    %c0_i32_0 = arith.constant 0 : i32
    %c0_i32_1 = arith.constant 0 : i32
    return %c0_i32, %c0_i32_0 : i32, i32
  }
  func.func @transform_10(%arg0: i32) -> (i32, i32) {
    %c0_i32 = arith.constant 0 : i32
    %c0_i32_0 = arith.constant 0 : i32
    %c0_i32_1 = arith.constant 0 : i32
    return %c0_i32, %c0_i32_0 : i32, i32
  }
  func.func @transform_11(%arg0: i32) -> (i32, i32) {
    %c0_i32 = arith.constant 0 : i32
    %c0_i32_0 = arith.constant 0 : i32
    %c0_i32_1 = arith.constant 0 : i32
    return %c0_i32, %c0_i32_0 : i32, i32
  }
  func.func @transform_12(%arg0: i32) -> (i32, i32) {
    %c0_i32 = arith.constant 0 : i32
    %c0_i32_0 = arith.constant 0 : i32
    %c0_i32_1 = arith.constant 0 : i32
    return %c0_i32, %c0_i32_0 : i32, i32
  }
  func.func @transform_13(%arg0: i32) -> (i32, i32, i32) {
    %c0_i32 = arith.constant 0 : i32
    %c0_i32_0 = arith.constant 0 : i32
    %c0_i32_1 = arith.constant 0 : i32
    return %arg0, %c0_i32, %c0_i32_0 : i32, i32, i32
  }
}

</mosaic_0001>

<llo_original>
// kernel: resnet_block.1
$region0: #{resnet_block.1}
  #allocation0 [shape = 'u32[]', space=smem, size = 0x4, offset = 0x4, fixed_abs, tag = 'smem constant byte address 0x4 - core index']
  #allocation1 [shape = 'u32[72,128]{1,0:T(1,128)}', space=vmem, size = 0x9000, scoped, tag = 'internal scratch']
  #allocation2 [shape = 'f32[10,10,160]{2,1,0:T(8,128)}', space=vmem, size = 0x28000, scoped, tag = 'scratch operand']
  #allocation3 [shape = 'f32[10,10,320]{2,1,0:T(8,128)}', space=vmem, size = 0x3c000, scoped, tag = 'scratch operand']
  %s0 = inlined_call_operand.vmem [shape: f32[2,64,128], index: 0, kind: input, shape index: {}]
  %s1 = inlined_call_operand.vmem [shape: bf16[9,160,256], index: 1, kind: input, shape index: {}]
  %s2 = inlined_call_operand.vmem [shape: f32[1,256], index: 2, kind: input, shape index: {}]
  %s3 = inlined_call_operand.vmem [shape: f32[1,256], index: 3, kind: input, shape index: {}]
  %s4 = inlined_call_operand.vmem [shape: f32[1,256], index: 4, kind: input, shape index: {}]
  %s5 = inlined_call_operand.vmem [shape: bf16[9,320,256], index: 5, kind: input, shape index: {}]
  %s6 = inlined_call_operand.vmem [shape: f32[1,256], index: 6, kind: input, shape index: {}]
  %s7 = inlined_call_operand.vmem [shape: f32[1,256], index: 7, kind: input, shape index: {}]
  %s8 = inlined_call_operand.vmem [shape: f32[1,256], index: 8, kind: input, shape index: {}]
  %s9 = inlined_call_operand.vmem [shape: f32[256,8], index: 9, kind: input, shape index: {}]
  %s10 = inlined_call_operand.vmem [shape: f32[8,256], index: 10, kind: input, shape index: {}]
  %s11 = inlined_call_operand.vmem [shape: bf16[128,256], index: 11, kind: input, shape index: {}]
  %s12 = inlined_call_operand.vmem [shape: f32[1,256], index: 12, kind: input, shape index: {}]
  %s13 = inlined_call_operand.vmem [shape: f32[2,64,256], index: 13, kind: output, shape index: {}]
  %s14 = sld [smem:[#allocation0]]
  $region85: #{resnet_block.1} parent=0
    _
  %s16 = ssub.s32 1, %s14
  %s17 = scalar_select 0, %s16, %s14
  loop: start=0, step=1, limit=4
  $region2: #{resnet_block.1} parent=0 // loop_pre_header
    _
  $region3: #{resnet_block.1} parent=0 // loop_header
    %s19 = sphi 0, %s23
    %p20 = scmp.ge.s32.totalorder %s19, 4
    %s29 = sphi 0, %s31
    %s32 = sphi 0, %s29
    %s33 = sphi 0, %s32
    %s49 = sphi 0, %s33
    %s53 = sphi 0, %s53
    %s55 = sphi 0, %s53
    %s56 = sphi 0, %s55
    %s70 = sphi 0, %s56
    %s74 = sphi 0, %s74
    %s76 = sphi 0, %s74
    %s77 = sphi 0, %s76
    %s91 = sphi 0, %s77
    %s95 = sphi 0, %s95
    %s97 = sphi 0, %s95
    %s98 = sphi 0, %s97
    %s112 = sphi 0, %s98
    %s116 = sphi 0, %s116
    %s118 = sphi 0, %s116
    %s119 = sphi 0, %s118
    %s133 = sphi 0, %s119
    %s137 = sphi 0, %s137
    %s139 = sphi 0, %s137
    %s140 = sphi 0, %s139
    %s154 = sphi 0, %s140
    %s158 = sphi 0, %s158
    %s160 = sphi 0, %s158
    %s161 = sphi 0, %s160
    %s175 = sphi 0, %s161
    %s179 = sphi 0, %s179
    %s181 = sphi 0, %s179
    %s182 = sphi 0, %s181
    %s196 = sphi 0, %s182
    %s200 = sphi 0, %s200
    %s202 = sphi 0, %s200
    %s203 = sphi 0, %s202
    %s217 = sphi 0, %s203
    %s221 = sphi 0, %s221
    %s223 = sphi 0, %s221
    %s224 = sphi 0, %s223
    %s238 = sphi 0, %s224
    %s242 = sphi 0, %s242
    %s244 = sphi 0, %s242
    %s245 = sphi 0, %s244
    %s259 = sphi 0, %s245
    %s263 = sphi 0, %s263
    %s265 = sphi 0, %s263
    %s266 = sphi 0, %s265
    %s280 = sphi 0, %s266
    %s284 = sphi 0, %s284
    %s286 = sphi 0, %s284
    %s287 = sphi 0, %s286
    %s301 = sphi 0, %s287
    %s307 = sphi 0, %s309
    %s310 = sphi 0, %s307
    %s311 = sphi 0, %s310
    %s327 = sphi 0, %s311
  $region4: #{resnet_block.1} parent=0 // loop_header_branch
    %22 = sbr.rel (%p20) target = $region8
  $region5: #{resnet_block.1} parent=0 // loop_body
    %s24 = ssub.s32 %s19, 1
    %s25 = ssub.s32 %s19, 2
    %s26 = sadd.s32 %s19, 1
    %s27 = ssub.s32 %s19, %s26
    %p28 = scmp.eq.s32.totalorder %s27, 0
    %s30 = sadd.s32 %s29, 1
    %s31 = scalar_select %p28, %s29, %s30
    %p34 = pneg %p28
    %p35 = scmp.eq.s32.totalorder %s19, 1
    %p36 = por %p34, %p35
    %p37 = scmp.ne.s32.totalorder %s29, %s32
    %p38 = scmp.eq.s32.totalorder %s19, 0
    %p39 = por %p37, %p38
    %p40 = scmp.ne.s32.totalorder %s29, %s32
    %p41 = scmp.eq.s32.totalorder %s24, 1
    %p42 = por %p40, %p41
    %p43 = scmp.ne.s32.totalorder %s32, %s33
    %p44 = scmp.eq.s32.totalorder %s24, 0
    %p45 = por %p43, %p44
    %p46 = scmp.ne.s32.totalorder %s32, %s33
    %p47 = scmp.eq.s32.totalorder %s25, 1
    %p48 = por %p46, %p47
    %p50 = scmp.ne.s32.totalorder %s33, %s49
    %p51 = scmp.eq.s32.totalorder %s25, 0
    %p52 = por %p50, %p51
    %s54 = sadd.s32 %s53, 1
    %p57 = scmp.eq.s32.totalorder %s19, 1
    %p58 = scmp.ne.s32.totalorder %s53, %s55
    %p59 = scmp.eq.s32.totalorder %s19, 0
    %p60 = por %p58, %p59
    %p61 = scmp.ne.s32.totalorder %s53, %s55
    %p62 = scmp.eq.s32.totalorder %s24, 1
    %p63 = por %p61, %p62
    %p64 = scmp.ne.s32.totalorder %s55, %s56
    %p65 = scmp.eq.s32.totalorder %s24, 0
    %p66 = por %p64, %p65
    %p67 = scmp.ne.s32.totalorder %s55, %s56
    %p68 = scmp.eq.s32.totalorder %s25, 1
    %p69 = por %p67, %p68
    %p71 = scmp.ne.s32.totalorder %s56, %s70
    %p72 = scmp.eq.s32.totalorder %s25, 0
    %p73 = por %p71, %p72
    %s75 = sadd.s32 %s74, 1
    %p78 = scmp.eq.s32.totalorder %s19, 1
    %p79 = scmp.ne.s32.totalorder %s74, %s76
    %p80 = scmp.eq.s32.totalorder %s19, 0
    %p81 = por %p79, %p80
    %p82 = scmp.ne.s32.totalorder %s74, %s76
    %p83 = scmp.eq.s32.totalorder %s24, 1
    %p84 = por %p82, %p83
    %p85 = scmp.ne.s32.totalorder %s76, %s77
    %p86 = scmp.eq.s32.totalorder %s24, 0
    %p87 = por %p85, %p86
    %p88 = scmp.ne.s32.totalorder %s76, %s77
    %p89 = scmp.eq.s32.totalorder %s25, 1
    %p90 = por %p88, %p89
    %p92 = scmp.ne.s32.totalorder %s77, %s91
    %p93 = scmp.eq.s32.totalorder %s25, 0
    %p94 = por %p92, %p93
    %s96 = sadd.s32 %s95, 1
    %p99 = scmp.eq.s32.totalorder %s19, 1
    %p100 = scmp.ne.s32.totalorder %s95, %s97
    %p101 = scmp.eq.s32.totalorder %s19, 0
    %p102 = por %p100, %p101
    %p103 = scmp.ne.s32.totalorder %s95, %s97
    %p104 = scmp.eq.s32.totalorder %s24, 1
    %p105 = por %p103, %p104
    %p106 = scmp.ne.s32.totalorder %s97, %s98
    %p107 = scmp.eq.s32.totalorder %s24, 0
    %p108 = por %p106, %p107
    %p109 = scmp.ne.s32.totalorder %s97, %s98
    %p110 = scmp.eq.s32.totalorder %s25, 1
    %p111 = por %p109, %p110
    %p113 = scmp.ne.s32.totalorder %s98, %s112
    %p114 = scmp.eq.s32.totalorder %s25, 0
    %p115 = por %p113, %p114
    %s117 = sadd.s32 %s116, 1
    %p120 = scmp.eq.s32.totalorder %s19, 1
    %p121 = scmp.ne.s32.totalorder %s116, %s118
    %p122 = scmp.eq.s32.totalorder %s19, 0
    %p123 = por %p121, %p122
    %p124 = scmp.ne.s32.totalorder %s116, %s118
    %p125 = scmp.eq.s32.totalorder %s24, 1
    %p126 = por %p124, %p125
    %p127 = scmp.ne.s32.totalorder %s118, %s119
    %p128 = scmp.eq.s32.totalorder %s24, 0
    %p129 = por %p127, %p128
    %p130 = scmp.ne.s32.totalorder %s118, %s119
    %p131 = scmp.eq.s32.totalorder %s25, 1
    %p132 = por %p130, %p131
    %p134 = scmp.ne.s32.totalorder %s119, %s133
    %p135 = scmp.eq.s32.totalorder %s25, 0
    %p136 = por %p134, %p135
    %s138 = sadd.s32 %s137, 1
    %p141 = scmp.eq.s32.totalorder %s19, 1
    %p142 = scmp.ne.s32.totalorder %s137, %s139
    %p143 = scmp.eq.s32.totalorder %s19, 0
    %p144 = por %p142, %p143
    %p145 = scmp.ne.s32.totalorder %s137, %s139
    %p146 = scmp.eq.s32.totalorder %s24, 1
    %p147 = por %p145, %p146
    %p148 = scmp.ne.s32.totalorder %s139, %s140
    %p149 = scmp.eq.s32.totalorder %s24, 0
    %p150 = por %p148, %p149
    %p151 = scmp.ne.s32.totalorder %s139, %s140
    %p152 = scmp.eq.s32.totalorder %s25, 1
    %p153 = por %p151, %p152
    %p155 = scmp.ne.s32.totalorder %s140, %s154
    %p156 = scmp.eq.s32.totalorder %s25, 0
    %p157 = por %p155, %p156
    %s159 = sadd.s32 %s158, 1
    %p162 = scmp.eq.s32.totalorder %s19, 1
    %p163 = scmp.ne.s32.totalorder %s158, %s160
    %p164 = scmp.eq.s32.totalorder %s19, 0
    %p165 = por %p163, %p164
    %p166 = scmp.ne.s32.totalorder %s158, %s160
    %p167 = scmp.eq.s32.totalorder %s24, 1
    %p168 = por %p166, %p167
    %p169 = scmp.ne.s32.totalorder %s160, %s161
    %p170 = scmp.eq.s32.totalorder %s24, 0
    %p171 = por %p169, %p170
    %p172 = scmp.ne.s32.totalorder %s160, %s161
    %p173 = scmp.eq.s32.totalorder %s25, 1
    %p174 = por %p172, %p173
    %p176 = scmp.ne.s32.totalorder %s161, %s175
    %p177 = scmp.eq.s32.totalorder %s25, 0
    %p178 = por %p176, %p177
    %s180 = sadd.s32 %s179, 1
    %p183 = scmp.eq.s32.totalorder %s19, 1
    %p184 = scmp.ne.s32.totalorder %s179, %s181
    %p185 = scmp.eq.s32.totalorder %s19, 0
    %p186 = por %p184, %p185
    %p187 = scmp.ne.s32.totalorder %s179, %s181
    %p188 = scmp.eq.s32.totalorder %s24, 1
    %p189 = por %p187, %p188
    %p190 = scmp.ne.s32.totalorder %s181, %s182
    %p191 = scmp.eq.s32.totalorder %s24, 0
    %p192 = por %p190, %p191
    %p193 = scmp.ne.s32.totalorder %s181, %s182
    %p194 = scmp.eq.s32.totalorder %s25, 1
    %p195 = por %p193, %p194
    %p197 = scmp.ne.s32.totalorder %s182, %s196
    %p198 = scmp.eq.s32.totalorder %s25, 0
    %p199 = por %p197, %p198
    %s201 = sadd.s32 %s200, 1
    %p204 = scmp.eq.s32.totalorder %s19, 1
    %p205 = scmp.ne.s32.totalorder %s200, %s202
    %p206 = scmp.eq.s32.totalorder %s19, 0
    %p207 = por %p205, %p206
    %p208 = scmp.ne.s32.totalorder %s200, %s202
    %p209 = scmp.eq.s32.totalorder %s24, 1
    %p210 = por %p208, %p209
    %p211 = scmp.ne.s32.totalorder %s202, %s203
    %p212 = scmp.eq.s32.totalorder %s24, 0
    %p213 = por %p211, %p212
    %p214 = scmp.ne.s32.totalorder %s202, %s203
    %p215 = scmp.eq.s32.totalorder %s25, 1
    %p216 = por %p214, %p215
    %p218 = scmp.ne.s32.totalorder %s203, %s217
    %p219 = scmp.eq.s32.totalorder %s25, 0
    %p220 = por %p218, %p219
    %s222 = sadd.s32 %s221, 1
    %p225 = scmp.eq.s32.totalorder %s19, 1
    %p226 = scmp.ne.s32.totalorder %s221, %s223
    %p227 = scmp.eq.s32.totalorder %s19, 0
    %p228 = por %p226, %p227
    %p229 = scmp.ne.s32.totalorder %s221, %s223
    %p230 = scmp.eq.s32.totalorder %s24, 1
    %p231 = por %p229, %p230
    %p232 = scmp.ne.s32.totalorder %s223, %s224
    %p233 = scmp.eq.s32.totalorder %s24, 0
    %p234 = por %p232, %p233
    %p235 = scmp.ne.s32.totalorder %s223, %s224
    %p236 = scmp.eq.s32.totalorder %s25, 1
    %p237 = por %p235, %p236
    %p239 = scmp.ne.s32.totalorder %s224, %s238
    %p240 = scmp.eq.s32.totalorder %s25, 0
    %p241 = por %p239, %p240
    %s243 = sadd.s32 %s242, 1
    %p246 = scmp.eq.s32.totalorder %s19, 1
    %p247 = scmp.ne.s32.totalorder %s242, %s244
    %p248 = scmp.eq.s32.totalorder %s19, 0
    %p249 = por %p247, %p248
    %p250 = scmp.ne.s32.totalorder %s242, %s244
    %p251 = scmp.eq.s32.totalorder %s24, 1
    %p252 = por %p250, %p251
    %p253 = scmp.ne.s32.totalorder %s244, %s245
    %p254 = scmp.eq.s32.totalorder %s24, 0
    %p255 = por %p253, %p254
    %p256 = scmp.ne.s32.totalorder %s244, %s245
    %p257 = scmp.eq.s32.totalorder %s25, 1
    %p258 = por %p256, %p257
    %p260 = scmp.ne.s32.totalorder %s245, %s259
    %p261 = scmp.eq.s32.totalorder %s25, 0
    %p262 = por %p260, %p261
    %s264 = sadd.s32 %s263, 1
    %p267 = scmp.eq.s32.totalorder %s19, 1
    %p268 = scmp.ne.s32.totalorder %s263, %s265
    %p269 = scmp.eq.s32.totalorder %s19, 0
    %p270 = por %p268, %p269
    %p271 = scmp.ne.s32.totalorder %s263, %s265
    %p272 = scmp.eq.s32.totalorder %s24, 1
    %p273 = por %p271, %p272
    %p274 = scmp.ne.s32.totalorder %s265, %s266
    %p275 = scmp.eq.s32.totalorder %s24, 0
    %p276 = por %p274, %p275
    %p277 = scmp.ne.s32.totalorder %s265, %s266
    %p278 = scmp.eq.s32.totalorder %s25, 1
    %p279 = por %p277, %p278
    %p281 = scmp.ne.s32.totalorder %s266, %s280
    %p282 = scmp.eq.s32.totalorder %s25, 0
    %p283 = por %p281, %p282
    %s285 = sadd.s32 %s284, 1
    %p288 = scmp.eq.s32.totalorder %s19, 1
    %p289 = scmp.ne.s32.totalorder %s284, %s286
    %p290 = scmp.eq.s32.totalorder %s19, 0
    %p291 = por %p289, %p290
    %p292 = scmp.ne.s32.totalorder %s284, %s286
    %p293 = scmp.eq.s32.totalorder %s24, 1
    %p294 = por %p292, %p293
    %p295 = scmp.ne.s32.totalorder %s286, %s287
    %p296 = scmp.eq.s32.totalorder %s24, 0
    %p297 = por %p295, %p296
    %p298 = scmp.ne.s32.totalorder %s286, %s287
    %p299 = scmp.eq.s32.totalorder %s25, 1
    %p300 = por %p298, %p299
    %p302 = scmp.ne.s32.totalorder %s287, %s301
    %p303 = scmp.eq.s32.totalorder %s25, 0
    %p304 = por %p302, %p303
    %s305 = ssub.s32 %s19, %s26
    %p306 = scmp.eq.s32.totalorder %s305, 0
    %s308 = sadd.s32 %s307, 1
    %s309 = scalar_select %p306, %s307, %s308
    %p312 = pneg %p306
    %p313 = scmp.eq.s32.totalorder %s19, 1
    %p314 = por %p312, %p313
    %p315 = scmp.ne.s32.totalorder %s307, %s310
    %p316 = scmp.eq.s32.totalorder %s19, 0
    %p317 = por %p315, %p316
    %p318 = scmp.ne.s32.totalorder %s307, %s310
    %p319 = scmp.eq.s32.totalorder %s24, 1
    %p320 = por %p318, %p319
    %p321 = scmp.ne.s32.totalorder %s310, %s311
    %p322 = scmp.eq.s32.totalorder %s24, 0
    %p323 = por %p321, %p322
    %p324 = scmp.ne.s32.totalorder %s310, %s311
    %p325 = scmp.eq.s32.totalorder %s25, 1
    %p326 = por %p324, %p325
    %p328 = scmp.ne.s32.totalorder %s311, %s327
    %p329 = scmp.eq.s32.totalorder %s25, 0
    %p330 = por %p328, %p329
    %p331 = scmp.le.s32.totalorder 1, %s19
    %p332 = scmp.lt.s32.totalorder %s19, 3
    %p333 = pnand %p331, %p332
    %p334 = pneg %p333
    // Predicated region
    $region9: #{resnet_block.1} parent=5 // pred_check
      _
    $region10: #{resnet_block.1} parent=5 // pred_check_branch
      %336 = sbr.rel (%p333) target = $region12
    $region11: #{resnet_block.1} parent=5 // pred_region
      %s337 = ssub.s32 %s19, 1
      // Predicated region
      $region13: #{resnet_block.1} parent=11 // pred_check
        %p338 = pneg %p66
      $region14: #{resnet_block.1} parent=11 // pred_check_branch
        %340 = sbr.rel (%p338) target = $region16
      $region15: #{resnet_block.1} parent=11 // pred_region
        _
      $region16: #{resnet_block.1} parent=11 // pred_fallthru
        _
      // Predicated region
      $region17: #{resnet_block.1} parent=11 // pred_check
        %p341 = pneg %p87
      $region18: #{resnet_block.1} parent=11 // pred_check_branch
        %343 = sbr.rel (%p341) target = $region20
      $region19: #{resnet_block.1} parent=11 // pred_region
        _
      $region20: #{resnet_block.1} parent=11 // pred_fallthru
        _
      // Predicated region
      $region21: #{resnet_block.1} parent=11 // pred_check
        %p344 = pneg %p108
      $region22: #{resnet_block.1} parent=11 // pred_check_branch
        %346 = sbr.rel (%p344) target = $region24
      $region23: #{resnet_block.1} parent=11 // pred_region
        _
      $region24: #{resnet_block.1} parent=11 // pred_fallthru
        _
      // Predicated region
      $region25: #{resnet_block.1} parent=11 // pred_check
        %p347 = pneg %p129
      $region26: #{resnet_block.1} parent=11 // pred_check_branch
        %349 = sbr.rel (%p347) target = $region28
      $region27: #{resnet_block.1} parent=11 // pred_region
        _
      $region28: #{resnet_block.1} parent=11 // pred_fallthru
        _
      // Predicated region
      $region29: #{resnet_block.1} parent=11 // pred_check
        %p350 = pneg %p150
      $region30: #{resnet_block.1} parent=11 // pred_check_branch
        %352 = sbr.rel (%p350) target = $region32
      $region31: #{resnet_block.1} parent=11 // pred_region
        _
      $region32: #{resnet_block.1} parent=11 // pred_fallthru
        _
      // Predicated region
      $region33: #{resnet_block.1} parent=11 // pred_check
        %p353 = pneg %p171
      $region34: #{resnet_block.1} parent=11 // pred_check_branch
        %355 = sbr.rel (%p353) target = $region36
      $region35: #{resnet_block.1} parent=11 // pred_region
        _
      $region36: #{resnet_block.1} parent=11 // pred_fallthru
        _
      // Predicated region
      $region37: #{resnet_block.1} parent=11 // pred_check
        %p356 = pneg %p192
      $region38: #{resnet_block.1} parent=11 // pred_check_branch
        %358 = sbr.rel (%p356) target = $region40
      $region39: #{resnet_block.1} parent=11 // pred_region
        _
      $region40: #{resnet_block.1} parent=11 // pred_fallthru
        _
      // Predicated region
      $region41: #{resnet_block.1} parent=11 // pred_check
        %p359 = pneg %p213
      $region42: #{resnet_block.1} parent=11 // pred_check_branch
        %361 = sbr.rel (%p359) target = $region44
      $region43: #{resnet_block.1} parent=11 // pred_region
        _
      $region44: #{resnet_block.1} parent=11 // pred_fallthru
        _
      // Predicated region
      $region45: #{resnet_block.1} parent=11 // pred_check
        %p362 = pneg %p234
      $region46: #{resnet_block.1} parent=11 // pred_check_branch
        %364 = sbr.rel (%p362) target = $region48
      $region47: #{resnet_block.1} parent=11 // pred_region
        _
      $region48: #{resnet_block.1} parent=11 // pred_fallthru
        _
      // Predicated region
      $region49: #{resnet_block.1} parent=11 // pred_check
        %p365 = pneg %p255
      $region50: #{resnet_block.1} parent=11 // pred_check_branch
        %367 = sbr.rel (%p365) target = $region52
      $region51: #{resnet_block.1} parent=11 // pred_region
        _
      $region52: #{resnet_block.1} parent=11 // pred_fallthru
        _
      // Predicated region
      $region53: #{resnet_block.1} parent=11 // pred_check
        %p368 = pneg %p276
      $region54: #{resnet_block.1} parent=11 // pred_check_branch
        %370 = sbr.rel (%p368) target = $region56
      $region55: #{resnet_block.1} parent=11 // pred_region
        _
      $region56: #{resnet_block.1} parent=11 // pred_fallthru
        _
      // Predicated region
      $region57: #{resnet_block.1} parent=11 // pred_check
        %p371 = pneg %p297
      $region58: #{resnet_block.1} parent=11 // pred_check_branch
        %373 = sbr.rel (%p371) target = $region60
      $region59: #{resnet_block.1} parent=11 // pred_region
        _
      $region60: #{resnet_block.1} parent=11 // pred_fallthru
        _
    $region12: #{resnet_block.1} parent=5 // pred_fallthru
      _
    %p374 = scmp.lt.s32.totalorder %s19, 2
    // Predicated region
    $region61: #{resnet_block.1} parent=5 // pred_check
      %p375 = pneg %p374
    $region62: #{resnet_block.1} parent=5 // pred_check_branch
      %377 = sbr.rel (%p375) target = $region64
    $region63: #{resnet_block.1} parent=5 // pred_region
      // Predicated region
      $region65: #{resnet_block.1} parent=63 // pred_check
        %p378 = pneg %p39
      $region66: #{resnet_block.1} parent=63 // pred_check_branch
        %380 = sbr.rel (%p378) target = $region68
      $region67: #{resnet_block.1} parent=63 // pred_region
        %p381 = scmp.lt.s32.totalorder %s19, 1
        %s382 = scalar_select %p381, %s19, 1
        %s383 = smul.addr %s382, 8
        %s384 = smul.addr %s383, 8
        %s385 = scalar_lea.vmem %s0, %s384
      $region68: #{resnet_block.1} parent=63 // pred_fallthru
        _
    $region64: #{resnet_block.1} parent=5 // pred_fallthru
      _
    %p386 = scmp.le.s32.totalorder 1, %s19
    %p387 = scmp.lt.s32.totalorder %s19, 3
    %p388 = pnand %p386, %p387
    %p389 = pneg %p388
    // Predicated region
    $region69: #{resnet_block.1} parent=5 // pred_check
      _
    $region70: #{resnet_block.1} parent=5 // pred_check_branch
      %391 = sbr.rel (%p388) target = $region72
    $region71: #{resnet_block.1} parent=5 // pred_region
      %s392 = ssub.s32 %s19, 1
      %p393 = scmp.lt.s32.totalorder %s24, 1
      %s394 = scalar_select %p393, %s24, 1
      %s395 = smul.addr %s394, 8
      %s396 = smul.addr %s395, 8
      %s397 = scalar_lea.vmem %s0, %s396
      %p398 = pneg %p45
      %p399 = pneg %p42
      %p400 = pneg %p66
      %p401 = pneg %p63
      %p402 = pneg %p87
      %p403 = pneg %p84
      %p404 = pneg %p108
      %p405 = pneg %p105
      %p406 = pneg %p129
      %p407 = pneg %p126
      %p408 = pneg %p150
      %p409 = pneg %p147
      %p410 = pneg %p171
      %p411 = pneg %p168
      %p412 = pneg %p192
      %p413 = pneg %p189
      %p414 = pneg %p213
      %p415 = pneg %p210
      %p416 = pneg %p234
      %p417 = pneg %p231
      %p418 = pneg %p255
      %p419 = pneg %p252
      %p420 = pneg %p276
      %p421 = pneg %p273
      %p422 = pneg %p297
      %p423 = pneg %p294
      %p424 = pneg %p323
      %p425 = pneg %p320
      %p426 = scmp.lt.s32.totalorder %s24, 1
      %s427 = scalar_select %p426, %s24, 1
      %s428 = smul.addr %s427, 16
      %s429 = smul.addr %s428, 8
      %s430 = scalar_lea.vmem %s13, %s429
      %p431 = scmp.lt.s32.totalorder %s24, 1
      %s432 = scalar_select %p431, %s24, 1
      %s433 = smul.addr %s432, 8
      %s434 = smul.addr %s433, 8
      %s435 = scalar_lea.vmem %s0, %s434
      %p436 = scmp.lt.s32.totalorder %s24, 1
      %s437 = scalar_select %p436, %s24, 1
      %s438 = smul.addr %s437, 16
      %s439 = smul.addr %s438, 8
      %s440 = scalar_lea.vmem %s13, %s439
      %442 = vst [vmem:[#allocation2] sm:$0xff] 0.0
      %vm443 = vcmask 261120
      %444 = vst.msk [vmem:[#allocation2 + $0x8] sm:$0xff] %vm443, 0.0
      %445 = vst [vmem:[#allocation2 + $0x10] sm:$0x3] 0.0
      %vm446 = vcmask 254976
      %447 = vst.msk [vmem:[#allocation2 + $0x18] sm:$0x3] %vm446, 0.0
      %448 = vst [vmem:[#allocation2 + $0x20] sm:$0xff] 0.0
      %449 = vst.msk [vmem:[#allocation2 + $0x28] sm:$0xff] %vm443, 0.0
      %450 = vst [vmem:[#allocation2 + $0x30] sm:$0x3] 0.0
      %451 = vst.msk [vmem:[#allocation2 + $0x38] sm:$0x3] %vm446, 0.0
      %452 = vst [vmem:[#allocation2 + $0x40] sm:$0xff] 0.0
      %453 = vst.msk [vmem:[#allocation2 + $0x48] sm:$0xff] %vm443, 0.0
      %454 = vst [vmem:[#allocation2 + $0x50] sm:$0x3] 0.0
      %455 = vst.msk [vmem:[#allocation2 + $0x58] sm:$0x3] %vm446, 0.0
      %456 = vst [vmem:[#allocation2 + $0x60] sm:$0xff] 0.0
      %457 = vst.msk [vmem:[#allocation2 + $0x68] sm:$0xff] %vm443, 0.0
      %458 = vst [vmem:[#allocation2 + $0x70] sm:$0x3] 0.0
      %459 = vst.msk [vmem:[#allocation2 + $0x78] sm:$0x3] %vm446, 0.0
      %460 = vst [vmem:[#allocation2 + $0x80] sm:$0xff] 0.0
      %461 = vst.msk [vmem:[#allocation2 + $0x88] sm:$0xff] %vm443, 0.0
      %462 = vst [vmem:[#allocation2 + $0x90] sm:$0x3] 0.0
      %463 = vst.msk [vmem:[#allocation2 + $0x98] sm:$0x3] %vm446, 0.0
      %464 = vst [vmem:[#allocation2 + $0xa0] sm:$0xff] 0.0
      %465 = vst.msk [vmem:[#allocation2 + $0xa8] sm:$0xff] %vm443, 0.0
      %466 = vst [vmem:[#allocation2 + $0xb0] sm:$0x3] 0.0
      %467 = vst.msk [vmem:[#allocation2 + $0xb8] sm:$0x3] %vm446, 0.0
      %468 = vst [vmem:[#allocation2 + $0xc0] sm:$0xff] 0.0
      %469 = vst.msk [vmem:[#allocation2 + $0xc8] sm:$0xff] %vm443, 0.0
      %470 = vst [vmem:[#allocation2 + $0xd0] sm:$0x3] 0.0
      %471 = vst.msk [vmem:[#allocation2 + $0xd8] sm:$0x3] %vm446, 0.0
      %472 = vst [vmem:[#allocation2 + $0xe0] sm:$0xff] 0.0
      %473 = vst.msk [vmem:[#allocation2 + $0xe8] sm:$0xff] %vm443, 0.0
      %474 = vst [vmem:[#allocation2 + $0xf0] sm:$0x3] 0.0
      %475 = vst.msk [vmem:[#allocation2 + $0xf8] sm:$0x3] %vm446, 0.0
      %476 = vst [vmem:[#allocation2 + $0x100] sm:$0xff] 0.0
      %477 = vst.msk [vmem:[#allocation2 + $0x108] sm:$0xff] %vm443, 0.0
      %478 = vst [vmem:[#allocation2 + $0x110] sm:$0x3] 0.0
      %479 = vst.msk [vmem:[#allocation2 + $0x118] sm:$0x3] %vm446, 0.0
      %480 = vst [vmem:[#allocation2 + $0x120] sm:$0xff] 0.0
      %481 = vst.msk [vmem:[#allocation2 + $0x128] sm:$0xff] %vm443, 0.0
      %482 = vst [vmem:[#allocation2 + $0x130] sm:$0x3] 0.0
      %483 = vst.msk [vmem:[#allocation2 + $0x138] sm:$0x3] %vm446, 0.0
      %484 = vst [vmem:[#allocation3] sm:$0xff] 0.0
      %485 = vst [vmem:[#allocation3 + $0x8] sm:$0xff] 0.0
      %vm486 = vcmask 523264
      %487 = vst.msk [vmem:[#allocation3 + $0x10] sm:$0xff] %vm486, 0.0
      %488 = vst [vmem:[#allocation3 + $0x18] sm:$0x3] 0.0
      %489 = vst [vmem:[#allocation3 + $0x20] sm:$0x3] 0.0
      %vm490 = vcmask 517120
      %491 = vst.msk [vmem:[#allocation3 + $0x28] sm:$0x3] %vm490, 0.0
      %492 = vst [vmem:[#allocation3 + $0x30] sm:$0xff] 0.0
      %493 = vst [vmem:[#allocation3 + $0x38] sm:$0xff] 0.0
      %494 = vst.msk [vmem:[#allocation3 + $0x40] sm:$0xff] %vm486, 0.0
      %495 = vst [vmem:[#allocation3 + $0x48] sm:$0x3] 0.0
      %496 = vst [vmem:[#allocation3 + $0x50] sm:$0x3] 0.0
      %497 = vst.msk [vmem:[#allocation3 + $0x58] sm:$0x3] %vm490, 0.0
      %498 = vst [vmem:[#allocation3 + $0x60] sm:$0xff] 0.0
      %499 = vst [vmem:[#allocation3 + $0x68] sm:$0xff] 0.0
      %500 = vst.msk [vmem:[#allocation3 + $0x70] sm:$0xff] %vm486, 0.0
      %501 = vst [vmem:[#allocation3 + $0x78] sm:$0x3] 0.0
      %502 = vst [vmem:[#allocation3 + $0x80] sm:$0x3] 0.0
      %503 = vst.msk [vmem:[#allocation3 + $0x88] sm:$0x3] %vm490, 0.0
      %504 = vst [vmem:[#allocation3 + $0x90] sm:$0xff] 0.0
      %505 = vst [vmem:[#allocation3 + $0x98] sm:$0xff] 0.0
      %506 = vst.msk [vmem:[#allocation3 + $0xa0] sm:$0xff] %vm486, 0.0
      %507 = vst [vmem:[#allocation3 + $0xa8] sm:$0x3] 0.0
      %508 = vst [vmem:[#allocation3 + $0xb0] sm:$0x3] 0.0
      %509 = vst.msk [vmem:[#allocation3 + $0xb8] sm:$0x3] %vm490, 0.0
      %510 = vst [vmem:[#allocation3 + $0xc0] sm:$0xff] 0.0
      %511 = vst [vmem:[#allocation3 + $0xc8] sm:$0xff] 0.0
      %512 = vst.msk [vmem:[#allocation3 + $0xd0] sm:$0xff] %vm486, 0.0
      %513 = vst [vmem:[#allocation3 + $0xd8] sm:$0x3] 0.0
      %514 = vst [vmem:[#allocation3 + $0xe0] sm:$0x3] 0.0
      %515 = vst.msk [vmem:[#allocation3 + $0xe8] sm:$0x3] %vm490, 0.0
      %516 = vst [vmem:[#allocation3 + $0xf0] sm:$0xff] 0.0
      %517 = vst [vmem:[#allocation3 + $0xf8] sm:$0xff] 0.0
      %518 = vst.msk [vmem:[#allocation3 + $0x100] sm:$0xff] %vm486, 0.0
      %519 = vst [vmem:[#allocation3 + $0x108] sm:$0x3] 0.0
      %520 = vst [vmem:[#allocation3 + $0x110] sm:$0x3] 0.0
      %521 = vst.msk [vmem:[#allocation3 + $0x118] sm:$0x3] %vm490, 0.0
      %522 = vst [vmem:[#allocation3 + $0x120] sm:$0xff] 0.0
      %523 = vst [vmem:[#allocation3 + $0x128] sm:$0xff] 0.0
      %524 = vst.msk [vmem:[#allocation3 + $0x130] sm:$0xff] %vm486, 0.0
      %525 = vst [vmem:[#allocation3 + $0x138] sm:$0x3] 0.0
      %526 = vst [vmem:[#allocation3 + $0x140] sm:$0x3] 0.0
      %527 = vst.msk [vmem:[#allocation3 + $0x148] sm:$0x3] %vm490, 0.0
      %528 = vst [vmem:[#allocation3 + $0x150] sm:$0xff] 0.0
      %529 = vst [vmem:[#allocation3 + $0x158] sm:$0xff] 0.0
      %530 = vst.msk [vmem:[#allocation3 + $0x160] sm:$0xff] %vm486, 0.0
      %531 = vst [vmem:[#allocation3 + $0x168] sm:$0x3] 0.0
      %532 = vst [vmem:[#allocation3 + $0x170] sm:$0x3] 0.0
      %533 = vst.msk [vmem:[#allocation3 + $0x178] sm:$0x3] %vm490, 0.0
      %534 = vst [vmem:[#allocation3 + $0x180] sm:$0xff] 0.0
      %535 = vst [vmem:[#allocation3 + $0x188] sm:$0xff] 0.0
      %536 = vst.msk [vmem:[#allocation3 + $0x190] sm:$0xff] %vm486, 0.0
      %537 = vst [vmem:[#allocation3 + $0x198] sm:$0x3] 0.0
      %538 = vst [vmem:[#allocation3 + $0x1a0] sm:$0x3] 0.0
      %539 = vst.msk [vmem:[#allocation3 + $0x1a8] sm:$0x3] %vm490, 0.0
      %540 = vst [vmem:[#allocation3 + $0x1b0] sm:$0xff] 0.0
      %541 = vst [vmem:[#allocation3 + $0x1b8] sm:$0xff] 0.0
      %542 = vst.msk [vmem:[#allocation3 + $0x1c0] sm:$0xff] %vm486, 0.0
      %543 = vst [vmem:[#allocation3 + $0x1c8] sm:$0x3] 0.0
      %544 = vst [vmem:[#allocation3 + $0x1d0] sm:$0x3] 0.0
      %545 = vst.msk [vmem:[#allocation3 + $0x1d8] sm:$0x3] %vm490, 0.0
      %v546 = vld [vmem:[%s435] sm:$0xff]
      %v547 = vld [vmem:[%s435 + $0x8] sm:$0xff]
      %v548 = vld [vmem:[%s435 + $0x10] sm:$0xff]
      %v549 = vld [vmem:[%s435 + $0x18] sm:$0xff]
      %v550 = vld [vmem:[%s435 + $0x20] sm:$0xff]
      %v551 = vld [vmem:[%s435 + $0x28] sm:$0xff]
      %v552 = vld [vmem:[%s435 + $0x30] sm:$0xff]
      %v553 = vld [vmem:[%s435 + $0x38] sm:$0xff]
      %v562 = vrot.slane %v546, 7
      %v563 = vrot.slane %v547, 7
      %v564 = vrot.slane %v548, 7
      %v565 = vrot.slane %v549, 7
      %v566 = vrot.slane %v550, 7
      %v567 = vrot.slane %v551, 7
      %v568 = vrot.slane %v552, 7
      %v569 = vrot.slane %v553, 7
      %570 = vrot.lane.b32.xlu0 %v562, 16
      %v571 = vpop.permute.xlu0 %570
      %572 = vrot.lane.b32.xlu0 %v563, 16
      %v573 = vpop.permute.xlu0 %572
      %574 = vrot.lane.b32.xlu0 %v564, 16
      %v575 = vpop.permute.xlu0 %574
      %576 = vrot.lane.b32.xlu0 %v565, 16
      %v577 = vpop.permute.xlu0 %576
      %578 = vrot.lane.b32.xlu0 %v566, 16
      %v579 = vpop.permute.xlu0 %578
      %580 = vrot.lane.b32.xlu0 %v567, 16
      %v581 = vpop.permute.xlu0 %580
      %582 = vrot.lane.b32.xlu0 %v568, 16
      %v583 = vpop.permute.xlu0 %582
      %584 = vrot.lane.b32.xlu0 %v569, 16
      %v585 = vpop.permute.xlu0 %584
      %s594 = scalar_lea.vmem [#allocation2], 32
      %vm595 = vcmask 1047681
      %596 = vst.msk [vmem:[%s594] sm:$0xfe] %vm595, %v571
      %vm597 = vcmask 130049
      %598 = vst.msk [vmem:[%s594 + $0x8] sm:$0xfe] %vm597, %v571
      %vm599 = vcmask 1040512
      %600 = vst.msk [vmem:[%s594 + $0x10] sm:$0x1] %vm599, %v571
      %vm601 = vcmask 122880
      %602 = vst.msk [vmem:[%s594 + $0x18] sm:$0x1] %vm601, %v571
      %603 = vst.msk [vmem:[%s594 + $0x20] sm:$0xfe] %vm595, %v573
      %604 = vst.msk [vmem:[%s594 + $0x28] sm:$0xfe] %vm597, %v573
      %605 = vst.msk [vmem:[%s594 + $0x30] sm:$0x1] %vm599, %v573
      %606 = vst.msk [vmem:[%s594 + $0x38] sm:$0x1] %vm601, %v573
      %607 = vst.msk [vmem:[%s594 + $0x40] sm:$0xfe] %vm595, %v575
      %608 = vst.msk [vmem:[%s594 + $0x48] sm:$0xfe] %vm597, %v575
      %609 = vst.msk [vmem:[%s594 + $0x50] sm:$0x1] %vm599, %v575
      %610 = vst.msk [vmem:[%s594 + $0x58] sm:$0x1] %vm601, %v575
      %611 = vst.msk [vmem:[%s594 + $0x60] sm:$0xfe] %vm595, %v577
      %612 = vst.msk [vmem:[%s594 + $0x68] sm:$0xfe] %vm597, %v577
      %613 = vst.msk [vmem:[%s594 + $0x70] sm:$0x1] %vm599, %v577
      %614 = vst.msk [vmem:[%s594 + $0x78] sm:$0x1] %vm601, %v577
      %615 = vst.msk [vmem:[%s594 + $0x80] sm:$0xfe] %vm595, %v579
      %616 = vst.msk [vmem:[%s594 + $0x88] sm:$0xfe] %vm597, %v579
      %617 = vst.msk [vmem:[%s594 + $0x90] sm:$0x1] %vm599, %v579
      %618 = vst.msk [vmem:[%s594 + $0x98] sm:$0x1] %vm601, %v579
      %619 = vst.msk [vmem:[%s594 + $0xa0] sm:$0xfe] %vm595, %v581
      %620 = vst.msk [vmem:[%s594 + $0xa8] sm:$0xfe] %vm597, %v581
      %621 = vst.msk [vmem:[%s594 + $0xb0] sm:$0x1] %vm599, %v581
      %622 = vst.msk [vmem:[%s594 + $0xb8] sm:$0x1] %vm601, %v581
      %623 = vst.msk [vmem:[%s594 + $0xc0] sm:$0xfe] %vm595, %v583
      %624 = vst.msk [vmem:[%s594 + $0xc8] sm:$0xfe] %vm597, %v583
      %625 = vst.msk [vmem:[%s594 + $0xd0] sm:$0x1] %vm599, %v583
      %626 = vst.msk [vmem:[%s594 + $0xd8] sm:$0x1] %vm601, %v583
      %627 = vst.msk [vmem:[%s594 + $0xe0] sm:$0xfe] %vm595, %v585
      %628 = vst.msk [vmem:[%s594 + $0xe8] sm:$0xfe] %vm597, %v585
      %629 = vst.msk [vmem:[%s594 + $0xf0] sm:$0x1] %vm599, %v585
      %630 = vst.msk [vmem:[%s594 + $0xf8] sm:$0x1] %vm601, %v585
      %v631 = vld [vmem:[%s9] sm:$0xff]
      %v632 = vld [vmem:[%s9 + $0x8] sm:$0xff]
      %v633 = vld [vmem:[%s9 + $0x10] sm:$0xff]
      %v634 = vld [vmem:[%s9 + $0x18] sm:$0xff]
      %v635 = vld [vmem:[%s9 + $0x20] sm:$0xff]
      %v636 = vld [vmem:[%s9 + $0x28] sm:$0xff]
      %v637 = vld [vmem:[%s9 + $0x30] sm:$0xff]
      %v638 = vld [vmem:[%s9 + $0x38] sm:$0xff]
      %v639 = vld [vmem:[%s9 + $0x40] sm:$0xff]
      %v640 = vld [vmem:[%s9 + $0x48] sm:$0xff]
      %v641 = vld [vmem:[%s9 + $0x50] sm:$0xff]
      %v642 = vld [vmem:[%s9 + $0x58] sm:$0xff]
      %v643 = vld [vmem:[%s9 + $0x60] sm:$0xff]
      %v644 = vld [vmem:[%s9 + $0x68] sm:$0xff]
      %v645 = vld [vmem:[%s9 + $0x70] sm:$0xff]
      %v646 = vld [vmem:[%s9 + $0x78] sm:$0xff]
      %v647 = vld [vmem:[%s9 + $0x80] sm:$0xff]
      %v648 = vld [vmem:[%s9 + $0x88] sm:$0xff]
      %v649 = vld [vmem:[%s9 + $0x90] sm:$0xff]
      %v650 = vld [vmem:[%s9 + $0x98] sm:$0xff]
      %v651 = vld [vmem:[%s9 + $0xa0] sm:$0xff]
      %v652 = vld [vmem:[%s9 + $0xa8] sm:$0xff]
      %v653 = vld [vmem:[%s9 + $0xb0] sm:$0xff]
      %v654 = vld [vmem:[%s9 + $0xb8] sm:$0xff]
      %v655 = vld [vmem:[%s9 + $0xc0] sm:$0xff]
      %v656 = vld [vmem:[%s9 + $0xc8] sm:$0xff]
      %v657 = vld [vmem:[%s9 + $0xd0] sm:$0xff]
      %v658 = vld [vmem:[%s9 + $0xd8] sm:$0xff]
      %v659 = vld [vmem:[%s9 + $0xe0] sm:$0xff]
      %v660 = vld [vmem:[%s9 + $0xe8] sm:$0xff]
      %v661 = vld [vmem:[%s9 + $0xf0] sm:$0xff]
      %v662 = vld [vmem:[%s9 + $0xf8] sm:$0xff]
      %v663 = vld [vmem:[%s10] sm:$0xff]
      %v664 = vld [vmem:[%s10 + $0x8] sm:$0xff]
      %v665 = vld [vmem:[%s2] sm:$0x3]
      %v666 = vld [vmem:[%s3] sm:$0x3]
      %v667 = vld [vmem:[%s4] sm:$0x3]
      %v668 = vld [vmem:[#allocation2] sm:$0xff]
      %v669 = vld [vmem:[#allocation2 + $0x8] sm:$0xff]
      %v670 = vld [vmem:[#allocation2 + $0x20] sm:$0xff]
      %v671 = vld [vmem:[#allocation2 + $0x28] sm:$0xff]
      %v672 = vld [vmem:[#allocation2 + $0x40] sm:$0xff]
      %v673 = vld [vmem:[#allocation2 + $0x48] sm:$0xff]
      %v674 = vld [vmem:[#allocation2 + $0x60] sm:$0xff]
      %v675 = vld [vmem:[#allocation2 + $0x68] sm:$0xff]
      %v676 = vld [vmem:[#allocation2 + $0x80] sm:$0xff]
      %v677 = vld [vmem:[#allocation2 + $0x88] sm:$0xff]
      %v678 = vld [vmem:[#allocation2 + $0xa0] sm:$0xff]
      %v679 = vld [vmem:[#allocation2 + $0xa8] sm:$0xff]
      %v680 = vld [vmem:[#allocation2 + $0xc0] sm:$0xff]
      %v681 = vld [vmem:[#allocation2 + $0xc8] sm:$0xff]
      %v682 = vld [vmem:[#allocation2 + $0xe0] sm:$0xff]
      %v683 = vld [vmem:[#allocation2 + $0xe8] sm:$0xff]
      %v684 = vpack.c.bf16 %v669, %v668
      %v685 = vpack.c.bf16 %v671, %v670
      %v686 = vpack.c.bf16 %v673, %v672
      %v687 = vpack.c.bf16 %v675, %v674
      %v688 = vpack.c.bf16 %v677, %v676
      %v689 = vpack.c.bf16 %v679, %v678
      %v690 = vpack.c.bf16 %v681, %v680
      %v691 = vpack.c.bf16 %v683, %v682
      %v692 = vld [vmem:[%s1] sm:$0xff]
      %v693 = vld [vmem:[%s1 + $0x8] sm:$0xff]
      %v694 = vld [vmem:[%s1 + $0x10] sm:$0xff]
      %v695 = vld [vmem:[%s1 + $0x18] sm:$0xff]
      %v696 = vld [vmem:[%s1 + $0x20] sm:$0xff]
      %v697 = vld [vmem:[%s1 + $0x28] sm:$0xff]
      %v698 = vld [vmem:[%s1 + $0x30] sm:$0xff]
      %v699 = vld [vmem:[%s1 + $0x38] sm:$0xff]
      %v700 = vld [vmem:[%s1 + $0x40] sm:$0xff]
      %v701 = vld [vmem:[%s1 + $0x48] sm:$0xff]
      %v702 = vld [vmem:[%s1 + $0x50] sm:$0xff]
      %v703 = vld [vmem:[%s1 + $0x58] sm:$0xff]
      %v704 = vld [vmem:[%s1 + $0x60] sm:$0xff]
      %v705 = vld [vmem:[%s1 + $0x68] sm:$0xff]
      %v706 = vld [vmem:[%s1 + $0x70] sm:$0xff]
      %v707 = vld [vmem:[%s1 + $0x78] sm:$0xff]
      %v708 = vld [vmem:[%s1 + $0x80] sm:$0xff]
      %v709 = vld [vmem:[%s1 + $0x88] sm:$0xff]
      %v710 = vld [vmem:[%s1 + $0x90] sm:$0xff]
      %v711 = vld [vmem:[%s1 + $0x98] sm:$0xff]
      %v712 = vld [vmem:[#allocation2] sm:$0xfe]
      %v713 = vld [vmem:[#allocation2 + $0x8] sm:$0xfe]
      %v714 = vld [vmem:[#allocation2 + $0x10] sm:$0x1]
      %v715 = vld [vmem:[#allocation2 + $0x18] sm:$0x1]
      %v716 = vld [vmem:[#allocation2 + $0x20] sm:$0xfe]
      %v717 = vld [vmem:[#allocation2 + $0x28] sm:$0xfe]
      %v718 = vld [vmem:[#allocation2 + $0x30] sm:$0x1]
      %v719 = vld [vmem:[#allocation2 + $0x38] sm:$0x1]
      %v720 = vld [vmem:[#allocation2 + $0x40] sm:$0xfe]
      %v721 = vld [vmem:[#allocation2 + $0x48] sm:$0xfe]
      %v722 = vld [vmem:[#allocation2 + $0x50] sm:$0x1]
      %v723 = vld [vmem:[#allocation2 + $0x58] sm:$0x1]
      %v724 = vld [vmem:[#allocation2 + $0x60] sm:$0xfe]
      %v725 = vld [vmem:[#allocation2 + $0x68] sm:$0xfe]
      %v726 = vld [vmem:[#allocation2 + $0x70] sm:$0x1]
      %v727 = vld [vmem:[#allocation2 + $0x78] sm:$0x1]
      %v728 = vld [vmem:[#allocation2 + $0x80] sm:$0xfe]
      %v729 = vld [vmem:[#allocation2 + $0x88] sm:$0xfe]
      %v730 = vld [vmem:[#allocation2 + $0x90] sm:$0x1]
      %v731 = vld [vmem:[#allocation2 + $0x98] sm:$0x1]
      %v732 = vld [vmem:[#allocation2 + $0xa0] sm:$0xfe]
      %v733 = vld [vmem:[#allocation2 + $0xa8] sm:$0xfe]
      %v734 = vld [vmem:[#allocation2 + $0xb0] sm:$0x1]
      %v735 = vld [vmem:[#allocation2 + $0xb8] sm:$0x1]
      %v736 = vld [vmem:[#allocation2 + $0xc0] sm:$0xfe]
      %v737 = vld [vmem:[#allocation2 + $0xc8] sm:$0xfe]
      %v738 = vld [vmem:[#allocation2 + $0xd0] sm:$0x1]
      %v739 = vld [vmem:[#allocation2 + $0xd8] sm:$0x1]
      %v740 = vld [vmem:[#allocation2 + $0xe0] sm:$0xfe]
      %v741 = vld [vmem:[#allocation2 + $0xe8] sm:$0xfe]
      %v742 = vld [vmem:[#allocation2 + $0xf0] sm:$0x1]
      %v743 = vld [vmem:[#allocation2 + $0xf8] sm:$0x1]
      %v744 = vpack.c.bf16 %v713, %v712
      %v745 = vpack.c.bf16 %v715, %v714
      %v746 = vpack.c.bf16 %v717, %v716
      %v747 = vpack.c.bf16 %v719, %v718
      %v748 = vpack.c.bf16 %v721, %v720
      %v749 = vpack.c.bf16 %v723, %v722
      %v750 = vpack.c.bf16 %v725, %v724
      %v751 = vpack.c.bf16 %v727, %v726
      %v752 = vpack.c.bf16 %v729, %v728
      %v753 = vpack.c.bf16 %v731, %v730
      %v754 = vpack.c.bf16 %v733, %v732
      %v755 = vpack.c.bf16 %v735, %v734
      %v756 = vpack.c.bf16 %v737, %v736
      %v757 = vpack.c.bf16 %v739, %v738
      %v758 = vpack.c.bf16 %v741, %v740
      %v759 = vpack.c.bf16 %v743, %v742
      %vm760 = vsmask.f32 3328
      %vm761 = vsmask.f32 7440
      %vm762 = vmor %vm760, %vm761
      %v764 = vshrl.u32 %v744, 16
      %v766 = vrot.slane %v764, 4
      %v767 = vshll.u32 %v744, 16
      %v769 = vrot.slane %v767, 5
      %v770 = vor.u32 %v766, %v769
      %v771 = vrot.slane %v770, 4
      %v773 = vshll.u32 %v745, 16
      %v775 = vrot.slane %v773, 5
      %v776 = vsel %vm762, %v771, %v775
      %v778 = vshrl.u32 %v746, 16
      %v780 = vrot.slane %v778, 4
      %v781 = vshll.u32 %v746, 16
      %v783 = vrot.slane %v781, 5
      %v784 = vor.u32 %v780, %v783
      %v785 = vrot.slane %v784, 4
      %v787 = vshll.u32 %v747, 16
      %v789 = vrot.slane %v787, 5
      %v790 = vsel %vm762, %v785, %v789
      %v792 = vshrl.u32 %v748, 16
      %v794 = vrot.slane %v792, 4
      %v795 = vshll.u32 %v748, 16
      %v797 = vrot.slane %v795, 5
      %v798 = vor.u32 %v794, %v797
      %v799 = vrot.slane %v798, 4
      %v801 = vshll.u32 %v749, 16
      %v803 = vrot.slane %v801, 5
      %v804 = vsel %vm762, %v799, %v803
      %v806 = vshrl.u32 %v750, 16
      %v808 = vrot.slane %v806, 4
      %v809 = vshll.u32 %v750, 16
      %v811 = vrot.slane %v809, 5
      %v812 = vor.u32 %v808, %v811
      %v813 = vrot.slane %v812, 4
      %v815 = vshll.u32 %v751, 16
      %v817 = vrot.slane %v815, 5
      %v818 = vsel %vm762, %v813, %v817
      %v820 = vshrl.u32 %v752, 16
      %v822 = vrot.slane %v820, 4
      %v823 = vshll.u32 %v752, 16
      %v825 = vrot.slane %v823, 5
      %v826 = vor.u32 %v822, %v825
      %v827 = vrot.slane %v826, 4
      %v829 = vshll.u32 %v753, 16
      %v831 = vrot.slane %v829, 5
      %v832 = vsel %vm762, %v827, %v831
      %v834 = vshrl.u32 %v754, 16
      %v836 = vrot.slane %v834, 4
      %v837 = vshll.u32 %v754, 16
      %v839 = vrot.slane %v837, 5
      %v840 = vor.u32 %v836, %v839
      %v841 = vrot.slane %v840, 4
      %v843 = vshll.u32 %v755, 16
      %v845 = vrot.slane %v843, 5
      %v846 = vsel %vm762, %v841, %v845
      %v848 = vshrl.u32 %v756, 16
      %v850 = vrot.slane %v848, 4
      %v851 = vshll.u32 %v756, 16
      %v853 = vrot.slane %v851, 5
      %v854 = vor.u32 %v850, %v853
      %v855 = vrot.slane %v854, 4
      %v857 = vshll.u32 %v757, 16
      %v859 = vrot.slane %v857, 5
      %v860 = vsel %vm762, %v855, %v859
      %v862 = vshrl.u32 %v758, 16
      %v864 = vrot.slane %v862, 4
      %v865 = vshll.u32 %v758, 16
      %v867 = vrot.slane %v865, 5
      %v868 = vor.u32 %v864, %v867
      %v869 = vrot.slane %v868, 4
      %v871 = vshll.u32 %v759, 16
      %v873 = vrot.slane %v871, 5
      %v874 = vsel %vm762, %v869, %v873
      %s875 = scalar_lea.vmem %s1, 160
      %v876 = vld [vmem:[%s875] sm:$0xff]
      %v877 = vld [vmem:[%s875 + $0x8] sm:$0xff]
      %v878 = vld [vmem:[%s875 + $0x10] sm:$0xff]
      %v879 = vld [vmem:[%s875 + $0x18] sm:$0xff]
      %v880 = vld [vmem:[%s875 + $0x20] sm:$0xff]
      %v881 = vld [vmem:[%s875 + $0x28] sm:$0xff]
      %v882 = vld [vmem:[%s875 + $0x30] sm:$0xff]
      %v883 = vld [vmem:[%s875 + $0x38] sm:$0xff]
      %v884 = vld [vmem:[%s875 + $0x40] sm:$0xff]
      %v885 = vld [vmem:[%s875 + $0x48] sm:$0xff]
      %v886 = vld [vmem:[%s875 + $0x50] sm:$0xff]
      %v887 = vld [vmem:[%s875 + $0x58] sm:$0xff]
      %v888 = vld [vmem:[%s875 + $0x60] sm:$0xff]
      %v889 = vld [vmem:[%s875 + $0x68] sm:$0xff]
      %v890 = vld [vmem:[%s875 + $0x70] sm:$0xff]
      %v891 = vld [vmem:[%s875 + $0x78] sm:$0xff]
      %v892 = vld [vmem:[%s875 + $0x80] sm:$0xff]
      %v893 = vld [vmem:[%s875 + $0x88] sm:$0xff]
      %v894 = vld [vmem:[%s875 + $0x90] sm:$0xff]
      %v895 = vld [vmem:[%s875 + $0x98] sm:$0xff]
      %v896 = vunpack.c.l.b16 %v776
      %v897 = vunpack.c.h.b16 %v776
      %v898 = vunpack.c.l.b16 %v790
      %v899 = vunpack.c.h.b16 %v790
      %v900 = vunpack.c.l.b16 %v804
      %v901 = vunpack.c.h.b16 %v804
      %v902 = vunpack.c.l.b16 %v818
      %v903 = vunpack.c.h.b16 %v818
      %v904 = vunpack.c.l.b16 %v832
      %v905 = vunpack.c.h.b16 %v832
      %v906 = vunpack.c.l.b16 %v846
      %v907 = vunpack.c.h.b16 %v846
      %v908 = vunpack.c.l.b16 %v860
      %v909 = vunpack.c.h.b16 %v860
      %v910 = vunpack.c.l.b16 %v874
      %v911 = vunpack.c.h.b16 %v874
      %v912 = vpack.c.b16 %v898, %v896
      %v913 = vpack.c.b16 %v899, %v897
      %v914 = vpack.c.b16 %v902, %v900
      %v915 = vpack.c.b16 %v903, %v901
      %v916 = vpack.c.b16 %v906, %v904
      %v917 = vpack.c.b16 %v907, %v905
      %v918 = vpack.c.b16 %v910, %v908
      %v919 = vpack.c.b16 %v911, %v909
      %v944 = vunpack.c.l.b16 %v876
      %v945 = vunpack.c.h.b16 %v876
      %v946 = vunpack.c.l.b16 %v877
      %v947 = vunpack.c.h.b16 %v877
      %v948 = vunpack.c.l.b16 %v878
      %v949 = vunpack.c.h.b16 %v878
      %v950 = vunpack.c.l.b16 %v879
      %v951 = vunpack.c.h.b16 %v879
      %v952 = vunpack.c.l.b16 %v880
      %v953 = vunpack.c.h.b16 %v880
      %v954 = vunpack.c.l.b16 %v881
      %v955 = vunpack.c.h.b16 %v881
      %v956 = vunpack.c.l.b16 %v882
      %v957 = vunpack.c.h.b16 %v882
      %v958 = vunpack.c.l.b16 %v883
      %v959 = vunpack.c.h.b16 %v883
      %v960 = vunpack.c.l.b16 %v884
      %v961 = vunpack.c.h.b16 %v884
      %v962 = vunpack.c.l.b16 %v885
      %v963 = vunpack.c.h.b16 %v885
      %v964 = vunpack.c.l.b16 %v886
      %v965 = vunpack.c.h.b16 %v886
      %v966 = vunpack.c.l.b16 %v887
      %v967 = vunpack.c.h.b16 %v887
      %v968 = vunpack.c.l.b16 %v888
      %v969 = vunpack.c.h.b16 %v888
      %v970 = vunpack.c.l.b16 %v889
      %v971 = vunpack.c.h.b16 %v889
      %v972 = vunpack.c.l.b16 %v890
      %v973 = vunpack.c.h.b16 %v890
      %v974 = vunpack.c.l.b16 %v891
      %v975 = vunpack.c.h.b16 %v891
      %v976 = vunpack.c.l.b16 %v892
      %v977 = vunpack.c.h.b16 %v892
      %v978 = vunpack.c.l.b16 %v893
      %v979 = vunpack.c.h.b16 %v893
      %v980 = vunpack.c.l.b16 %v894
      %v981 = vunpack.c.h.b16 %v894
      %v982 = vunpack.c.l.b16 %v895
      %v983 = vunpack.c.h.b16 %v895
      %v984 = vpack.c.b16 %v946, %v944
      %v985 = vpack.c.b16 %v947, %v945
      %v986 = vpack.c.b16 %v950, %v948
      %v987 = vpack.c.b16 %v951, %v949
      %v988 = vpack.c.b16 %v954, %v952
      %v989 = vpack.c.b16 %v955, %v953
      %v990 = vpack.c.b16 %v958, %v956
      %v991 = vpack.c.b16 %v959, %v957
      %v992 = vpack.c.b16 %v962, %v960
      %v993 = vpack.c.b16 %v963, %v961
      %v994 = vpack.c.b16 %v966, %v964
      %v995 = vpack.c.b16 %v967, %v965
      %v996 = vpack.c.b16 %v970, %v968
      %v997 = vpack.c.b16 %v971, %v969
      %v998 = vpack.c.b16 %v974, %v972
      %v999 = vpack.c.b16 %v975, %v973
      %v1000 = vpack.c.b16 %v978, %v976
      %v1001 = vpack.c.b16 %v979, %v977
      %v1002 = vpack.c.b16 %v982, %v980
      %v1003 = vpack.c.b16 %v983, %v981
      %v1025 = vsel %vm443, %v913, 0
      %v1028 = vsel %vm443, %v915, 0
      %v1031 = vsel %vm443, %v917, 0
      %v1034 = vsel %vm443, %v919, 0
      %1036 = vmatpush.bf16.msra.mxu0 %v998
      %1037 = vmatpush.bf16.msra.mxu0 %v996
      %1038 = vmatpush.bf16.msra.mxu0 %v994
      %1039 = vmatpush.bf16.msra.mxu0 %v992
      %1040 = vmatpush.bf16.msra.mxu0 %v990
      %1041 = vmatpush.bf16.msra.mxu0 %v988
      %1042 = vmatpush.bf16.msra.mxu0 %v986
      %1043 = vmatpush.bf16.msra.mxu0 %v984
      %1044 = vmatmul.bf16.gmra.mxu0 %v912
      %v1045 = vpop.f32.mrf.mxu0
      %v1046 = vadd.f32 0.0, %v1045
      %v1047 = vpop.f32.mrf.mxu0
      %v1048 = vadd.f32 0.0, %v1047
      %1049 = vmatmul.bf16.gmra.mxu0 %v914
      %v1050 = vpop.f32.mrf.mxu0
      %v1051 = vadd.f32 0.0, %v1050
      %v1052 = vpop.f32.mrf.mxu0
      %v1053 = vadd.f32 0.0, %v1052
      %1054 = vmatmul.bf16.gmra.mxu0 %v916
      %v1055 = vpop.f32.mrf.mxu0
      %v1056 = vadd.f32 0.0, %v1055
      %v1057 = vpop.f32.mrf.mxu0
      %v1058 = vadd.f32 0.0, %v1057
      %1059 = vmatmul.bf16.gmra.mxu0 %v918
      %v1060 = vpop.f32.mrf.mxu0
      %v1061 = vadd.f32 0.0, %v1060
      %v1062 = vpop.f32.mrf.mxu0
      %v1063 = vadd.f32 0.0, %v1062
      %1064 = vdwg.mxu0
      %1065 = vmatpush.bf16.msra.mxu0 0
      %1066 = vmatpush.bf16.msra.mxu0 0
      %1067 = vmatpush.bf16.msra.mxu0 0
      %1068 = vmatpush.bf16.msra.mxu0 0
      %1069 = vmatpush.bf16.msra.mxu0 0
      %1070 = vmatpush.bf16.msra.mxu0 0
      %1071 = vmatpush.bf16.msra.mxu0 %v1002
      %1072 = vmatpush.bf16.msra.mxu0 %v1000
      %1073 = vmatmul.bf16.gmra.mxu0 %v1025
      %v1074 = vpop.f32.mrf.mxu0
      %v1075 = vadd.f32 %v1046, %v1074
      %v1076 = vpop.f32.mrf.mxu0
      %v1077 = vadd.f32 %v1048, %v1076
      %1078 = vmatmul.bf16.gmra.mxu0 %v1028
      %v1079 = vpop.f32.mrf.mxu0
      %v1080 = vadd.f32 %v1051, %v1079
      %v1081 = vpop.f32.mrf.mxu0
      %v1082 = vadd.f32 %v1053, %v1081
      %1083 = vmatmul.bf16.gmra.mxu0 %v1031
      %v1084 = vpop.f32.mrf.mxu0
      %v1085 = vadd.f32 %v1056, %v1084
      %v1086 = vpop.f32.mrf.mxu0
      %v1087 = vadd.f32 %v1058, %v1086
      %1088 = vmatmul.bf16.gmra.mxu0 %v1034
      %v1089 = vpop.f32.mrf.mxu0
      %v1090 = vadd.f32 %v1061, %v1089
      %v1091 = vpop.f32.mrf.mxu0
      %v1092 = vadd.f32 %v1063, %v1091
      %1093 = vdwg.mxu0
      %1094 = vmatpush.bf16.msra.mxu0 %v999
      %1095 = vmatpush.bf16.msra.mxu0 %v997
      %1096 = vmatpush.bf16.msra.mxu0 %v995
      %1097 = vmatpush.bf16.msra.mxu0 %v993
      %1098 = vmatpush.bf16.msra.mxu0 %v991
      %1099 = vmatpush.bf16.msra.mxu0 %v989
      %1100 = vmatpush.bf16.msra.mxu0 %v987
      %1101 = vmatpush.bf16.msra.mxu0 %v985
      %1102 = vmatmul.bf16.gmra.mxu0 %v912
      %v1103 = vpop.f32.mrf.mxu0
      %v1104 = vadd.f32 0.0, %v1103
      %v1105 = vpop.f32.mrf.mxu0
      %v1106 = vadd.f32 0.0, %v1105
      %1107 = vmatmul.bf16.gmra.mxu0 %v914
      %v1108 = vpop.f32.mrf.mxu0
      %v1109 = vadd.f32 0.0, %v1108
      %v1110 = vpop.f32.mrf.mxu0
      %v1111 = vadd.f32 0.0, %v1110
      %1112 = vmatmul.bf16.gmra.mxu0 %v916
      %v1113 = vpop.f32.mrf.mxu0
      %v1114 = vadd.f32 0.0, %v1113
      %v1115 = vpop.f32.mrf.mxu0
      %v1116 = vadd.f32 0.0, %v1115
      %1117 = vmatmul.bf16.gmra.mxu0 %v918
      %v1118 = vpop.f32.mrf.mxu0
      %v1119 = vadd.f32 0.0, %v1118
      %v1120 = vpop.f32.mrf.mxu0
      %v1121 = vadd.f32 0.0, %v1120
      %1122 = vdwg.mxu0
      %1123 = vmatpush.bf16.msra.mxu0 0
      %1124 = vmatpush.bf16.msra.mxu0 0
      %1125 = vmatpush.bf16.msra.mxu0 0
      %1126 = vmatpush.bf16.msra.mxu0 0
      %1127 = vmatpush.bf16.msra.mxu0 0
      %1128 = vmatpush.bf16.msra.mxu0 0
      %1129 = vmatpush.bf16.msra.mxu0 %v1003
      %1130 = vmatpush.bf16.msra.mxu0 %v1001
      %1131 = vmatmul.bf16.gmra.mxu0 %v1025
      %v1132 = vpop.f32.mrf.mxu0
      %v1133 = vadd.f32 %v1104, %v1132
      %v1134 = vpop.f32.mrf.mxu0
      %v1135 = vadd.f32 %v1106, %v1134
      %1136 = vmatmul.bf16.gmra.mxu0 %v1028
      %v1137 = vpop.f32.mrf.mxu0
      %v1138 = vadd.f32 %v1109, %v1137
      %v1139 = vpop.f32.mrf.mxu0
      %v1140 = vadd.f32 %v1111, %v1139
      %1141 = vmatmul.bf16.gmra.mxu0 %v1031
      %v1142 = vpop.f32.mrf.mxu0
      %v1143 = vadd.f32 %v1114, %v1142
      %v1144 = vpop.f32.mrf.mxu0
      %v1145 = vadd.f32 %v1116, %v1144
      %1146 = vmatmul.bf16.gmra.mxu0 %v1034
      %v1147 = vpop.f32.mrf.mxu0
      %v1148 = vadd.f32 %v1119, %v1147
      %v1149 = vpop.f32.mrf.mxu0
      %v1150 = vadd.f32 %v1121, %v1149
      %1151 = vdwg.mxu0
      %v1160 = vunpack.c.l.b16 %v684
      %v1161 = vunpack.c.h.b16 %v684
      %v1162 = vunpack.c.l.b16 %v685
      %v1163 = vunpack.c.h.b16 %v685
      %v1164 = vunpack.c.l.b16 %v686
      %v1165 = vunpack.c.h.b16 %v686
      %v1166 = vunpack.c.l.b16 %v687
      %v1167 = vunpack.c.h.b16 %v687
      %v1168 = vunpack.c.l.b16 %v688
      %v1169 = vunpack.c.h.b16 %v688
      %v1170 = vunpack.c.l.b16 %v689
      %v1171 = vunpack.c.h.b16 %v689
      %v1172 = vunpack.c.l.b16 %v690
      %v1173 = vunpack.c.h.b16 %v690
      %v1174 = vunpack.c.l.b16 %v691
      %v1175 = vunpack.c.h.b16 %v691
      %v1176 = vpack.c.b16 %v1162, %v1160
      %v1177 = vpack.c.b16 %v1163, %v1161
      %v1178 = vpack.c.b16 %v1166, %v1164
      %v1179 = vpack.c.b16 %v1167, %v1165
      %v1180 = vpack.c.b16 %v1170, %v1168
      %v1181 = vpack.c.b16 %v1171, %v1169
      %v1182 = vpack.c.b16 %v1174, %v1172
      %v1183 = vpack.c.b16 %v1175, %v1173
      %v1208 = vunpack.c.l.b16 %v692
      %v1209 = vunpack.c.h.b16 %v692
      %v1210 = vunpack.c.l.b16 %v693
      %v1211 = vunpack.c.h.b16 %v693
      %v1212 = vunpack.c.l.b16 %v694
      %v1213 = vunpack.c.h.b16 %v694
      %v1214 = vunpack.c.l.b16 %v695
      %v1215 = vunpack.c.h.b16 %v695
      %v1216 = vunpack.c.l.b16 %v696
      %v1217 = vunpack.c.h.b16 %v696
      %v1218 = vunpack.c.l.b16 %v697
      %v1219 = vunpack.c.h.b16 %v697
      %v1220 = vunpack.c.l.b16 %v698
      %v1221 = vunpack.c.h.b16 %v698
      %v1222 = vunpack.c.l.b16 %v699
      %v1223 = vunpack.c.h.b16 %v699
      %v1224 = vunpack.c.l.b16 %v700
      %v1225 = vunpack.c.h.b16 %v700
      %v1226 = vunpack.c.l.b16 %v701
      %v1227 = vunpack.c.h.b16 %v701
      %v1228 = vunpack.c.l.b16 %v702
      %v1229 = vunpack.c.h.b16 %v702
      %v1230 = vunpack.c.l.b16 %v703
      %v1231 = vunpack.c.h.b16 %v703
      %v1232 = vunpack.c.l.b16 %v704
      %v1233 = vunpack.c.h.b16 %v704
      %v1234 = vunpack.c.l.b16 %v705
      %v1235 = vunpack.c.h.b16 %v705
      %v1236 = vunpack.c.l.b16 %v706
      %v1237 = vunpack.c.h.b16 %v706
      %v1238 = vunpack.c.l.b16 %v707
      %v1239 = vunpack.c.h.b16 %v707
      %v1240 = vunpack.c.l.b16 %v708
      %v1241 = vunpack.c.h.b16 %v708
      %v1242 = vunpack.c.l.b16 %v709
      %v1243 = vunpack.c.h.b16 %v709
      %v1244 = vunpack.c.l.b16 %v710
      %v1245 = vunpack.c.h.b16 %v710
      %v1246 = vunpack.c.l.b16 %v711
      %v1247 = vunpack.c.h.b16 %v711
      %v1248 = vpack.c.b16 %v1210, %v1208
      %v1249 = vpack.c.b16 %v1211, %v1209
      %v1250 = vpack.c.b16 %v1214, %v1212
      %v1251 = vpack.c.b16 %v1215, %v1213
      %v1252 = vpack.c.b16 %v1218, %v1216
      %v1253 = vpack.c.b16 %v1219, %v1217
      %v1254 = vpack.c.b16 %v1222, %v1220
      %v1255 = vpack.c.b16 %v1223, %v1221
      %v1256 = vpack.c.b16 %v1226, %v1224
      %v1257 = vpack.c.b16 %v1227, %v1225
      %v1258 = vpack.c.b16 %v1230, %v1228
      %v1259 = vpack.c.b16 %v1231, %v1229
      %v1260 = vpack.c.b16 %v1234, %v1232
      %v1261 = vpack.c.b16 %v1235, %v1233
      %v1262 = vpack.c.b16 %v1238, %v1236
      %v1263 = vpack.c.b16 %v1239, %v1237
      %v1264 = vpack.c.b16 %v1242, %v1240
      %v1265 = vpack.c.b16 %v1243, %v1241
      %v1266 = vpack.c.b16 %v1246, %v1244
      %v1267 = vpack.c.b16 %v1247, %v1245
      %v1289 = vsel %vm443, %v1177, 0
      %v1292 = vsel %vm443, %v1179, 0
      %v1295 = vsel %vm443, %v1181, 0
      %v1298 = vsel %vm443, %v1183, 0
      %1300 = vmatpush.bf16.msra.mxu0 %v1262
      %1301 = vmatpush.bf16.msra.mxu0 %v1260
      %1302 = vmatpush.bf16.msra.mxu0 %v1258
      %1303 = vmatpush.bf16.msra.mxu0 %v1256
      %1304 = vmatpush.bf16.msra.mxu0 %v1254
      %1305 = vmatpush.bf16.msra.mxu0 %v1252
      %1306 = vmatpush.bf16.msra.mxu0 %v1250
      %1307 = vmatpush.bf16.msra.mxu0 %v1248
      %1308 = vmatmul.bf16.gmra.mxu0 %v1176
      %v1309 = vpop.f32.mrf.mxu0
      %v1310 = vadd.f32 %v1075, %v1309
      %v1311 = vpop.f32.mrf.mxu0
      %v1312 = vadd.f32 %v1077, %v1311
      %1313 = vmatmul.bf16.gmra.mxu0 %v1178
      %v1314 = vpop.f32.mrf.mxu0
      %v1315 = vadd.f32 %v1080, %v1314
      %v1316 = vpop.f32.mrf.mxu0
      %v1317 = vadd.f32 %v1082, %v1316
      %1318 = vmatmul.bf16.gmra.mxu0 %v1180
      %v1319 = vpop.f32.mrf.mxu0
      %v1320 = vadd.f32 %v1085, %v1319
      %v1321 = vpop.f32.mrf.mxu0
      %v1322 = vadd.f32 %v1087, %v1321
      %1323 = vmatmul.bf16.gmra.mxu0 %v1182
      %v1324 = vpop.f32.mrf.mxu0
      %v1325 = vadd.f32 %v1090, %v1324
      %v1326 = vpop.f32.mrf.mxu0
      %v1327 = vadd.f32 %v1092, %v1326
      %1328 = vdwg.mxu0
      %1329 = vmatpush.bf16.msra.mxu0 0
      %1330 = vmatpush.bf16.msra.mxu0 0
      %1331 = vmatpush.bf16.msra.mxu0 0
      %1332 = vmatpush.bf16.msra.mxu0 0
      %1333 = vmatpush.bf16.msra.mxu0 0
      %1334 = vmatpush.bf16.msra.mxu0 0
      %1335 = vmatpush.bf16.msra.mxu0 %v1266
      %1336 = vmatpush.bf16.msra.mxu0 %v1264
      %1337 = vmatmul.bf16.gmra.mxu0 %v1289
      %v1338 = vpop.f32.mrf.mxu0
      %v1339 = vadd.f32 %v1310, %v1338
      %v1340 = vpop.f32.mrf.mxu0
      %v1341 = vadd.f32 %v1312, %v1340
      %1342 = vmatmul.bf16.gmra.mxu0 %v1292
      %v1343 = vpop.f32.mrf.mxu0
      %v1344 = vadd.f32 %v1315, %v1343
      %v1345 = vpop.f32.mrf.mxu0
      %v1346 = vadd.f32 %v1317, %v1345
      %1347 = vmatmul.bf16.gmra.mxu0 %v1295
      %v1348 = vpop.f32.mrf.mxu0
      %v1349 = vadd.f32 %v1320, %v1348
      %v1350 = vpop.f32.mrf.mxu0
      %v1351 = vadd.f32 %v1322, %v1350
      %1352 = vmatmul.bf16.gmra.mxu0 %v1298
      %v1353 = vpop.f32.mrf.mxu0
      %v1354 = vadd.f32 %v1325, %v1353
      %v1355 = vpop.f32.mrf.mxu0
      %v1356 = vadd.f32 %v1327, %v1355
      %1357 = vdwg.mxu0
      %1358 = vmatpush.bf16.msra.mxu0 %v1263
      %1359 = vmatpush.bf16.msra.mxu0 %v1261
      %1360 = vmatpush.bf16.msra.mxu0 %v1259
      %1361 = vmatpush.bf16.msra.mxu0 %v1257
      %1362 = vmatpush.bf16.msra.mxu0 %v1255
      %1363 = vmatpush.bf16.msra.mxu0 %v1253
      %1364 = vmatpush.bf16.msra.mxu0 %v1251
      %1365 = vmatpush.bf16.msra.mxu0 %v1249
      %1366 = vmatmul.bf16.gmra.mxu0 %v1176
      %v1367 = vpop.f32.mrf.mxu0
      %v1368 = vadd.f32 %v1133, %v1367
      %v1369 = vpop.f32.mrf.mxu0
      %v1370 = vadd.f32 %v1135, %v1369
      %1371 = vmatmul.bf16.gmra.mxu0 %v1178
      %v1372 = vpop.f32.mrf.mxu0
      %v1373 = vadd.f32 %v1138, %v1372
      %v1374 = vpop.f32.mrf.mxu0
      %v1375 = vadd.f32 %v1140, %v1374
      %1376 = vmatmul.bf16.gmra.mxu0 %v1180
      %v1377 = vpop.f32.mrf.mxu0
      %v1378 = vadd.f32 %v1143, %v1377
      %v1379 = vpop.f32.mrf.mxu0
      %v1380 = vadd.f32 %v1145, %v1379
      %1381 = vmatmul.bf16.gmra.mxu0 %v1182
      %v1382 = vpop.f32.mrf.mxu0
      %v1383 = vadd.f32 %v1148, %v1382
      %v1384 = vpop.f32.mrf.mxu0
      %v1385 = vadd.f32 %v1150, %v1384
      %1386 = vdwg.mxu0
      %1387 = vmatpush.bf16.msra.mxu0 0
      %1388 = vmatpush.bf16.msra.mxu0 0
      %1389 = vmatpush.bf16.msra.mxu0 0
      %1390 = vmatpush.bf16.msra.mxu0 0
      %1391 = vmatpush.bf16.msra.mxu0 0
      %1392 = vmatpush.bf16.msra.mxu0 0
      %1393 = vmatpush.bf16.msra.mxu0 %v1267
      %1394 = vmatpush.bf16.msra.mxu0 %v1265
      %1395 = vmatmul.bf16.gmra.mxu0 %v1289
      %v1396 = vpop.f32.mrf.mxu0
      %v1397 = vadd.f32 %v1368, %v1396
      %v1398 = vpop.f32.mrf.mxu0
      %v1399 = vadd.f32 %v1370, %v1398
      %1400 = vmatmul.bf16.gmra.mxu0 %v1292
      %v1401 = vpop.f32.mrf.mxu0
      %v1402 = vadd.f32 %v1373, %v1401
      %v1403 = vpop.f32.mrf.mxu0
      %v1404 = vadd.f32 %v1375, %v1403
      %1405 = vmatmul.bf16.gmra.mxu0 %v1295
      %v1406 = vpop.f32.mrf.mxu0
      %v1407 = vadd.f32 %v1378, %v1406
      %v1408 = vpop.f32.mrf.mxu0
      %v1409 = vadd.f32 %v1380, %v1408
      %1410 = vmatmul.bf16.gmra.mxu0 %v1298
      %v1411 = vpop.f32.mrf.mxu0
      %v1412 = vadd.f32 %v1383, %v1411
      %v1413 = vpop.f32.mrf.mxu0
      %v1414 = vadd.f32 %v1385, %v1413
      %1415 = vdwg.mxu0
      %v1416 = vld [vmem:[#allocation2] sm:$0xfc]
      %v1417 = vld [vmem:[#allocation2 + $0x8] sm:$0xfc]
      %v1418 = vld [vmem:[#allocation2 + $0x10] sm:$0x3]
      %v1419 = vld [vmem:[#allocation2 + $0x18] sm:$0x3]
      %v1420 = vld [vmem:[#allocation2 + $0x20] sm:$0xfc]
      %v1421 = vld [vmem:[#allocation2 + $0x28] sm:$0xfc]
      %v1422 = vld [vmem:[#allocation2 + $0x30] sm:$0x3]
      %v1423 = vld [vmem:[#allocation2 + $0x38] sm:$0x3]
      %v1424 = vld [vmem:[#allocation2 + $0x40] sm:$0xfc]
      %v1425 = vld [vmem:[#allocation2 + $0x48] sm:$0xfc]
      %v1426 = vld [vmem:[#allocation2 + $0x50] sm:$0x3]
      %v1427 = vld [vmem:[#allocation2 + $0x58] sm:$0x3]
      %v1428 = vld [vmem:[#allocation2 + $0x60] sm:$0xfc]
      %v1429 = vld [vmem:[#allocation2 + $0x68] sm:$0xfc]
      %v1430 = vld [vmem:[#allocation2 + $0x70] sm:$0x3]
      %v1431 = vld [vmem:[#allocation2 + $0x78] sm:$0x3]
      %v1432 = vld [vmem:[#allocation2 + $0x80] sm:$0xfc]
      %v1433 = vld [vmem:[#allocation2 + $0x88] sm:$0xfc]
      %v1434 = vld [vmem:[#allocation2 + $0x90] sm:$0x3]
      %v1435 = vld [vmem:[#allocation2 + $0x98] sm:$0x3]
      %v1436 = vld [vmem:[#allocation2 + $0xa0] sm:$0xfc]
      %v1437 = vld [vmem:[#allocation2 + $0xa8] sm:$0xfc]
      %v1438 = vld [vmem:[#allocation2 + $0xb0] sm:$0x3]
      %v1439 = vld [vmem:[#allocation2 + $0xb8] sm:$0x3]
      %v1440 = vld [vmem:[#allocation2 + $0xc0] sm:$0xfc]
      %v1441 = vld [vmem:[#allocation2 + $0xc8] sm:$0xfc]
      %v1442 = vld [vmem:[#allocation2 + $0xd0] sm:$0x3]
      %v1443 = vld [vmem:[#allocation2 + $0xd8] sm:$0x3]
      %v1444 = vld [vmem:[#allocation2 + $0xe0] sm:$0xfc]
      %v1445 = vld [vmem:[#allocation2 + $0xe8] sm:$0xfc]
      %v1446 = vld [vmem:[#allocation2 + $0xf0] sm:$0x3]
      %v1447 = vld [vmem:[#allocation2 + $0xf8] sm:$0x3]
      %v1448 = vpack.c.bf16 %v1417, %v1416
      %v1449 = vpack.c.bf16 %v1419, %v1418
      %v1450 = vpack.c.bf16 %v1421, %v1420
      %v1451 = vpack.c.bf16 %v1423, %v1422
      %v1452 = vpack.c.bf16 %v1425, %v1424
      %v1453 = vpack.c.bf16 %v1427, %v1426
      %v1454 = vpack.c.bf16 %v1429, %v1428
      %v1455 = vpack.c.bf16 %v1431, %v1430
      %v1456 = vpack.c.bf16 %v1433, %v1432
      %v1457 = vpack.c.bf16 %v1435, %v1434
      %v1458 = vpack.c.bf16 %v1437, %v1436
      %v1459 = vpack.c.bf16 %v1439, %v1438
      %v1460 = vpack.c.bf16 %v1441, %v1440
      %v1461 = vpack.c.bf16 %v1443, %v1442
      %v1462 = vpack.c.bf16 %v1445, %v1444
      %v1463 = vpack.c.bf16 %v1447, %v1446
      %vm1480 = vcmask 1042432
      %vm1481 = vcmask 1046532
      %vm1482 = vmor %vm1480, %vm1481
      %v1483 = vrot.slane %v1448, 5
      %v1484 = vrot.slane %v1483, 4
      %v1485 = vrot.slane %v1449, 5
      %v1486 = vsel %vm1482, %v1484, %v1485
      %v1487 = vrot.slane %v1450, 5
      %v1488 = vrot.slane %v1487, 4
      %v1489 = vrot.slane %v1451, 5
      %v1490 = vsel %vm1482, %v1488, %v1489
      %v1491 = vrot.slane %v1452, 5
      %v1492 = vrot.slane %v1491, 4
      %v1493 = vrot.slane %v1453, 5
      %v1494 = vsel %vm1482, %v1492, %v1493
      %v1495 = vrot.slane %v1454, 5
      %v1496 = vrot.slane %v1495, 4
      %v1497 = vrot.slane %v1455, 5
      %v1498 = vsel %vm1482, %v1496, %v1497
      %v1499 = vrot.slane %v1456, 5
      %v1500 = vrot.slane %v1499, 4
      %v1501 = vrot.slane %v1457, 5
      %v1502 = vsel %vm1482, %v1500, %v1501
      %v1503 = vrot.slane %v1458, 5
      %v1504 = vrot.slane %v1503, 4
      %v1505 = vrot.slane %v1459, 5
      %v1506 = vsel %vm1482, %v1504, %v1505
      %v1507 = vrot.slane %v1460, 5
      %v1508 = vrot.slane %v1507, 4
      %v1509 = vrot.slane %v1461, 5
      %v1510 = vsel %vm1482, %v1508, %v1509
      %v1511 = vrot.slane %v1462, 5
      %v1512 = vrot.slane %v1511, 4
      %v1513 = vrot.slane %v1463, 5
      %v1514 = vsel %vm1482, %v1512, %v1513
      %s1515 = scalar_lea.vmem %s1, 320
      %v1516 = vld [vmem:[%s1515] sm:$0xff]
      %v1517 = vld [vmem:[%s1515 + $0x8] sm:$0xff]
      %v1518 = vld [vmem:[%s1515 + $0x10] sm:$0xff]
      %v1519 = vld [vmem:[%s1515 + $0x18] sm:$0xff]
      %v1520 = vld [vmem:[%s1515 + $0x20] sm:$0xff]
      %v1521 = vld [vmem:[%s1515 + $0x28] sm:$0xff]
      %v1522 = vld [vmem:[%s1515 + $0x30] sm:$0xff]
      %v1523 = vld [vmem:[%s1515 + $0x38] sm:$0xff]
      %v1524 = vld [vmem:[%s1515 + $0x40] sm:$0xff]
      %v1525 = vld [vmem:[%s1515 + $0x48] sm:$0xff]
      %v1526 = vld [vmem:[%s1515 + $0x50] sm:$0xff]
      %v1527 = vld [vmem:[%s1515 + $0x58] sm:$0xff]
      %v1528 = vld [vmem:[%s1515 + $0x60] sm:$0xff]
      %v1529 = vld [vmem:[%s1515 + $0x68] sm:$0xff]
      %v1530 = vld [vmem:[%s1515 + $0x70] sm:$0xff]
      %v1531 = vld [vmem:[%s1515 + $0x78] sm:$0xff]
      %v1532 = vld [vmem:[%s1515 + $0x80] sm:$0xff]
      %v1533 = vld [vmem:[%s1515 + $0x88] sm:$0xff]
      %v1534 = vld [vmem:[%s1515 + $0x90] sm:$0xff]
      %v1535 = vld [vmem:[%s1515 + $0x98] sm:$0xff]
      %v1536 = vunpack.c.l.b16 %v1486
      %v1537 = vunpack.c.h.b16 %v1486
      %v1538 = vunpack.c.l.b16 %v1490
      %v1539 = vunpack.c.h.b16 %v1490
      %v1540 = vunpack.c.l.b16 %v1494
      %v1541 = vunpack.c.h.b16 %v1494
      %v1542 = vunpack.c.l.b16 %v1498
      %v1543 = vunpack.c.h.b16 %v1498
      %v1544 = vunpack.c.l.b16 %v1502
      %v1545 = vunpack.c.h.b16 %v1502
      %v1546 = vunpack.c.l.b16 %v1506
      %v1547 = vunpack.c.h.b16 %v1506
      %v1548 = vunpack.c.l.b16 %v1510
      %v1549 = vunpack.c.h.b16 %v1510
      %v1550 = vunpack.c.l.b16 %v1514
      %v1551 = vunpack.c.h.b16 %v1514
      %v1552 = vpack.c.b16 %v1538, %v1536
      %v1553 = vpack.c.b16 %v1539, %v1537
      %v1554 = vpack.c.b16 %v1542, %v1540
      %v1555 = vpack.c.b16 %v1543, %v1541
      %v1556 = vpack.c.b16 %v1546, %v1544
      %v1557 = vpack.c.b16 %v1547, %v1545
      %v1558 = vpack.c.b16 %v1550, %v1548
      %v1559 = vpack.c.b16 %v1551, %v1549
      %v1584 = vunpack.c.l.b16 %v1516
      %v1585 = vunpack.c.h.b16 %v1516
      %v1586 = vunpack.c.l.b16 %v1517
      %v1587 = vunpack.c.h.b16 %v1517
      %v1588 = vunpack.c.l.b16 %v1518
      %v1589 = vunpack.c.h.b16 %v1518
      %v1590 = vunpack.c.l.b16 %v1519
      %v1591 = vunpack.c.h.b16 %v1519
      %v1592 = vunpack.c.l.b16 %v1520
      %v1593 = vunpack.c.h.b16 %v1520
      %v1594 = vunpack.c.l.b16 %v1521
      %v1595 = vunpack.c.h.b16 %v1521
      %v1596 = vunpack.c.l.b16 %v1522
      %v1597 = vunpack.c.h.b16 %v1522
      %v1598 = vunpack.c.l.b16 %v1523
      %v1599 = vunpack.c.h.b16 %v1523
      %v1600 = vunpack.c.l.b16 %v1524
      %v1601 = vunpack.c.h.b16 %v1524
      %v1602 = vunpack.c.l.b16 %v1525
      %v1603 = vunpack.c.h.b16 %v1525
      %v1604 = vunpack.c.l.b16 %v1526
      %v1605 = vunpack.c.h.b16 %v1526
      %v1606 = vunpack.c.l.b16 %v1527
      %v1607 = vunpack.c.h.b16 %v1527
      %v1608 = vunpack.c.l.b16 %v1528
      %v1609 = vunpack.c.h.b16 %v1528
      %v1610 = vunpack.c.l.b16 %v1529
      %v1611 = vunpack.c.h.b16 %v1529
      %v1612 = vunpack.c.l.b16 %v1530
      %v1613 = vunpack.c.h.b16 %v1530
      %v1614 = vunpack.c.l.b16 %v1531
      %v1615 = vunpack.c.h.b16 %v1531
      %v1616 = vunpack.c.l.b16 %v1532
      %v1617 = vunpack.c.h.b16 %v1532
      %v1618 = vunpack.c.l.b16 %v1533
      %v1619 = vunpack.c.h.b16 %v1533
      %v1620 = vunpack.c.l.b16 %v1534
      %v1621 = vunpack.c.h.b16 %v1534
      %v1622 = vunpack.c.l.b16 %v1535
      %v1623 = vunpack.c.h.b16 %v1535
      %v1624 = vpack.c.b16 %v1586, %v1584
      %v1625 = vpack.c.b16 %v1587, %v1585
      %v1626 = vpack.c.b16 %v1590, %v1588
      %v1627 = vpack.c.b16 %v1591, %v1589
      %v1628 = vpack.c.b16 %v1594, %v1592
      %v1629 = vpack.c.b16 %v1595, %v1593
      %v1630 = vpack.c.b16 %v1598, %v1596
      %v1631 = vpack.c.b16 %v1599, %v1597
      %v1632 = vpack.c.b16 %v1602, %v1600
      %v1633 = vpack.c.b16 %v1603, %v1601
      %v1634 = vpack.c.b16 %v1606, %v1604
      %v1635 = vpack.c.b16 %v1607, %v1605
      %v1636 = vpack.c.b16 %v1610, %v1608
      %v1637 = vpack.c.b16 %v1611, %v1609
      %v1638 = vpack.c.b16 %v1614, %v1612
      %v1639 = vpack.c.b16 %v1615, %v1613
      %v1640 = vpack.c.b16 %v1618, %v1616
      %v1641 = vpack.c.b16 %v1619, %v1617
      %v1642 = vpack.c.b16 %v1622, %v1620
      %v1643 = vpack.c.b16 %v1623, %v1621
      %v1665 = vsel %vm443, %v1553, 0
      %v1668 = vsel %vm443, %v1555, 0
      %v1671 = vsel %vm443, %v1557, 0
      %v1674 = vsel %vm443, %v1559, 0
      %1676 = vmatpush.bf16.msra.mxu0 %v1638
      %1677 = vmatpush.bf16.msra.mxu0 %v1636
      %1678 = vmatpush.bf16.msra.mxu0 %v1634
      %1679 = vmatpush.bf16.msra.mxu0 %v1632
      %1680 = vmatpush.bf16.msra.mxu0 %v1630
      %1681 = vmatpush.bf16.msra.mxu0 %v1628
      %1682 = vmatpush.bf16.msra.mxu0 %v1626
      %1683 = vmatpush.bf16.msra.mxu0 %v1624
      %1684 = vmatmul.bf16.gmra.mxu0 %v1552
      %v1685 = vpop.f32.mrf.mxu0
      %v1686 = vadd.f32 0.0, %v1685
      %v1687 = vpop.f32.mrf.mxu0
      %v1688 = vadd.f32 0.0, %v1687
      %1689 = vmatmul.bf16.gmra.mxu0 %v1554
      %v1690 = vpop.f32.mrf.mxu0
      %v1691 = vadd.f32 0.0, %v1690
      %v1692 = vpop.f32.mrf.mxu0
      %v1693 = vadd.f32 0.0, %v1692
      %1694 = vmatmul.bf16.gmra.mxu0 %v1556
      %v1695 = vpop.f32.mrf.mxu0
      %v1696 = vadd.f32 0.0, %v1695
      %v1697 = vpop.f32.mrf.mxu0
      %v1698 = vadd.f32 0.0, %v1697
      %1699 = vmatmul.bf16.gmra.mxu0 %v1558
      %v1700 = vpop.f32.mrf.mxu0
      %v1701 = vadd.f32 0.0, %v1700
      %v1702 = vpop.f32.mrf.mxu0
      %v1703 = vadd.f32 0.0, %v1702
      %1704 = vdwg.mxu0
      %1705 = vmatpush.bf16.msra.mxu0 0
      %1706 = vmatpush.bf16.msra.mxu0 0
      %1707 = vmatpush.bf16.msra.mxu0 0
      %1708 = vmatpush.bf16.msra.mxu0 0
      %1709 = vmatpush.bf16.msra.mxu0 0
      %1710 = vmatpush.bf16.msra.mxu0 0
      %1711 = vmatpush.bf16.msra.mxu0 %v1642
      %1712 = vmatpush.bf16.msra.mxu0 %v1640
      %1713 = vmatmul.bf16.gmra.mxu0 %v1665
      %v1714 = vpop.f32.mrf.mxu0
      %v1715 = vadd.f32 %v1686, %v1714
      %v1716 = vpop.f32.mrf.mxu0
      %v1717 = vadd.f32 %v1688, %v1716
      %1718 = vmatmul.bf16.gmra.mxu0 %v1668
      %v1719 = vpop.f32.mrf.mxu0
      %v1720 = vadd.f32 %v1691, %v1719
      %v1721 = vpop.f32.mrf.mxu0
      %v1722 = vadd.f32 %v1693, %v1721
      %1723 = vmatmul.bf16.gmra.mxu0 %v1671
      %v1724 = vpop.f32.mrf.mxu0
      %v1725 = vadd.f32 %v1696, %v1724
      %v1726 = vpop.f32.mrf.mxu0
      %v1727 = vadd.f32 %v1698, %v1726
      %1728 = vmatmul.bf16.gmra.mxu0 %v1674
      %v1729 = vpop.f32.mrf.mxu0
      %v1730 = vadd.f32 %v1701, %v1729
      %v1731 = vpop.f32.mrf.mxu0
      %v1732 = vadd.f32 %v1703, %v1731
      %1733 = vdwg.mxu0
      %1734 = vmatpush.bf16.msra.mxu0 %v1639
      %1735 = vmatpush.bf16.msra.mxu0 %v1637
      %1736 = vmatpush.bf16.msra.mxu0 %v1635
      %1737 = vmatpush.bf16.msra.mxu0 %v1633
      %1738 = vmatpush.bf16.msra.mxu0 %v1631
      %1739 = vmatpush.bf16.msra.mxu0 %v1629
      %1740 = vmatpush.bf16.msra.mxu0 %v1627
      %1741 = vmatpush.bf16.msra.mxu0 %v1625
      %1742 = vmatmul.bf16.gmra.mxu0 %v1552
      %v1743 = vpop.f32.mrf.mxu0
      %v1744 = vadd.f32 0.0, %v1743
      %v1745 = vpop.f32.mrf.mxu0
      %v1746 = vadd.f32 0.0, %v1745
      %1747 = vmatmul.bf16.gmra.mxu0 %v1554
      %v1748 = vpop.f32.mrf.mxu0
      %v1749 = vadd.f32 0.0, %v1748
      %v1750 = vpop.f32.mrf.mxu0
      %v1751 = vadd.f32 0.0, %v1750
      %1752 = vmatmul.bf16.gmra.mxu0 %v1556
      %v1753 = vpop.f32.mrf.mxu0
      %v1754 = vadd.f32 0.0, %v1753
      %v1755 = vpop.f32.mrf.mxu0
      %v1756 = vadd.f32 0.0, %v1755
      %1757 = vmatmul.bf16.gmra.mxu0 %v1558
      %v1758 = vpop.f32.mrf.mxu0
      %v1759 = vadd.f32 0.0, %v1758
      %v1760 = vpop.f32.mrf.mxu0
      %v1761 = vadd.f32 0.0, %v1760
      %1762 = vdwg.mxu0
      %1763 = vmatpush.bf16.msra.mxu0 0
      %1764 = vmatpush.bf16.msra.mxu0 0
      %1765 = vmatpush.bf16.msra.mxu0 0
      %1766 = vmatpush.bf16.msra.mxu0 0
      %1767 = vmatpush.bf16.msra.mxu0 0
      %1768 = vmatpush.bf16.msra.mxu0 0
      %1769 = vmatpush.bf16.msra.mxu0 %v1643
      %1770 = vmatpush.bf16.msra.mxu0 %v1641
      %1771 = vmatmul.bf16.gmra.mxu0 %v1665
      %v1772 = vpop.f32.mrf.mxu0
      %v1773 = vadd.f32 %v1744, %v1772
      %v1774 = vpop.f32.mrf.mxu0
      %v1775 = vadd.f32 %v1746, %v1774
      %1776 = vmatmul.bf16.gmra.mxu0 %v1668
      %v1777 = vpop.f32.mrf.mxu0
      %v1778 = vadd.f32 %v1749, %v1777
      %v1779 = vpop.f32.mrf.mxu0
      %v1780 = vadd.f32 %v1751, %v1779
      %1781 = vmatmul.bf16.gmra.mxu0 %v1671
      %v1782 = vpop.f32.mrf.mxu0
      %v1783 = vadd.f32 %v1754, %v1782
      %v1784 = vpop.f32.mrf.mxu0
      %v1785 = vadd.f32 %v1756, %v1784
      %1786 = vmatmul.bf16.gmra.mxu0 %v1674
      %v1787 = vpop.f32.mrf.mxu0
      %v1788 = vadd.f32 %v1759, %v1787
      %v1789 = vpop.f32.mrf.mxu0
      %v1790 = vadd.f32 %v1761, %v1789
      %1791 = vdwg.mxu0
      %v1792 = vadd.f32 %v1339, %v1715
      %v1793 = vadd.f32 %v1397, %v1773
      %v1794 = vadd.f32 %v1341, %v1717
      %v1795 = vadd.f32 %v1399, %v1775
      %v1796 = vadd.f32 %v1344, %v1720
      %v1797 = vadd.f32 %v1402, %v1778
      %v1798 = vadd.f32 %v1346, %v1722
      %v1799 = vadd.f32 %v1404, %v1780
      %v1800 = vadd.f32 %v1349, %v1725
      %v1801 = vadd.f32 %v1407, %v1783
      %v1802 = vadd.f32 %v1351, %v1727
      %v1803 = vadd.f32 %v1409, %v1785
      %v1804 = vadd.f32 %v1354, %v1730
      %v1805 = vadd.f32 %v1412, %v1788
      %v1806 = vadd.f32 %v1356, %v1732
      %v1807 = vadd.f32 %v1414, %v1790
      %v1808 = vld [vmem:[%s594] sm:$0xff]
      %v1809 = vld [vmem:[%s594 + $0x8] sm:$0xff]
      %v1810 = vld [vmem:[%s594 + $0x20] sm:$0xff]
      %v1811 = vld [vmem:[%s594 + $0x28] sm:$0xff]
      %v1812 = vld [vmem:[%s594 + $0x40] sm:$0xff]
      %v1813 = vld [vmem:[%s594 + $0x48] sm:$0xff]
      %v1814 = vld [vmem:[%s594 + $0x60] sm:$0xff]
      %v1815 = vld [vmem:[%s594 + $0x68] sm:$0xff]
      %v1816 = vld [vmem:[%s594 + $0x80] sm:$0xff]
      %v1817 = vld [vmem:[%s594 + $0x88] sm:$0xff]
      %v1818 = vld [vmem:[%s594 + $0xa0] sm:$0xff]
      %v1819 = vld [vmem:[%s594 + $0xa8] sm:$0xff]
      %v1820 = vld [vmem:[%s594 + $0xc0] sm:$0xff]
      %v1821 = vld [vmem:[%s594 + $0xc8] sm:$0xff]
      %v1822 = vld [vmem:[%s594 + $0xe0] sm:$0xff]
      %v1823 = vld [vmem:[%s594 + $0xe8] sm:$0xff]
      %v1824 = vpack.c.bf16 %v1809, %v1808
      %v1825 = vpack.c.bf16 %v1811, %v1810
      %v1826 = vpack.c.bf16 %v1813, %v1812
      %v1827 = vpack.c.bf16 %v1815, %v1814
      %v1828 = vpack.c.bf16 %v1817, %v1816
      %v1829 = vpack.c.bf16 %v1819, %v1818
      %v1830 = vpack.c.bf16 %v1821, %v1820
      %v1831 = vpack.c.bf16 %v1823, %v1822
      %s1832 = scalar_lea.vmem %s1, 480
      %v1833 = vld [vmem:[%s1832] sm:$0xff]
      %v1834 = vld [vmem:[%s1832 + $0x8] sm:$0xff]
      %v1835 = vld [vmem:[%s1832 + $0x10] sm:$0xff]
      %v1836 = vld [vmem:[%s1832 + $0x18] sm:$0xff]
      %v1837 = vld [vmem:[%s1832 + $0x20] sm:$0xff]
      %v1838 = vld [vmem:[%s1832 + $0x28] sm:$0xff]
      %v1839 = vld [vmem:[%s1832 + $0x30] sm:$0xff]
      %v1840 = vld [vmem:[%s1832 + $0x38] sm:$0xff]
      %v1841 = vld [vmem:[%s1832 + $0x40] sm:$0xff]
      %v1842 = vld [vmem:[%s1832 + $0x48] sm:$0xff]
      %v1843 = vld [vmem:[%s1832 + $0x50] sm:$0xff]
      %v1844 = vld [vmem:[%s1832 + $0x58] sm:$0xff]
      %v1845 = vld [vmem:[%s1832 + $0x60] sm:$0xff]
      %v1846 = vld [vmem:[%s1832 + $0x68] sm:$0xff]
      %v1847 = vld [vmem:[%s1832 + $0x70] sm:$0xff]
      %v1848 = vld [vmem:[%s1832 + $0x78] sm:$0xff]
      %v1849 = vld [vmem:[%s1832 + $0x80] sm:$0xff]
      %v1850 = vld [vmem:[%s1832 + $0x88] sm:$0xff]
      %v1851 = vld [vmem:[%s1832 + $0x90] sm:$0xff]
      %v1852 = vld [vmem:[%s1832 + $0x98] sm:$0xff]
      %v1861 = vunpack.c.l.b16 %v1824
      %v1862 = vunpack.c.h.b16 %v1824
      %v1863 = vunpack.c.l.b16 %v1825
      %v1864 = vunpack.c.h.b16 %v1825
      %v1865 = vunpack.c.l.b16 %v1826
      %v1866 = vunpack.c.h.b16 %v1826
      %v1867 = vunpack.c.l.b16 %v1827
      %v1868 = vunpack.c.h.b16 %v1827
      %v1869 = vunpack.c.l.b16 %v1828
      %v1870 = vunpack.c.h.b16 %v1828
      %v1871 = vunpack.c.l.b16 %v1829
      %v1872 = vunpack.c.h.b16 %v1829
      %v1873 = vunpack.c.l.b16 %v1830
      %v1874 = vunpack.c.h.b16 %v1830
      %v1875 = vunpack.c.l.b16 %v1831
      %v1876 = vunpack.c.h.b16 %v1831
      %v1877 = vpack.c.b16 %v1863, %v1861
      %v1878 = vpack.c.b16 %v1864, %v1862
      %v1879 = vpack.c.b16 %v1867, %v1865
      %v1880 = vpack.c.b16 %v1868, %v1866
      %v1881 = vpack.c.b16 %v1871, %v1869
      %v1882 = vpack.c.b16 %v1872, %v1870
      %v1883 = vpack.c.b16 %v1875, %v1873
      %v1884 = vpack.c.b16 %v1876, %v1874
      %v1909 = vunpack.c.l.b16 %v1833
      %v1910 = vunpack.c.h.b16 %v1833
      %v1911 = vunpack.c.l.b16 %v1834
      %v1912 = vunpack.c.h.b16 %v1834
      %v1913 = vunpack.c.l.b16 %v1835
      %v1914 = vunpack.c.h.b16 %v1835
      %v1915 = vunpack.c.l.b16 %v1836
      %v1916 = vunpack.c.h.b16 %v1836
      %v1917 = vunpack.c.l.b16 %v1837
      %v1918 = vunpack.c.h.b16 %v1837
      %v1919 = vunpack.c.l.b16 %v1838
      %v1920 = vunpack.c.h.b16 %v1838
      %v1921 = vunpack.c.l.b16 %v1839
      %v1922 = vunpack.c.h.b16 %v1839
      %v1923 = vunpack.c.l.b16 %v1840
      %v1924 = vunpack.c.h.b16 %v1840
      %v1925 = vunpack.c.l.b16 %v1841
      %v1926 = vunpack.c.h.b16 %v1841
      %v1927 = vunpack.c.l.b16 %v1842
      %v1928 = vunpack.c.h.b16 %v1842
      %v1929 = vunpack.c.l.b16 %v1843
      %v1930 = vunpack.c.h.b16 %v1843
      %v1931 = vunpack.c.l.b16 %v1844
      %v1932 = vunpack.c.h.b16 %v1844
      %v1933 = vunpack.c.l.b16 %v1845
      %v1934 = vunpack.c.h.b16 %v1845
      %v1935 = vunpack.c.l.b16 %v1846
      %v1936 = vunpack.c.h.b16 %v1846
      %v1937 = vunpack.c.l.b16 %v1847
      %v1938 = vunpack.c.h.b16 %v1847
      %v1939 = vunpack.c.l.b16 %v1848
      %v1940 = vunpack.c.h.b16 %v1848
      %v1941 = vunpack.c.l.b16 %v1849
      %v1942 = vunpack.c.h.b16 %v1849
      %v1943 = vunpack.c.l.b16 %v1850
      %v1944 = vunpack.c.h.b16 %v1850
      %v1945 = vunpack.c.l.b16 %v1851
      %v1946 = vunpack.c.h.b16 %v1851
      %v1947 = vunpack.c.l.b16 %v1852
      %v1948 = vunpack.c.h.b16 %v1852
      %v1949 = vpack.c.b16 %v1911, %v1909
      %v1950 = vpack.c.b16 %v1912, %v1910
      %v1951 = vpack.c.b16 %v1915, %v1913
      %v1952 = vpack.c.b16 %v1916, %v1914
      %v1953 = vpack.c.b16 %v1919, %v1917
      %v1954 = vpack.c.b16 %v1920, %v1918
      %v1955 = vpack.c.b16 %v1923, %v1921
      %v1956 = vpack.c.b16 %v1924, %v1922
      %v1957 = vpack.c.b16 %v1927, %v1925
      %v1958 = vpack.c.b16 %v1928, %v1926
      %v1959 = vpack.c.b16 %v1931, %v1929
      %v1960 = vpack.c.b16 %v1932, %v1930
      %v1961 = vpack.c.b16 %v1935, %v1933
      %v1962 = vpack.c.b16 %v1936, %v1934
      %v1963 = vpack.c.b16 %v1939, %v1937
      %v1964 = vpack.c.b16 %v1940, %v1938
      %v1965 = vpack.c.b16 %v1943, %v1941
      %v1966 = vpack.c.b16 %v1944, %v1942
      %v1967 = vpack.c.b16 %v1947, %v1945
      %v1968 = vpack.c.b16 %v1948, %v1946
      %v1990 = vsel %vm443, %v1878, 0
      %v1993 = vsel %vm443, %v1880, 0
      %v1996 = vsel %vm443, %v1882, 0
      %v1999 = vsel %vm443, %v1884, 0
      %2001 = vmatpush.bf16.msra.mxu0 %v1963
      %2002 = vmatpush.bf16.msra.mxu0 %v1961
      %2003 = vmatpush.bf16.msra.mxu0 %v1959
      %2004 = vmatpush.bf16.msra.mxu0 %v1957
      %2005 = vmatpush.bf16.msra.mxu0 %v1955
      %2006 = vmatpush.bf16.msra.mxu0 %v1953
      %2007 = vmatpush.bf16.msra.mxu0 %v1951
      %2008 = vmatpush.bf16.msra.mxu0 %v1949
      %2009 = vmatmul.bf16.gmra.mxu0 %v1877
      %v2010 = vpop.f32.mrf.mxu0
      %v2011 = vadd.f32 0.0, %v2010
      %v2012 = vpop.f32.mrf.mxu0
      %v2013 = vadd.f32 0.0, %v2012
      %2014 = vmatmul.bf16.gmra.mxu0 %v1879
      %v2015 = vpop.f32.mrf.mxu0
      %v2016 = vadd.f32 0.0, %v2015
      %v2017 = vpop.f32.mrf.mxu0
      %v2018 = vadd.f32 0.0, %v2017
      %2019 = vmatmul.bf16.gmra.mxu0 %v1881
      %v2020 = vpop.f32.mrf.mxu0
      %v2021 = vadd.f32 0.0, %v2020
      %v2022 = vpop.f32.mrf.mxu0
      %v2023 = vadd.f32 0.0, %v2022
      %2024 = vmatmul.bf16.gmra.mxu0 %v1883
      %v2025 = vpop.f32.mrf.mxu0
      %v2026 = vadd.f32 0.0, %v2025
      %v2027 = vpop.f32.mrf.mxu0
      %v2028 = vadd.f32 0.0, %v2027
      %2029 = vdwg.mxu0
      %2030 = vmatpush.bf16.msra.mxu0 0
      %2031 = vmatpush.bf16.msra.mxu0 0
      %2032 = vmatpush.bf16.msra.mxu0 0
      %2033 = vmatpush.bf16.msra.mxu0 0
      %2034 = vmatpush.bf16.msra.mxu0 0
      %2035 = vmatpush.bf16.msra.mxu0 0
      %2036 = vmatpush.bf16.msra.mxu0 %v1967
      %2037 = vmatpush.bf16.msra.mxu0 %v1965
      %2038 = vmatmul.bf16.gmra.mxu0 %v1990
      %v2039 = vpop.f32.mrf.mxu0
      %v2040 = vadd.f32 %v2011, %v2039
      %v2041 = vpop.f32.mrf.mxu0
      %v2042 = vadd.f32 %v2013, %v2041
      %2043 = vmatmul.bf16.gmra.mxu0 %v1993
      %v2044 = vpop.f32.mrf.mxu0
      %v2045 = vadd.f32 %v2016, %v2044
      %v2046 = vpop.f32.mrf.mxu0
      %v2047 = vadd.f32 %v2018, %v2046
      %2048 = vmatmul.bf16.gmra.mxu0 %v1996
      %v2049 = vpop.f32.mrf.mxu0
      %v2050 = vadd.f32 %v2021, %v2049
      %v2051 = vpop.f32.mrf.mxu0
      %v2052 = vadd.f32 %v2023, %v2051
      %2053 = vmatmul.bf16.gmra.mxu0 %v1999
      %v2054 = vpop.f32.mrf.mxu0
      %v2055 = vadd.f32 %v2026, %v2054
      %v2056 = vpop.f32.mrf.mxu0
      %v2057 = vadd.f32 %v2028, %v2056
      %2058 = vdwg.mxu0
      %2059 = vmatpush.bf16.msra.mxu0 %v1964
      %2060 = vmatpush.bf16.msra.mxu0 %v1962
      %2061 = vmatpush.bf16.msra.mxu0 %v1960
      %2062 = vmatpush.bf16.msra.mxu0 %v1958
      %2063 = vmatpush.bf16.msra.mxu0 %v1956
      %2064 = vmatpush.bf16.msra.mxu0 %v1954
      %2065 = vmatpush.bf16.msra.mxu0 %v1952
      %2066 = vmatpush.bf16.msra.mxu0 %v1950
      %2067 = vmatmul.bf16.gmra.mxu0 %v1877
      %v2068 = vpop.f32.mrf.mxu0
      %v2069 = vadd.f32 0.0, %v2068
      %v2070 = vpop.f32.mrf.mxu0
      %v2071 = vadd.f32 0.0, %v2070
      %2072 = vmatmul.bf16.gmra.mxu0 %v1879
      %v2073 = vpop.f32.mrf.mxu0
      %v2074 = vadd.f32 0.0, %v2073
      %v2075 = vpop.f32.mrf.mxu0
      %v2076 = vadd.f32 0.0, %v2075
      %2077 = vmatmul.bf16.gmra.mxu0 %v1881
      %v2078 = vpop.f32.mrf.mxu0
      %v2079 = vadd.f32 0.0, %v2078
      %v2080 = vpop.f32.mrf.mxu0
      %v2081 = vadd.f32 0.0, %v2080
      %2082 = vmatmul.bf16.gmra.mxu0 %v1883
      %v2083 = vpop.f32.mrf.mxu0
      %v2084 = vadd.f32 0.0, %v2083
      %v2085 = vpop.f32.mrf.mxu0
      %v2086 = vadd.f32 0.0, %v2085
      %2087 = vdwg.mxu0
      %2088 = vmatpush.bf16.msra.mxu0 0
      %2089 = vmatpush.bf16.msra.mxu0 0
      %2090 = vmatpush.bf16.msra.mxu0 0
      %2091 = vmatpush.bf16.msra.mxu0 0
      %2092 = vmatpush.bf16.msra.mxu0 0
      %2093 = vmatpush.bf16.msra.mxu0 0
      %2094 = vmatpush.bf16.msra.mxu0 %v1968
      %2095 = vmatpush.bf16.msra.mxu0 %v1966
      %2096 = vmatmul.bf16.gmra.mxu0 %v1990
      %v2097 = vpop.f32.mrf.mxu0
      %v2098 = vadd.f32 %v2069, %v2097
      %v2099 = vpop.f32.mrf.mxu0
      %v2100 = vadd.f32 %v2071, %v2099
      %2101 = vmatmul.bf16.gmra.mxu0 %v1993
      %v2102 = vpop.f32.mrf.mxu0
      %v2103 = vadd.f32 %v2074, %v2102
      %v2104 = vpop.f32.mrf.mxu0
      %v2105 = vadd.f32 %v2076, %v2104
      %2106 = vmatmul.bf16.gmra.mxu0 %v1996
      %v2107 = vpop.f32.mrf.mxu0
      %v2108 = vadd.f32 %v2079, %v2107
      %v2109 = vpop.f32.mrf.mxu0
      %v2110 = vadd.f32 %v2081, %v2109
      %2111 = vmatmul.bf16.gmra.mxu0 %v1999
      %v2112 = vpop.f32.mrf.mxu0
      %v2113 = vadd.f32 %v2084, %v2112
      %v2114 = vpop.f32.mrf.mxu0
      %v2115 = vadd.f32 %v2086, %v2114
      %2116 = vdwg.mxu0
      %v2117 = vadd.f32 %v1792, %v2040
      %v2118 = vadd.f32 %v1793, %v2098
      %v2119 = vadd.f32 %v1794, %v2042
      %v2120 = vadd.f32 %v1795, %v2100
      %v2121 = vadd.f32 %v1796, %v2045
      %v2122 = vadd.f32 %v1797, %v2103
      %v2123 = vadd.f32 %v1798, %v2047
      %v2124 = vadd.f32 %v1799, %v2105
      %v2125 = vadd.f32 %v1800, %v2050
      %v2126 = vadd.f32 %v1801, %v2108
      %v2127 = vadd.f32 %v1802, %v2052
      %v2128 = vadd.f32 %v1803, %v2110
      %v2129 = vadd.f32 %v1804, %v2055
      %v2130 = vadd.f32 %v1805, %v2113
      %v2131 = vadd.f32 %v1806, %v2057
      %v2132 = vadd.f32 %v1807, %v2115
      %v2133 = vld [vmem:[%s594] sm:$0xfe]
      %v2134 = vld [vmem:[%s594 + $0x8] sm:$0xfe]
      %v2135 = vld [vmem:[%s594 + $0x10] sm:$0x1]
      %v2136 = vld [vmem:[%s594 + $0x18] sm:$0x1]
      %v2137 = vld [vmem:[%s594 + $0x20] sm:$0xfe]
      %v2138 = vld [vmem:[%s594 + $0x28] sm:$0xfe]
      %v2139 = vld [vmem:[%s594 + $0x30] sm:$0x1]
      %v2140 = vld [vmem:[%s594 + $0x38] sm:$0x1]
      %v2141 = vld [vmem:[%s594 + $0x40] sm:$0xfe]
      %v2142 = vld [vmem:[%s594 + $0x48] sm:$0xfe]
      %v2143 = vld [vmem:[%s594 + $0x50] sm:$0x1]
      %v2144 = vld [vmem:[%s594 + $0x58] sm:$0x1]
      %v2145 = vld [vmem:[%s594 + $0x60] sm:$0xfe]
      %v2146 = vld [vmem:[%s594 + $0x68] sm:$0xfe]
      %v2147 = vld [vmem:[%s594 + $0x70] sm:$0x1]
      %v2148 = vld [vmem:[%s594 + $0x78] sm:$0x1]
      %v2149 = vld [vmem:[%s594 + $0x80] sm:$0xfe]
      %v2150 = vld [vmem:[%s594 + $0x88] sm:$0xfe]
      %v2151 = vld [vmem:[%s594 + $0x90] sm:$0x1]
      %v2152 = vld [vmem:[%s594 + $0x98] sm:$0x1]
      %v2153 = vld [vmem:[%s594 + $0xa0] sm:$0xfe]
      %v2154 = vld [vmem:[%s594 + $0xa8] sm:$0xfe]
      %v2155 = vld [vmem:[%s594 + $0xb0] sm:$0x1]
      %v2156 = vld [vmem:[%s594 + $0xb8] sm:$0x1]
      %v2157 = vld [vmem:[%s594 + $0xc0] sm:$0xfe]
      %v2158 = vld [vmem:[%s594 + $0xc8] sm:$0xfe]
      %v2159 = vld [vmem:[%s594 + $0xd0] sm:$0x1]
      %v2160 = vld [vmem:[%s594 + $0xd8] sm:$0x1]
      %v2161 = vld [vmem:[%s594 + $0xe0] sm:$0xfe]
      %v2162 = vld [vmem:[%s594 + $0xe8] sm:$0xfe]
      %v2163 = vld [vmem:[%s594 + $0xf0] sm:$0x1]
      %v2164 = vld [vmem:[%s594 + $0xf8] sm:$0x1]
      %v2165 = vpack.c.bf16 %v2134, %v2133
      %v2166 = vpack.c.bf16 %v2136, %v2135
      %v2167 = vpack.c.bf16 %v2138, %v2137
      %v2168 = vpack.c.bf16 %v2140, %v2139
      %v2169 = vpack.c.bf16 %v2142, %v2141
      %v2170 = vpack.c.bf16 %v2144, %v2143
      %v2171 = vpack.c.bf16 %v2146, %v2145
      %v2172 = vpack.c.bf16 %v2148, %v2147
      %v2173 = vpack.c.bf16 %v2150, %v2149
      %v2174 = vpack.c.bf16 %v2152, %v2151
      %v2175 = vpack.c.bf16 %v2154, %v2153
      %v2176 = vpack.c.bf16 %v2156, %v2155
      %v2177 = vpack.c.bf16 %v2158, %v2157
      %v2178 = vpack.c.bf16 %v2160, %v2159
      %v2179 = vpack.c.bf16 %v2162, %v2161
      %v2180 = vpack.c.bf16 %v2164, %v2163
      %v2182 = vshrl.u32 %v2165, 16
      %v2184 = vrot.slane %v2182, 4
      %v2185 = vshll.u32 %v2165, 16
      %v2187 = vrot.slane %v2185, 5
      %v2188 = vor.u32 %v2184, %v2187
      %v2189 = vrot.slane %v2188, 4
      %v2191 = vshll.u32 %v2166, 16
      %v2193 = vrot.slane %v2191, 5
      %v2194 = vsel %vm762, %v2189, %v2193
      %v2196 = vshrl.u32 %v2167, 16
      %v2198 = vrot.slane %v2196, 4
      %v2199 = vshll.u32 %v2167, 16
      %v2201 = vrot.slane %v2199, 5
      %v2202 = vor.u32 %v2198, %v2201
      %v2203 = vrot.slane %v2202, 4
      %v2205 = vshll.u32 %v2168, 16
      %v2207 = vrot.slane %v2205, 5
      %v2208 = vsel %vm762, %v2203, %v2207
      %v2210 = vshrl.u32 %v2169, 16
      %v2212 = vrot.slane %v2210, 4
      %v2213 = vshll.u32 %v2169, 16
      %v2215 = vrot.slane %v2213, 5
      %v2216 = vor.u32 %v2212, %v2215
      %v2217 = vrot.slane %v2216, 4
      %v2219 = vshll.u32 %v2170, 16
      %v2221 = vrot.slane %v2219, 5
      %v2222 = vsel %vm762, %v2217, %v2221
      %v2224 = vshrl.u32 %v2171, 16
      %v2226 = vrot.slane %v2224, 4
      %v2227 = vshll.u32 %v2171, 16
      %v2229 = vrot.slane %v2227, 5
      %v2230 = vor.u32 %v2226, %v2229
      %v2231 = vrot.slane %v2230, 4
      %v2233 = vshll.u32 %v2172, 16
      %v2235 = vrot.slane %v2233, 5
      %v2236 = vsel %vm762, %v2231, %v2235
      %v2238 = vshrl.u32 %v2173, 16
      %v2240 = vrot.slane %v2238, 4
      %v2241 = vshll.u32 %v2173, 16
      %v2243 = vrot.slane %v2241, 5
      %v2244 = vor.u32 %v2240, %v2243
      %v2245 = vrot.slane %v2244, 4
      %v2247 = vshll.u32 %v2174, 16
      %v2249 = vrot.slane %v2247, 5
      %v2250 = vsel %vm762, %v2245, %v2249
      %v2252 = vshrl.u32 %v2175, 16
      %v2254 = vrot.slane %v2252, 4
      %v2255 = vshll.u32 %v2175, 16
      %v2257 = vrot.slane %v2255, 5
      %v2258 = vor.u32 %v2254, %v2257
      %v2259 = vrot.slane %v2258, 4
      %v2261 = vshll.u32 %v2176, 16
      %v2263 = vrot.slane %v2261, 5
      %v2264 = vsel %vm762, %v2259, %v2263
      %v2266 = vshrl.u32 %v2177, 16
      %v2268 = vrot.slane %v2266, 4
      %v2269 = vshll.u32 %v2177, 16
      %v2271 = vrot.slane %v2269, 5
      %v2272 = vor.u32 %v2268, %v2271
      %v2273 = vrot.slane %v2272, 4
      %v2275 = vshll.u32 %v2178, 16
      %v2277 = vrot.slane %v2275, 5
      %v2278 = vsel %vm762, %v2273, %v2277
      %v2280 = vshrl.u32 %v2179, 16
      %v2282 = vrot.slane %v2280, 4
      %v2283 = vshll.u32 %v2179, 16
      %v2285 = vrot.slane %v2283, 5
      %v2286 = vor.u32 %v2282, %v2285
      %v2287 = vrot.slane %v2286, 4
      %v2289 = vshll.u32 %v2180, 16
      %v2291 = vrot.slane %v2289, 5
      %v2292 = vsel %vm762, %v2287, %v2291
      %s2293 = scalar_lea.vmem %s1, 640
      %v2294 = vld [vmem:[%s2293] sm:$0xff]
      %v2295 = vld [vmem:[%s2293 + $0x8] sm:$0xff]
      %v2296 = vld [vmem:[%s2293 + $0x10] sm:$0xff]
      %v2297 = vld [vmem:[%s2293 + $0x18] sm:$0xff]
      %v2298 = vld [vmem:[%s2293 + $0x20] sm:$0xff]
      %v2299 = vld [vmem:[%s2293 + $0x28] sm:$0xff]
      %v2300 = vld [vmem:[%s2293 + $0x30] sm:$0xff]
      %v2301 = vld [vmem:[%s2293 + $0x38] sm:$0xff]
      %v2302 = vld [vmem:[%s2293 + $0x40] sm:$0xff]
      %v2303 = vld [vmem:[%s2293 + $0x48] sm:$0xff]
      %v2304 = vld [vmem:[%s2293 + $0x50] sm:$0xff]
      %v2305 = vld [vmem:[%s2293 + $0x58] sm:$0xff]
      %v2306 = vld [vmem:[%s2293 + $0x60] sm:$0xff]
      %v2307 = vld [vmem:[%s2293 + $0x68] sm:$0xff]
      %v2308 = vld [vmem:[%s2293 + $0x70] sm:$0xff]
      %v2309 = vld [vmem:[%s2293 + $0x78] sm:$0xff]
      %v2310 = vld [vmem:[%s2293 + $0x80] sm:$0xff]
      %v2311 = vld [vmem:[%s2293 + $0x88] sm:$0xff]
      %v2312 = vld [vmem:[%s2293 + $0x90] sm:$0xff]
      %v2313 = vld [vmem:[%s2293 + $0x98] sm:$0xff]
      %v2314 = vunpack.c.l.b16 %v2194
      %v2315 = vunpack.c.h.b16 %v2194
      %v2316 = vunpack.c.l.b16 %v2208
      %v2317 = vunpack.c.h.b16 %v2208
      %v2318 = vunpack.c.l.b16 %v2222
      %v2319 = vunpack.c.h.b16 %v2222
      %v2320 = vunpack.c.l.b16 %v2236
      %v2321 = vunpack.c.h.b16 %v2236
      %v2322 = vunpack.c.l.b16 %v2250
      %v2323 = vunpack.c.h.b16 %v2250
      %v2324 = vunpack.c.l.b16 %v2264
      %v2325 = vunpack.c.h.b16 %v2264
      %v2326 = vunpack.c.l.b16 %v2278
      %v2327 = vunpack.c.h.b16 %v2278
      %v2328 = vunpack.c.l.b16 %v2292
      %v2329 = vunpack.c.h.b16 %v2292
      %v2330 = vpack.c.b16 %v2316, %v2314
      %v2331 = vpack.c.b16 %v2317, %v2315
      %v2332 = vpack.c.b16 %v2320, %v2318
      %v2333 = vpack.c.b16 %v2321, %v2319
      %v2334 = vpack.c.b16 %v2324, %v2322
      %v2335 = vpack.c.b16 %v2325, %v2323
      %v2336 = vpack.c.b16 %v2328, %v2326
      %v2337 = vpack.c.b16 %v2329, %v2327
      %v2362 = vunpack.c.l.b16 %v2294
      %v2363 = vunpack.c.h.b16 %v2294
      %v2364 = vunpack.c.l.b16 %v2295
      %v2365 = vunpack.c.h.b16 %v2295
      %v2366 = vunpack.c.l.b16 %v2296
      %v2367 = vunpack.c.h.b16 %v2296
      %v2368 = vunpack.c.l.b16 %v2297
      %v2369 = vunpack.c.h.b16 %v2297
      %v2370 = vunpack.c.l.b16 %v2298
      %v2371 = vunpack.c.h.b16 %v2298
      %v2372 = vunpack.c.l.b16 %v2299
      %v2373 = vunpack.c.h.b16 %v2299
      %v2374 = vunpack.c.l.b16 %v2300
      %v2375 = vunpack.c.h.b16 %v2300
      %v2376 = vunpack.c.l.b16 %v2301
      %v2377 = vunpack.c.h.b16 %v2301
      %v2378 = vunpack.c.l.b16 %v2302
      %v2379 = vunpack.c.h.b16 %v2302
      %v2380 = vunpack.c.l.b16 %v2303
      %v2381 = vunpack.c.h.b16 %v2303
      %v2382 = vunpack.c.l.b16 %v2304
      %v2383 = vunpack.c.h.b16 %v2304
      %v2384 = vunpack.c.l.b16 %v2305
      %v2385 = vunpack.c.h.b16 %v2305
      %v2386 = vunpack.c.l.b16 %v2306
      %v2387 = vunpack.c.h.b16 %v2306
      %v2388 = vunpack.c.l.b16 %v2307
      %v2389 = vunpack.c.h.b16 %v2307
      %v2390 = vunpack.c.l.b16 %v2308
      %v2391 = vunpack.c.h.b16 %v2308
      %v2392 = vunpack.c.l.b16 %v2309
      %v2393 = vunpack.c.h.b16 %v2309
      %v2394 = vunpack.c.l.b16 %v2310
      %v2395 = vunpack.c.h.b16 %v2310
      %v2396 = vunpack.c.l.b16 %v2311
      %v2397 = vunpack.c.h.b16 %v2311
      %v2398 = vunpack.c.l.b16 %v2312
      %v2399 = vunpack.c.h.b16 %v2312
      %v2400 = vunpack.c.l.b16 %v2313
      %v2401 = vunpack.c.h.b16 %v2313
      %v2402 = vpack.c.b16 %v2364, %v2362
      %v2403 = vpack.c.b16 %v2365, %v2363
      %v2404 = vpack.c.b16 %v2368, %v2366
      %v2405 = vpack.c.b16 %v2369, %v2367
      %v2406 = vpack.c.b16 %v2372, %v2370
      %v2407 = vpack.c.b16 %v2373, %v2371
      %v2408 = vpack.c.b16 %v2376, %v2374
      %v2409 = vpack.c.b16 %v2377, %v2375
      %v2410 = vpack.c.b16 %v2380, %v2378
      %v2411 = vpack.c.b16 %v2381, %v2379
      %v2412 = vpack.c.b16 %v2384, %v2382
      %v2413 = vpack.c.b16 %v2385, %v2383
      %v2414 = vpack.c.b16 %v2388, %v2386
      %v2415 = vpack.c.b16 %v2389, %v2387
      %v2416 = vpack.c.b16 %v2392, %v2390
      %v2417 = vpack.c.b16 %v2393, %v2391
      %v2418 = vpack.c.b16 %v2396, %v2394
      %v2419 = vpack.c.b16 %v2397, %v2395
      %v2420 = vpack.c.b16 %v2400, %v2398
      %v2421 = vpack.c.b16 %v2401, %v2399
      %v2443 = vsel %vm443, %v2331, 0
      %v2446 = vsel %vm443, %v2333, 0
      %v2449 = vsel %vm443, %v2335, 0
      %v2452 = vsel %vm443, %v2337, 0
      %2454 = vmatpush.bf16.msra.mxu0 %v2416
      %2455 = vmatpush.bf16.msra.mxu0 %v2414
      %2456 = vmatpush.bf16.msra.mxu0 %v2412
      %2457 = vmatpush.bf16.msra.mxu0 %v2410
      %2458 = vmatpush.bf16.msra.mxu0 %v2408
      %2459 = vmatpush.bf16.msra.mxu0 %v2406
      %2460 = vmatpush.bf16.msra.mxu0 %v2404
      %2461 = vmatpush.bf16.msra.mxu0 %v2402
      %2462 = vmatmul.bf16.gmra.mxu0 %v2330
      %v2463 = vpop.f32.mrf.mxu0
      %v2464 = vadd.f32 0.0, %v2463
      %v2465 = vpop.f32.mrf.mxu0
      %v2466 = vadd.f32 0.0, %v2465
      %2467 = vmatmul.bf16.gmra.mxu0 %v2332
      %v2468 = vpop.f32.mrf.mxu0
      %v2469 = vadd.f32 0.0, %v2468
      %v2470 = vpop.f32.mrf.mxu0
      %v2471 = vadd.f32 0.0, %v2470
      %2472 = vmatmul.bf16.gmra.mxu0 %v2334
      %v2473 = vpop.f32.mrf.mxu0
      %v2474 = vadd.f32 0.0, %v2473
      %v2475 = vpop.f32.mrf.mxu0
      %v2476 = vadd.f32 0.0, %v2475
      %2477 = vmatmul.bf16.gmra.mxu0 %v2336
      %v2478 = vpop.f32.mrf.mxu0
      %v2479 = vadd.f32 0.0, %v2478
      %v2480 = vpop.f32.mrf.mxu0
      %v2481 = vadd.f32 0.0, %v2480
      %2482 = vdwg.mxu0
      %2483 = vmatpush.bf16.msra.mxu0 0
      %2484 = vmatpush.bf16.msra.mxu0 0
      %2485 = vmatpush.bf16.msra.mxu0 0
      %2486 = vmatpush.bf16.msra.mxu0 0
      %2487 = vmatpush.bf16.msra.mxu0 0
      %2488 = vmatpush.bf16.msra.mxu0 0
      %2489 = vmatpush.bf16.msra.mxu0 %v2420
      %2490 = vmatpush.bf16.msra.mxu0 %v2418
      %2491 = vmatmul.bf16.gmra.mxu0 %v2443
      %v2492 = vpop.f32.mrf.mxu0
      %v2493 = vadd.f32 %v2464, %v2492
      %v2494 = vpop.f32.mrf.mxu0
      %v2495 = vadd.f32 %v2466, %v2494
      %2496 = vmatmul.bf16.gmra.mxu0 %v2446
      %v2497 = vpop.f32.mrf.mxu0
      %v2498 = vadd.f32 %v2469, %v2497
      %v2499 = vpop.f32.mrf.mxu0
      %v2500 = vadd.f32 %v2471, %v2499
      %2501 = vmatmul.bf16.gmra.mxu0 %v2449
      %v2502 = vpop.f32.mrf.mxu0
      %v2503 = vadd.f32 %v2474, %v2502
      %v2504 = vpop.f32.mrf.mxu0
      %v2505 = vadd.f32 %v2476, %v2504
      %2506 = vmatmul.bf16.gmra.mxu0 %v2452
      %v2507 = vpop.f32.mrf.mxu0
      %v2508 = vadd.f32 %v2479, %v2507
      %v2509 = vpop.f32.mrf.mxu0
      %v2510 = vadd.f32 %v2481, %v2509
      %2511 = vdwg.mxu0
      %2512 = vmatpush.bf16.msra.mxu0 %v2417
      %2513 = vmatpush.bf16.msra.mxu0 %v2415
      %2514 = vmatpush.bf16.msra.mxu0 %v2413
      %2515 = vmatpush.bf16.msra.mxu0 %v2411
      %2516 = vmatpush.bf16.msra.mxu0 %v2409
      %2517 = vmatpush.bf16.msra.mxu0 %v2407
      %2518 = vmatpush.bf16.msra.mxu0 %v2405
      %2519 = vmatpush.bf16.msra.mxu0 %v2403
      %2520 = vmatmul.bf16.gmra.mxu0 %v2330
      %v2521 = vpop.f32.mrf.mxu0
      %v2522 = vadd.f32 0.0, %v2521
      %v2523 = vpop.f32.mrf.mxu0
      %v2524 = vadd.f32 0.0, %v2523
      %2525 = vmatmul.bf16.gmra.mxu0 %v2332
      %v2526 = vpop.f32.mrf.mxu0
      %v2527 = vadd.f32 0.0, %v2526
      %v2528 = vpop.f32.mrf.mxu0
      %v2529 = vadd.f32 0.0, %v2528
      %2530 = vmatmul.bf16.gmra.mxu0 %v2334
      %v2531 = vpop.f32.mrf.mxu0
      %v2532 = vadd.f32 0.0, %v2531
      %v2533 = vpop.f32.mrf.mxu0
      %v2534 = vadd.f32 0.0, %v2533
      %2535 = vmatmul.bf16.gmra.mxu0 %v2336
      %v2536 = vpop.f32.mrf.mxu0
      %v2537 = vadd.f32 0.0, %v2536
      %v2538 = vpop.f32.mrf.mxu0
      %v2539 = vadd.f32 0.0, %v2538
      %2540 = vdwg.mxu0
      %2541 = vmatpush.bf16.msra.mxu0 0
      %2542 = vmatpush.bf16.msra.mxu0 0
      %2543 = vmatpush.bf16.msra.mxu0 0
      %2544 = vmatpush.bf16.msra.mxu0 0
      %2545 = vmatpush.bf16.msra.mxu0 0
      %2546 = vmatpush.bf16.msra.mxu0 0
      %2547 = vmatpush.bf16.msra.mxu0 %v2421
      %2548 = vmatpush.bf16.msra.mxu0 %v2419
      %2549 = vmatmul.bf16.gmra.mxu0 %v2443
      %v2550 = vpop.f32.mrf.mxu0
      %v2551 = vadd.f32 %v2522, %v2550
      %v2552 = vpop.f32.mrf.mxu0
      %v2553 = vadd.f32 %v2524, %v2552
      %2554 = vmatmul.bf16.gmra.mxu0 %v2446
      %v2555 = vpop.f32.mrf.mxu0
      %v2556 = vadd.f32 %v2527, %v2555
      %v2557 = vpop.f32.mrf.mxu0
      %v2558 = vadd.f32 %v2529, %v2557
      %2559 = vmatmul.bf16.gmra.mxu0 %v2449
      %v2560 = vpop.f32.mrf.mxu0
      %v2561 = vadd.f32 %v2532, %v2560
      %v2562 = vpop.f32.mrf.mxu0
      %v2563 = vadd.f32 %v2534, %v2562
      %2564 = vmatmul.bf16.gmra.mxu0 %v2452
      %v2565 = vpop.f32.mrf.mxu0
      %v2566 = vadd.f32 %v2537, %v2565
      %v2567 = vpop.f32.mrf.mxu0
      %v2568 = vadd.f32 %v2539, %v2567
      %2569 = vdwg.mxu0
      %v2570 = vadd.f32 %v2117, %v2493
      %v2571 = vadd.f32 %v2118, %v2551
      %v2572 = vadd.f32 %v2119, %v2495
      %v2573 = vadd.f32 %v2120, %v2553
      %v2574 = vadd.f32 %v2121, %v2498
      %v2575 = vadd.f32 %v2122, %v2556
      %v2576 = vadd.f32 %v2123, %v2500
      %v2577 = vadd.f32 %v2124, %v2558
      %v2578 = vadd.f32 %v2125, %v2503
      %v2579 = vadd.f32 %v2126, %v2561
      %v2580 = vadd.f32 %v2127, %v2505
      %v2581 = vadd.f32 %v2128, %v2563
      %v2582 = vadd.f32 %v2129, %v2508
      %v2583 = vadd.f32 %v2130, %v2566
      %v2584 = vadd.f32 %v2131, %v2510
      %v2585 = vadd.f32 %v2132, %v2568
      %v2586 = vld [vmem:[%s594] sm:$0xfc]
      %v2587 = vld [vmem:[%s594 + $0x8] sm:$0xfc]
      %v2588 = vld [vmem:[%s594 + $0x10] sm:$0x3]
      %v2589 = vld [vmem:[%s594 + $0x18] sm:$0x3]
      %v2590 = vld [vmem:[%s594 + $0x20] sm:$0xfc]
      %v2591 = vld [vmem:[%s594 + $0x28] sm:$0xfc]
      %v2592 = vld [vmem:[%s594 + $0x30] sm:$0x3]
      %v2593 = vld [vmem:[%s594 + $0x38] sm:$0x3]
      %v2594 = vld [vmem:[%s594 + $0x40] sm:$0xfc]
      %v2595 = vld [vmem:[%s594 + $0x48] sm:$0xfc]
      %v2596 = vld [vmem:[%s594 + $0x50] sm:$0x3]
      %v2597 = vld [vmem:[%s594 + $0x58] sm:$0x3]
      %v2598 = vld [vmem:[%s594 + $0x60] sm:$0xfc]
      %v2599 = vld [vmem:[%s594 + $0x68] sm:$0xfc]
      %v2600 = vld [vmem:[%s594 + $0x70] sm:$0x3]
      %v2601 = vld [vmem:[%s594 + $0x78] sm:$0x3]
      %v2602 = vld [vmem:[%s594 + $0x80] sm:$0xfc]
      %v2603 = vld [vmem:[%s594 + $0x88] sm:$0xfc]
      %v2604 = vld [vmem:[%s594 + $0x90] sm:$0x3]
      %v2605 = vld [vmem:[%s594 + $0x98] sm:$0x3]
      %v2606 = vld [vmem:[%s594 + $0xa0] sm:$0xfc]
      %v2607 = vld [vmem:[%s594 + $0xa8] sm:$0xfc]
      %v2608 = vld [vmem:[%s594 + $0xb0] sm:$0x3]
      %v2609 = vld [vmem:[%s594 + $0xb8] sm:$0x3]
      %v2610 = vld [vmem:[%s594 + $0xc0] sm:$0xfc]
      %v2611 = vld [vmem:[%s594 + $0xc8] sm:$0xfc]
      %v2612 = vld [vmem:[%s594 + $0xd0] sm:$0x3]
      %v2613 = vld [vmem:[%s594 + $0xd8] sm:$0x3]
      %v2614 = vld [vmem:[%s594 + $0xe0] sm:$0xfc]
      %v2615 = vld [vmem:[%s594 + $0xe8] sm:$0xfc]
      %v2616 = vld [vmem:[%s594 + $0xf0] sm:$0x3]
      %v2617 = vld [vmem:[%s594 + $0xf8] sm:$0x3]
      %v2618 = vpack.c.bf16 %v2587, %v2586
      %v2619 = vpack.c.bf16 %v2589, %v2588
      %v2620 = vpack.c.bf16 %v2591, %v2590
      %v2621 = vpack.c.bf16 %v2593, %v2592
      %v2622 = vpack.c.bf16 %v2595, %v2594
      %v2623 = vpack.c.bf16 %v2597, %v2596
      %v2624 = vpack.c.bf16 %v2599, %v2598
      %v2625 = vpack.c.bf16 %v2601, %v2600
      %v2626 = vpack.c.bf16 %v2603, %v2602
      %v2627 = vpack.c.bf16 %v2605, %v2604
      %v2628 = vpack.c.bf16 %v2607, %v2606
      %v2629 = vpack.c.bf16 %v2609, %v2608
      %v2630 = vpack.c.bf16 %v2611, %v2610
      %v2631 = vpack.c.bf16 %v2613, %v2612
      %v2632 = vpack.c.bf16 %v2615, %v2614
      %v2633 = vpack.c.bf16 %v2617, %v2616
      %v2650 = vrot.slane %v2618, 5
      %v2651 = vrot.slane %v2650, 4
      %v2652 = vrot.slane %v2619, 5
      %v2653 = vsel %vm1482, %v2651, %v2652
      %v2654 = vrot.slane %v2620, 5
      %v2655 = vrot.slane %v2654, 4
      %v2656 = vrot.slane %v2621, 5
      %v2657 = vsel %vm1482, %v2655, %v2656
      %v2658 = vrot.slane %v2622, 5
      %v2659 = vrot.slane %v2658, 4
      %v2660 = vrot.slane %v2623, 5
      %v2661 = vsel %vm1482, %v2659, %v2660
      %v2662 = vrot.slane %v2624, 5
      %v2663 = vrot.slane %v2662, 4
      %v2664 = vrot.slane %v2625, 5
      %v2665 = vsel %vm1482, %v2663, %v2664
      %v2666 = vrot.slane %v2626, 5
      %v2667 = vrot.slane %v2666, 4
      %v2668 = vrot.slane %v2627, 5
      %v2669 = vsel %vm1482, %v2667, %v2668
      %v2670 = vrot.slane %v2628, 5
      %v2671 = vrot.slane %v2670, 4
      %v2672 = vrot.slane %v2629, 5
      %v2673 = vsel %vm1482, %v2671, %v2672
      %v2674 = vrot.slane %v2630, 5
      %v2675 = vrot.slane %v2674, 4
      %v2676 = vrot.slane %v2631, 5
      %v2677 = vsel %vm1482, %v2675, %v2676
      %v2678 = vrot.slane %v2632, 5
      %v2679 = vrot.slane %v2678, 4
      %v2680 = vrot.slane %v2633, 5
      %v2681 = vsel %vm1482, %v2679, %v2680
      %s2682 = scalar_lea.vmem %s1, 800
      %v2683 = vld [vmem:[%s2682] sm:$0xff]
      %v2684 = vld [vmem:[%s2682 + $0x8] sm:$0xff]
      %v2685 = vld [vmem:[%s2682 + $0x10] sm:$0xff]
      %v2686 = vld [vmem:[%s2682 + $0x18] sm:$0xff]
      %v2687 = vld [vmem:[%s2682 + $0x20] sm:$0xff]
      %v2688 = vld [vmem:[%s2682 + $0x28] sm:$0xff]
      %v2689 = vld [vmem:[%s2682 + $0x30] sm:$0xff]
      %v2690 = vld [vmem:[%s2682 + $0x38] sm:$0xff]
      %v2691 = vld [vmem:[%s2682 + $0x40] sm:$0xff]
      %v2692 = vld [vmem:[%s2682 + $0x48] sm:$0xff]
      %v2693 = vld [vmem:[%s2682 + $0x50] sm:$0xff]
      %v2694 = vld [vmem:[%s2682 + $0x58] sm:$0xff]
      %v2695 = vld [vmem:[%s2682 + $0x60] sm:$0xff]
      %v2696 = vld [vmem:[%s2682 + $0x68] sm:$0xff]
      %v2697 = vld [vmem:[%s2682 + $0x70] sm:$0xff]
      %v2698 = vld [vmem:[%s2682 + $0x78] sm:$0xff]
      %v2699 = vld [vmem:[%s2682 + $0x80] sm:$0xff]
      %v2700 = vld [vmem:[%s2682 + $0x88] sm:$0xff]
      %v2701 = vld [vmem:[%s2682 + $0x90] sm:$0xff]
      %v2702 = vld [vmem:[%s2682 + $0x98] sm:$0xff]
      %v2703 = vunpack.c.l.b16 %v2653
      %v2704 = vunpack.c.h.b16 %v2653
      %v2705 = vunpack.c.l.b16 %v2657
      %v2706 = vunpack.c.h.b16 %v2657
      %v2707 = vunpack.c.l.b16 %v2661
      %v2708 = vunpack.c.h.b16 %v2661
      %v2709 = vunpack.c.l.b16 %v2665
      %v2710 = vunpack.c.h.b16 %v2665
      %v2711 = vunpack.c.l.b16 %v2669
      %v2712 = vunpack.c.h.b16 %v2669
      %v2713 = vunpack.c.l.b16 %v2673
      %v2714 = vunpack.c.h.b16 %v2673
      %v2715 = vunpack.c.l.b16 %v2677
      %v2716 = vunpack.c.h.b16 %v2677
      %v2717 = vunpack.c.l.b16 %v2681
      %v2718 = vunpack.c.h.b16 %v2681
      %v2719 = vpack.c.b16 %v2705, %v2703
      %v2720 = vpack.c.b16 %v2706, %v2704
      %v2721 = vpack.c.b16 %v2709, %v2707
      %v2722 = vpack.c.b16 %v2710, %v2708
      %v2723 = vpack.c.b16 %v2713, %v2711
      %v2724 = vpack.c.b16 %v2714, %v2712
      %v2725 = vpack.c.b16 %v2717, %v2715
      %v2726 = vpack.c.b16 %v2718, %v2716
      %v2751 = vunpack.c.l.b16 %v2683
      %v2752 = vunpack.c.h.b16 %v2683
      %v2753 = vunpack.c.l.b16 %v2684
      %v2754 = vunpack.c.h.b16 %v2684
      %v2755 = vunpack.c.l.b16 %v2685
      %v2756 = vunpack.c.h.b16 %v2685
      %v2757 = vunpack.c.l.b16 %v2686
      %v2758 = vunpack.c.h.b16 %v2686
      %v2759 = vunpack.c.l.b16 %v2687
      %v2760 = vunpack.c.h.b16 %v2687
      %v2761 = vunpack.c.l.b16 %v2688
      %v2762 = vunpack.c.h.b16 %v2688
      %v2763 = vunpack.c.l.b16 %v2689
      %v2764 = vunpack.c.h.b16 %v2689
      %v2765 = vunpack.c.l.b16 %v2690
      %v2766 = vunpack.c.h.b16 %v2690
      %v2767 = vunpack.c.l.b16 %v2691
      %v2768 = vunpack.c.h.b16 %v2691
      %v2769 = vunpack.c.l.b16 %v2692
      %v2770 = vunpack.c.h.b16 %v2692
      %v2771 = vunpack.c.l.b16 %v2693
      %v2772 = vunpack.c.h.b16 %v2693
      %v2773 = vunpack.c.l.b16 %v2694
      %v2774 = vunpack.c.h.b16 %v2694
      %v2775 = vunpack.c.l.b16 %v2695
      %v2776 = vunpack.c.h.b16 %v2695
      %v2777 = vunpack.c.l.b16 %v2696
      %v2778 = vunpack.c.h.b16 %v2696
      %v2779 = vunpack.c.l.b16 %v2697
      %v2780 = vunpack.c.h.b16 %v2697
      %v2781 = vunpack.c.l.b16 %v2698
      %v2782 = vunpack.c.h.b16 %v2698
      %v2783 = vunpack.c.l.b16 %v2699
      %v2784 = vunpack.c.h.b16 %v2699
      %v2785 = vunpack.c.l.b16 %v2700
      %v2786 = vunpack.c.h.b16 %v2700
      %v2787 = vunpack.c.l.b16 %v2701
      %v2788 = vunpack.c.h.b16 %v2701
      %v2789 = vunpack.c.l.b16 %v2702
      %v2790 = vunpack.c.h.b16 %v2702
      %v2791 = vpack.c.b16 %v2753, %v2751
      %v2792 = vpack.c.b16 %v2754, %v2752
      %v2793 = vpack.c.b16 %v2757, %v2755
      %v2794 = vpack.c.b16 %v2758, %v2756
      %v2795 = vpack.c.b16 %v2761, %v2759
      %v2796 = vpack.c.b16 %v2762, %v2760
      %v2797 = vpack.c.b16 %v2765, %v2763
      %v2798 = vpack.c.b16 %v2766, %v2764
      %v2799 = vpack.c.b16 %v2769, %v2767
      %v2800 = vpack.c.b16 %v2770, %v2768
      %v2801 = vpack.c.b16 %v2773, %v2771
      %v2802 = vpack.c.b16 %v2774, %v2772
      %v2803 = vpack.c.b16 %v2777, %v2775
      %v2804 = vpack.c.b16 %v2778, %v2776
      %v2805 = vpack.c.b16 %v2781, %v2779
      %v2806 = vpack.c.b16 %v2782, %v2780
      %v2807 = vpack.c.b16 %v2785, %v2783
      %v2808 = vpack.c.b16 %v2786, %v2784
      %v2809 = vpack.c.b16 %v2789, %v2787
      %v2810 = vpack.c.b16 %v2790, %v2788
      %v2832 = vsel %vm443, %v2720, 0
      %v2835 = vsel %vm443, %v2722, 0
      %v2838 = vsel %vm443, %v2724, 0
      %v2841 = vsel %vm443, %v2726, 0
      %2843 = vmatpush.bf16.msra.mxu0 %v2805
      %2844 = vmatpush.bf16.msra.mxu0 %v2803
      %2845 = vmatpush.bf16.msra.mxu0 %v2801
      %2846 = vmatpush.bf16.msra.mxu0 %v2799
      %2847 = vmatpush.bf16.msra.mxu0 %v2797
      %2848 = vmatpush.bf16.msra.mxu0 %v2795
      %2849 = vmatpush.bf16.msra.mxu0 %v2793
      %2850 = vmatpush.bf16.msra.mxu0 %v2791
      %2851 = vmatmul.bf16.gmra.mxu0 %v2719
      %v2852 = vpop.f32.mrf.mxu0
      %v2853 = vadd.f32 0.0, %v2852
      %v2854 = vpop.f32.mrf.mxu0
      %v2855 = vadd.f32 0.0, %v2854
      %2856 = vmatmul.bf16.gmra.mxu0 %v2721
      %v2857 = vpop.f32.mrf.mxu0
      %v2858 = vadd.f32 0.0, %v2857
      %v2859 = vpop.f32.mrf.mxu0
      %v2860 = vadd.f32 0.0, %v2859
      %2861 = vmatmul.bf16.gmra.mxu0 %v2723
      %v2862 = vpop.f32.mrf.mxu0
      %v2863 = vadd.f32 0.0, %v2862
      %v2864 = vpop.f32.mrf.mxu0
      %v2865 = vadd.f32 0.0, %v2864
      %2866 = vmatmul.bf16.gmra.mxu0 %v2725
      %v2867 = vpop.f32.mrf.mxu0
      %v2868 = vadd.f32 0.0, %v2867
      %v2869 = vpop.f32.mrf.mxu0
      %v2870 = vadd.f32 0.0, %v2869
      %2871 = vdwg.mxu0
      %2872 = vmatpush.bf16.msra.mxu0 0
      %2873 = vmatpush.bf16.msra.mxu0 0
      %2874 = vmatpush.bf16.msra.mxu0 0
      %2875 = vmatpush.bf16.msra.mxu0 0
      %2876 = vmatpush.bf16.msra.mxu0 0
      %2877 = vmatpush.bf16.msra.mxu0 0
      %2878 = vmatpush.bf16.msra.mxu0 %v2809
      %2879 = vmatpush.bf16.msra.mxu0 %v2807
      %2880 = vmatmul.bf16.gmra.mxu0 %v2832
      %v2881 = vpop.f32.mrf.mxu0
      %v2882 = vadd.f32 %v2853, %v2881
      %v2883 = vpop.f32.mrf.mxu0
      %v2884 = vadd.f32 %v2855, %v2883
      %2885 = vmatmul.bf16.gmra.mxu0 %v2835
      %v2886 = vpop.f32.mrf.mxu0
      %v2887 = vadd.f32 %v2858, %v2886
      %v2888 = vpop.f32.mrf.mxu0
      %v2889 = vadd.f32 %v2860, %v2888
      %2890 = vmatmul.bf16.gmra.mxu0 %v2838
      %v2891 = vpop.f32.mrf.mxu0
      %v2892 = vadd.f32 %v2863, %v2891
      %v2893 = vpop.f32.mrf.mxu0
      %v2894 = vadd.f32 %v2865, %v2893
      %2895 = vmatmul.bf16.gmra.mxu0 %v2841
      %v2896 = vpop.f32.mrf.mxu0
      %v2897 = vadd.f32 %v2868, %v2896
      %v2898 = vpop.f32.mrf.mxu0
      %v2899 = vadd.f32 %v2870, %v2898
      %2900 = vdwg.mxu0
      %2901 = vmatpush.bf16.msra.mxu0 %v2806
      %2902 = vmatpush.bf16.msra.mxu0 %v2804
      %2903 = vmatpush.bf16.msra.mxu0 %v2802
      %2904 = vmatpush.bf16.msra.mxu0 %v2800
      %2905 = vmatpush.bf16.msra.mxu0 %v2798
      %2906 = vmatpush.bf16.msra.mxu0 %v2796
      %2907 = vmatpush.bf16.msra.mxu0 %v2794
      %2908 = vmatpush.bf16.msra.mxu0 %v2792
      %2909 = vmatmul.bf16.gmra.mxu0 %v2719
      %v2910 = vpop.f32.mrf.mxu0
      %v2911 = vadd.f32 0.0, %v2910
      %v2912 = vpop.f32.mrf.mxu0
      %v2913 = vadd.f32 0.0, %v2912
      %2914 = vmatmul.bf16.gmra.mxu0 %v2721
      %v2915 = vpop.f32.mrf.mxu0
      %v2916 = vadd.f32 0.0, %v2915
      %v2917 = vpop.f32.mrf.mxu0
      %v2918 = vadd.f32 0.0, %v2917
      %2919 = vmatmul.bf16.gmra.mxu0 %v2723
      %v2920 = vpop.f32.mrf.mxu0
      %v2921 = vadd.f32 0.0, %v2920
      %v2922 = vpop.f32.mrf.mxu0
      %v2923 = vadd.f32 0.0, %v2922
      %2924 = vmatmul.bf16.gmra.mxu0 %v2725
      %v2925 = vpop.f32.mrf.mxu0
      %v2926 = vadd.f32 0.0, %v2925
      %v2927 = vpop.f32.mrf.mxu0
      %v2928 = vadd.f32 0.0, %v2927
      %2929 = vdwg.mxu0
      %2930 = vmatpush.bf16.msra.mxu0 0
      %2931 = vmatpush.bf16.msra.mxu0 0
      %2932 = vmatpush.bf16.msra.mxu0 0
      %2933 = vmatpush.bf16.msra.mxu0 0
      %2934 = vmatpush.bf16.msra.mxu0 0
      %2935 = vmatpush.bf16.msra.mxu0 0
      %2936 = vmatpush.bf16.msra.mxu0 %v2810
      %2937 = vmatpush.bf16.msra.mxu0 %v2808
      %2938 = vmatmul.bf16.gmra.mxu0 %v2832
      %v2939 = vpop.f32.mrf.mxu0
      %v2940 = vadd.f32 %v2911, %v2939
      %v2941 = vpop.f32.mrf.mxu0
      %v2942 = vadd.f32 %v2913, %v2941
      %2943 = vmatmul.bf16.gmra.mxu0 %v2835
      %v2944 = vpop.f32.mrf.mxu0
      %v2945 = vadd.f32 %v2916, %v2944
      %v2946 = vpop.f32.mrf.mxu0
      %v2947 = vadd.f32 %v2918, %v2946
      %2948 = vmatmul.bf16.gmra.mxu0 %v2838
      %v2949 = vpop.f32.mrf.mxu0
      %v2950 = vadd.f32 %v2921, %v2949
      %v2951 = vpop.f32.mrf.mxu0
      %v2952 = vadd.f32 %v2923, %v2951
      %2953 = vmatmul.bf16.gmra.mxu0 %v2841
      %v2954 = vpop.f32.mrf.mxu0
      %v2955 = vadd.f32 %v2926, %v2954
      %v2956 = vpop.f32.mrf.mxu0
      %v2957 = vadd.f32 %v2928, %v2956
      %2958 = vdwg.mxu0
      %v2959 = vadd.f32 %v2570, %v2882
      %v2960 = vadd.f32 %v2571, %v2940
      %v2961 = vadd.f32 %v2572, %v2884
      %v2962 = vadd.f32 %v2573, %v2942
      %v2963 = vadd.f32 %v2574, %v2887
      %v2964 = vadd.f32 %v2575, %v2945
      %v2965 = vadd.f32 %v2576, %v2889
      %v2966 = vadd.f32 %v2577, %v2947
      %v2967 = vadd.f32 %v2578, %v2892
      %v2968 = vadd.f32 %v2579, %v2950
      %v2969 = vadd.f32 %v2580, %v2894
      %v2970 = vadd.f32 %v2581, %v2952
      %v2971 = vadd.f32 %v2582, %v2897
      %v2972 = vadd.f32 %v2583, %v2955
      %v2973 = vadd.f32 %v2584, %v2899
      %v2974 = vadd.f32 %v2585, %v2957
      %s2975 = scalar_lea.vmem [#allocation2], 64
      %v2976 = vld [vmem:[%s2975] sm:$0xff]
      %v2977 = vld [vmem:[%s2975 + $0x8] sm:$0xff]
      %v2978 = vld [vmem:[%s2975 + $0x20] sm:$0xff]
      %v2979 = vld [vmem:[%s2975 + $0x28] sm:$0xff]
      %v2980 = vld [vmem:[%s2975 + $0x40] sm:$0xff]
      %v2981 = vld [vmem:[%s2975 + $0x48] sm:$0xff]
      %v2982 = vld [vmem:[%s2975 + $0x60] sm:$0xff]
      %v2983 = vld [vmem:[%s2975 + $0x68] sm:$0xff]
      %v2984 = vld [vmem:[%s2975 + $0x80] sm:$0xff]
      %v2985 = vld [vmem:[%s2975 + $0x88] sm:$0xff]
      %v2986 = vld [vmem:[%s2975 + $0xa0] sm:$0xff]
      %v2987 = vld [vmem:[%s2975 + $0xa8] sm:$0xff]
      %v2988 = vld [vmem:[%s2975 + $0xc0] sm:$0xff]
      %v2989 = vld [vmem:[%s2975 + $0xc8] sm:$0xff]
      %v2990 = vld [vmem:[%s2975 + $0xe0] sm:$0xff]
      %v2991 = vld [vmem:[%s2975 + $0xe8] sm:$0xff]
      %v2992 = vpack.c.bf16 %v2977, %v2976
      %v2993 = vpack.c.bf16 %v2979, %v2978
      %v2994 = vpack.c.bf16 %v2981, %v2980
      %v2995 = vpack.c.bf16 %v2983, %v2982
      %v2996 = vpack.c.bf16 %v2985, %v2984
      %v2997 = vpack.c.bf16 %v2987, %v2986
      %v2998 = vpack.c.bf16 %v2989, %v2988
      %v2999 = vpack.c.bf16 %v2991, %v2990
      %s3000 = scalar_lea.vmem %s1, 960
      %v3001 = vld [vmem:[%s3000] sm:$0xff]
      %v3002 = vld [vmem:[%s3000 + $0x8] sm:$0xff]
      %v3003 = vld [vmem:[%s3000 + $0x10] sm:$0xff]
      %v3004 = vld [vmem:[%s3000 + $0x18] sm:$0xff]
      %v3005 = vld [vmem:[%s3000 + $0x20] sm:$0xff]
      %v3006 = vld [vmem:[%s3000 + $0x28] sm:$0xff]
      %v3007 = vld [vmem:[%s3000 + $0x30] sm:$0xff]
      %v3008 = vld [vmem:[%s3000 + $0x38] sm:$0xff]
      %v3009 = vld [vmem:[%s3000 + $0x40] sm:$0xff]
      %v3010 = vld [vmem:[%s3000 + $0x48] sm:$0xff]
      %v3011 = vld [vmem:[%s3000 + $0x50] sm:$0xff]
      %v3012 = vld [vmem:[%s3000 + $0x58] sm:$0xff]
      %v3013 = vld [vmem:[%s3000 + $0x60] sm:$0xff]
      %v3014 = vld [vmem:[%s3000 + $0x68] sm:$0xff]
      %v3015 = vld [vmem:[%s3000 + $0x70] sm:$0xff]
      %v3016 = vld [vmem:[%s3000 + $0x78] sm:$0xff]
      %v3017 = vld [vmem:[%s3000 + $0x80] sm:$0xff]
      %v3018 = vld [vmem:[%s3000 + $0x88] sm:$0xff]
      %v3019 = vld [vmem:[%s3000 + $0x90] sm:$0xff]
      %v3020 = vld [vmem:[%s3000 + $0x98] sm:$0xff]
      %v3029 = vunpack.c.l.b16 %v2992
      %v3030 = vunpack.c.h.b16 %v2992
      %v3031 = vunpack.c.l.b16 %v2993
      %v3032 = vunpack.c.h.b16 %v2993
      %v3033 = vunpack.c.l.b16 %v2994
      %v3034 = vunpack.c.h.b16 %v2994
      %v3035 = vunpack.c.l.b16 %v2995
      %v3036 = vunpack.c.h.b16 %v2995
      %v3037 = vunpack.c.l.b16 %v2996
      %v3038 = vunpack.c.h.b16 %v2996
      %v3039 = vunpack.c.l.b16 %v2997
      %v3040 = vunpack.c.h.b16 %v2997
      %v3041 = vunpack.c.l.b16 %v2998
      %v3042 = vunpack.c.h.b16 %v2998
      %v3043 = vunpack.c.l.b16 %v2999
      %v3044 = vunpack.c.h.b16 %v2999
      %v3045 = vpack.c.b16 %v3031, %v3029
      %v3046 = vpack.c.b16 %v3032, %v3030
      %v3047 = vpack.c.b16 %v3035, %v3033
      %v3048 = vpack.c.b16 %v3036, %v3034
      %v3049 = vpack.c.b16 %v3039, %v3037
      %v3050 = vpack.c.b16 %v3040, %v3038
      %v3051 = vpack.c.b16 %v3043, %v3041
      %v3052 = vpack.c.b16 %v3044, %v3042
      %v3077 = vunpack.c.l.b16 %v3001
      %v3078 = vunpack.c.h.b16 %v3001
      %v3079 = vunpack.c.l.b16 %v3002
      %v3080 = vunpack.c.h.b16 %v3002
      %v3081 = vunpack.c.l.b16 %v3003
      %v3082 = vunpack.c.h.b16 %v3003
      %v3083 = vunpack.c.l.b16 %v3004
      %v3084 = vunpack.c.h.b16 %v3004
      %v3085 = vunpack.c.l.b16 %v3005
      %v3086 = vunpack.c.h.b16 %v3005
      %v3087 = vunpack.c.l.b16 %v3006
      %v3088 = vunpack.c.h.b16 %v3006
      %v3089 = vunpack.c.l.b16 %v3007
      %v3090 = vunpack.c.h.b16 %v3007
      %v3091 = vunpack.c.l.b16 %v3008
      %v3092 = vunpack.c.h.b16 %v3008
      %v3093 = vunpack.c.l.b16 %v3009
      %v3094 = vunpack.c.h.b16 %v3009
      %v3095 = vunpack.c.l.b16 %v3010
      %v3096 = vunpack.c.h.b16 %v3010
      %v3097 = vunpack.c.l.b16 %v3011
      %v3098 = vunpack.c.h.b16 %v3011
      %v3099 = vunpack.c.l.b16 %v3012
      %v3100 = vunpack.c.h.b16 %v3012
      %v3101 = vunpack.c.l.b16 %v3013
      %v3102 = vunpack.c.h.b16 %v3013
      %v3103 = vunpack.c.l.b16 %v3014
      %v3104 = vunpack.c.h.b16 %v3014
      %v3105 = vunpack.c.l.b16 %v3015
      %v3106 = vunpack.c.h.b16 %v3015
      %v3107 = vunpack.c.l.b16 %v3016
      %v3108 = vunpack.c.h.b16 %v3016
      %v3109 = vunpack.c.l.b16 %v3017
      %v3110 = vunpack.c.h.b16 %v3017
      %v3111 = vunpack.c.l.b16 %v3018
      %v3112 = vunpack.c.h.b16 %v3018
      %v3113 = vunpack.c.l.b16 %v3019
      %v3114 = vunpack.c.h.b16 %v3019
      %v3115 = vunpack.c.l.b16 %v3020
      %v3116 = vunpack.c.h.b16 %v3020
      %v3117 = vpack.c.b16 %v3079, %v3077
      %v3118 = vpack.c.b16 %v3080, %v3078
      %v3119 = vpack.c.b16 %v3083, %v3081
      %v3120 = vpack.c.b16 %v3084, %v3082
      %v3121 = vpack.c.b16 %v3087, %v3085
      %v3122 = vpack.c.b16 %v3088, %v3086
      %v3123 = vpack.c.b16 %v3091, %v3089
      %v3124 = vpack.c.b16 %v3092, %v3090
      %v3125 = vpack.c.b16 %v3095, %v3093
      %v3126 = vpack.c.b16 %v3096, %v3094
      %v3127 = vpack.c.b16 %v3099, %v3097
      %v3128 = vpack.c.b16 %v3100, %v3098
      %v3129 = vpack.c.b16 %v3103, %v3101
      %v3130 = vpack.c.b16 %v3104, %v3102
      %v3131 = vpack.c.b16 %v3107, %v3105
      %v3132 = vpack.c.b16 %v3108, %v3106
      %v3133 = vpack.c.b16 %v3111, %v3109
      %v3134 = vpack.c.b16 %v3112, %v3110
      %v3135 = vpack.c.b16 %v3115, %v3113
      %v3136 = vpack.c.b16 %v3116, %v3114
      %v3158 = vsel %vm443, %v3046, 0
      %v3161 = vsel %vm443, %v3048, 0
      %v3164 = vsel %vm443, %v3050, 0
      %v3167 = vsel %vm443, %v3052, 0
      %3169 = vmatpush.bf16.msra.mxu0 %v3131
      %3170 = vmatpush.bf16.msra.mxu0 %v3129
      %3171 = vmatpush.bf16.msra.mxu0 %v3127
      %3172 = vmatpush.bf16.msra.mxu0 %v3125
      %3173 = vmatpush.bf16.msra.mxu0 %v3123
      %3174 = vmatpush.bf16.msra.mxu0 %v3121
      %3175 = vmatpush.bf16.msra.mxu0 %v3119
      %3176 = vmatpush.bf16.msra.mxu0 %v3117
      %3177 = vmatmul.bf16.gmra.mxu0 %v3045
      %v3178 = vpop.f32.mrf.mxu0
      %v3179 = vadd.f32 0.0, %v3178
      %v3180 = vpop.f32.mrf.mxu0
      %v3181 = vadd.f32 0.0, %v3180
      %3182 = vmatmul.bf16.gmra.mxu0 %v3047
      %v3183 = vpop.f32.mrf.mxu0
      %v3184 = vadd.f32 0.0, %v3183
      %v3185 = vpop.f32.mrf.mxu0
      %v3186 = vadd.f32 0.0, %v3185
      %3187 = vmatmul.bf16.gmra.mxu0 %v3049
      %v3188 = vpop.f32.mrf.mxu0
      %v3189 = vadd.f32 0.0, %v3188
      %v3190 = vpop.f32.mrf.mxu0
      %v3191 = vadd.f32 0.0, %v3190
      %3192 = vmatmul.bf16.gmra.mxu0 %v3051
      %v3193 = vpop.f32.mrf.mxu0
      %v3194 = vadd.f32 0.0, %v3193
      %v3195 = vpop.f32.mrf.mxu0
      %v3196 = vadd.f32 0.0, %v3195
      %3197 = vdwg.mxu0
      %3198 = vmatpush.bf16.msra.mxu0 0
      %3199 = vmatpush.bf16.msra.mxu0 0
      %3200 = vmatpush.bf16.msra.mxu0 0
      %3201 = vmatpush.bf16.msra.mxu0 0
      %3202 = vmatpush.bf16.msra.mxu0 0
      %3203 = vmatpush.bf16.msra.mxu0 0
      %3204 = vmatpush.bf16.msra.mxu0 %v3135
      %3205 = vmatpush.bf16.msra.mxu0 %v3133
      %3206 = vmatmul.bf16.gmra.mxu0 %v3158
      %v3207 = vpop.f32.mrf.mxu0
      %v3208 = vadd.f32 %v3179, %v3207
      %v3209 = vpop.f32.mrf.mxu0
      %v3210 = vadd.f32 %v3181, %v3209
      %3211 = vmatmul.bf16.gmra.mxu0 %v3161
      %v3212 = vpop.f32.mrf.mxu0
      %v3213 = vadd.f32 %v3184, %v3212
      %v3214 = vpop.f32.mrf.mxu0
      %v3215 = vadd.f32 %v3186, %v3214
      %3216 = vmatmul.bf16.gmra.mxu0 %v3164
      %v3217 = vpop.f32.mrf.mxu0
      %v3218 = vadd.f32 %v3189, %v3217
      %v3219 = vpop.f32.mrf.mxu0
      %v3220 = vadd.f32 %v3191, %v3219
      %3221 = vmatmul.bf16.gmra.mxu0 %v3167
      %v3222 = vpop.f32.mrf.mxu0
      %v3223 = vadd.f32 %v3194, %v3222
      %v3224 = vpop.f32.mrf.mxu0
      %v3225 = vadd.f32 %v3196, %v3224
      %3226 = vdwg.mxu0
      %3227 = vmatpush.bf16.msra.mxu0 %v3132
      %3228 = vmatpush.bf16.msra.mxu0 %v3130
      %3229 = vmatpush.bf16.msra.mxu0 %v3128
      %3230 = vmatpush.bf16.msra.mxu0 %v3126
      %3231 = vmatpush.bf16.msra.mxu0 %v3124
      %3232 = vmatpush.bf16.msra.mxu0 %v3122
      %3233 = vmatpush.bf16.msra.mxu0 %v3120
      %3234 = vmatpush.bf16.msra.mxu0 %v3118
      %3235 = vmatmul.bf16.gmra.mxu0 %v3045
      %v3236 = vpop.f32.mrf.mxu0
      %v3237 = vadd.f32 0.0, %v3236
      %v3238 = vpop.f32.mrf.mxu0
      %v3239 = vadd.f32 0.0, %v3238
      %3240 = vmatmul.bf16.gmra.mxu0 %v3047
      %v3241 = vpop.f32.mrf.mxu0
      %v3242 = vadd.f32 0.0, %v3241
      %v3243 = vpop.f32.mrf.mxu0
      %v3244 = vadd.f32 0.0, %v3243
      %3245 = vmatmul.bf16.gmra.mxu0 %v3049
      %v3246 = vpop.f32.mrf.mxu0
      %v3247 = vadd.f32 0.0, %v3246
      %v3248 = vpop.f32.mrf.mxu0
      %v3249 = vadd.f32 0.0, %v3248
      %3250 = vmatmul.bf16.gmra.mxu0 %v3051
      %v3251 = vpop.f32.mrf.mxu0
      %v3252 = vadd.f32 0.0, %v3251
      %v3253 = vpop.f32.mrf.mxu0
      %v3254 = vadd.f32 0.0, %v3253
      %3255 = vdwg.mxu0
      %3256 = vmatpush.bf16.msra.mxu0 0
      %3257 = vmatpush.bf16.msra.mxu0 0
      %3258 = vmatpush.bf16.msra.mxu0 0
      %3259 = vmatpush.bf16.msra.mxu0 0
      %3260 = vmatpush.bf16.msra.mxu0 0
      %3261 = vmatpush.bf16.msra.mxu0 0
      %3262 = vmatpush.bf16.msra.mxu0 %v3136
      %3263 = vmatpush.bf16.msra.mxu0 %v3134
      %3264 = vmatmul.bf16.gmra.mxu0 %v3158
      %v3265 = vpop.f32.mrf.mxu0
      %v3266 = vadd.f32 %v3237, %v3265
      %v3267 = vpop.f32.mrf.mxu0
      %v3268 = vadd.f32 %v3239, %v3267
      %3269 = vmatmul.bf16.gmra.mxu0 %v3161
      %v3270 = vpop.f32.mrf.mxu0
      %v3271 = vadd.f32 %v3242, %v3270
      %v3272 = vpop.f32.mrf.mxu0
      %v3273 = vadd.f32 %v3244, %v3272
      %3274 = vmatmul.bf16.gmra.mxu0 %v3164
      %v3275 = vpop.f32.mrf.mxu0
      %v3276 = vadd.f32 %v3247, %v3275
      %v3277 = vpop.f32.mrf.mxu0
      %v3278 = vadd.f32 %v3249, %v3277
      %3279 = vmatmul.bf16.gmra.mxu0 %v3167
      %v3280 = vpop.f32.mrf.mxu0
      %v3281 = vadd.f32 %v3252, %v3280
      %v3282 = vpop.f32.mrf.mxu0
      %v3283 = vadd.f32 %v3254, %v3282
      %3284 = vdwg.mxu0
      %v3285 = vadd.f32 %v2959, %v3208
      %v3286 = vadd.f32 %v2960, %v3266
      %v3287 = vadd.f32 %v2961, %v3210
      %v3288 = vadd.f32 %v2962, %v3268
      %v3289 = vadd.f32 %v2963, %v3213
      %v3290 = vadd.f32 %v2964, %v3271
      %v3291 = vadd.f32 %v2965, %v3215
      %v3292 = vadd.f32 %v2966, %v3273
      %v3293 = vadd.f32 %v2967, %v3218
      %v3294 = vadd.f32 %v2968, %v3276
      %v3295 = vadd.f32 %v2969, %v3220
      %v3296 = vadd.f32 %v2970, %v3278
      %v3297 = vadd.f32 %v2971, %v3223
      %v3298 = vadd.f32 %v2972, %v3281
      %v3299 = vadd.f32 %v2973, %v3225
      %v3300 = vadd.f32 %v2974, %v3283
      %v3301 = vld [vmem:[%s2975] sm:$0xfe]
      %v3302 = vld [vmem:[%s2975 + $0x8] sm:$0xfe]
      %v3303 = vld [vmem:[%s2975 + $0x10] sm:$0x1]
      %v3304 = vld [vmem:[%s2975 + $0x18] sm:$0x1]
      %v3305 = vld [vmem:[%s2975 + $0x20] sm:$0xfe]
      %v3306 = vld [vmem:[%s2975 + $0x28] sm:$0xfe]
      %v3307 = vld [vmem:[%s2975 + $0x30] sm:$0x1]
      %v3308 = vld [vmem:[%s2975 + $0x38] sm:$0x1]
      %v3309 = vld [vmem:[%s2975 + $0x40] sm:$0xfe]
      %v3310 = vld [vmem:[%s2975 + $0x48] sm:$0xfe]
      %v3311 = vld [vmem:[%s2975 + $0x50] sm:$0x1]
      %v3312 = vld [vmem:[%s2975 + $0x58] sm:$0x1]
      %v3313 = vld [vmem:[%s2975 + $0x60] sm:$0xfe]
      %v3314 = vld [vmem:[%s2975 + $0x68] sm:$0xfe]
      %v3315 = vld [vmem:[%s2975 + $0x70] sm:$0x1]
      %v3316 = vld [vmem:[%s2975 + $0x78] sm:$0x1]
      %v3317 = vld [vmem:[%s2975 + $0x80] sm:$0xfe]
      %v3318 = vld [vmem:[%s2975 + $0x88] sm:$0xfe]
      %v3319 = vld [vmem:[%s2975 + $0x90] sm:$0x1]
      %v3320 = vld [vmem:[%s2975 + $0x98] sm:$0x1]
      %v3321 = vld [vmem:[%s2975 + $0xa0] sm:$0xfe]
      %v3322 = vld [vmem:[%s2975 + $0xa8] sm:$0xfe]
      %v3323 = vld [vmem:[%s2975 + $0xb0] sm:$0x1]
      %v3324 = vld [vmem:[%s2975 + $0xb8] sm:$0x1]
      %v3325 = vld [vmem:[%s2975 + $0xc0] sm:$0xfe]
      %v3326 = vld [vmem:[%s2975 + $0xc8] sm:$0xfe]
      %v3327 = vld [vmem:[%s2975 + $0xd0] sm:$0x1]
      %v3328 = vld [vmem:[%s2975 + $0xd8] sm:$0x1]
      %v3329 = vld [vmem:[%s2975 + $0xe0] sm:$0xfe]
      %v3330 = vld [vmem:[%s2975 + $0xe8] sm:$0xfe]
      %v3331 = vld [vmem:[%s2975 + $0xf0] sm:$0x1]
      %v3332 = vld [vmem:[%s2975 + $0xf8] sm:$0x1]
      %v3333 = vpack.c.bf16 %v3302, %v3301
      %v3334 = vpack.c.bf16 %v3304, %v3303
      %v3335 = vpack.c.bf16 %v3306, %v3305
      %v3336 = vpack.c.bf16 %v3308, %v3307
      %v3337 = vpack.c.bf16 %v3310, %v3309
      %v3338 = vpack.c.bf16 %v3312, %v3311
      %v3339 = vpack.c.bf16 %v3314, %v3313
      %v3340 = vpack.c.bf16 %v3316, %v3315
      %v3341 = vpack.c.bf16 %v3318, %v3317
      %v3342 = vpack.c.bf16 %v3320, %v3319
      %v3343 = vpack.c.bf16 %v3322, %v3321
      %v3344 = vpack.c.bf16 %v3324, %v3323
      %v3345 = vpack.c.bf16 %v3326, %v3325
      %v3346 = vpack.c.bf16 %v3328, %v3327
      %v3347 = vpack.c.bf16 %v3330, %v3329
      %v3348 = vpack.c.bf16 %v3332, %v3331
      %v3350 = vshrl.u32 %v3333, 16
      %v3352 = vrot.slane %v3350, 4
      %v3353 = vshll.u32 %v3333, 16
      %v3355 = vrot.slane %v3353, 5
      %v3356 = vor.u32 %v3352, %v3355
      %v3357 = vrot.slane %v3356, 4
      %v3359 = vshll.u32 %v3334, 16
      %v3361 = vrot.slane %v3359, 5
      %v3362 = vsel %vm762, %v3357, %v3361
      %v3364 = vshrl.u32 %v3335, 16
      %v3366 = vrot.slane %v3364, 4
      %v3367 = vshll.u32 %v3335, 16
      %v3369 = vrot.slane %v3367, 5
      %v3370 = vor.u32 %v3366, %v3369
      %v3371 = vrot.slane %v3370, 4
      %v3373 = vshll.u32 %v3336, 16
      %v3375 = vrot.slane %v3373, 5
      %v3376 = vsel %vm762, %v3371, %v3375
      %v3378 = vshrl.u32 %v3337, 16
      %v3380 = vrot.slane %v3378, 4
      %v3381 = vshll.u32 %v3337, 16
      %v3383 = vrot.slane %v3381, 5
      %v3384 = vor.u32 %v3380, %v3383
      %v3385 = vrot.slane %v3384, 4
      %v3387 = vshll.u32 %v3338, 16
      %v3389 = vrot.slane %v3387, 5
      %v3390 = vsel %vm762, %v3385, %v3389
      %v3392 = vshrl.u32 %v3339, 16
      %v3394 = vrot.slane %v3392, 4
      %v3395 = vshll.u32 %v3339, 16
      %v3397 = vrot.slane %v3395, 5
      %v3398 = vor.u32 %v3394, %v3397
      %v3399 = vrot.slane %v3398, 4
      %v3401 = vshll.u32 %v3340, 16
      %v3403 = vrot.slane %v3401, 5
      %v3404 = vsel %vm762, %v3399, %v3403
      %v3406 = vshrl.u32 %v3341, 16
      %v3408 = vrot.slane %v3406, 4
      %v3409 = vshll.u32 %v3341, 16
      %v3411 = vrot.slane %v3409, 5
      %v3412 = vor.u32 %v3408, %v3411
      %v3413 = vrot.slane %v3412, 4
      %v3415 = vshll.u32 %v3342, 16
      %v3417 = vrot.slane %v3415, 5
      %v3418 = vsel %vm762, %v3413, %v3417
      %v3420 = vshrl.u32 %v3343, 16
      %v3422 = vrot.slane %v3420, 4
      %v3423 = vshll.u32 %v3343, 16
      %v3425 = vrot.slane %v3423, 5
      %v3426 = vor.u32 %v3422, %v3425
      %v3427 = vrot.slane %v3426, 4
      %v3429 = vshll.u32 %v3344, 16
      %v3431 = vrot.slane %v3429, 5
      %v3432 = vsel %vm762, %v3427, %v3431
      %v3434 = vshrl.u32 %v3345, 16
      %v3436 = vrot.slane %v3434, 4
      %v3437 = vshll.u32 %v3345, 16
      %v3439 = vrot.slane %v3437, 5
      %v3440 = vor.u32 %v3436, %v3439
      %v3441 = vrot.slane %v3440, 4
      %v3443 = vshll.u32 %v3346, 16
      %v3445 = vrot.slane %v3443, 5
      %v3446 = vsel %vm762, %v3441, %v3445
      %v3448 = vshrl.u32 %v3347, 16
      %v3450 = vrot.slane %v3448, 4
      %v3451 = vshll.u32 %v3347, 16
      %v3453 = vrot.slane %v3451, 5
      %v3454 = vor.u32 %v3450, %v3453
      %v3455 = vrot.slane %v3454, 4
      %v3457 = vshll.u32 %v3348, 16
      %v3459 = vrot.slane %v3457, 5
      %v3460 = vsel %vm762, %v3455, %v3459
      %s3461 = scalar_lea.vmem %s1, 1120
      %v3462 = vld [vmem:[%s3461] sm:$0xff]
      %v3463 = vld [vmem:[%s3461 + $0x8] sm:$0xff]
      %v3464 = vld [vmem:[%s3461 + $0x10] sm:$0xff]
      %v3465 = vld [vmem:[%s3461 + $0x18] sm:$0xff]
      %v3466 = vld [vmem:[%s3461 + $0x20] sm:$0xff]
      %v3467 = vld [vmem:[%s3461 + $0x28] sm:$0xff]
      %v3468 = vld [vmem:[%s3461 + $0x30] sm:$0xff]
      %v3469 = vld [vmem:[%s3461 + $0x38] sm:$0xff]
      %v3470 = vld [vmem:[%s3461 + $0x40] sm:$0xff]
      %v3471 = vld [vmem:[%s3461 + $0x48] sm:$0xff]
      %v3472 = vld [vmem:[%s3461 + $0x50] sm:$0xff]
      %v3473 = vld [vmem:[%s3461 + $0x58] sm:$0xff]
      %v3474 = vld [vmem:[%s3461 + $0x60] sm:$0xff]
      %v3475 = vld [vmem:[%s3461 + $0x68] sm:$0xff]
      %v3476 = vld [vmem:[%s3461 + $0x70] sm:$0xff]
      %v3477 = vld [vmem:[%s3461 + $0x78] sm:$0xff]
      %v3478 = vld [vmem:[%s3461 + $0x80] sm:$0xff]
      %v3479 = vld [vmem:[%s3461 + $0x88] sm:$0xff]
      %v3480 = vld [vmem:[%s3461 + $0x90] sm:$0xff]
      %v3481 = vld [vmem:[%s3461 + $0x98] sm:$0xff]
      %v3482 = vunpack.c.l.b16 %v3362
      %v3483 = vunpack.c.h.b16 %v3362
      %v3484 = vunpack.c.l.b16 %v3376
      %v3485 = vunpack.c.h.b16 %v3376
      %v3486 = vunpack.c.l.b16 %v3390
      %v3487 = vunpack.c.h.b16 %v3390
      %v3488 = vunpack.c.l.b16 %v3404
      %v3489 = vunpack.c.h.b16 %v3404
      %v3490 = vunpack.c.l.b16 %v3418
      %v3491 = vunpack.c.h.b16 %v3418
      %v3492 = vunpack.c.l.b16 %v3432
      %v3493 = vunpack.c.h.b16 %v3432
      %v3494 = vunpack.c.l.b16 %v3446
      %v3495 = vunpack.c.h.b16 %v3446
      %v3496 = vunpack.c.l.b16 %v3460
      %v3497 = vunpack.c.h.b16 %v3460
      %v3498 = vpack.c.b16 %v3484, %v3482
      %v3499 = vpack.c.b16 %v3485, %v3483
      %v3500 = vpack.c.b16 %v3488, %v3486
      %v3501 = vpack.c.b16 %v3489, %v3487
      %v3502 = vpack.c.b16 %v3492, %v3490
      %v3503 = vpack.c.b16 %v3493, %v3491
      %v3504 = vpack.c.b16 %v3496, %v3494
      %v3505 = vpack.c.b16 %v3497, %v3495
      %v3530 = vunpack.c.l.b16 %v3462
      %v3531 = vunpack.c.h.b16 %v3462
      %v3532 = vunpack.c.l.b16 %v3463
      %v3533 = vunpack.c.h.b16 %v3463
      %v3534 = vunpack.c.l.b16 %v3464
      %v3535 = vunpack.c.h.b16 %v3464
      %v3536 = vunpack.c.l.b16 %v3465
      %v3537 = vunpack.c.h.b16 %v3465
      %v3538 = vunpack.c.l.b16 %v3466
      %v3539 = vunpack.c.h.b16 %v3466
      %v3540 = vunpack.c.l.b16 %v3467
      %v3541 = vunpack.c.h.b16 %v3467
      %v3542 = vunpack.c.l.b16 %v3468
      %v3543 = vunpack.c.h.b16 %v3468
      %v3544 = vunpack.c.l.b16 %v3469
      %v3545 = vunpack.c.h.b16 %v3469
      %v3546 = vunpack.c.l.b16 %v3470
      %v3547 = vunpack.c.h.b16 %v3470
      %v3548 = vunpack.c.l.b16 %v3471
      %v3549 = vunpack.c.h.b16 %v3471
      %v3550 = vunpack.c.l.b16 %v3472
      %v3551 = vunpack.c.h.b16 %v3472
      %v3552 = vunpack.c.l.b16 %v3473
      %v3553 = vunpack.c.h.b16 %v3473
      %v3554 = vunpack.c.l.b16 %v3474
      %v3555 = vunpack.c.h.b16 %v3474
      %v3556 = vunpack.c.l.b16 %v3475
      %v3557 = vunpack.c.h.b16 %v3475
      %v3558 = vunpack.c.l.b16 %v3476
      %v3559 = vunpack.c.h.b16 %v3476
      %v3560 = vunpack.c.l.b16 %v3477
      %v3561 = vunpack.c.h.b16 %v3477
      %v3562 = vunpack.c.l.b16 %v3478
      %v3563 = vunpack.c.h.b16 %v3478
      %v3564 = vunpack.c.l.b16 %v3479
      %v3565 = vunpack.c.h.b16 %v3479
      %v3566 = vunpack.c.l.b16 %v3480
      %v3567 = vunpack.c.h.b16 %v3480
      %v3568 = vunpack.c.l.b16 %v3481
      %v3569 = vunpack.c.h.b16 %v3481
      %v3570 = vpack.c.b16 %v3532, %v3530
      %v3571 = vpack.c.b16 %v3533, %v3531
      %v3572 = vpack.c.b16 %v3536, %v3534
      %v3573 = vpack.c.b16 %v3537, %v3535
      %v3574 = vpack.c.b16 %v3540, %v3538
      %v3575 = vpack.c.b16 %v3541, %v3539
      %v3576 = vpack.c.b16 %v3544, %v3542
      %v3577 = vpack.c.b16 %v3545, %v3543
      %v3578 = vpack.c.b16 %v3548, %v3546
      %v3579 = vpack.c.b16 %v3549, %v3547
      %v3580 = vpack.c.b16 %v3552, %v3550
      %v3581 = vpack.c.b16 %v3553, %v3551
      %v3582 = vpack.c.b16 %v3556, %v3554
      %v3583 = vpack.c.b16 %v3557, %v3555
      %v3584 = vpack.c.b16 %v3560, %v3558
      %v3585 = vpack.c.b16 %v3561, %v3559
      %v3586 = vpack.c.b16 %v3564, %v3562
      %v3587 = vpack.c.b16 %v3565, %v3563
      %v3588 = vpack.c.b16 %v3568, %v3566
      %v3589 = vpack.c.b16 %v3569, %v3567
      %v3611 = vsel %vm443, %v3499, 0
      %v3614 = vsel %vm443, %v3501, 0
      %v3617 = vsel %vm443, %v3503, 0
      %v3620 = vsel %vm443, %v3505, 0
      %3622 = vmatpush.bf16.msra.mxu0 %v3584
      %3623 = vmatpush.bf16.msra.mxu0 %v3582
      %3624 = vmatpush.bf16.msra.mxu0 %v3580
      %3625 = vmatpush.bf16.msra.mxu0 %v3578
      %3626 = vmatpush.bf16.msra.mxu0 %v3576
      %3627 = vmatpush.bf16.msra.mxu0 %v3574
      %3628 = vmatpush.bf16.msra.mxu0 %v3572
      %3629 = vmatpush.bf16.msra.mxu0 %v3570
      %3630 = vmatmul.bf16.gmra.mxu0 %v3498
      %v3631 = vpop.f32.mrf.mxu0
      %v3632 = vadd.f32 0.0, %v3631
      %v3633 = vpop.f32.mrf.mxu0
      %v3634 = vadd.f32 0.0, %v3633
      %3635 = vmatmul.bf16.gmra.mxu0 %v3500
      %v3636 = vpop.f32.mrf.mxu0
      %v3637 = vadd.f32 0.0, %v3636
      %v3638 = vpop.f32.mrf.mxu0
      %v3639 = vadd.f32 0.0, %v3638
      %3640 = vmatmul.bf16.gmra.mxu0 %v3502
      %v3641 = vpop.f32.mrf.mxu0
      %v3642 = vadd.f32 0.0, %v3641
      %v3643 = vpop.f32.mrf.mxu0
      %v3644 = vadd.f32 0.0, %v3643
      %3645 = vmatmul.bf16.gmra.mxu0 %v3504
      %v3646 = vpop.f32.mrf.mxu0
      %v3647 = vadd.f32 0.0, %v3646
      %v3648 = vpop.f32.mrf.mxu0
      %v3649 = vadd.f32 0.0, %v3648
      %3650 = vdwg.mxu0
      %3651 = vmatpush.bf16.msra.mxu0 0
      %3652 = vmatpush.bf16.msra.mxu0 0
      %3653 = vmatpush.bf16.msra.mxu0 0
      %3654 = vmatpush.bf16.msra.mxu0 0
      %3655 = vmatpush.bf16.msra.mxu0 0
      %3656 = vmatpush.bf16.msra.mxu0 0
      %3657 = vmatpush.bf16.msra.mxu0 %v3588
      %3658 = vmatpush.bf16.msra.mxu0 %v3586
      %3659 = vmatmul.bf16.gmra.mxu0 %v3611
      %v3660 = vpop.f32.mrf.mxu0
      %v3661 = vadd.f32 %v3632, %v3660
      %v3662 = vpop.f32.mrf.mxu0
      %v3663 = vadd.f32 %v3634, %v3662
      %3664 = vmatmul.bf16.gmra.mxu0 %v3614
      %v3665 = vpop.f32.mrf.mxu0
      %v3666 = vadd.f32 %v3637, %v3665
      %v3667 = vpop.f32.mrf.mxu0
      %v3668 = vadd.f32 %v3639, %v3667
      %3669 = vmatmul.bf16.gmra.mxu0 %v3617
      %v3670 = vpop.f32.mrf.mxu0
      %v3671 = vadd.f32 %v3642, %v3670
      %v3672 = vpop.f32.mrf.mxu0
      %v3673 = vadd.f32 %v3644, %v3672
      %3674 = vmatmul.bf16.gmra.mxu0 %v3620
      %v3675 = vpop.f32.mrf.mxu0
      %v3676 = vadd.f32 %v3647, %v3675
      %v3677 = vpop.f32.mrf.mxu0
      %v3678 = vadd.f32 %v3649, %v3677
      %3679 = vdwg.mxu0
      %3680 = vmatpush.bf16.msra.mxu0 %v3585
      %3681 = vmatpush.bf16.msra.mxu0 %v3583
      %3682 = vmatpush.bf16.msra.mxu0 %v3581
      %3683 = vmatpush.bf16.msra.mxu0 %v3579
      %3684 = vmatpush.bf16.msra.mxu0 %v3577
      %3685 = vmatpush.bf16.msra.mxu0 %v3575
      %3686 = vmatpush.bf16.msra.mxu0 %v3573
      %3687 = vmatpush.bf16.msra.mxu0 %v3571
      %3688 = vmatmul.bf16.gmra.mxu0 %v3498
      %v3689 = vpop.f32.mrf.mxu0
      %v3690 = vadd.f32 0.0, %v3689
      %v3691 = vpop.f32.mrf.mxu0
      %v3692 = vadd.f32 0.0, %v3691
      %3693 = vmatmul.bf16.gmra.mxu0 %v3500
      %v3694 = vpop.f32.mrf.mxu0
      %v3695 = vadd.f32 0.0, %v3694
      %v3696 = vpop.f32.mrf.mxu0
      %v3697 = vadd.f32 0.0, %v3696
      %3698 = vmatmul.bf16.gmra.mxu0 %v3502
      %v3699 = vpop.f32.mrf.mxu0
      %v3700 = vadd.f32 0.0, %v3699
      %v3701 = vpop.f32.mrf.mxu0
      %v3702 = vadd.f32 0.0, %v3701
      %3703 = vmatmul.bf16.gmra.mxu0 %v3504
      %v3704 = vpop.f32.mrf.mxu0
      %v3705 = vadd.f32 0.0, %v3704
      %v3706 = vpop.f32.mrf.mxu0
      %v3707 = vadd.f32 0.0, %v3706
      %3708 = vdwg.mxu0
      %3709 = vmatpush.bf16.msra.mxu0 0
      %3710 = vmatpush.bf16.msra.mxu0 0
      %3711 = vmatpush.bf16.msra.mxu0 0
      %3712 = vmatpush.bf16.msra.mxu0 0
      %3713 = vmatpush.bf16.msra.mxu0 0
      %3714 = vmatpush.bf16.msra.mxu0 0
      %3715 = vmatpush.bf16.msra.mxu0 %v3589
      %3716 = vmatpush.bf16.msra.mxu0 %v3587
      %3717 = vmatmul.bf16.gmra.mxu0 %v3611
      %v3718 = vpop.f32.mrf.mxu0
      %v3719 = vadd.f32 %v3690, %v3718
      %v3720 = vpop.f32.mrf.mxu0
      %v3721 = vadd.f32 %v3692, %v3720
      %3722 = vmatmul.bf16.gmra.mxu0 %v3614
      %v3723 = vpop.f32.mrf.mxu0
      %v3724 = vadd.f32 %v3695, %v3723
      %v3725 = vpop.f32.mrf.mxu0
      %v3726 = vadd.f32 %v3697, %v3725
      %3727 = vmatmul.bf16.gmra.mxu0 %v3617
      %v3728 = vpop.f32.mrf.mxu0
      %v3729 = vadd.f32 %v3700, %v3728
      %v3730 = vpop.f32.mrf.mxu0
      %v3731 = vadd.f32 %v3702, %v3730
      %3732 = vmatmul.bf16.gmra.mxu0 %v3620
      %v3733 = vpop.f32.mrf.mxu0
      %v3734 = vadd.f32 %v3705, %v3733
      %v3735 = vpop.f32.mrf.mxu0
      %v3736 = vadd.f32 %v3707, %v3735
      %3737 = vdwg.mxu0
      %v3738 = vadd.f32 %v3285, %v3661
      %v3739 = vadd.f32 %v3286, %v3719
      %v3740 = vadd.f32 %v3287, %v3663
      %v3741 = vadd.f32 %v3288, %v3721
      %v3742 = vadd.f32 %v3289, %v3666
      %v3743 = vadd.f32 %v3290, %v3724
      %v3744 = vadd.f32 %v3291, %v3668
      %v3745 = vadd.f32 %v3292, %v3726
      %v3746 = vadd.f32 %v3293, %v3671
      %v3747 = vadd.f32 %v3294, %v3729
      %v3748 = vadd.f32 %v3295, %v3673
      %v3749 = vadd.f32 %v3296, %v3731
      %v3750 = vadd.f32 %v3297, %v3676
      %v3751 = vadd.f32 %v3298, %v3734
      %v3752 = vadd.f32 %v3299, %v3678
      %v3753 = vadd.f32 %v3300, %v3736
      %v3754 = vld [vmem:[%s2975] sm:$0xfc]
      %v3755 = vld [vmem:[%s2975 + $0x8] sm:$0xfc]
      %v3756 = vld [vmem:[%s2975 + $0x10] sm:$0x3]
      %v3757 = vld [vmem:[%s2975 + $0x18] sm:$0x3]
      %v3758 = vld [vmem:[%s2975 + $0x20] sm:$0xfc]
      %v3759 = vld [vmem:[%s2975 + $0x28] sm:$0xfc]
      %v3760 = vld [vmem:[%s2975 + $0x30] sm:$0x3]
      %v3761 = vld [vmem:[%s2975 + $0x38] sm:$0x3]
      %v3762 = vld [vmem:[%s2975 + $0x40] sm:$0xfc]
      %v3763 = vld [vmem:[%s2975 + $0x48] sm:$0xfc]
      %v3764 = vld [vmem:[%s2975 + $0x50] sm:$0x3]
      %v3765 = vld [vmem:[%s2975 + $0x58] sm:$0x3]
      %v3766 = vld [vmem:[%s2975 + $0x60] sm:$0xfc]
      %v3767 = vld [vmem:[%s2975 + $0x68] sm:$0xfc]
      %v3768 = vld [vmem:[%s2975 + $0x70] sm:$0x3]
      %v3769 = vld [vmem:[%s2975 + $0x78] sm:$0x3]
      %v3770 = vld [vmem:[%s2975 + $0x80] sm:$0xfc]
      %v3771 = vld [vmem:[%s2975 + $0x88] sm:$0xfc]
      %v3772 = vld [vmem:[%s2975 + $0x90] sm:$0x3]
      %v3773 = vld [vmem:[%s2975 + $0x98] sm:$0x3]
      %v3774 = vld [vmem:[%s2975 + $0xa0] sm:$0xfc]
      %v3775 = vld [vmem:[%s2975 + $0xa8] sm:$0xfc]
      %v3776 = vld [vmem:[%s2975 + $0xb0] sm:$0x3]
      %v3777 = vld [vmem:[%s2975 + $0xb8] sm:$0x3]
      %v3778 = vld [vmem:[%s2975 + $0xc0] sm:$0xfc]
      %v3779 = vld [vmem:[%s2975 + $0xc8] sm:$0xfc]
      %v3780 = vld [vmem:[%s2975 + $0xd0] sm:$0x3]
      %v3781 = vld [vmem:[%s2975 + $0xd8] sm:$0x3]
      %v3782 = vld [vmem:[%s2975 + $0xe0] sm:$0xfc]
      %v3783 = vld [vmem:[%s2975 + $0xe8] sm:$0xfc]
      %v3784 = vld [vmem:[%s2975 + $0xf0] sm:$0x3]
      %v3785 = vld [vmem:[%s2975 + $0xf8] sm:$0x3]
      %v3786 = vpack.c.bf16 %v3755, %v3754
      %v3787 = vpack.c.bf16 %v3757, %v3756
      %v3788 = vpack.c.bf16 %v3759, %v3758
      %v3789 = vpack.c.bf16 %v3761, %v3760
      %v3790 = vpack.c.bf16 %v3763, %v3762
      %v3791 = vpack.c.bf16 %v3765, %v3764
      %v3792 = vpack.c.bf16 %v3767, %v3766
      %v3793 = vpack.c.bf16 %v3769, %v3768
      %v3794 = vpack.c.bf16 %v3771, %v3770
      %v3795 = vpack.c.bf16 %v3773, %v3772
      %v3796 = vpack.c.bf16 %v3775, %v3774
      %v3797 = vpack.c.bf16 %v3777, %v3776
      %v3798 = vpack.c.bf16 %v3779, %v3778
      %v3799 = vpack.c.bf16 %v3781, %v3780
      %v3800 = vpack.c.bf16 %v3783, %v3782
      %v3801 = vpack.c.bf16 %v3785, %v3784
      %v3818 = vrot.slane %v3786, 5
      %v3819 = vrot.slane %v3818, 4
      %v3820 = vrot.slane %v3787, 5
      %v3821 = vsel %vm1482, %v3819, %v3820
      %v3822 = vrot.slane %v3788, 5
      %v3823 = vrot.slane %v3822, 4
      %v3824 = vrot.slane %v3789, 5
      %v3825 = vsel %vm1482, %v3823, %v3824
      %v3826 = vrot.slane %v3790, 5
      %v3827 = vrot.slane %v3826, 4
      %v3828 = vrot.slane %v3791, 5
      %v3829 = vsel %vm1482, %v3827, %v3828
      %v3830 = vrot.slane %v3792, 5
      %v3831 = vrot.slane %v3830, 4
      %v3832 = vrot.slane %v3793, 5
      %v3833 = vsel %vm1482, %v3831, %v3832
      %v3834 = vrot.slane %v3794, 5
      %v3835 = vrot.slane %v3834, 4
      %v3836 = vrot.slane %v3795, 5
      %v3837 = vsel %vm1482, %v3835, %v3836
      %v3838 = vrot.slane %v3796, 5
      %v3839 = vrot.slane %v3838, 4
      %v3840 = vrot.slane %v3797, 5
      %v3841 = vsel %vm1482, %v3839, %v3840
      %v3842 = vrot.slane %v3798, 5
      %v3843 = vrot.slane %v3842, 4
      %v3844 = vrot.slane %v3799, 5
      %v3845 = vsel %vm1482, %v3843, %v3844
      %v3846 = vrot.slane %v3800, 5
      %v3847 = vrot.slane %v3846, 4
      %v3848 = vrot.slane %v3801, 5
      %v3849 = vsel %vm1482, %v3847, %v3848
      %s3850 = scalar_lea.vmem %s1, 1280
      %v3851 = vld [vmem:[%s3850] sm:$0xff]
      %v3852 = vld [vmem:[%s3850 + $0x8] sm:$0xff]
      %v3853 = vld [vmem:[%s3850 + $0x10] sm:$0xff]
      %v3854 = vld [vmem:[%s3850 + $0x18] sm:$0xff]
      %v3855 = vld [vmem:[%s3850 + $0x20] sm:$0xff]
      %v3856 = vld [vmem:[%s3850 + $0x28] sm:$0xff]
      %v3857 = vld [vmem:[%s3850 + $0x30] sm:$0xff]
      %v3858 = vld [vmem:[%s3850 + $0x38] sm:$0xff]
      %v3859 = vld [vmem:[%s3850 + $0x40] sm:$0xff]
      %v3860 = vld [vmem:[%s3850 + $0x48] sm:$0xff]
      %v3861 = vld [vmem:[%s3850 + $0x50] sm:$0xff]
      %v3862 = vld [vmem:[%s3850 + $0x58] sm:$0xff]
      %v3863 = vld [vmem:[%s3850 + $0x60] sm:$0xff]
      %v3864 = vld [vmem:[%s3850 + $0x68] sm:$0xff]
      %v3865 = vld [vmem:[%s3850 + $0x70] sm:$0xff]
      %v3866 = vld [vmem:[%s3850 + $0x78] sm:$0xff]
      %v3867 = vld [vmem:[%s3850 + $0x80] sm:$0xff]
      %v3868 = vld [vmem:[%s3850 + $0x88] sm:$0xff]
      %v3869 = vld [vmem:[%s3850 + $0x90] sm:$0xff]
      %v3870 = vld [vmem:[%s3850 + $0x98] sm:$0xff]
      %v3871 = vunpack.c.l.b16 %v3821
      %v3872 = vunpack.c.h.b16 %v3821
      %v3873 = vunpack.c.l.b16 %v3825
      %v3874 = vunpack.c.h.b16 %v3825
      %v3875 = vunpack.c.l.b16 %v3829
      %v3876 = vunpack.c.h.b16 %v3829
      %v3877 = vunpack.c.l.b16 %v3833
      %v3878 = vunpack.c.h.b16 %v3833
      %v3879 = vunpack.c.l.b16 %v3837
      %v3880 = vunpack.c.h.b16 %v3837
      %v3881 = vunpack.c.l.b16 %v3841
      %v3882 = vunpack.c.h.b16 %v3841
      %v3883 = vunpack.c.l.b16 %v3845
      %v3884 = vunpack.c.h.b16 %v3845
      %v3885 = vunpack.c.l.b16 %v3849
      %v3886 = vunpack.c.h.b16 %v3849
      %v3887 = vpack.c.b16 %v3873, %v3871
      %v3888 = vpack.c.b16 %v3874, %v3872
      %v3889 = vpack.c.b16 %v3877, %v3875
      %v3890 = vpack.c.b16 %v3878, %v3876
      %v3891 = vpack.c.b16 %v3881, %v3879
      %v3892 = vpack.c.b16 %v3882, %v3880
      %v3893 = vpack.c.b16 %v3885, %v3883
      %v3894 = vpack.c.b16 %v3886, %v3884
      %v3919 = vunpack.c.l.b16 %v3851
      %v3920 = vunpack.c.h.b16 %v3851
      %v3921 = vunpack.c.l.b16 %v3852
      %v3922 = vunpack.c.h.b16 %v3852
      %v3923 = vunpack.c.l.b16 %v3853
      %v3924 = vunpack.c.h.b16 %v3853
      %v3925 = vunpack.c.l.b16 %v3854
      %v3926 = vunpack.c.h.b16 %v3854
      %v3927 = vunpack.c.l.b16 %v3855
      %v3928 = vunpack.c.h.b16 %v3855
      %v3929 = vunpack.c.l.b16 %v3856
      %v3930 = vunpack.c.h.b16 %v3856
      %v3931 = vunpack.c.l.b16 %v3857
      %v3932 = vunpack.c.h.b16 %v3857
      %v3933 = vunpack.c.l.b16 %v3858
      %v3934 = vunpack.c.h.b16 %v3858
      %v3935 = vunpack.c.l.b16 %v3859
      %v3936 = vunpack.c.h.b16 %v3859
      %v3937 = vunpack.c.l.b16 %v3860
      %v3938 = vunpack.c.h.b16 %v3860
      %v3939 = vunpack.c.l.b16 %v3861
      %v3940 = vunpack.c.h.b16 %v3861
      %v3941 = vunpack.c.l.b16 %v3862
      %v3942 = vunpack.c.h.b16 %v3862
      %v3943 = vunpack.c.l.b16 %v3863
      %v3944 = vunpack.c.h.b16 %v3863
      %v3945 = vunpack.c.l.b16 %v3864
      %v3946 = vunpack.c.h.b16 %v3864
      %v3947 = vunpack.c.l.b16 %v3865
      %v3948 = vunpack.c.h.b16 %v3865
      %v3949 = vunpack.c.l.b16 %v3866
      %v3950 = vunpack.c.h.b16 %v3866
      %v3951 = vunpack.c.l.b16 %v3867
      %v3952 = vunpack.c.h.b16 %v3867
      %v3953 = vunpack.c.l.b16 %v3868
      %v3954 = vunpack.c.h.b16 %v3868
      %v3955 = vunpack.c.l.b16 %v3869
      %v3956 = vunpack.c.h.b16 %v3869
      %v3957 = vunpack.c.l.b16 %v3870
      %v3958 = vunpack.c.h.b16 %v3870
      %v3959 = vpack.c.b16 %v3921, %v3919
      %v3960 = vpack.c.b16 %v3922, %v3920
      %v3961 = vpack.c.b16 %v3925, %v3923
      %v3962 = vpack.c.b16 %v3926, %v3924
      %v3963 = vpack.c.b16 %v3929, %v3927
      %v3964 = vpack.c.b16 %v3930, %v3928
      %v3965 = vpack.c.b16 %v3933, %v3931
      %v3966 = vpack.c.b16 %v3934, %v3932
      %v3967 = vpack.c.b16 %v3937, %v3935
      %v3968 = vpack.c.b16 %v3938, %v3936
      %v3969 = vpack.c.b16 %v3941, %v3939
      %v3970 = vpack.c.b16 %v3942, %v3940
      %v3971 = vpack.c.b16 %v3945, %v3943
      %v3972 = vpack.c.b16 %v3946, %v3944
      %v3973 = vpack.c.b16 %v3949, %v3947
      %v3974 = vpack.c.b16 %v3950, %v3948
      %v3975 = vpack.c.b16 %v3953, %v3951
      %v3976 = vpack.c.b16 %v3954, %v3952
      %v3977 = vpack.c.b16 %v3957, %v3955
      %v3978 = vpack.c.b16 %v3958, %v3956
      %v4000 = vsel %vm443, %v3888, 0
      %v4003 = vsel %vm443, %v3890, 0
      %v4006 = vsel %vm443, %v3892, 0
      %v4009 = vsel %vm443, %v3894, 0
      %4011 = vmatpush.bf16.msra.mxu0 %v3973
      %4012 = vmatpush.bf16.msra.mxu0 %v3971
      %4013 = vmatpush.bf16.msra.mxu0 %v3969
      %4014 = vmatpush.bf16.msra.mxu0 %v3967
      %4015 = vmatpush.bf16.msra.mxu0 %v3965
      %4016 = vmatpush.bf16.msra.mxu0 %v3963
      %4017 = vmatpush.bf16.msra.mxu0 %v3961
      %4018 = vmatpush.bf16.msra.mxu0 %v3959
      %4019 = vmatmul.bf16.gmra.mxu0 %v3887
      %v4020 = vpop.f32.mrf.mxu0
      %v4021 = vadd.f32 0.0, %v4020
      %v4022 = vpop.f32.mrf.mxu0
      %v4023 = vadd.f32 0.0, %v4022
      %4024 = vmatmul.bf16.gmra.mxu0 %v3889
      %v4025 = vpop.f32.mrf.mxu0
      %v4026 = vadd.f32 0.0, %v4025
      %v4027 = vpop.f32.mrf.mxu0
      %v4028 = vadd.f32 0.0, %v4027
      %4029 = vmatmul.bf16.gmra.mxu0 %v3891
      %v4030 = vpop.f32.mrf.mxu0
      %v4031 = vadd.f32 0.0, %v4030
      %v4032 = vpop.f32.mrf.mxu0
      %v4033 = vadd.f32 0.0, %v4032
      %4034 = vmatmul.bf16.gmra.mxu0 %v3893
      %v4035 = vpop.f32.mrf.mxu0
      %v4036 = vadd.f32 0.0, %v4035
      %v4037 = vpop.f32.mrf.mxu0
      %v4038 = vadd.f32 0.0, %v4037
      %4039 = vdwg.mxu0
      %4040 = vmatpush.bf16.msra.mxu0 0
      %4041 = vmatpush.bf16.msra.mxu0 0
      %4042 = vmatpush.bf16.msra.mxu0 0
      %4043 = vmatpush.bf16.msra.mxu0 0
      %4044 = vmatpush.bf16.msra.mxu0 0
      %4045 = vmatpush.bf16.msra.mxu0 0
      %4046 = vmatpush.bf16.msra.mxu0 %v3977
      %4047 = vmatpush.bf16.msra.mxu0 %v3975
      %4048 = vmatmul.bf16.gmra.mxu0 %v4000
      %v4049 = vpop.f32.mrf.mxu0
      %v4050 = vadd.f32 %v4021, %v4049
      %v4051 = vpop.f32.mrf.mxu0
      %v4052 = vadd.f32 %v4023, %v4051
      %4053 = vmatmul.bf16.gmra.mxu0 %v4003
      %v4054 = vpop.f32.mrf.mxu0
      %v4055 = vadd.f32 %v4026, %v4054
      %v4056 = vpop.f32.mrf.mxu0
      %v4057 = vadd.f32 %v4028, %v4056
      %4058 = vmatmul.bf16.gmra.mxu0 %v4006
      %v4059 = vpop.f32.mrf.mxu0
      %v4060 = vadd.f32 %v4031, %v4059
      %v4061 = vpop.f32.mrf.mxu0
      %v4062 = vadd.f32 %v4033, %v4061
      %4063 = vmatmul.bf16.gmra.mxu0 %v4009
      %v4064 = vpop.f32.mrf.mxu0
      %v4065 = vadd.f32 %v4036, %v4064
      %v4066 = vpop.f32.mrf.mxu0
      %v4067 = vadd.f32 %v4038, %v4066
      %4068 = vdwg.mxu0
      %4069 = vmatpush.bf16.msra.mxu0 %v3974
      %4070 = vmatpush.bf16.msra.mxu0 %v3972
      %4071 = vmatpush.bf16.msra.mxu0 %v3970
      %4072 = vmatpush.bf16.msra.mxu0 %v3968
      %4073 = vmatpush.bf16.msra.mxu0 %v3966
      %4074 = vmatpush.bf16.msra.mxu0 %v3964
      %4075 = vmatpush.bf16.msra.mxu0 %v3962
      %4076 = vmatpush.bf16.msra.mxu0 %v3960
      %4077 = vmatmul.bf16.gmra.mxu0 %v3887
      %v4078 = vpop.f32.mrf.mxu0
      %v4079 = vadd.f32 0.0, %v4078
      %v4080 = vpop.f32.mrf.mxu0
      %v4081 = vadd.f32 0.0, %v4080
      %4082 = vmatmul.bf16.gmra.mxu0 %v3889
      %v4083 = vpop.f32.mrf.mxu0
      %v4084 = vadd.f32 0.0, %v4083
      %v4085 = vpop.f32.mrf.mxu0
      %v4086 = vadd.f32 0.0, %v4085
      %4087 = vmatmul.bf16.gmra.mxu0 %v3891
      %v4088 = vpop.f32.mrf.mxu0
      %v4089 = vadd.f32 0.0, %v4088
      %v4090 = vpop.f32.mrf.mxu0
      %v4091 = vadd.f32 0.0, %v4090
      %4092 = vmatmul.bf16.gmra.mxu0 %v3893
      %v4093 = vpop.f32.mrf.mxu0
      %v4094 = vadd.f32 0.0, %v4093
      %v4095 = vpop.f32.mrf.mxu0
      %v4096 = vadd.f32 0.0, %v4095
      %4097 = vdwg.mxu0
      %4098 = vmatpush.bf16.msra.mxu0 0
      %4099 = vmatpush.bf16.msra.mxu0 0
      %4100 = vmatpush.bf16.msra.mxu0 0
      %4101 = vmatpush.bf16.msra.mxu0 0
      %4102 = vmatpush.bf16.msra.mxu0 0
      %4103 = vmatpush.bf16.msra.mxu0 0
      %4104 = vmatpush.bf16.msra.mxu0 %v3978
      %4105 = vmatpush.bf16.msra.mxu0 %v3976
      %4106 = vmatmul.bf16.gmra.mxu0 %v4000
      %v4107 = vpop.f32.mrf.mxu0
      %v4108 = vadd.f32 %v4079, %v4107
      %v4109 = vpop.f32.mrf.mxu0
      %v4110 = vadd.f32 %v4081, %v4109
      %4111 = vmatmul.bf16.gmra.mxu0 %v4003
      %v4112 = vpop.f32.mrf.mxu0
      %v4113 = vadd.f32 %v4084, %v4112
      %v4114 = vpop.f32.mrf.mxu0
      %v4115 = vadd.f32 %v4086, %v4114
      %4116 = vmatmul.bf16.gmra.mxu0 %v4006
      %v4117 = vpop.f32.mrf.mxu0
      %v4118 = vadd.f32 %v4089, %v4117
      %v4119 = vpop.f32.mrf.mxu0
      %v4120 = vadd.f32 %v4091, %v4119
      %4121 = vmatmul.bf16.gmra.mxu0 %v4009
      %v4122 = vpop.f32.mrf.mxu0
      %v4123 = vadd.f32 %v4094, %v4122
      %v4124 = vpop.f32.mrf.mxu0
      %v4125 = vadd.f32 %v4096, %v4124
      %4126 = vdwg.mxu0
      %v4127 = vadd.f32 %v3738, %v4050
      %v4128 = vadd.f32 %v3739, %v4108
      %v4129 = vadd.f32 %v3740, %v4052
      %v4130 = vadd.f32 %v3741, %v4110
      %v4131 = vadd.f32 %v3742, %v4055
      %v4132 = vadd.f32 %v3743, %v4113
      %v4133 = vadd.f32 %v3744, %v4057
      %v4134 = vadd.f32 %v3745, %v4115
      %v4135 = vadd.f32 %v3746, %v4060
      %v4136 = vadd.f32 %v3747, %v4118
      %v4137 = vadd.f32 %v3748, %v4062
      %v4138 = vadd.f32 %v3749, %v4120
      %v4139 = vadd.f32 %v3750, %v4065
      %v4140 = vadd.f32 %v3751, %v4123
      %v4141 = vadd.f32 %v3752, %v4067
      %v4142 = vadd.f32 %v3753, %v4125
      %v4144 = vperm.slane %v665, 0
      %v4145 = vperm.slane %v665, 1
      %v4148 = vadd.f32 %v4127, %v4144
      %v4149 = vadd.f32 %v4128, %v4145
      %v4150 = vadd.f32 %v4129, %v4144
      %v4151 = vadd.f32 %v4130, %v4145
      %v4152 = vadd.f32 %v4131, %v4144
      %v4153 = vadd.f32 %v4132, %v4145
      %v4154 = vadd.f32 %v4133, %v4144
      %v4155 = vadd.f32 %v4134, %v4145
      %v4156 = vadd.f32 %v4135, %v4144
      %v4157 = vadd.f32 %v4136, %v4145
      %v4158 = vadd.f32 %v4137, %v4144
      %v4159 = vadd.f32 %v4138, %v4145
      %v4160 = vadd.f32 %v4139, %v4144
      %v4161 = vadd.f32 %v4140, %v4145
      %v4162 = vadd.f32 %v4141, %v4144
      %v4163 = vadd.f32 %v4142, %v4145
      %v4164 = vadd.f32 %v4148, %v4150
      %v4165 = vadd.f32 %v4164, %v4152
      %v4166 = vadd.f32 %v4165, %v4154
      %v4167 = vadd.f32 %v4166, %v4156
      %v4168 = vadd.f32 %v4167, %v4158
      %v4169 = vadd.f32 %v4168, %v4160
      %v4170 = vadd.f32 %v4169, %v4162
      %v4171 = vrot.slane %v4170, 4
      %v4172 = vadd.f32 %v4170, %v4171
      %v4173 = vrot.slane %v4172, 2
      %v4174 = vadd.f32 %v4172, %v4173
      %v4175 = vrot.slane %v4174, 1
      %v4176 = vadd.f32 %v4174, %v4175
      %v4177 = vadd.f32 %v4149, %v4151
      %v4178 = vadd.f32 %v4177, %v4153
      %v4179 = vadd.f32 %v4178, %v4155
      %v4180 = vadd.f32 %v4179, %v4157
      %v4181 = vadd.f32 %v4180, %v4159
      %v4182 = vadd.f32 %v4181, %v4161
      %v4183 = vadd.f32 %v4182, %v4163
      %v4184 = vrot.slane %v4183, 4
      %v4185 = vadd.f32 %v4183, %v4184
      %v4186 = vrot.slane %v4185, 2
      %v4187 = vadd.f32 %v4185, %v4186
      %v4188 = vrot.slane %v4187, 1
      %v4189 = vadd.f32 %v4187, %v4188
      %4190 = vmatpush.msra.mxu0 %v646
      %4191 = vmatpush.msra.mxu0 %v645
      %4192 = vmatpush.msra.mxu0 %v644
      %4193 = vmatpush.msra.mxu0 %v643
      %4194 = vmatpush.msra.mxu0 %v642
      %4195 = vmatpush.msra.mxu0 %v641
      %4196 = vmatpush.msra.mxu0 %v640
      %4197 = vmatpush.msra.mxu0 %v639
      %4198 = vmatpush.msra.mxu0 %v638
      %4199 = vmatpush.msra.mxu0 %v637
      %4200 = vmatpush.msra.mxu0 %v636
      %4201 = vmatpush.msra.mxu0 %v635
      %4202 = vmatpush.msra.mxu0 %v634
      %4203 = vmatpush.msra.mxu0 %v633
      %4204 = vmatpush.msra.mxu0 %v632
      %4205 = vmatpush.msra.mxu0 %v631
      %4206 = vmatmul.f32.gmra.mxu0 %v4176
      %v4207 = vpop.f32.mrf.mxu0
      %v4208 = vadd.f32 0.0, %v4207
      %4209 = vdwg.mxu0
      %4210 = vmatpush.msra.mxu0 %v662
      %4211 = vmatpush.msra.mxu0 %v661
      %4212 = vmatpush.msra.mxu0 %v660
      %4213 = vmatpush.msra.mxu0 %v659
      %4214 = vmatpush.msra.mxu0 %v658
      %4215 = vmatpush.msra.mxu0 %v657
      %4216 = vmatpush.msra.mxu0 %v656
      %4217 = vmatpush.msra.mxu0 %v655
      %4218 = vmatpush.msra.mxu0 %v654
      %4219 = vmatpush.msra.mxu0 %v653
      %4220 = vmatpush.msra.mxu0 %v652
      %4221 = vmatpush.msra.mxu0 %v651
      %4222 = vmatpush.msra.mxu0 %v650
      %4223 = vmatpush.msra.mxu0 %v649
      %4224 = vmatpush.msra.mxu0 %v648
      %4225 = vmatpush.msra.mxu0 %v647
      %4226 = vmatmul.f32.gmra.mxu0 %v4189
      %v4227 = vpop.f32.mrf.mxu0
      %v4228 = vadd.f32 %v4208, %v4227
      %4229 = vdwg.mxu0
      %v4230 = vmul.f32 %v4228, 0.00048828125
      %vm4231 = vcmask 64512
      %v4233 = vsel %vm4231, %v4230, 0
      %4235 = vmatpush.msra.mxu0 0.0
      %4236 = vmatpush.msra.mxu0 0.0
      %4237 = vmatpush.msra.mxu0 0.0
      %4238 = vmatpush.msra.mxu0 0.0
      %4239 = vmatpush.msra.mxu0 0.0
      %4240 = vmatpush.msra.mxu0 0.0
      %4241 = vmatpush.msra.mxu0 0.0
      %4242 = vmatpush.msra.mxu0 0.0
      %4243 = vmatpush.msra.mxu0 0.0
      %4244 = vmatpush.msra.mxu0 0.0
      %4245 = vmatpush.msra.mxu0 0.0
      %4246 = vmatpush.msra.mxu0 0.0
      %4247 = vmatpush.msra.mxu0 0.0
      %4248 = vmatpush.msra.mxu0 0.0
      %4249 = vmatpush.msra.mxu0 0.0
      %4250 = vmatpush.msra.mxu0 %v663
      %4251 = vmatmul.f32.gmra.mxu0 %v4233
      %v4252 = vpop.f32.mrf.mxu0
      %v4253 = vadd.f32 0.0, %v4252
      %4254 = vdwg.mxu0
      %4255 = vmatpush.msra.mxu0 0.0
      %4256 = vmatpush.msra.mxu0 0.0
      %4257 = vmatpush.msra.mxu0 0.0
      %4258 = vmatpush.msra.mxu0 0.0
      %4259 = vmatpush.msra.mxu0 0.0
      %4260 = vmatpush.msra.mxu0 0.0
      %4261 = vmatpush.msra.mxu0 0.0
      %4262 = vmatpush.msra.mxu0 0.0
      %4263 = vmatpush.msra.mxu0 0.0
      %4264 = vmatpush.msra.mxu0 0.0
      %4265 = vmatpush.msra.mxu0 0.0
      %4266 = vmatpush.msra.mxu0 0.0
      %4267 = vmatpush.msra.mxu0 0.0
      %4268 = vmatpush.msra.mxu0 0.0
      %4269 = vmatpush.msra.mxu0 0.0
      %4270 = vmatpush.msra.mxu0 %v664
      %4271 = vmatmul.f32.gmra.mxu0 %v4233
      %v4272 = vpop.f32.mrf.mxu0
      %v4273 = vadd.f32 0.0, %v4272
      %4274 = vdwg.mxu0
      %v4275 = vperm.slane %v4253, 0
      %v4276 = vperm.slane %v4273, 0
      %v4277 = vsub.f32 %v4148, %v4275
      %v4278 = vsub.f32 %v4149, %v4276
      %v4279 = vsub.f32 %v4150, %v4275
      %v4280 = vsub.f32 %v4151, %v4276
      %v4281 = vsub.f32 %v4152, %v4275
      %v4282 = vsub.f32 %v4153, %v4276
      %v4283 = vsub.f32 %v4154, %v4275
      %v4284 = vsub.f32 %v4155, %v4276
      %v4285 = vsub.f32 %v4156, %v4275
      %v4286 = vsub.f32 %v4157, %v4276
      %v4287 = vsub.f32 %v4158, %v4275
      %v4288 = vsub.f32 %v4159, %v4276
      %v4289 = vsub.f32 %v4160, %v4275
      %v4290 = vsub.f32 %v4161, %v4276
      %v4291 = vsub.f32 %v4162, %v4275
      %v4292 = vsub.f32 %v4163, %v4276
      %v4293 = vmul.f32 %v4277, %v4277
      %v4294 = vmul.f32 %v4278, %v4278
      %v4295 = vmul.f32 %v4279, %v4279
      %v4296 = vmul.f32 %v4280, %v4280
      %v4297 = vmul.f32 %v4281, %v4281
      %v4298 = vmul.f32 %v4282, %v4282
      %v4299 = vmul.f32 %v4283, %v4283
      %v4300 = vmul.f32 %v4284, %v4284
      %v4301 = vmul.f32 %v4285, %v4285
      %v4302 = vmul.f32 %v4286, %v4286
      %v4303 = vmul.f32 %v4287, %v4287
      %v4304 = vmul.f32 %v4288, %v4288
      %v4305 = vmul.f32 %v4289, %v4289
      %v4306 = vmul.f32 %v4290, %v4290
      %v4307 = vmul.f32 %v4291, %v4291
      %v4308 = vmul.f32 %v4292, %v4292
      %v4309 = vadd.f32 %v4293, %v4295
      %v4310 = vadd.f32 %v4309, %v4297
      %v4311 = vadd.f32 %v4310, %v4299
      %v4312 = vadd.f32 %v4311, %v4301
      %v4313 = vadd.f32 %v4312, %v4303
      %v4314 = vadd.f32 %v4313, %v4305
      %v4315 = vadd.f32 %v4314, %v4307
      %v4316 = vrot.slane %v4315, 4
      %v4317 = vadd.f32 %v4315, %v4316
      %v4318 = vrot.slane %v4317, 2
      %v4319 = vadd.f32 %v4317, %v4318
      %v4320 = vrot.slane %v4319, 1
      %v4321 = vadd.f32 %v4319, %v4320
      %v4322 = vadd.f32 %v4294, %v4296
      %v4323 = vadd.f32 %v4322, %v4298
      %v4324 = vadd.f32 %v4323, %v4300
      %v4325 = vadd.f32 %v4324, %v4302
      %v4326 = vadd.f32 %v4325, %v4304
      %v4327 = vadd.f32 %v4326, %v4306
      %v4328 = vadd.f32 %v4327, %v4308
      %v4329 = vrot.slane %v4328, 4
      %v4330 = vadd.f32 %v4328, %v4329
      %v4331 = vrot.slane %v4330, 2
      %v4332 = vadd.f32 %v4330, %v4331
      %v4333 = vrot.slane %v4332, 1
      %v4334 = vadd.f32 %v4332, %v4333
      %4335 = vmatpush.msra.mxu0 %v646
      %4336 = vmatpush.msra.mxu0 %v645
      %4337 = vmatpush.msra.mxu0 %v644
      %4338 = vmatpush.msra.mxu0 %v643
      %4339 = vmatpush.msra.mxu0 %v642
      %4340 = vmatpush.msra.mxu0 %v641
      %4341 = vmatpush.msra.mxu0 %v640
      %4342 = vmatpush.msra.mxu0 %v639
      %4343 = vmatpush.msra.mxu0 %v638
      %4344 = vmatpush.msra.mxu0 %v637
      %4345 = vmatpush.msra.mxu0 %v636
      %4346 = vmatpush.msra.mxu0 %v635
      %4347 = vmatpush.msra.mxu0 %v634
      %4348 = vmatpush.msra.mxu0 %v633
      %4349 = vmatpush.msra.mxu0 %v632
      %4350 = vmatpush.msra.mxu0 %v631
      %4351 = vmatmul.f32.gmra.mxu0 %v4321
      %v4352 = vpop.f32.mrf.mxu0
      %v4353 = vadd.f32 0.0, %v4352
      %4354 = vdwg.mxu0
      %4355 = vmatpush.msra.mxu0 %v662
      %4356 = vmatpush.msra.mxu0 %v661
      %4357 = vmatpush.msra.mxu0 %v660
      %4358 = vmatpush.msra.mxu0 %v659
      %4359 = vmatpush.msra.mxu0 %v658
      %4360 = vmatpush.msra.mxu0 %v657
      %4361 = vmatpush.msra.mxu0 %v656
      %4362 = vmatpush.msra.mxu0 %v655
      %4363 = vmatpush.msra.mxu0 %v654
      %4364 = vmatpush.msra.mxu0 %v653
      %4365 = vmatpush.msra.mxu0 %v652
      %4366 = vmatpush.msra.mxu0 %v651
      %4367 = vmatpush.msra.mxu0 %v650
      %4368 = vmatpush.msra.mxu0 %v649
      %4369 = vmatpush.msra.mxu0 %v648
      %4370 = vmatpush.msra.mxu0 %v647
      %4371 = vmatmul.f32.gmra.mxu0 %v4334
      %v4372 = vpop.f32.mrf.mxu0
      %v4373 = vadd.f32 %v4353, %v4372
      %4374 = vdwg.mxu0
      %v4375 = vmul.f32 %v4373, 0.00048828125
      %v4376 = vadd.f32 %v4375, 1e-05
      %v4377 = vrsqrt.pop %v4376
      %v4378 = vmul.f32 %v4377, %v4376
      %v4379 = vmul.f32 %v4378, %v4377
      %v4380 = vmul.f32 0.5, %v4379
      %v4381 = vsub.f32 1.5, %v4380
      %v4382 = vmul.f32 %v4377, %v4381
      %vm4383 = vweird.f32 %v4376
      %vm4384 = vweird.f32 %v4377
      %vm4385 = vmor %vm4383, %vm4384
      %v4386 = vsel %vm4385, %v4377, %v4382
      %v4388 = vsel %vm4231, %v4386, 0
      %4390 = vmatpush.msra.mxu0 0.0
      %4391 = vmatpush.msra.mxu0 0.0
      %4392 = vmatpush.msra.mxu0 0.0
      %4393 = vmatpush.msra.mxu0 0.0
      %4394 = vmatpush.msra.mxu0 0.0
      %4395 = vmatpush.msra.mxu0 0.0
      %4396 = vmatpush.msra.mxu0 0.0
      %4397 = vmatpush.msra.mxu0 0.0
      %4398 = vmatpush.msra.mxu0 0.0
      %4399 = vmatpush.msra.mxu0 0.0
      %4400 = vmatpush.msra.mxu0 0.0
      %4401 = vmatpush.msra.mxu0 0.0
      %4402 = vmatpush.msra.mxu0 0.0
      %4403 = vmatpush.msra.mxu0 0.0
      %4404 = vmatpush.msra.mxu0 0.0
      %4405 = vmatpush.msra.mxu0 %v663
      %4406 = vmatmul.f32.gmra.mxu0 %v4388
      %v4407 = vpop.f32.mrf.mxu0
      %v4408 = vadd.f32 0.0, %v4407
      %4409 = vdwg.mxu0
      %4410 = vmatpush.msra.mxu0 0.0
      %4411 = vmatpush.msra.mxu0 0.0
      %4412 = vmatpush.msra.mxu0 0.0
      %4413 = vmatpush.msra.mxu0 0.0
      %4414 = vmatpush.msra.mxu0 0.0
      %4415 = vmatpush.msra.mxu0 0.0
      %4416 = vmatpush.msra.mxu0 0.0
      %4417 = vmatpush.msra.mxu0 0.0
      %4418 = vmatpush.msra.mxu0 0.0
      %4419 = vmatpush.msra.mxu0 0.0
      %4420 = vmatpush.msra.mxu0 0.0
      %4421 = vmatpush.msra.mxu0 0.0
      %4422 = vmatpush.msra.mxu0 0.0
      %4423 = vmatpush.msra.mxu0 0.0
      %4424 = vmatpush.msra.mxu0 0.0
      %4425 = vmatpush.msra.mxu0 %v664
      %4426 = vmatmul.f32.gmra.mxu0 %v4388
      %v4427 = vpop.f32.mrf.mxu0
      %v4428 = vadd.f32 0.0, %v4427
      %4429 = vdwg.mxu0
      %v4430 = vperm.slane %v4408, 0
      %v4431 = vperm.slane %v4428, 0
      %v4432 = vmul.f32 %v4277, %v4430
      %v4433 = vmul.f32 %v4278, %v4431
      %v4434 = vmul.f32 %v4279, %v4430
      %v4435 = vmul.f32 %v4280, %v4431
      %v4436 = vmul.f32 %v4281, %v4430
      %v4437 = vmul.f32 %v4282, %v4431
      %v4438 = vmul.f32 %v4283, %v4430
      %v4439 = vmul.f32 %v4284, %v4431
      %v4440 = vmul.f32 %v4285, %v4430
      %v4441 = vmul.f32 %v4286, %v4431
      %v4442 = vmul.f32 %v4287, %v4430
      %v4443 = vmul.f32 %v4288, %v4431
      %v4444 = vmul.f32 %v4289, %v4430
      %v4445 = vmul.f32 %v4290, %v4431
      %v4446 = vmul.f32 %v4291, %v4430
      %v4447 = vmul.f32 %v4292, %v4431
      %v4449 = vperm.slane %v666, 0
      %v4450 = vperm.slane %v666, 1
      %v4453 = vmul.f32 %v4432, %v4449
      %v4454 = vmul.f32 %v4433, %v4450
      %v4455 = vmul.f32 %v4434, %v4449
      %v4456 = vmul.f32 %v4435, %v4450
      %v4457 = vmul.f32 %v4436, %v4449
      %v4458 = vmul.f32 %v4437, %v4450
      %v4459 = vmul.f32 %v4438, %v4449
      %v4460 = vmul.f32 %v4439, %v4450
      %v4461 = vmul.f32 %v4440, %v4449
      %v4462 = vmul.f32 %v4441, %v4450
      %v4463 = vmul.f32 %v4442, %v4449
      %v4464 = vmul.f32 %v4443, %v4450
      %v4465 = vmul.f32 %v4444, %v4449
      %v4466 = vmul.f32 %v4445, %v4450
      %v4467 = vmul.f32 %v4446, %v4449
      %v4468 = vmul.f32 %v4447, %v4450
      %v4470 = vperm.slane %v667, 0
      %v4471 = vperm.slane %v667, 1
      %v4474 = vadd.f32 %v4453, %v4470
      %v4475 = vadd.f32 %v4454, %v4471
      %v4476 = vadd.f32 %v4455, %v4470
      %v4477 = vadd.f32 %v4456, %v4471
      %v4478 = vadd.f32 %v4457, %v4470
      %v4479 = vadd.f32 %v4458, %v4471
      %v4480 = vadd.f32 %v4459, %v4470
      %v4481 = vadd.f32 %v4460, %v4471
      %v4482 = vadd.f32 %v4461, %v4470
      %v4483 = vadd.f32 %v4462, %v4471
      %v4484 = vadd.f32 %v4463, %v4470
      %v4485 = vadd.f32 %v4464, %v4471
      %v4486 = vadd.f32 %v4465, %v4470
      %v4487 = vadd.f32 %v4466, %v4471
      %v4488 = vadd.f32 %v4467, %v4470
      %v4489 = vadd.f32 %v4468, %v4471
      %v4490 = vxor.u32 %v4474, 2147483648
      %v4491 = vxor.u32 %v4475, 2147483648
      %v4492 = vxor.u32 %v4476, 2147483648
      %v4493 = vxor.u32 %v4477, 2147483648
      %v4494 = vxor.u32 %v4478, 2147483648
      %v4495 = vxor.u32 %v4479, 2147483648
      %v4496 = vxor.u32 %v4480, 2147483648
      %v4497 = vxor.u32 %v4481, 2147483648
      %v4498 = vxor.u32 %v4482, 2147483648
      %v4499 = vxor.u32 %v4483, 2147483648
      %v4500 = vxor.u32 %v4484, 2147483648
      %v4501 = vxor.u32 %v4485, 2147483648
      %v4502 = vxor.u32 %v4486, 2147483648
      %v4503 = vxor.u32 %v4487, 2147483648
      %v4504 = vxor.u32 %v4488, 2147483648
      %v4505 = vxor.u32 %v4489, 2147483648
      %v4506 = vmul.f32 %v4490, 1.442695
      %v4507 = vpow.pop %v4506
      %v4508 = vmul.f32 %v4491, 1.442695
      %v4509 = vpow.pop %v4508
      %v4510 = vmul.f32 %v4492, 1.442695
      %v4511 = vpow.pop %v4510
      %v4512 = vmul.f32 %v4493, 1.442695
      %v4513 = vpow.pop %v4512
      %v4514 = vmul.f32 %v4494, 1.442695
      %v4515 = vpow.pop %v4514
      %v4516 = vmul.f32 %v4495, 1.442695
      %v4517 = vpow.pop %v4516
      %v4518 = vmul.f32 %v4496, 1.442695
      %v4519 = vpow.pop %v4518
      %v4520 = vmul.f32 %v4497, 1.442695
      %v4521 = vpow.pop %v4520
      %v4522 = vmul.f32 %v4498, 1.442695
      %v4523 = vpow.pop %v4522
      %v4524 = vmul.f32 %v4499, 1.442695
      %v4525 = vpow.pop %v4524
      %v4526 = vmul.f32 %v4500, 1.442695
      %v4527 = vpow.pop %v4526
      %v4528 = vmul.f32 %v4501, 1.442695
      %v4529 = vpow.pop %v4528
      %v4530 = vmul.f32 %v4502, 1.442695
      %v4531 = vpow.pop %v4530
      %v4532 = vmul.f32 %v4503, 1.442695
      %v4533 = vpow.pop %v4532
      %v4534 = vmul.f32 %v4504, 1.442695
      %v4535 = vpow.pop %v4534
      %v4536 = vmul.f32 %v4505, 1.442695
      %v4537 = vpow.pop %v4536
      %v4538 = vadd.f32 %v4507, 1.0
      %v4539 = vadd.f32 %v4509, 1.0
      %v4540 = vadd.f32 %v4511, 1.0
      %v4541 = vadd.f32 %v4513, 1.0
      %v4542 = vadd.f32 %v4515, 1.0
      %v4543 = vadd.f32 %v4517, 1.0
      %v4544 = vadd.f32 %v4519, 1.0
      %v4545 = vadd.f32 %v4521, 1.0
      %v4546 = vadd.f32 %v4523, 1.0
      %v4547 = vadd.f32 %v4525, 1.0
      %v4548 = vadd.f32 %v4527, 1.0
      %v4549 = vadd.f32 %v4529, 1.0
      %v4550 = vadd.f32 %v4531, 1.0
      %v4551 = vadd.f32 %v4533, 1.0
      %v4552 = vadd.f32 %v4535, 1.0
      %v4553 = vadd.f32 %v4537, 1.0
      %v4554 = vrcp.pop %v4538
      %v4555 = vmul.f32 %v4538, %v4554
      %v4556 = vsub.f32 1.0, %v4555
      %v4557 = vmul.f32 %v4554, %v4556
      %v4558 = vadd.f32 %v4554, %v4557
      %vm4559 = vweird.f32 %v4538
      %vm4560 = vweird.f32 %v4554
      %vm4561 = vmor %vm4559, %vm4560
      %v4562 = vsel %vm4561, %v4554, %v4558
      %v4563 = vand.u32 2147483647, %v4538
      %vm4564 = vcmp.eq.f32.partialorder %v4563, 8.507059e+37
      %v4565 = vand.u32 %v4538, 2147483648
      %v4566 = vor.u32 1.1754944e-38, %v4565
      %v4567 = vsel %vm4564, %v4566, %v4562
      %v4568 = vmul.f32 1.0, %v4567
      %v4569 = vrcp.pop %v4539
      %v4570 = vmul.f32 %v4539, %v4569
      %v4571 = vsub.f32 1.0, %v4570
      %v4572 = vmul.f32 %v4569, %v4571
      %v4573 = vadd.f32 %v4569, %v4572
      %vm4574 = vweird.f32 %v4539
      %vm4575 = vweird.f32 %v4569
      %vm4576 = vmor %vm4574, %vm4575
      %v4577 = vsel %vm4576, %v4569, %v4573
      %v4578 = vand.u32 2147483647, %v4539
      %vm4579 = vcmp.eq.f32.partialorder %v4578, 8.507059e+37
      %v4580 = vand.u32 %v4539, 2147483648
      %v4581 = vor.u32 1.1754944e-38, %v4580
      %v4582 = vsel %vm4579, %v4581, %v4577
      %v4583 = vmul.f32 1.0, %v4582
      %v4584 = vrcp.pop %v4540
      %v4585 = vmul.f32 %v4540, %v4584
      %v4586 = vsub.f32 1.0, %v4585
      %v4587 = vmul.f32 %v4584, %v4586
      %v4588 = vadd.f32 %v4584, %v4587
      %vm4589 = vweird.f32 %v4540
      %vm4590 = vweird.f32 %v4584
      %vm4591 = vmor %vm4589, %vm4590
      %v4592 = vsel %vm4591, %v4584, %v4588
      %v4593 = vand.u32 2147483647, %v4540
      %vm4594 = vcmp.eq.f32.partialorder %v4593, 8.507059e+37
      %v4595 = vand.u32 %v4540, 2147483648
      %v4596 = vor.u32 1.1754944e-38, %v4595
      %v4597 = vsel %vm4594, %v4596, %v4592
      %v4598 = vmul.f32 1.0, %v4597
      %v4599 = vrcp.pop %v4541
      %v4600 = vmul.f32 %v4541, %v4599
      %v4601 = vsub.f32 1.0, %v4600
      %v4602 = vmul.f32 %v4599, %v4601
      %v4603 = vadd.f32 %v4599, %v4602
      %vm4604 = vweird.f32 %v4541
      %vm4605 = vweird.f32 %v4599
      %vm4606 = vmor %vm4604, %vm4605
      %v4607 = vsel %vm4606, %v4599, %v4603
      %v4608 = vand.u32 2147483647, %v4541
      %vm4609 = vcmp.eq.f32.partialorder %v4608, 8.507059e+37
      %v4610 = vand.u32 %v4541, 2147483648
      %v4611 = vor.u32 1.1754944e-38, %v4610
      %v4612 = vsel %vm4609, %v4611, %v4607
      %v4613 = vmul.f32 1.0, %v4612
      %v4614 = vrcp.pop %v4542
      %v4615 = vmul.f32 %v4542, %v4614
      %v4616 = vsub.f32 1.0, %v4615
      %v4617 = vmul.f32 %v4614, %v4616
      %v4618 = vadd.f32 %v4614, %v4617
      %vm4619 = vweird.f32 %v4542
      %vm4620 = vweird.f32 %v4614
      %vm4621 = vmor %vm4619, %vm4620
      %v4622 = vsel %vm4621, %v4614, %v4618
      %v4623 = vand.u32 2147483647, %v4542
      %vm4624 = vcmp.eq.f32.partialorder %v4623, 8.507059e+37
      %v4625 = vand.u32 %v4542, 2147483648
      %v4626 = vor.u32 1.1754944e-38, %v4625
      %v4627 = vsel %vm4624, %v4626, %v4622
      %v4628 = vmul.f32 1.0, %v4627
      %v4629 = vrcp.pop %v4543
      %v4630 = vmul.f32 %v4543, %v4629
      %v4631 = vsub.f32 1.0, %v4630
      %v4632 = vmul.f32 %v4629, %v4631
      %v4633 = vadd.f32 %v4629, %v4632
      %vm4634 = vweird.f32 %v4543
      %vm4635 = vweird.f32 %v4629
      %vm4636 = vmor %vm4634, %vm4635
      %v4637 = vsel %vm4636, %v4629, %v4633
      %v4638 = vand.u32 2147483647, %v4543
      %vm4639 = vcmp.eq.f32.partialorder %v4638, 8.507059e+37
      %v4640 = vand.u32 %v4543, 2147483648
      %v4641 = vor.u32 1.1754944e-38, %v4640
      %v4642 = vsel %vm4639, %v4641, %v4637
      %v4643 = vmul.f32 1.0, %v4642
      %v4644 = vrcp.pop %v4544
      %v4645 = vmul.f32 %v4544, %v4644
      %v4646 = vsub.f32 1.0, %v4645
      %v4647 = vmul.f32 %v4644, %v4646
      %v4648 = vadd.f32 %v4644, %v4647
      %vm4649 = vweird.f32 %v4544
      %vm4650 = vweird.f32 %v4644
      %vm4651 = vmor %vm4649, %vm4650
      %v4652 = vsel %vm4651, %v4644, %v4648
      %v4653 = vand.u32 2147483647, %v4544
      %vm4654 = vcmp.eq.f32.partialorder %v4653, 8.507059e+37
      %v4655 = vand.u32 %v4544, 2147483648
      %v4656 = vor.u32 1.1754944e-38, %v4655
      %v4657 = vsel %vm4654, %v4656, %v4652
      %v4658 = vmul.f32 1.0, %v4657
      %v4659 = vrcp.pop %v4545
      %v4660 = vmul.f32 %v4545, %v4659
      %v4661 = vsub.f32 1.0, %v4660
      %v4662 = vmul.f32 %v4659, %v4661
      %v4663 = vadd.f32 %v4659, %v4662
      %vm4664 = vweird.f32 %v4545
      %vm4665 = vweird.f32 %v4659
      %vm4666 = vmor %vm4664, %vm4665
      %v4667 = vsel %vm4666, %v4659, %v4663
      %v4668 = vand.u32 2147483647, %v4545
      %vm4669 = vcmp.eq.f32.partialorder %v4668, 8.507059e+37
      %v4670 = vand.u32 %v4545, 2147483648
      %v4671 = vor.u32 1.1754944e-38, %v4670
      %v4672 = vsel %vm4669, %v4671, %v4667
      %v4673 = vmul.f32 1.0, %v4672
      %v4674 = vrcp.pop %v4546
      %v4675 = vmul.f32 %v4546, %v4674
      %v4676 = vsub.f32 1.0, %v4675
      %v4677 = vmul.f32 %v4674, %v4676
      %v4678 = vadd.f32 %v4674, %v4677
      %vm4679 = vweird.f32 %v4546
      %vm4680 = vweird.f32 %v4674
      %vm4681 = vmor %vm4679, %vm4680
      %v4682 = vsel %vm4681, %v4674, %v4678
      %v4683 = vand.u32 2147483647, %v4546
      %vm4684 = vcmp.eq.f32.partialorder %v4683, 8.507059e+37
      %v4685 = vand.u32 %v4546, 2147483648
      %v4686 = vor.u32 1.1754944e-38, %v4685
      %v4687 = vsel %vm4684, %v4686, %v4682
      %v4688 = vmul.f32 1.0, %v4687
      %v4689 = vrcp.pop %v4547
      %v4690 = vmul.f32 %v4547, %v4689
      %v4691 = vsub.f32 1.0, %v4690
      %v4692 = vmul.f32 %v4689, %v4691
      %v4693 = vadd.f32 %v4689, %v4692
      %vm4694 = vweird.f32 %v4547
      %vm4695 = vweird.f32 %v4689
      %vm4696 = vmor %vm4694, %vm4695
      %v4697 = vsel %vm4696, %v4689, %v4693
      %v4698 = vand.u32 2147483647, %v4547
      %vm4699 = vcmp.eq.f32.partialorder %v4698, 8.507059e+37
      %v4700 = vand.u32 %v4547, 2147483648
      %v4701 = vor.u32 1.1754944e-38, %v4700
      %v4702 = vsel %vm4699, %v4701, %v4697
      %v4703 = vmul.f32 1.0, %v4702
      %v4704 = vrcp.pop %v4548
      %v4705 = vmul.f32 %v4548, %v4704
      %v4706 = vsub.f32 1.0, %v4705
      %v4707 = vmul.f32 %v4704, %v4706
      %v4708 = vadd.f32 %v4704, %v4707
      %vm4709 = vweird.f32 %v4548
      %vm4710 = vweird.f32 %v4704
      %vm4711 = vmor %vm4709, %vm4710
      %v4712 = vsel %vm4711, %v4704, %v4708
      %v4713 = vand.u32 2147483647, %v4548
      %vm4714 = vcmp.eq.f32.partialorder %v4713, 8.507059e+37
      %v4715 = vand.u32 %v4548, 2147483648
      %v4716 = vor.u32 1.1754944e-38, %v4715
      %v4717 = vsel %vm4714, %v4716, %v4712
      %v4718 = vmul.f32 1.0, %v4717
      %v4719 = vrcp.pop %v4549
      %v4720 = vmul.f32 %v4549, %v4719
      %v4721 = vsub.f32 1.0, %v4720
      %v4722 = vmul.f32 %v4719, %v4721
      %v4723 = vadd.f32 %v4719, %v4722
      %vm4724 = vweird.f32 %v4549
      %vm4725 = vweird.f32 %v4719
      %vm4726 = vmor %vm4724, %vm4725
      %v4727 = vsel %vm4726, %v4719, %v4723
      %v4728 = vand.u32 2147483647, %v4549
      %vm4729 = vcmp.eq.f32.partialorder %v4728, 8.507059e+37
      %v4730 = vand.u32 %v4549, 2147483648
      %v4731 = vor.u32 1.1754944e-38, %v4730
      %v4732 = vsel %vm4729, %v4731, %v4727
      %v4733 = vmul.f32 1.0, %v4732
      %v4734 = vrcp.pop %v4550
      %v4735 = vmul.f32 %v4550, %v4734
      %v4736 = vsub.f32 1.0, %v4735
      %v4737 = vmul.f32 %v4734, %v4736
      %v4738 = vadd.f32 %v4734, %v4737
      %vm4739 = vweird.f32 %v4550
      %vm4740 = vweird.f32 %v4734
      %vm4741 = vmor %vm4739, %vm4740
      %v4742 = vsel %vm4741, %v4734, %v4738
      %v4743 = vand.u32 2147483647, %v4550
      %vm4744 = vcmp.eq.f32.partialorder %v4743, 8.507059e+37
      %v4745 = vand.u32 %v4550, 2147483648
      %v4746 = vor.u32 1.1754944e-38, %v4745
      %v4747 = vsel %vm4744, %v4746, %v4742
      %v4748 = vmul.f32 1.0, %v4747
      %v4749 = vrcp.pop %v4551
      %v4750 = vmul.f32 %v4551, %v4749
      %v4751 = vsub.f32 1.0, %v4750
      %v4752 = vmul.f32 %v4749, %v4751
      %v4753 = vadd.f32 %v4749, %v4752
      %vm4754 = vweird.f32 %v4551
      %vm4755 = vweird.f32 %v4749
      %vm4756 = vmor %vm4754, %vm4755
      %v4757 = vsel %vm4756, %v4749, %v4753
      %v4758 = vand.u32 2147483647, %v4551
      %vm4759 = vcmp.eq.f32.partialorder %v4758, 8.507059e+37
      %v4760 = vand.u32 %v4551, 2147483648
      %v4761 = vor.u32 1.1754944e-38, %v4760
      %v4762 = vsel %vm4759, %v4761, %v4757
      %v4763 = vmul.f32 1.0, %v4762
      %v4764 = vrcp.pop %v4552
      %v4765 = vmul.f32 %v4552, %v4764
      %v4766 = vsub.f32 1.0, %v4765
      %v4767 = vmul.f32 %v4764, %v4766
      %v4768 = vadd.f32 %v4764, %v4767
      %vm4769 = vweird.f32 %v4552
      %vm4770 = vweird.f32 %v4764
      %vm4771 = vmor %vm4769, %vm4770
      %v4772 = vsel %vm4771, %v4764, %v4768
      %v4773 = vand.u32 2147483647, %v4552
      %vm4774 = vcmp.eq.f32.partialorder %v4773, 8.507059e+37
      %v4775 = vand.u32 %v4552, 2147483648
      %v4776 = vor.u32 1.1754944e-38, %v4775
      %v4777 = vsel %vm4774, %v4776, %v4772
      %v4778 = vmul.f32 1.0, %v4777
      %v4779 = vrcp.pop %v4553
      %v4780 = vmul.f32 %v4553, %v4779
      %v4781 = vsub.f32 1.0, %v4780
      %v4782 = vmul.f32 %v4779, %v4781
      %v4783 = vadd.f32 %v4779, %v4782
      %vm4784 = vweird.f32 %v4553
      %vm4785 = vweird.f32 %v4779
      %vm4786 = vmor %vm4784, %vm4785
      %v4787 = vsel %vm4786, %v4779, %v4783
      %v4788 = vand.u32 2147483647, %v4553
      %vm4789 = vcmp.eq.f32.partialorder %v4788, 8.507059e+37
      %v4790 = vand.u32 %v4553, 2147483648
      %v4791 = vor.u32 1.1754944e-38, %v4790
      %v4792 = vsel %vm4789, %v4791, %v4787
      %v4793 = vmul.f32 1.0, %v4792
      %v4794 = vmul.f32 %v4474, %v4568
      %v4795 = vmul.f32 %v4475, %v4583
      %v4796 = vmul.f32 %v4476, %v4598
      %v4797 = vmul.f32 %v4477, %v4613
      %v4798 = vmul.f32 %v4478, %v4628
      %v4799 = vmul.f32 %v4479, %v4643
      %v4800 = vmul.f32 %v4480, %v4658
      %v4801 = vmul.f32 %v4481, %v4673
      %v4802 = vmul.f32 %v4482, %v4688
      %v4803 = vmul.f32 %v4483, %v4703
      %v4804 = vmul.f32 %v4484, %v4718
      %v4805 = vmul.f32 %v4485, %v4733
      %v4806 = vmul.f32 %v4486, %v4748
      %v4807 = vmul.f32 %v4487, %v4763
      %v4808 = vmul.f32 %v4488, %v4778
      %v4809 = vmul.f32 %v4489, %v4793
      %v4826 = vrot.slane %v4794, 7
      %v4827 = vrot.slane %v4795, 7
      %v4828 = vrot.slane %v4796, 7
      %v4829 = vrot.slane %v4797, 7
      %v4830 = vrot.slane %v4798, 7
      %v4831 = vrot.slane %v4799, 7
      %v4832 = vrot.slane %v4800, 7
      %v4833 = vrot.slane %v4801, 7
      %v4834 = vrot.slane %v4802, 7
      %v4835 = vrot.slane %v4803, 7
      %v4836 = vrot.slane %v4804, 7
      %v4837 = vrot.slane %v4805, 7
      %v4838 = vrot.slane %v4806, 7
      %v4839 = vrot.slane %v4807, 7
      %v4840 = vrot.slane %v4808, 7
      %v4841 = vrot.slane %v4809, 7
      %4842 = vrot.lane.b32.xlu0 %v4826, 32
      %v4843 = vpop.permute.xlu0 %4842
      %4844 = vrot.lane.b32.xlu0 %v4827, 32
      %v4845 = vpop.permute.xlu0 %4844
      %4846 = vrot.lane.b32.xlu0 %v4828, 32
      %v4847 = vpop.permute.xlu0 %4846
      %4848 = vrot.lane.b32.xlu0 %v4829, 32
      %v4849 = vpop.permute.xlu0 %4848
      %4850 = vrot.lane.b32.xlu0 %v4830, 32
      %v4851 = vpop.permute.xlu0 %4850
      %4852 = vrot.lane.b32.xlu0 %v4831, 32
      %v4853 = vpop.permute.xlu0 %4852
      %4854 = vrot.lane.b32.xlu0 %v4832, 32
      %v4855 = vpop.permute.xlu0 %4854
      %4856 = vrot.lane.b32.xlu0 %v4833, 32
      %v4857 = vpop.permute.xlu0 %4856
      %4858 = vrot.lane.b32.xlu0 %v4834, 32
      %v4859 = vpop.permute.xlu0 %4858
      %4860 = vrot.lane.b32.xlu0 %v4835, 32
      %v4861 = vpop.permute.xlu0 %4860
      %4862 = vrot.lane.b32.xlu0 %v4836, 32
      %v4863 = vpop.permute.xlu0 %4862
      %4864 = vrot.lane.b32.xlu0 %v4837, 32
      %v4865 = vpop.permute.xlu0 %4864
      %4866 = vrot.lane.b32.xlu0 %v4838, 32
      %v4867 = vpop.permute.xlu0 %4866
      %4868 = vrot.lane.b32.xlu0 %v4839, 32
      %v4869 = vpop.permute.xlu0 %4868
      %4870 = vrot.lane.b32.xlu0 %v4840, 32
      %v4871 = vpop.permute.xlu0 %4870
      %4872 = vrot.lane.b32.xlu0 %v4841, 32
      %v4873 = vpop.permute.xlu0 %4872
      %v4874 = vsel %vm443, %v4843, %v4845
      %v4875 = vsel %vm443, %v4847, %v4849
      %v4876 = vsel %vm443, %v4851, %v4853
      %v4877 = vsel %vm443, %v4855, %v4857
      %v4878 = vsel %vm443, %v4859, %v4861
      %v4879 = vsel %vm443, %v4863, %v4865
      %v4880 = vsel %vm443, %v4867, %v4869
      %v4881 = vsel %vm443, %v4871, %v4873
      %s4906 = scalar_lea.vmem [#allocation3], 48
      %vm4907 = vcmask 1047809
      %4908 = vst.msk [vmem:[%s4906] sm:$0xfe] %vm4907, %v4843
      %4909 = vst [vmem:[%s4906 + $0x8] sm:$0xfe] %v4874
      %vm4910 = vcmask 261121
      %4911 = vst.msk [vmem:[%s4906 + $0x10] sm:$0xfe] %vm4910, %v4845
      %vm4912 = vcmask 1040640
      %4913 = vst.msk [vmem:[%s4906 + $0x18] sm:$0x1] %vm4912, %v4843
      %4914 = vst [vmem:[%s4906 + $0x20] sm:$0x1] %v4874
      %vm4915 = vcmask 253952
      %4916 = vst.msk [vmem:[%s4906 + $0x28] sm:$0x1] %vm4915, %v4845
      %4917 = vst.msk [vmem:[%s4906 + $0x30] sm:$0xfe] %vm4907, %v4847
      %4918 = vst [vmem:[%s4906 + $0x38] sm:$0xfe] %v4875
      %4919 = vst.msk [vmem:[%s4906 + $0x40] sm:$0xfe] %vm4910, %v4849
      %4920 = vst.msk [vmem:[%s4906 + $0x48] sm:$0x1] %vm4912, %v4847
      %4921 = vst [vmem:[%s4906 + $0x50] sm:$0x1] %v4875
      %4922 = vst.msk [vmem:[%s4906 + $0x58] sm:$0x1] %vm4915, %v4849
      %4923 = vst.msk [vmem:[%s4906 + $0x60] sm:$0xfe] %vm4907, %v4851
      %4924 = vst [vmem:[%s4906 + $0x68] sm:$0xfe] %v4876
      %4925 = vst.msk [vmem:[%s4906 + $0x70] sm:$0xfe] %vm4910, %v4853
      %4926 = vst.msk [vmem:[%s4906 + $0x78] sm:$0x1] %vm4912, %v4851
      %4927 = vst [vmem:[%s4906 + $0x80] sm:$0x1] %v4876
      %4928 = vst.msk [vmem:[%s4906 + $0x88] sm:$0x1] %vm4915, %v4853
      %4929 = vst.msk [vmem:[%s4906 + $0x90] sm:$0xfe] %vm4907, %v4855
      %4930 = vst [vmem:[%s4906 + $0x98] sm:$0xfe] %v4877
      %4931 = vst.msk [vmem:[%s4906 + $0xa0] sm:$0xfe] %vm4910, %v4857
      %4932 = vst.msk [vmem:[%s4906 + $0xa8] sm:$0x1] %vm4912, %v4855
      %4933 = vst [vmem:[%s4906 + $0xb0] sm:$0x1] %v4877
      %4934 = vst.msk [vmem:[%s4906 + $0xb8] sm:$0x1] %vm4915, %v4857
      %4935 = vst.msk [vmem:[%s4906 + $0xc0] sm:$0xfe] %vm4907, %v4859
      %4936 = vst [vmem:[%s4906 + $0xc8] sm:$0xfe] %v4878
      %4937 = vst.msk [vmem:[%s4906 + $0xd0] sm:$0xfe] %vm4910, %v4861
      %4938 = vst.msk [vmem:[%s4906 + $0xd8] sm:$0x1] %vm4912, %v4859
      %4939 = vst [vmem:[%s4906 + $0xe0] sm:$0x1] %v4878
      %4940 = vst.msk [vmem:[%s4906 + $0xe8] sm:$0x1] %vm4915, %v4861
      %4941 = vst.msk [vmem:[%s4906 + $0xf0] sm:$0xfe] %vm4907, %v4863
      %4942 = vst [vmem:[%s4906 + $0xf8] sm:$0xfe] %v4879
      %4943 = vst.msk [vmem:[%s4906 + $0x100] sm:$0xfe] %vm4910, %v4865
      %4944 = vst.msk [vmem:[%s4906 + $0x108] sm:$0x1] %vm4912, %v4863
      %4945 = vst [vmem:[%s4906 + $0x110] sm:$0x1] %v4879
      %4946 = vst.msk [vmem:[%s4906 + $0x118] sm:$0x1] %vm4915, %v4865
      %4947 = vst.msk [vmem:[%s4906 + $0x120] sm:$0xfe] %vm4907, %v4867
      %4948 = vst [vmem:[%s4906 + $0x128] sm:$0xfe] %v4880
      %4949 = vst.msk [vmem:[%s4906 + $0x130] sm:$0xfe] %vm4910, %v4869
      %4950 = vst.msk [vmem:[%s4906 + $0x138] sm:$0x1] %vm4912, %v4867
      %4951 = vst [vmem:[%s4906 + $0x140] sm:$0x1] %v4880
      %4952 = vst.msk [vmem:[%s4906 + $0x148] sm:$0x1] %vm4915, %v4869
      %4953 = vst.msk [vmem:[%s4906 + $0x150] sm:$0xfe] %vm4907, %v4871
      %4954 = vst [vmem:[%s4906 + $0x158] sm:$0xfe] %v4881
      %4955 = vst.msk [vmem:[%s4906 + $0x160] sm:$0xfe] %vm4910, %v4873
      %4956 = vst.msk [vmem:[%s4906 + $0x168] sm:$0x1] %vm4912, %v4871
      %4957 = vst [vmem:[%s4906 + $0x170] sm:$0x1] %v4881
      %4958 = vst.msk [vmem:[%s4906 + $0x178] sm:$0x1] %vm4915, %v4873
      %v4959 = vld [vmem:[%s6] sm:$0x3]
      %v4960 = vld [vmem:[%s7] sm:$0x3]
      %v4961 = vld [vmem:[%s8] sm:$0x3]
      %v4962 = vld [vmem:[#allocation3] sm:$0xff]
      %v4963 = vld [vmem:[#allocation3 + $0x8] sm:$0xff]
      %v4964 = vld [vmem:[#allocation3 + $0x10] sm:$0xff]
      %v4965 = vld [vmem:[#allocation3 + $0x30] sm:$0xff]
      %v4966 = vld [vmem:[#allocation3 + $0x38] sm:$0xff]
      %v4967 = vld [vmem:[#allocation3 + $0x40] sm:$0xff]
      %v4968 = vld [vmem:[#allocation3 + $0x60] sm:$0xff]
      %v4969 = vld [vmem:[#allocation3 + $0x68] sm:$0xff]
      %v4970 = vld [vmem:[#allocation3 + $0x70] sm:$0xff]
      %v4971 = vld [vmem:[#allocation3 + $0x90] sm:$0xff]
      %v4972 = vld [vmem:[#allocation3 + $0x98] sm:$0xff]
      %v4973 = vld [vmem:[#allocation3 + $0xa0] sm:$0xff]
      %v4974 = vld [vmem:[#allocation3 + $0xc0] sm:$0xff]
      %v4975 = vld [vmem:[#allocation3 + $0xc8] sm:$0xff]
      %v4976 = vld [vmem:[#allocation3 + $0xd0] sm:$0xff]
      %v4977 = vld [vmem:[#allocation3 + $0xf0] sm:$0xff]
      %v4978 = vld [vmem:[#allocation3 + $0xf8] sm:$0xff]
      %v4979 = vld [vmem:[#allocation3 + $0x100] sm:$0xff]
      %v4980 = vld [vmem:[#allocation3 + $0x120] sm:$0xff]
      %v4981 = vld [vmem:[#allocation3 + $0x128] sm:$0xff]
      %v4982 = vld [vmem:[#allocation3 + $0x130] sm:$0xff]
      %v4983 = vld [vmem:[#allocation3 + $0x150] sm:$0xff]
      %v4984 = vld [vmem:[#allocation3 + $0x158] sm:$0xff]
      %v4985 = vld [vmem:[#allocation3 + $0x160] sm:$0xff]
      %v4986 = vpack.c.bf16 %v4963, %v4962
      %v4987 = vpack.c.bf16 %v4964, %v4964
      %v4988 = vpack.c.bf16 %v4966, %v4965
      %v4989 = vpack.c.bf16 %v4967, %v4967
      %v4990 = vpack.c.bf16 %v4969, %v4968
      %v4991 = vpack.c.bf16 %v4970, %v4970
      %v4992 = vpack.c.bf16 %v4972, %v4971
      %v4993 = vpack.c.bf16 %v4973, %v4973
      %v4994 = vpack.c.bf16 %v4975, %v4974
      %v4995 = vpack.c.bf16 %v4976, %v4976
      %v4996 = vpack.c.bf16 %v4978, %v4977
      %v4997 = vpack.c.bf16 %v4979, %v4979
      %v4998 = vpack.c.bf16 %v4981, %v4980
      %v4999 = vpack.c.bf16 %v4982, %v4982
      %v5000 = vpack.c.bf16 %v4984, %v4983
      %v5001 = vpack.c.bf16 %v4985, %v4985
      %v5002 = vld [vmem:[%s5] sm:$0xff]
      %v5003 = vld [vmem:[%s5 + $0x8] sm:$0xff]
      %v5004 = vld [vmem:[%s5 + $0x10] sm:$0xff]
      %v5005 = vld [vmem:[%s5 + $0x18] sm:$0xff]
      %v5006 = vld [vmem:[%s5 + $0x20] sm:$0xff]
      %v5007 = vld [vmem:[%s5 + $0x28] sm:$0xff]
      %v5008 = vld [vmem:[%s5 + $0x30] sm:$0xff]
      %v5009 = vld [vmem:[%s5 + $0x38] sm:$0xff]
      %v5010 = vld [vmem:[%s5 + $0x40] sm:$0xff]
      %v5011 = vld [vmem:[%s5 + $0x48] sm:$0xff]
      %v5012 = vld [vmem:[%s5 + $0x50] sm:$0xff]
      %v5013 = vld [vmem:[%s5 + $0x58] sm:$0xff]
      %v5014 = vld [vmem:[%s5 + $0x60] sm:$0xff]
      %v5015 = vld [vmem:[%s5 + $0x68] sm:$0xff]
      %v5016 = vld [vmem:[%s5 + $0x70] sm:$0xff]
      %v5017 = vld [vmem:[%s5 + $0x78] sm:$0xff]
      %v5018 = vld [vmem:[%s5 + $0x80] sm:$0xff]
      %v5019 = vld [vmem:[%s5 + $0x88] sm:$0xff]
      %v5020 = vld [vmem:[%s5 + $0x90] sm:$0xff]
      %v5021 = vld [vmem:[%s5 + $0x98] sm:$0xff]
      %v5022 = vld [vmem:[%s5 + $0xa0] sm:$0xff]
      %v5023 = vld [vmem:[%s5 + $0xa8] sm:$0xff]
      %v5024 = vld [vmem:[%s5 + $0xb0] sm:$0xff]
      %v5025 = vld [vmem:[%s5 + $0xb8] sm:$0xff]
      %v5026 = vld [vmem:[%s5 + $0xc0] sm:$0xff]
      %v5027 = vld [vmem:[%s5 + $0xc8] sm:$0xff]
      %v5028 = vld [vmem:[%s5 + $0xd0] sm:$0xff]
      %v5029 = vld [vmem:[%s5 + $0xd8] sm:$0xff]
      %v5030 = vld [vmem:[%s5 + $0xe0] sm:$0xff]
      %v5031 = vld [vmem:[%s5 + $0xe8] sm:$0xff]
      %v5032 = vld [vmem:[%s5 + $0xf0] sm:$0xff]
      %v5033 = vld [vmem:[%s5 + $0xf8] sm:$0xff]
      %v5034 = vld [vmem:[%s5 + $0x100] sm:$0xff]
      %v5035 = vld [vmem:[%s5 + $0x108] sm:$0xff]
      %v5036 = vld [vmem:[%s5 + $0x110] sm:$0xff]
      %v5037 = vld [vmem:[%s5 + $0x118] sm:$0xff]
      %v5038 = vld [vmem:[%s5 + $0x120] sm:$0xff]
      %v5039 = vld [vmem:[%s5 + $0x128] sm:$0xff]
      %v5040 = vld [vmem:[%s5 + $0x130] sm:$0xff]
      %v5041 = vld [vmem:[%s5 + $0x138] sm:$0xff]
      %v5042 = vld [vmem:[#allocation3] sm:$0xfe]
      %v5043 = vld [vmem:[#allocation3 + $0x8] sm:$0xfe]
      %v5044 = vld [vmem:[#allocation3 + $0x10] sm:$0xfe]
      %v5045 = vld [vmem:[#allocation3 + $0x18] sm:$0x1]
      %v5046 = vld [vmem:[#allocation3 + $0x20] sm:$0x1]
      %v5047 = vld [vmem:[#allocation3 + $0x28] sm:$0x1]
      %v5048 = vld [vmem:[#allocation3 + $0x30] sm:$0xfe]
      %v5049 = vld [vmem:[#allocation3 + $0x38] sm:$0xfe]
      %v5050 = vld [vmem:[#allocation3 + $0x40] sm:$0xfe]
      %v5051 = vld [vmem:[#allocation3 + $0x48] sm:$0x1]
      %v5052 = vld [vmem:[#allocation3 + $0x50] sm:$0x1]
      %v5053 = vld [vmem:[#allocation3 + $0x58] sm:$0x1]
      %v5054 = vld [vmem:[#allocation3 + $0x60] sm:$0xfe]
      %v5055 = vld [vmem:[#allocation3 + $0x68] sm:$0xfe]
      %v5056 = vld [vmem:[#allocation3 + $0x70] sm:$0xfe]
      %v5057 = vld [vmem:[#allocation3 + $0x78] sm:$0x1]
      %v5058 = vld [vmem:[#allocation3 + $0x80] sm:$0x1]
      %v5059 = vld [vmem:[#allocation3 + $0x88] sm:$0x1]
      %v5060 = vld [vmem:[#allocation3 + $0x90] sm:$0xfe]
      %v5061 = vld [vmem:[#allocation3 + $0x98] sm:$0xfe]
      %v5062 = vld [vmem:[#allocation3 + $0xa0] sm:$0xfe]
      %v5063 = vld [vmem:[#allocation3 + $0xa8] sm:$0x1]
      %v5064 = vld [vmem:[#allocation3 + $0xb0] sm:$0x1]
      %v5065 = vld [vmem:[#allocation3 + $0xb8] sm:$0x1]
      %v5066 = vld [vmem:[#allocation3 + $0xc0] sm:$0xfe]
      %v5067 = vld [vmem:[#allocation3 + $0xc8] sm:$0xfe]
      %v5068 = vld [vmem:[#allocation3 + $0xd0] sm:$0xfe]
      %v5069 = vld [vmem:[#allocation3 + $0xd8] sm:$0x1]
      %v5070 = vld [vmem:[#allocation3 + $0xe0] sm:$0x1]
      %v5071 = vld [vmem:[#allocation3 + $0xe8] sm:$0x1]
      %v5072 = vld [vmem:[#allocation3 + $0xf0] sm:$0xfe]
      %v5073 = vld [vmem:[#allocation3 + $0xf8] sm:$0xfe]
      %v5074 = vld [vmem:[#allocation3 + $0x100] sm:$0xfe]
      %v5075 = vld [vmem:[#allocation3 + $0x108] sm:$0x1]
      %v5076 = vld [vmem:[#allocation3 + $0x110] sm:$0x1]
      %v5077 = vld [vmem:[#allocation3 + $0x118] sm:$0x1]
      %v5078 = vld [vmem:[#allocation3 + $0x120] sm:$0xfe]
      %v5079 = vld [vmem:[#allocation3 + $0x128] sm:$0xfe]
      %v5080 = vld [vmem:[#allocation3 + $0x130] sm:$0xfe]
      %v5081 = vld [vmem:[#allocation3 + $0x138] sm:$0x1]
      %v5082 = vld [vmem:[#allocation3 + $0x140] sm:$0x1]
      %v5083 = vld [vmem:[#allocation3 + $0x148] sm:$0x1]
      %v5084 = vld [vmem:[#allocation3 + $0x150] sm:$0xfe]
      %v5085 = vld [vmem:[#allocation3 + $0x158] sm:$0xfe]
      %v5086 = vld [vmem:[#allocation3 + $0x160] sm:$0xfe]
      %v5087 = vld [vmem:[#allocation3 + $0x168] sm:$0x1]
      %v5088 = vld [vmem:[#allocation3 + $0x170] sm:$0x1]
      %v5089 = vld [vmem:[#allocation3 + $0x178] sm:$0x1]
      %v5090 = vpack.c.bf16 %v5043, %v5042
      %v5091 = vpack.c.bf16 %v5044, %v5044
      %v5092 = vpack.c.bf16 %v5046, %v5045
      %v5093 = vpack.c.bf16 %v5047, %v5047
      %v5094 = vpack.c.bf16 %v5049, %v5048
      %v5095 = vpack.c.bf16 %v5050, %v5050
      %v5096 = vpack.c.bf16 %v5052, %v5051
      %v5097 = vpack.c.bf16 %v5053, %v5053
      %v5098 = vpack.c.bf16 %v5055, %v5054
      %v5099 = vpack.c.bf16 %v5056, %v5056
      %v5100 = vpack.c.bf16 %v5058, %v5057
      %v5101 = vpack.c.bf16 %v5059, %v5059
      %v5102 = vpack.c.bf16 %v5061, %v5060
      %v5103 = vpack.c.bf16 %v5062, %v5062
      %v5104 = vpack.c.bf16 %v5064, %v5063
      %v5105 = vpack.c.bf16 %v5065, %v5065
      %v5106 = vpack.c.bf16 %v5067, %v5066
      %v5107 = vpack.c.bf16 %v5068, %v5068
      %v5108 = vpack.c.bf16 %v5070, %v5069
      %v5109 = vpack.c.bf16 %v5071, %v5071
      %v5110 = vpack.c.bf16 %v5073, %v5072
      %v5111 = vpack.c.bf16 %v5074, %v5074
      %v5112 = vpack.c.bf16 %v5076, %v5075
      %v5113 = vpack.c.bf16 %v5077, %v5077
      %v5114 = vpack.c.bf16 %v5079, %v5078
      %v5115 = vpack.c.bf16 %v5080, %v5080
      %v5116 = vpack.c.bf16 %v5082, %v5081
      %v5117 = vpack.c.bf16 %v5083, %v5083
      %v5118 = vpack.c.bf16 %v5085, %v5084
      %v5119 = vpack.c.bf16 %v5086, %v5086
      %v5120 = vpack.c.bf16 %v5088, %v5087
      %v5121 = vpack.c.bf16 %v5089, %v5089
      %v5123 = vshrl.u32 %v5090, 16
      %v5125 = vrot.slane %v5123, 4
      %v5126 = vshll.u32 %v5090, 16
      %v5128 = vrot.slane %v5126, 5
      %v5129 = vor.u32 %v5125, %v5128
      %v5130 = vrot.slane %v5129, 4
      %v5132 = vshll.u32 %v5092, 16
      %v5134 = vrot.slane %v5132, 5
      %v5135 = vsel %vm762, %v5130, %v5134
      %v5137 = vshrl.u32 %v5091, 16
      %v5139 = vrot.slane %v5137, 4
      %v5140 = vshll.u32 %v5091, 16
      %v5142 = vrot.slane %v5140, 5
      %v5143 = vor.u32 %v5139, %v5142
      %v5144 = vrot.slane %v5143, 4
      %v5146 = vshll.u32 %v5093, 16
      %v5148 = vrot.slane %v5146, 5
      %v5149 = vsel %vm762, %v5144, %v5148
      %v5151 = vshrl.u32 %v5094, 16
      %v5153 = vrot.slane %v5151, 4
      %v5154 = vshll.u32 %v5094, 16
      %v5156 = vrot.slane %v5154, 5
      %v5157 = vor.u32 %v5153, %v5156
      %v5158 = vrot.slane %v5157, 4
      %v5160 = vshll.u32 %v5096, 16
      %v5162 = vrot.slane %v5160, 5
      %v5163 = vsel %vm762, %v5158, %v5162
      %v5165 = vshrl.u32 %v5095, 16
      %v5167 = vrot.slane %v5165, 4
      %v5168 = vshll.u32 %v5095, 16
      %v5170 = vrot.slane %v5168, 5
      %v5171 = vor.u32 %v5167, %v5170
      %v5172 = vrot.slane %v5171, 4
      %v5174 = vshll.u32 %v5097, 16
      %v5176 = vrot.slane %v5174, 5
      %v5177 = vsel %vm762, %v5172, %v5176
      %v5179 = vshrl.u32 %v5098, 16
      %v5181 = vrot.slane %v5179, 4
      %v5182 = vshll.u32 %v5098, 16
      %v5184 = vrot.slane %v5182, 5
      %v5185 = vor.u32 %v5181, %v5184
      %v5186 = vrot.slane %v5185, 4
      %v5188 = vshll.u32 %v5100, 16
      %v5190 = vrot.slane %v5188, 5
      %v5191 = vsel %vm762, %v5186, %v5190
      %v5193 = vshrl.u32 %v5099, 16
      %v5195 = vrot.slane %v5193, 4
      %v5196 = vshll.u32 %v5099, 16
      %v5198 = vrot.slane %v5196, 5
      %v5199 = vor.u32 %v5195, %v5198
      %v5200 = vrot.slane %v5199, 4
      %v5202 = vshll.u32 %v5101, 16
      %v5204 = vrot.slane %v5202, 5
      %v5205 = vsel %vm762, %v5200, %v5204
      %v5207 = vshrl.u32 %v5102, 16
      %v5209 = vrot.slane %v5207, 4
      %v5210 = vshll.u32 %v5102, 16
      %v5212 = vrot.slane %v5210, 5
      %v5213 = vor.u32 %v5209, %v5212
      %v5214 = vrot.slane %v5213, 4
      %v5216 = vshll.u32 %v5104, 16
      %v5218 = vrot.slane %v5216, 5
      %v5219 = vsel %vm762, %v5214, %v5218
      %v5221 = vshrl.u32 %v5103, 16
      %v5223 = vrot.slane %v5221, 4
      %v5224 = vshll.u32 %v5103, 16
      %v5226 = vrot.slane %v5224, 5
      %v5227 = vor.u32 %v5223, %v5226
      %v5228 = vrot.slane %v5227, 4
      %v5230 = vshll.u32 %v5105, 16
      %v5232 = vrot.slane %v5230, 5
      %v5233 = vsel %vm762, %v5228, %v5232
      %v5235 = vshrl.u32 %v5106, 16
      %v5237 = vrot.slane %v5235, 4
      %v5238 = vshll.u32 %v5106, 16
      %v5240 = vrot.slane %v5238, 5
      %v5241 = vor.u32 %v5237, %v5240
      %v5242 = vrot.slane %v5241, 4
      %v5244 = vshll.u32 %v5108, 16
      %v5246 = vrot.slane %v5244, 5
      %v5247 = vsel %vm762, %v5242, %v5246
      %v5249 = vshrl.u32 %v5107, 16
      %v5251 = vrot.slane %v5249, 4
      %v5252 = vshll.u32 %v5107, 16
      %v5254 = vrot.slane %v5252, 5
      %v5255 = vor.u32 %v5251, %v5254
      %v5256 = vrot.slane %v5255, 4
      %v5258 = vshll.u32 %v5109, 16
      %v5260 = vrot.slane %v5258, 5
      %v5261 = vsel %vm762, %v5256, %v5260
      %v5263 = vshrl.u32 %v5110, 16
      %v5265 = vrot.slane %v5263, 4
      %v5266 = vshll.u32 %v5110, 16
      %v5268 = vrot.slane %v5266, 5
      %v5269 = vor.u32 %v5265, %v5268
      %v5270 = vrot.slane %v5269, 4
      %v5272 = vshll.u32 %v5112, 16
      %v5274 = vrot.slane %v5272, 5
      %v5275 = vsel %vm762, %v5270, %v5274
      %v5277 = vshrl.u32 %v5111, 16
      %v5279 = vrot.slane %v5277, 4
      %v5280 = vshll.u32 %v5111, 16
      %v5282 = vrot.slane %v5280, 5
      %v5283 = vor.u32 %v5279, %v5282
      %v5284 = vrot.slane %v5283, 4
      %v5286 = vshll.u32 %v5113, 16
      %v5288 = vrot.slane %v5286, 5
      %v5289 = vsel %vm762, %v5284, %v5288
      %v5291 = vshrl.u32 %v5114, 16
      %v5293 = vrot.slane %v5291, 4
      %v5294 = vshll.u32 %v5114, 16
      %v5296 = vrot.slane %v5294, 5
      %v5297 = vor.u32 %v5293, %v5296
      %v5298 = vrot.slane %v5297, 4
      %v5300 = vshll.u32 %v5116, 16
      %v5302 = vrot.slane %v5300, 5
      %v5303 = vsel %vm762, %v5298, %v5302
      %v5305 = vshrl.u32 %v5115, 16
      %v5307 = vrot.slane %v5305, 4
      %v5308 = vshll.u32 %v5115, 16
      %v5310 = vrot.slane %v5308, 5
      %v5311 = vor.u32 %v5307, %v5310
      %v5312 = vrot.slane %v5311, 4
      %v5314 = vshll.u32 %v5117, 16
      %v5316 = vrot.slane %v5314, 5
      %v5317 = vsel %vm762, %v5312, %v5316
      %v5319 = vshrl.u32 %v5118, 16
      %v5321 = vrot.slane %v5319, 4
      %v5322 = vshll.u32 %v5118, 16
      %v5324 = vrot.slane %v5322, 5
      %v5325 = vor.u32 %v5321, %v5324
      %v5326 = vrot.slane %v5325, 4
      %v5328 = vshll.u32 %v5120, 16
      %v5330 = vrot.slane %v5328, 5
      %v5331 = vsel %vm762, %v5326, %v5330
      %v5333 = vshrl.u32 %v5119, 16
      %v5335 = vrot.slane %v5333, 4
      %v5336 = vshll.u32 %v5119, 16
      %v5338 = vrot.slane %v5336, 5
      %v5339 = vor.u32 %v5335, %v5338
      %v5340 = vrot.slane %v5339, 4
      %v5342 = vshll.u32 %v5121, 16
      %v5344 = vrot.slane %v5342, 5
      %v5345 = vsel %vm762, %v5340, %v5344
      %s5346 = scalar_lea.vmem %s5, 320
      %v5347 = vld [vmem:[%s5346] sm:$0xff]
      %v5348 = vld [vmem:[%s5346 + $0x8] sm:$0xff]
      %v5349 = vld [vmem:[%s5346 + $0x10] sm:$0xff]
      %v5350 = vld [vmem:[%s5346 + $0x18] sm:$0xff]
      %v5351 = vld [vmem:[%s5346 + $0x20] sm:$0xff]
      %v5352 = vld [vmem:[%s5346 + $0x28] sm:$0xff]
      %v5353 = vld [vmem:[%s5346 + $0x30] sm:$0xff]
      %v5354 = vld [vmem:[%s5346 + $0x38] sm:$0xff]
      %v5355 = vld [vmem:[%s5346 + $0x40] sm:$0xff]
      %v5356 = vld [vmem:[%s5346 + $0x48] sm:$0xff]
      %v5357 = vld [vmem:[%s5346 + $0x50] sm:$0xff]
      %v5358 = vld [vmem:[%s5346 + $0x58] sm:$0xff]
      %v5359 = vld [vmem:[%s5346 + $0x60] sm:$0xff]
      %v5360 = vld [vmem:[%s5346 + $0x68] sm:$0xff]
      %v5361 = vld [vmem:[%s5346 + $0x70] sm:$0xff]
      %v5362 = vld [vmem:[%s5346 + $0x78] sm:$0xff]
      %v5363 = vld [vmem:[%s5346 + $0x80] sm:$0xff]
      %v5364 = vld [vmem:[%s5346 + $0x88] sm:$0xff]
      %v5365 = vld [vmem:[%s5346 + $0x90] sm:$0xff]
      %v5366 = vld [vmem:[%s5346 + $0x98] sm:$0xff]
      %v5367 = vld [vmem:[%s5346 + $0xa0] sm:$0xff]
      %v5368 = vld [vmem:[%s5346 + $0xa8] sm:$0xff]
      %v5369 = vld [vmem:[%s5346 + $0xb0] sm:$0xff]
      %v5370 = vld [vmem:[%s5346 + $0xb8] sm:$0xff]
      %v5371 = vld [vmem:[%s5346 + $0xc0] sm:$0xff]
      %v5372 = vld [vmem:[%s5346 + $0xc8] sm:$0xff]
      %v5373 = vld [vmem:[%s5346 + $0xd0] sm:$0xff]
      %v5374 = vld [vmem:[%s5346 + $0xd8] sm:$0xff]
      %v5375 = vld [vmem:[%s5346 + $0xe0] sm:$0xff]
      %v5376 = vld [vmem:[%s5346 + $0xe8] sm:$0xff]
      %v5377 = vld [vmem:[%s5346 + $0xf0] sm:$0xff]
      %v5378 = vld [vmem:[%s5346 + $0xf8] sm:$0xff]
      %v5379 = vld [vmem:[%s5346 + $0x100] sm:$0xff]
      %v5380 = vld [vmem:[%s5346 + $0x108] sm:$0xff]
      %v5381 = vld [vmem:[%s5346 + $0x110] sm:$0xff]
      %v5382 = vld [vmem:[%s5346 + $0x118] sm:$0xff]
      %v5383 = vld [vmem:[%s5346 + $0x120] sm:$0xff]
      %v5384 = vld [vmem:[%s5346 + $0x128] sm:$0xff]
      %v5385 = vld [vmem:[%s5346 + $0x130] sm:$0xff]
      %v5386 = vld [vmem:[%s5346 + $0x138] sm:$0xff]
      %v5387 = vunpack.c.l.b16 %v5135
      %v5388 = vunpack.c.h.b16 %v5135
      %v5389 = vunpack.c.l.b16 %v5149
      %v5390 = vunpack.c.l.b16 %v5163
      %v5391 = vunpack.c.h.b16 %v5163
      %v5392 = vunpack.c.l.b16 %v5177
      %v5393 = vunpack.c.l.b16 %v5191
      %v5394 = vunpack.c.h.b16 %v5191
      %v5395 = vunpack.c.l.b16 %v5205
      %v5396 = vunpack.c.l.b16 %v5219
      %v5397 = vunpack.c.h.b16 %v5219
      %v5398 = vunpack.c.l.b16 %v5233
      %v5399 = vunpack.c.l.b16 %v5247
      %v5400 = vunpack.c.h.b16 %v5247
      %v5401 = vunpack.c.l.b16 %v5261
      %v5402 = vunpack.c.l.b16 %v5275
      %v5403 = vunpack.c.h.b16 %v5275
      %v5404 = vunpack.c.l.b16 %v5289
      %v5405 = vunpack.c.l.b16 %v5303
      %v5406 = vunpack.c.h.b16 %v5303
      %v5407 = vunpack.c.l.b16 %v5317
      %v5408 = vunpack.c.l.b16 %v5331
      %v5409 = vunpack.c.h.b16 %v5331
      %v5410 = vunpack.c.l.b16 %v5345
      %v5411 = vpack.c.b16 %v5390, %v5387
      %v5412 = vpack.c.b16 %v5391, %v5388
      %v5413 = vpack.c.b16 %v5392, %v5389
      %v5414 = vpack.c.b16 %v5396, %v5393
      %v5415 = vpack.c.b16 %v5397, %v5394
      %v5416 = vpack.c.b16 %v5398, %v5395
      %v5417 = vpack.c.b16 %v5402, %v5399
      %v5418 = vpack.c.b16 %v5403, %v5400
      %v5419 = vpack.c.b16 %v5404, %v5401
      %v5420 = vpack.c.b16 %v5408, %v5405
      %v5421 = vpack.c.b16 %v5409, %v5406
      %v5422 = vpack.c.b16 %v5410, %v5407
      %v5471 = vunpack.c.l.b16 %v5347
      %v5472 = vunpack.c.h.b16 %v5347
      %v5473 = vunpack.c.l.b16 %v5348
      %v5474 = vunpack.c.h.b16 %v5348
      %v5475 = vunpack.c.l.b16 %v5349
      %v5476 = vunpack.c.h.b16 %v5349
      %v5477 = vunpack.c.l.b16 %v5350
      %v5478 = vunpack.c.h.b16 %v5350
      %v5479 = vunpack.c.l.b16 %v5351
      %v5480 = vunpack.c.h.b16 %v5351
      %v5481 = vunpack.c.l.b16 %v5352
      %v5482 = vunpack.c.h.b16 %v5352
      %v5483 = vunpack.c.l.b16 %v5353
      %v5484 = vunpack.c.h.b16 %v5353
      %v5485 = vunpack.c.l.b16 %v5354
      %v5486 = vunpack.c.h.b16 %v5354
      %v5487 = vunpack.c.l.b16 %v5355
      %v5488 = vunpack.c.h.b16 %v5355
      %v5489 = vunpack.c.l.b16 %v5356
      %v5490 = vunpack.c.h.b16 %v5356
      %v5491 = vunpack.c.l.b16 %v5357
      %v5492 = vunpack.c.h.b16 %v5357
      %v5493 = vunpack.c.l.b16 %v5358
      %v5494 = vunpack.c.h.b16 %v5358
      %v5495 = vunpack.c.l.b16 %v5359
      %v5496 = vunpack.c.h.b16 %v5359
      %v5497 = vunpack.c.l.b16 %v5360
      %v5498 = vunpack.c.h.b16 %v5360
      %v5499 = vunpack.c.l.b16 %v5361
      %v5500 = vunpack.c.h.b16 %v5361
      %v5501 = vunpack.c.l.b16 %v5362
      %v5502 = vunpack.c.h.b16 %v5362
      %v5503 = vunpack.c.l.b16 %v5363
      %v5504 = vunpack.c.h.b16 %v5363
      %v5505 = vunpack.c.l.b16 %v5364
      %v5506 = vunpack.c.h.b16 %v5364
      %v5507 = vunpack.c.l.b16 %v5365
      %v5508 = vunpack.c.h.b16 %v5365
      %v5509 = vunpack.c.l.b16 %v5366
      %v5510 = vunpack.c.h.b16 %v5366
      %v5511 = vunpack.c.l.b16 %v5367
      %v5512 = vunpack.c.h.b16 %v5367
      %v5513 = vunpack.c.l.b16 %v5368
      %v5514 = vunpack.c.h.b16 %v5368
      %v5515 = vunpack.c.l.b16 %v5369
      %v5516 = vunpack.c.h.b16 %v5369
      %v5517 = vunpack.c.l.b16 %v5370
      %v5518 = vunpack.c.h.b16 %v5370
      %v5519 = vunpack.c.l.b16 %v5371
      %v5520 = vunpack.c.h.b16 %v5371
      %v5521 = vunpack.c.l.b16 %v5372
      %v5522 = vunpack.c.h.b16 %v5372
      %v5523 = vunpack.c.l.b16 %v5373
      %v5524 = vunpack.c.h.b16 %v5373
      %v5525 = vunpack.c.l.b16 %v5374
      %v5526 = vunpack.c.h.b16 %v5374
      %v5527 = vunpack.c.l.b16 %v5375
      %v5528 = vunpack.c.h.b16 %v5375
      %v5529 = vunpack.c.l.b16 %v5376
      %v5530 = vunpack.c.h.b16 %v5376
      %v5531 = vunpack.c.l.b16 %v5377
      %v5532 = vunpack.c.h.b16 %v5377
      %v5533 = vunpack.c.l.b16 %v5378
      %v5534 = vunpack.c.h.b16 %v5378
      %v5535 = vunpack.c.l.b16 %v5379
      %v5536 = vunpack.c.h.b16 %v5379
      %v5537 = vunpack.c.l.b16 %v5380
      %v5538 = vunpack.c.h.b16 %v5380
      %v5539 = vunpack.c.l.b16 %v5381
      %v5540 = vunpack.c.h.b16 %v5381
      %v5541 = vunpack.c.l.b16 %v5382
      %v5542 = vunpack.c.h.b16 %v5382
      %v5543 = vunpack.c.l.b16 %v5383
      %v5544 = vunpack.c.h.b16 %v5383
      %v5545 = vunpack.c.l.b16 %v5384
      %v5546 = vunpack.c.h.b16 %v5384
      %v5547 = vunpack.c.l.b16 %v5385
      %v5548 = vunpack.c.h.b16 %v5385
      %v5549 = vunpack.c.l.b16 %v5386
      %v5550 = vunpack.c.h.b16 %v5386
      %v5551 = vpack.c.b16 %v5473, %v5471
      %v5552 = vpack.c.b16 %v5474, %v5472
      %v5553 = vpack.c.b16 %v5477, %v5475
      %v5554 = vpack.c.b16 %v5478, %v5476
      %v5555 = vpack.c.b16 %v5481, %v5479
      %v5556 = vpack.c.b16 %v5482, %v5480
      %v5557 = vpack.c.b16 %v5485, %v5483
      %v5558 = vpack.c.b16 %v5486, %v5484
      %v5559 = vpack.c.b16 %v5489, %v5487
      %v5560 = vpack.c.b16 %v5490, %v5488
      %v5561 = vpack.c.b16 %v5493, %v5491
      %v5562 = vpack.c.b16 %v5494, %v5492
      %v5563 = vpack.c.b16 %v5497, %v5495
      %v5564 = vpack.c.b16 %v5498, %v5496
      %v5565 = vpack.c.b16 %v5501, %v5499
      %v5566 = vpack.c.b16 %v5502, %v5500
      %v5567 = vpack.c.b16 %v5505, %v5503
      %v5568 = vpack.c.b16 %v5506, %v5504
      %v5569 = vpack.c.b16 %v5509, %v5507
      %v5570 = vpack.c.b16 %v5510, %v5508
      %v5571 = vpack.c.b16 %v5513, %v5511
      %v5572 = vpack.c.b16 %v5514, %v5512
      %v5573 = vpack.c.b16 %v5517, %v5515
      %v5574 = vpack.c.b16 %v5518, %v5516
      %v5575 = vpack.c.b16 %v5521, %v5519
      %v5576 = vpack.c.b16 %v5522, %v5520
      %v5577 = vpack.c.b16 %v5525, %v5523
      %v5578 = vpack.c.b16 %v5526, %v5524
      %v5579 = vpack.c.b16 %v5529, %v5527
      %v5580 = vpack.c.b16 %v5530, %v5528
      %v5581 = vpack.c.b16 %v5533, %v5531
      %v5582 = vpack.c.b16 %v5534, %v5532
      %v5583 = vpack.c.b16 %v5537, %v5535
      %v5584 = vpack.c.b16 %v5538, %v5536
      %v5585 = vpack.c.b16 %v5541, %v5539
      %v5586 = vpack.c.b16 %v5542, %v5540
      %v5587 = vpack.c.b16 %v5545, %v5543
      %v5588 = vpack.c.b16 %v5546, %v5544
      %v5589 = vpack.c.b16 %v5549, %v5547
      %v5590 = vpack.c.b16 %v5550, %v5548
      %v5632 = vsel %vm486, %v5413, 0
      %v5635 = vsel %vm486, %v5416, 0
      %v5638 = vsel %vm486, %v5419, 0
      %v5641 = vsel %vm486, %v5422, 0
      %5643 = vmatpush.bf16.msra.mxu0 %v5565
      %5644 = vmatpush.bf16.msra.mxu0 %v5563
      %5645 = vmatpush.bf16.msra.mxu0 %v5561
      %5646 = vmatpush.bf16.msra.mxu0 %v5559
      %5647 = vmatpush.bf16.msra.mxu0 %v5557
      %5648 = vmatpush.bf16.msra.mxu0 %v5555
      %5649 = vmatpush.bf16.msra.mxu0 %v5553
      %5650 = vmatpush.bf16.msra.mxu0 %v5551
      %5651 = vmatmul.bf16.gmra.mxu0 %v5411
      %v5652 = vpop.f32.mrf.mxu0
      %v5653 = vadd.f32 0.0, %v5652
      %v5654 = vpop.f32.mrf.mxu0
      %v5655 = vadd.f32 0.0, %v5654
      %5656 = vmatmul.bf16.gmra.mxu0 %v5414
      %v5657 = vpop.f32.mrf.mxu0
      %v5658 = vadd.f32 0.0, %v5657
      %v5659 = vpop.f32.mrf.mxu0
      %v5660 = vadd.f32 0.0, %v5659
      %5661 = vmatmul.bf16.gmra.mxu0 %v5417
      %v5662 = vpop.f32.mrf.mxu0
      %v5663 = vadd.f32 0.0, %v5662
      %v5664 = vpop.f32.mrf.mxu0
      %v5665 = vadd.f32 0.0, %v5664
      %5666 = vmatmul.bf16.gmra.mxu0 %v5420
      %v5667 = vpop.f32.mrf.mxu0
      %v5668 = vadd.f32 0.0, %v5667
      %v5669 = vpop.f32.mrf.mxu0
      %v5670 = vadd.f32 0.0, %v5669
      %5671 = vdwg.mxu0
      %5672 = vmatpush.bf16.msra.mxu0 %v5581
      %5673 = vmatpush.bf16.msra.mxu0 %v5579
      %5674 = vmatpush.bf16.msra.mxu0 %v5577
      %5675 = vmatpush.bf16.msra.mxu0 %v5575
      %5676 = vmatpush.bf16.msra.mxu0 %v5573
      %5677 = vmatpush.bf16.msra.mxu0 %v5571
      %5678 = vmatpush.bf16.msra.mxu0 %v5569
      %5679 = vmatpush.bf16.msra.mxu0 %v5567
      %5680 = vmatmul.bf16.gmra.mxu0 %v5412
      %v5681 = vpop.f32.mrf.mxu0
      %v5682 = vadd.f32 %v5653, %v5681
      %v5683 = vpop.f32.mrf.mxu0
      %v5684 = vadd.f32 %v5655, %v5683
      %5685 = vmatmul.bf16.gmra.mxu0 %v5415
      %v5686 = vpop.f32.mrf.mxu0
      %v5687 = vadd.f32 %v5658, %v5686
      %v5688 = vpop.f32.mrf.mxu0
      %v5689 = vadd.f32 %v5660, %v5688
      %5690 = vmatmul.bf16.gmra.mxu0 %v5418
      %v5691 = vpop.f32.mrf.mxu0
      %v5692 = vadd.f32 %v5663, %v5691
      %v5693 = vpop.f32.mrf.mxu0
      %v5694 = vadd.f32 %v5665, %v5693
      %5695 = vmatmul.bf16.gmra.mxu0 %v5421
      %v5696 = vpop.f32.mrf.mxu0
      %v5697 = vadd.f32 %v5668, %v5696
      %v5698 = vpop.f32.mrf.mxu0
      %v5699 = vadd.f32 %v5670, %v5698
      %5700 = vdwg.mxu0
      %5701 = vmatpush.bf16.msra.mxu0 0
      %5702 = vmatpush.bf16.msra.mxu0 0
      %5703 = vmatpush.bf16.msra.mxu0 0
      %5704 = vmatpush.bf16.msra.mxu0 0
      %5705 = vmatpush.bf16.msra.mxu0 %v5589
      %5706 = vmatpush.bf16.msra.mxu0 %v5587
      %5707 = vmatpush.bf16.msra.mxu0 %v5585
      %5708 = vmatpush.bf16.msra.mxu0 %v5583
      %5709 = vmatmul.bf16.gmra.mxu0 %v5632
      %v5710 = vpop.f32.mrf.mxu0
      %v5711 = vadd.f32 %v5682, %v5710
      %v5712 = vpop.f32.mrf.mxu0
      %v5713 = vadd.f32 %v5684, %v5712
      %5714 = vmatmul.bf16.gmra.mxu0 %v5635
      %v5715 = vpop.f32.mrf.mxu0
      %v5716 = vadd.f32 %v5687, %v5715
      %v5717 = vpop.f32.mrf.mxu0
      %v5718 = vadd.f32 %v5689, %v5717
      %5719 = vmatmul.bf16.gmra.mxu0 %v5638
      %v5720 = vpop.f32.mrf.mxu0
      %v5721 = vadd.f32 %v5692, %v5720
      %v5722 = vpop.f32.mrf.mxu0
      %v5723 = vadd.f32 %v5694, %v5722
      %5724 = vmatmul.bf16.gmra.mxu0 %v5641
      %v5725 = vpop.f32.mrf.mxu0
      %v5726 = vadd.f32 %v5697, %v5725
      %v5727 = vpop.f32.mrf.mxu0
      %v5728 = vadd.f32 %v5699, %v5727
      %5729 = vdwg.mxu0
      %5730 = vmatpush.bf16.msra.mxu0 %v5566
      %5731 = vmatpush.bf16.msra.mxu0 %v5564
      %5732 = vmatpush.bf16.msra.mxu0 %v5562
      %5733 = vmatpush.bf16.msra.mxu0 %v5560
      %5734 = vmatpush.bf16.msra.mxu0 %v5558
      %5735 = vmatpush.bf16.msra.mxu0 %v5556
      %5736 = vmatpush.bf16.msra.mxu0 %v5554
      %5737 = vmatpush.bf16.msra.mxu0 %v5552
      %5738 = vmatmul.bf16.gmra.mxu0 %v5411
      %v5739 = vpop.f32.mrf.mxu0
      %v5740 = vadd.f32 0.0, %v5739
      %v5741 = vpop.f32.mrf.mxu0
      %v5742 = vadd.f32 0.0, %v5741
      %5743 = vmatmul.bf16.gmra.mxu0 %v5414
      %v5744 = vpop.f32.mrf.mxu0
      %v5745 = vadd.f32 0.0, %v5744
      %v5746 = vpop.f32.mrf.mxu0
      %v5747 = vadd.f32 0.0, %v5746
      %5748 = vmatmul.bf16.gmra.mxu0 %v5417
      %v5749 = vpop.f32.mrf.mxu0
      %v5750 = vadd.f32 0.0, %v5749
      %v5751 = vpop.f32.mrf.mxu0
      %v5752 = vadd.f32 0.0, %v5751
      %5753 = vmatmul.bf16.gmra.mxu0 %v5420
      %v5754 = vpop.f32.mrf.mxu0
      %v5755 = vadd.f32 0.0, %v5754
      %v5756 = vpop.f32.mrf.mxu0
      %v5757 = vadd.f32 0.0, %v5756
      %5758 = vdwg.mxu0
      %5759 = vmatpush.bf16.msra.mxu0 %v5582
      %5760 = vmatpush.bf16.msra.mxu0 %v5580
      %5761 = vmatpush.bf16.msra.mxu0 %v5578
      %5762 = vmatpush.bf16.msra.mxu0 %v5576
      %5763 = vmatpush.bf16.msra.mxu0 %v5574
      %5764 = vmatpush.bf16.msra.mxu0 %v5572
      %5765 = vmatpush.bf16.msra.mxu0 %v5570
      %5766 = vmatpush.bf16.msra.mxu0 %v5568
      %5767 = vmatmul.bf16.gmra.mxu0 %v5412
      %v5768 = vpop.f32.mrf.mxu0
      %v5769 = vadd.f32 %v5740, %v5768
      %v5770 = vpop.f32.mrf.mxu0
      %v5771 = vadd.f32 %v5742, %v5770
      %5772 = vmatmul.bf16.gmra.mxu0 %v5415
      %v5773 = vpop.f32.mrf.mxu0
      %v5774 = vadd.f32 %v5745, %v5773
      %v5775 = vpop.f32.mrf.mxu0
      %v5776 = vadd.f32 %v5747, %v5775
      %5777 = vmatmul.bf16.gmra.mxu0 %v5418
      %v5778 = vpop.f32.mrf.mxu0
      %v5779 = vadd.f32 %v5750, %v5778
      %v5780 = vpop.f32.mrf.mxu0
      %v5781 = vadd.f32 %v5752, %v5780
      %5782 = vmatmul.bf16.gmra.mxu0 %v5421
      %v5783 = vpop.f32.mrf.mxu0
      %v5784 = vadd.f32 %v5755, %v5783
      %v5785 = vpop.f32.mrf.mxu0
      %v5786 = vadd.f32 %v5757, %v5785
      %5787 = vdwg.mxu0
      %5788 = vmatpush.bf16.msra.mxu0 0
      %5789 = vmatpush.bf16.msra.mxu0 0
      %5790 = vmatpush.bf16.msra.mxu0 0
      %5791 = vmatpush.bf16.msra.mxu0 0
      %5792 = vmatpush.bf16.msra.mxu0 %v5590
      %5793 = vmatpush.bf16.msra.mxu0 %v5588
      %5794 = vmatpush.bf16.msra.mxu0 %v5586
      %5795 = vmatpush.bf16.msra.mxu0 %v5584
      %5796 = vmatmul.bf16.gmra.mxu0 %v5632
      %v5797 = vpop.f32.mrf.mxu0
      %v5798 = vadd.f32 %v5769, %v5797
      %v5799 = vpop.f32.mrf.mxu0
      %v5800 = vadd.f32 %v5771, %v5799
      %5801 = vmatmul.bf16.gmra.mxu0 %v5635
      %v5802 = vpop.f32.mrf.mxu0
      %v5803 = vadd.f32 %v5774, %v5802
      %v5804 = vpop.f32.mrf.mxu0
      %v5805 = vadd.f32 %v5776, %v5804
      %5806 = vmatmul.bf16.gmra.mxu0 %v5638
      %v5807 = vpop.f32.mrf.mxu0
      %v5808 = vadd.f32 %v5779, %v5807
      %v5809 = vpop.f32.mrf.mxu0
      %v5810 = vadd.f32 %v5781, %v5809
      %5811 = vmatmul.bf16.gmra.mxu0 %v5641
      %v5812 = vpop.f32.mrf.mxu0
      %v5813 = vadd.f32 %v5784, %v5812
      %v5814 = vpop.f32.mrf.mxu0
      %v5815 = vadd.f32 %v5786, %v5814
      %5816 = vdwg.mxu0
      %v5833 = vunpack.c.l.b16 %v4986
      %v5834 = vunpack.c.h.b16 %v4986
      %v5835 = vunpack.c.l.b16 %v4987
      %v5836 = vunpack.c.l.b16 %v4988
      %v5837 = vunpack.c.h.b16 %v4988
      %v5838 = vunpack.c.l.b16 %v4989
      %v5839 = vunpack.c.l.b16 %v4990
      %v5840 = vunpack.c.h.b16 %v4990
      %v5841 = vunpack.c.l.b16 %v4991
      %v5842 = vunpack.c.l.b16 %v4992
      %v5843 = vunpack.c.h.b16 %v4992
      %v5844 = vunpack.c.l.b16 %v4993
      %v5845 = vunpack.c.l.b16 %v4994
      %v5846 = vunpack.c.h.b16 %v4994
      %v5847 = vunpack.c.l.b16 %v4995
      %v5848 = vunpack.c.l.b16 %v4996
      %v5849 = vunpack.c.h.b16 %v4996
      %v5850 = vunpack.c.l.b16 %v4997
      %v5851 = vunpack.c.l.b16 %v4998
      %v5852 = vunpack.c.h.b16 %v4998
      %v5853 = vunpack.c.l.b16 %v4999
      %v5854 = vunpack.c.l.b16 %v5000
      %v5855 = vunpack.c.h.b16 %v5000
      %v5856 = vunpack.c.l.b16 %v5001
      %v5857 = vpack.c.b16 %v5836, %v5833
      %v5858 = vpack.c.b16 %v5837, %v5834
      %v5859 = vpack.c.b16 %v5838, %v5835
      %v5860 = vpack.c.b16 %v5842, %v5839
      %v5861 = vpack.c.b16 %v5843, %v5840
      %v5862 = vpack.c.b16 %v5844, %v5841
      %v5863 = vpack.c.b16 %v5848, %v5845
      %v5864 = vpack.c.b16 %v5849, %v5846
      %v5865 = vpack.c.b16 %v5850, %v5847
      %v5866 = vpack.c.b16 %v5854, %v5851
      %v5867 = vpack.c.b16 %v5855, %v5852
      %v5868 = vpack.c.b16 %v5856, %v5853
      %v5917 = vunpack.c.l.b16 %v5002
      %v5918 = vunpack.c.h.b16 %v5002
      %v5919 = vunpack.c.l.b16 %v5003
      %v5920 = vunpack.c.h.b16 %v5003
      %v5921 = vunpack.c.l.b16 %v5004
      %v5922 = vunpack.c.h.b16 %v5004
      %v5923 = vunpack.c.l.b16 %v5005
      %v5924 = vunpack.c.h.b16 %v5005
      %v5925 = vunpack.c.l.b16 %v5006
      %v5926 = vunpack.c.h.b16 %v5006
      %v5927 = vunpack.c.l.b16 %v5007
      %v5928 = vunpack.c.h.b16 %v5007
      %v5929 = vunpack.c.l.b16 %v5008
      %v5930 = vunpack.c.h.b16 %v5008
      %v5931 = vunpack.c.l.b16 %v5009
      %v5932 = vunpack.c.h.b16 %v5009
      %v5933 = vunpack.c.l.b16 %v5010
      %v5934 = vunpack.c.h.b16 %v5010
      %v5935 = vunpack.c.l.b16 %v5011
      %v5936 = vunpack.c.h.b16 %v5011
      %v5937 = vunpack.c.l.b16 %v5012
      %v5938 = vunpack.c.h.b16 %v5012
      %v5939 = vunpack.c.l.b16 %v5013
      %v5940 = vunpack.c.h.b16 %v5013
      %v5941 = vunpack.c.l.b16 %v5014
      %v5942 = vunpack.c.h.b16 %v5014
      %v5943 = vunpack.c.l.b16 %v5015
      %v5944 = vunpack.c.h.b16 %v5015
      %v5945 = vunpack.c.l.b16 %v5016
      %v5946 = vunpack.c.h.b16 %v5016
      %v5947 = vunpack.c.l.b16 %v5017
      %v5948 = vunpack.c.h.b16 %v5017
      %v5949 = vunpack.c.l.b16 %v5018
      %v5950 = vunpack.c.h.b16 %v5018
      %v5951 = vunpack.c.l.b16 %v5019
      %v5952 = vunpack.c.h.b16 %v5019
      %v5953 = vunpack.c.l.b16 %v5020
      %v5954 = vunpack.c.h.b16 %v5020
      %v5955 = vunpack.c.l.b16 %v5021
      %v5956 = vunpack.c.h.b16 %v5021
      %v5957 = vunpack.c.l.b16 %v5022
      %v5958 = vunpack.c.h.b16 %v5022
      %v5959 = vunpack.c.l.b16 %v5023
      %v5960 = vunpack.c.h.b16 %v5023
      %v5961 = vunpack.c.l.b16 %v5024
      %v5962 = vunpack.c.h.b16 %v5024
      %v5963 = vunpack.c.l.b16 %v5025
      %v5964 = vunpack.c.h.b16 %v5025
      %v5965 = vunpack.c.l.b16 %v5026
      %v5966 = vunpack.c.h.b16 %v5026
      %v5967 = vunpack.c.l.b16 %v5027
      %v5968 = vunpack.c.h.b16 %v5027
      %v5969 = vunpack.c.l.b16 %v5028
      %v5970 = vunpack.c.h.b16 %v5028
      %v5971 = vunpack.c.l.b16 %v5029
      %v5972 = vunpack.c.h.b16 %v5029
      %v5973 = vunpack.c.l.b16 %v5030
      %v5974 = vunpack.c.h.b16 %v5030
      %v5975 = vunpack.c.l.b16 %v5031
      %v5976 = vunpack.c.h.b16 %v5031
      %v5977 = vunpack.c.l.b16 %v5032
      %v5978 = vunpack.c.h.b16 %v5032
      %v5979 = vunpack.c.l.b16 %v5033
      %v5980 = vunpack.c.h.b16 %v5033
      %v5981 = vunpack.c.l.b16 %v5034
      %v5982 = vunpack.c.h.b16 %v5034
      %v5983 = vunpack.c.l.b16 %v5035
      %v5984 = vunpack.c.h.b16 %v5035
      %v5985 = vunpack.c.l.b16 %v5036
      %v5986 = vunpack.c.h.b16 %v5036
      %v5987 = vunpack.c.l.b16 %v5037
      %v5988 = vunpack.c.h.b16 %v5037
      %v5989 = vunpack.c.l.b16 %v5038
      %v5990 = vunpack.c.h.b16 %v5038
      %v5991 = vunpack.c.l.b16 %v5039
      %v5992 = vunpack.c.h.b16 %v5039
      %v5993 = vunpack.c.l.b16 %v5040
      %v5994 = vunpack.c.h.b16 %v5040
      %v5995 = vunpack.c.l.b16 %v5041
      %v5996 = vunpack.c.h.b16 %v5041
      %v5997 = vpack.c.b16 %v5919, %v5917
      %v5998 = vpack.c.b16 %v5920, %v5918
      %v5999 = vpack.c.b16 %v5923, %v5921
      %v6000 = vpack.c.b16 %v5924, %v5922
      %v6001 = vpack.c.b16 %v5927, %v5925
      %v6002 = vpack.c.b16 %v5928, %v5926
      %v6003 = vpack.c.b16 %v5931, %v5929
      %v6004 = vpack.c.b16 %v5932, %v5930
      %v6005 = vpack.c.b16 %v5935, %v5933
      %v6006 = vpack.c.b16 %v5936, %v5934
      %v6007 = vpack.c.b16 %v5939, %v5937
      %v6008 = vpack.c.b16 %v5940, %v5938
      %v6009 = vpack.c.b16 %v5943, %v5941
      %v6010 = vpack.c.b16 %v5944, %v5942
      %v6011 = vpack.c.b16 %v5947, %v5945
      %v6012 = vpack.c.b16 %v5948, %v5946
      %v6013 = vpack.c.b16 %v5951, %v5949
      %v6014 = vpack.c.b16 %v5952, %v5950
      %v6015 = vpack.c.b16 %v5955, %v5953
      %v6016 = vpack.c.b16 %v5956, %v5954
      %v6017 = vpack.c.b16 %v5959, %v5957
      %v6018 = vpack.c.b16 %v5960, %v5958
      %v6019 = vpack.c.b16 %v5963, %v5961
      %v6020 = vpack.c.b16 %v5964, %v5962
      %v6021 = vpack.c.b16 %v5967, %v5965
      %v6022 = vpack.c.b16 %v5968, %v5966
      %v6023 = vpack.c.b16 %v5971, %v5969
      %v6024 = vpack.c.b16 %v5972, %v5970
      %v6025 = vpack.c.b16 %v5975, %v5973
      %v6026 = vpack.c.b16 %v5976, %v5974
      %v6027 = vpack.c.b16 %v5979, %v5977
      %v6028 = vpack.c.b16 %v5980, %v5978
      %v6029 = vpack.c.b16 %v5983, %v5981
      %v6030 = vpack.c.b16 %v5984, %v5982
      %v6031 = vpack.c.b16 %v5987, %v5985
      %v6032 = vpack.c.b16 %v5988, %v5986
      %v6033 = vpack.c.b16 %v5991, %v5989
      %v6034 = vpack.c.b16 %v5992, %v5990
      %v6035 = vpack.c.b16 %v5995, %v5993
      %v6036 = vpack.c.b16 %v5996, %v5994
      %v6078 = vsel %vm486, %v5859, 0
      %v6081 = vsel %vm486, %v5862, 0
      %v6084 = vsel %vm486, %v5865, 0
      %v6087 = vsel %vm486, %v5868, 0
      %6089 = vmatpush.bf16.msra.mxu0 %v6011
      %6090 = vmatpush.bf16.msra.mxu0 %v6009
      %6091 = vmatpush.bf16.msra.mxu0 %v6007
      %6092 = vmatpush.bf16.msra.mxu0 %v6005
      %6093 = vmatpush.bf16.msra.mxu0 %v6003
      %6094 = vmatpush.bf16.msra.mxu0 %v6001
      %6095 = vmatpush.bf16.msra.mxu0 %v5999
      %6096 = vmatpush.bf16.msra.mxu0 %v5997
      %6097 = vmatmul.bf16.gmra.mxu0 %v5857
      %v6098 = vpop.f32.mrf.mxu0
      %v6099 = vadd.f32 %v5711, %v6098
      %v6100 = vpop.f32.mrf.mxu0
      %v6101 = vadd.f32 %v5713, %v6100
      %6102 = vmatmul.bf16.gmra.mxu0 %v5860
      %v6103 = vpop.f32.mrf.mxu0
      %v6104 = vadd.f32 %v5716, %v6103
      %v6105 = vpop.f32.mrf.mxu0
      %v6106 = vadd.f32 %v5718, %v6105
      %6107 = vmatmul.bf16.gmra.mxu0 %v5863
      %v6108 = vpop.f32.mrf.mxu0
      %v6109 = vadd.f32 %v5721, %v6108
      %v6110 = vpop.f32.mrf.mxu0
      %v6111 = vadd.f32 %v5723, %v6110
      %6112 = vmatmul.bf16.gmra.mxu0 %v5866
      %v6113 = vpop.f32.mrf.mxu0
      %v6114 = vadd.f32 %v5726, %v6113
      %v6115 = vpop.f32.mrf.mxu0
      %v6116 = vadd.f32 %v5728, %v6115
      %6117 = vdwg.mxu0
      %6118 = vmatpush.bf16.msra.mxu0 %v6027
      %6119 = vmatpush.bf16.msra.mxu0 %v6025
      %6120 = vmatpush.bf16.msra.mxu0 %v6023
      %6121 = vmatpush.bf16.msra.mxu0 %v6021
      %6122 = vmatpush.bf16.msra.mxu0 %v6019
      %6123 = vmatpush.bf16.msra.mxu0 %v6017
      %6124 = vmatpush.bf16.msra.mxu0 %v6015
      %6125 = vmatpush.bf16.msra.mxu0 %v6013
      %6126 = vmatmul.bf16.gmra.mxu0 %v5858
      %v6127 = vpop.f32.mrf.mxu0
      %v6128 = vadd.f32 %v6099, %v6127
      %v6129 = vpop.f32.mrf.mxu0
      %v6130 = vadd.f32 %v6101, %v6129
      %6131 = vmatmul.bf16.gmra.mxu0 %v5861
      %v6132 = vpop.f32.mrf.mxu0
      %v6133 = vadd.f32 %v6104, %v6132
      %v6134 = vpop.f32.mrf.mxu0
      %v6135 = vadd.f32 %v6106, %v6134
      %6136 = vmatmul.bf16.gmra.mxu0 %v5864
      %v6137 = vpop.f32.mrf.mxu0
      %v6138 = vadd.f32 %v6109, %v6137
      %v6139 = vpop.f32.mrf.mxu0
      %v6140 = vadd.f32 %v6111, %v6139
      %6141 = vmatmul.bf16.gmra.mxu0 %v5867
      %v6142 = vpop.f32.mrf.mxu0
      %v6143 = vadd.f32 %v6114, %v6142
      %v6144 = vpop.f32.mrf.mxu0
      %v6145 = vadd.f32 %v6116, %v6144
      %6146 = vdwg.mxu0
      %6147 = vmatpush.bf16.msra.mxu0 0
      %6148 = vmatpush.bf16.msra.mxu0 0
      %6149 = vmatpush.bf16.msra.mxu0 0
      %6150 = vmatpush.bf16.msra.mxu0 0
      %6151 = vmatpush.bf16.msra.mxu0 %v6035
      %6152 = vmatpush.bf16.msra.mxu0 %v6033
      %6153 = vmatpush.bf16.msra.mxu0 %v6031
      %6154 = vmatpush.bf16.msra.mxu0 %v6029
      %6155 = vmatmul.bf16.gmra.mxu0 %v6078
      %v6156 = vpop.f32.mrf.mxu0
      %v6157 = vadd.f32 %v6128, %v6156
      %v6158 = vpop.f32.mrf.mxu0
      %v6159 = vadd.f32 %v6130, %v6158
      %6160 = vmatmul.bf16.gmra.mxu0 %v6081
      %v6161 = vpop.f32.mrf.mxu0
      %v6162 = vadd.f32 %v6133, %v6161
      %v6163 = vpop.f32.mrf.mxu0
      %v6164 = vadd.f32 %v6135, %v6163
      %6165 = vmatmul.bf16.gmra.mxu0 %v6084
      %v6166 = vpop.f32.mrf.mxu0
      %v6167 = vadd.f32 %v6138, %v6166
      %v6168 = vpop.f32.mrf.mxu0
      %v6169 = vadd.f32 %v6140, %v6168
      %6170 = vmatmul.bf16.gmra.mxu0 %v6087
      %v6171 = vpop.f32.mrf.mxu0
      %v6172 = vadd.f32 %v6143, %v6171
      %v6173 = vpop.f32.mrf.mxu0
      %v6174 = vadd.f32 %v6145, %v6173
      %6175 = vdwg.mxu0
      %6176 = vmatpush.bf16.msra.mxu0 %v6012
      %6177 = vmatpush.bf16.msra.mxu0 %v6010
      %6178 = vmatpush.bf16.msra.mxu0 %v6008
      %6179 = vmatpush.bf16.msra.mxu0 %v6006
      %6180 = vmatpush.bf16.msra.mxu0 %v6004
      %6181 = vmatpush.bf16.msra.mxu0 %v6002
      %6182 = vmatpush.bf16.msra.mxu0 %v6000
      %6183 = vmatpush.bf16.msra.mxu0 %v5998
      %6184 = vmatmul.bf16.gmra.mxu0 %v5857
      %v6185 = vpop.f32.mrf.mxu0
      %v6186 = vadd.f32 %v5798, %v6185
      %v6187 = vpop.f32.mrf.mxu0
      %v6188 = vadd.f32 %v5800, %v6187
      %6189 = vmatmul.bf16.gmra.mxu0 %v5860
      %v6190 = vpop.f32.mrf.mxu0
      %v6191 = vadd.f32 %v5803, %v6190
      %v6192 = vpop.f32.mrf.mxu0
      %v6193 = vadd.f32 %v5805, %v6192
      %6194 = vmatmul.bf16.gmra.mxu0 %v5863
      %v6195 = vpop.f32.mrf.mxu0
      %v6196 = vadd.f32 %v5808, %v6195
      %v6197 = vpop.f32.mrf.mxu0
      %v6198 = vadd.f32 %v5810, %v6197
      %6199 = vmatmul.bf16.gmra.mxu0 %v5866
      %v6200 = vpop.f32.mrf.mxu0
      %v6201 = vadd.f32 %v5813, %v6200
      %v6202 = vpop.f32.mrf.mxu0
      %v6203 = vadd.f32 %v5815, %v6202
      %6204 = vdwg.mxu0
      %6205 = vmatpush.bf16.msra.mxu0 %v6028
      %6206 = vmatpush.bf16.msra.mxu0 %v6026
      %6207 = vmatpush.bf16.msra.mxu0 %v6024
      %6208 = vmatpush.bf16.msra.mxu0 %v6022
      %6209 = vmatpush.bf16.msra.mxu0 %v6020
      %6210 = vmatpush.bf16.msra.mxu0 %v6018
      %6211 = vmatpush.bf16.msra.mxu0 %v6016
      %6212 = vmatpush.bf16.msra.mxu0 %v6014
      %6213 = vmatmul.bf16.gmra.mxu0 %v5858
      %v6214 = vpop.f32.mrf.mxu0
      %v6215 = vadd.f32 %v6186, %v6214
      %v6216 = vpop.f32.mrf.mxu0
      %v6217 = vadd.f32 %v6188, %v6216
      %6218 = vmatmul.bf16.gmra.mxu0 %v5861
      %v6219 = vpop.f32.mrf.mxu0
      %v6220 = vadd.f32 %v6191, %v6219
      %v6221 = vpop.f32.mrf.mxu0
      %v6222 = vadd.f32 %v6193, %v6221
      %6223 = vmatmul.bf16.gmra.mxu0 %v5864
      %v6224 = vpop.f32.mrf.mxu0
      %v6225 = vadd.f32 %v6196, %v6224
      %v6226 = vpop.f32.mrf.mxu0
      %v6227 = vadd.f32 %v6198, %v6226
      %6228 = vmatmul.bf16.gmra.mxu0 %v5867
      %v6229 = vpop.f32.mrf.mxu0
      %v6230 = vadd.f32 %v6201, %v6229
      %v6231 = vpop.f32.mrf.mxu0
      %v6232 = vadd.f32 %v6203, %v6231
      %6233 = vdwg.mxu0
      %6234 = vmatpush.bf16.msra.mxu0 0
      %6235 = vmatpush.bf16.msra.mxu0 0
      %6236 = vmatpush.bf16.msra.mxu0 0
      %6237 = vmatpush.bf16.msra.mxu0 0
      %6238 = vmatpush.bf16.msra.mxu0 %v6036
      %6239 = vmatpush.bf16.msra.mxu0 %v6034
      %6240 = vmatpush.bf16.msra.mxu0 %v6032
      %6241 = vmatpush.bf16.msra.mxu0 %v6030
      %6242 = vmatmul.bf16.gmra.mxu0 %v6078
      %v6243 = vpop.f32.mrf.mxu0
      %v6244 = vadd.f32 %v6215, %v6243
      %v6245 = vpop.f32.mrf.mxu0
      %v6246 = vadd.f32 %v6217, %v6245
      %6247 = vmatmul.bf16.gmra.mxu0 %v6081
      %v6248 = vpop.f32.mrf.mxu0
      %v6249 = vadd.f32 %v6220, %v6248
      %v6250 = vpop.f32.mrf.mxu0
      %v6251 = vadd.f32 %v6222, %v6250
      %6252 = vmatmul.bf16.gmra.mxu0 %v6084
      %v6253 = vpop.f32.mrf.mxu0
      %v6254 = vadd.f32 %v6225, %v6253
      %v6255 = vpop.f32.mrf.mxu0
      %v6256 = vadd.f32 %v6227, %v6255
      %6257 = vmatmul.bf16.gmra.mxu0 %v6087
      %v6258 = vpop.f32.mrf.mxu0
      %v6259 = vadd.f32 %v6230, %v6258
      %v6260 = vpop.f32.mrf.mxu0
      %v6261 = vadd.f32 %v6232, %v6260
      %6262 = vdwg.mxu0
      %v6263 = vld [vmem:[#allocation3] sm:$0xfc]
      %v6264 = vld [vmem:[#allocation3 + $0x8] sm:$0xfc]
      %v6265 = vld [vmem:[#allocation3 + $0x10] sm:$0xfc]
      %v6266 = vld [vmem:[#allocation3 + $0x18] sm:$0x3]
      %v6267 = vld [vmem:[#allocation3 + $0x20] sm:$0x3]
      %v6268 = vld [vmem:[#allocation3 + $0x28] sm:$0x3]
      %v6269 = vld [vmem:[#allocation3 + $0x30] sm:$0xfc]
      %v6270 = vld [vmem:[#allocation3 + $0x38] sm:$0xfc]
      %v6271 = vld [vmem:[#allocation3 + $0x40] sm:$0xfc]
      %v6272 = vld [vmem:[#allocation3 + $0x48] sm:$0x3]
      %v6273 = vld [vmem:[#allocation3 + $0x50] sm:$0x3]
      %v6274 = vld [vmem:[#allocation3 + $0x58] sm:$0x3]
      %v6275 = vld [vmem:[#allocation3 + $0x60] sm:$0xfc]
      %v6276 = vld [vmem:[#allocation3 + $0x68] sm:$0xfc]
      %v6277 = vld [vmem:[#allocation3 + $0x70] sm:$0xfc]
      %v6278 = vld [vmem:[#allocation3 + $0x78] sm:$0x3]
      %v6279 = vld [vmem:[#allocation3 + $0x80] sm:$0x3]
      %v6280 = vld [vmem:[#allocation3 + $0x88] sm:$0x3]
      %v6281 = vld [vmem:[#allocation3 + $0x90] sm:$0xfc]
      %v6282 = vld [vmem:[#allocation3 + $0x98] sm:$0xfc]
      %v6283 = vld [vmem:[#allocation3 + $0xa0] sm:$0xfc]
      %v6284 = vld [vmem:[#allocation3 + $0xa8] sm:$0x3]
      %v6285 = vld [vmem:[#allocation3 + $0xb0] sm:$0x3]
      %v6286 = vld [vmem:[#allocation3 + $0xb8] sm:$0x3]
      %v6287 = vld [vmem:[#allocation3 + $0xc0] sm:$0xfc]
      %v6288 = vld [vmem:[#allocation3 + $0xc8] sm:$0xfc]
      %v6289 = vld [vmem:[#allocation3 + $0xd0] sm:$0xfc]
      %v6290 = vld [vmem:[#allocation3 + $0xd8] sm:$0x3]
      %v6291 = vld [vmem:[#allocation3 + $0xe0] sm:$0x3]
      %v6292 = vld [vmem:[#allocation3 + $0xe8] sm:$0x3]
      %v6293 = vld [vmem:[#allocation3 + $0xf0] sm:$0xfc]
      %v6294 = vld [vmem:[#allocation3 + $0xf8] sm:$0xfc]
      %v6295 = vld [vmem:[#allocation3 + $0x100] sm:$0xfc]
      %v6296 = vld [vmem:[#allocation3 + $0x108] sm:$0x3]
      %v6297 = vld [vmem:[#allocation3 + $0x110] sm:$0x3]
      %v6298 = vld [vmem:[#allocation3 + $0x118] sm:$0x3]
      %v6299 = vld [vmem:[#allocation3 + $0x120] sm:$0xfc]
      %v6300 = vld [vmem:[#allocation3 + $0x128] sm:$0xfc]
      %v6301 = vld [vmem:[#allocation3 + $0x130] sm:$0xfc]
      %v6302 = vld [vmem:[#allocation3 + $0x138] sm:$0x3]
      %v6303 = vld [vmem:[#allocation3 + $0x140] sm:$0x3]
      %v6304 = vld [vmem:[#allocation3 + $0x148] sm:$0x3]
      %v6305 = vld [vmem:[#allocation3 + $0x150] sm:$0xfc]
      %v6306 = vld [vmem:[#allocation3 + $0x158] sm:$0xfc]
      %v6307 = vld [vmem:[#allocation3 + $0x160] sm:$0xfc]
      %v6308 = vld [vmem:[#allocation3 + $0x168] sm:$0x3]
      %v6309 = vld [vmem:[#allocation3 + $0x170] sm:$0x3]
      %v6310 = vld [vmem:[#allocation3 + $0x178] sm:$0x3]
      %v6311 = vpack.c.bf16 %v6264, %v6263
      %v6312 = vpack.c.bf16 %v6265, %v6265
      %v6313 = vpack.c.bf16 %v6267, %v6266
      %v6314 = vpack.c.bf16 %v6268, %v6268
      %v6315 = vpack.c.bf16 %v6270, %v6269
      %v6316 = vpack.c.bf16 %v6271, %v6271
      %v6317 = vpack.c.bf16 %v6273, %v6272
      %v6318 = vpack.c.bf16 %v6274, %v6274
      %v6319 = vpack.c.bf16 %v6276, %v6275
      %v6320 = vpack.c.bf16 %v6277, %v6277
      %v6321 = vpack.c.bf16 %v6279, %v6278
      %v6322 = vpack.c.bf16 %v6280, %v6280
      %v6323 = vpack.c.bf16 %v6282, %v6281
      %v6324 = vpack.c.bf16 %v6283, %v6283
      %v6325 = vpack.c.bf16 %v6285, %v6284
      %v6326 = vpack.c.bf16 %v6286, %v6286
      %v6327 = vpack.c.bf16 %v6288, %v6287
      %v6328 = vpack.c.bf16 %v6289, %v6289
      %v6329 = vpack.c.bf16 %v6291, %v6290
      %v6330 = vpack.c.bf16 %v6292, %v6292
      %v6331 = vpack.c.bf16 %v6294, %v6293
      %v6332 = vpack.c.bf16 %v6295, %v6295
      %v6333 = vpack.c.bf16 %v6297, %v6296
      %v6334 = vpack.c.bf16 %v6298, %v6298
      %v6335 = vpack.c.bf16 %v6300, %v6299
      %v6336 = vpack.c.bf16 %v6301, %v6301
      %v6337 = vpack.c.bf16 %v6303, %v6302
      %v6338 = vpack.c.bf16 %v6304, %v6304
      %v6339 = vpack.c.bf16 %v6306, %v6305
      %v6340 = vpack.c.bf16 %v6307, %v6307
      %v6341 = vpack.c.bf16 %v6309, %v6308
      %v6342 = vpack.c.bf16 %v6310, %v6310
      %v6375 = vrot.slane %v6311, 5
      %v6376 = vrot.slane %v6375, 4
      %v6377 = vrot.slane %v6313, 5
      %v6378 = vsel %vm1482, %v6376, %v6377
      %v6379 = vrot.slane %v6312, 5
      %v6380 = vrot.slane %v6379, 4
      %v6381 = vrot.slane %v6314, 5
      %v6382 = vsel %vm1482, %v6380, %v6381
      %v6383 = vrot.slane %v6315, 5
      %v6384 = vrot.slane %v6383, 4
      %v6385 = vrot.slane %v6317, 5
      %v6386 = vsel %vm1482, %v6384, %v6385
      %v6387 = vrot.slane %v6316, 5
      %v6388 = vrot.slane %v6387, 4
      %v6389 = vrot.slane %v6318, 5
      %v6390 = vsel %vm1482, %v6388, %v6389
      %v6391 = vrot.slane %v6319, 5
      %v6392 = vrot.slane %v6391, 4
      %v6393 = vrot.slane %v6321, 5
      %v6394 = vsel %vm1482, %v6392, %v6393
      %v6395 = vrot.slane %v6320, 5
      %v6396 = vrot.slane %v6395, 4
      %v6397 = vrot.slane %v6322, 5
      %v6398 = vsel %vm1482, %v6396, %v6397
      %v6399 = vrot.slane %v6323, 5
      %v6400 = vrot.slane %v6399, 4
      %v6401 = vrot.slane %v6325, 5
      %v6402 = vsel %vm1482, %v6400, %v6401
      %v6403 = vrot.slane %v6324, 5
      %v6404 = vrot.slane %v6403, 4
      %v6405 = vrot.slane %v6326, 5
      %v6406 = vsel %vm1482, %v6404, %v6405
      %v6407 = vrot.slane %v6327, 5
      %v6408 = vrot.slane %v6407, 4
      %v6409 = vrot.slane %v6329, 5
      %v6410 = vsel %vm1482, %v6408, %v6409
      %v6411 = vrot.slane %v6328, 5
      %v6412 = vrot.slane %v6411, 4
      %v6413 = vrot.slane %v6330, 5
      %v6414 = vsel %vm1482, %v6412, %v6413
      %v6415 = vrot.slane %v6331, 5
      %v6416 = vrot.slane %v6415, 4
      %v6417 = vrot.slane %v6333, 5
      %v6418 = vsel %vm1482, %v6416, %v6417
      %v6419 = vrot.slane %v6332, 5
      %v6420 = vrot.slane %v6419, 4
      %v6421 = vrot.slane %v6334, 5
      %v6422 = vsel %vm1482, %v6420, %v6421
      %v6423 = vrot.slane %v6335, 5
      %v6424 = vrot.slane %v6423, 4
      %v6425 = vrot.slane %v6337, 5
      %v6426 = vsel %vm1482, %v6424, %v6425
      %v6427 = vrot.slane %v6336, 5
      %v6428 = vrot.slane %v6427, 4
      %v6429 = vrot.slane %v6338, 5
      %v6430 = vsel %vm1482, %v6428, %v6429
      %v6431 = vrot.slane %v6339, 5
      %v6432 = vrot.slane %v6431, 4
      %v6433 = vrot.slane %v6341, 5
      %v6434 = vsel %vm1482, %v6432, %v6433
      %v6435 = vrot.slane %v6340, 5
      %v6436 = vrot.slane %v6435, 4
      %v6437 = vrot.slane %v6342, 5
      %v6438 = vsel %vm1482, %v6436, %v6437
      %s6439 = scalar_lea.vmem %s5, 640
      %v6440 = vld [vmem:[%s6439] sm:$0xff]
      %v6441 = vld [vmem:[%s6439 + $0x8] sm:$0xff]
      %v6442 = vld [vmem:[%s6439 + $0x10] sm:$0xff]
      %v6443 = vld [vmem:[%s6439 + $0x18] sm:$0xff]
      %v6444 = vld [vmem:[%s6439 + $0x20] sm:$0xff]
      %v6445 = vld [vmem:[%s6439 + $0x28] sm:$0xff]
      %v6446 = vld [vmem:[%s6439 + $0x30] sm:$0xff]
      %v6447 = vld [vmem:[%s6439 + $0x38] sm:$0xff]
      %v6448 = vld [vmem:[%s6439 + $0x40] sm:$0xff]
      %v6449 = vld [vmem:[%s6439 + $0x48] sm:$0xff]
      %v6450 = vld [vmem:[%s6439 + $0x50] sm:$0xff]
      %v6451 = vld [vmem:[%s6439 + $0x58] sm:$0xff]
      %v6452 = vld [vmem:[%s6439 + $0x60] sm:$0xff]
      %v6453 = vld [vmem:[%s6439 + $0x68] sm:$0xff]
      %v6454 = vld [vmem:[%s6439 + $0x70] sm:$0xff]
      %v6455 = vld [vmem:[%s6439 + $0x78] sm:$0xff]
      %v6456 = vld [vmem:[%s6439 + $0x80] sm:$0xff]
      %v6457 = vld [vmem:[%s6439 + $0x88] sm:$0xff]
      %v6458 = vld [vmem:[%s6439 + $0x90] sm:$0xff]
      %v6459 = vld [vmem:[%s6439 + $0x98] sm:$0xff]
      %v6460 = vld [vmem:[%s6439 + $0xa0] sm:$0xff]
      %v6461 = vld [vmem:[%s6439 + $0xa8] sm:$0xff]
      %v6462 = vld [vmem:[%s6439 + $0xb0] sm:$0xff]
      %v6463 = vld [vmem:[%s6439 + $0xb8] sm:$0xff]
      %v6464 = vld [vmem:[%s6439 + $0xc0] sm:$0xff]
      %v6465 = vld [vmem:[%s6439 + $0xc8] sm:$0xff]
      %v6466 = vld [vmem:[%s6439 + $0xd0] sm:$0xff]
      %v6467 = vld [vmem:[%s6439 + $0xd8] sm:$0xff]
      %v6468 = vld [vmem:[%s6439 + $0xe0] sm:$0xff]
      %v6469 = vld [vmem:[%s6439 + $0xe8] sm:$0xff]
      %v6470 = vld [vmem:[%s6439 + $0xf0] sm:$0xff]
      %v6471 = vld [vmem:[%s6439 + $0xf8] sm:$0xff]
      %v6472 = vld [vmem:[%s6439 + $0x100] sm:$0xff]
      %v6473 = vld [vmem:[%s6439 + $0x108] sm:$0xff]
      %v6474 = vld [vmem:[%s6439 + $0x110] sm:$0xff]
      %v6475 = vld [vmem:[%s6439 + $0x118] sm:$0xff]
      %v6476 = vld [vmem:[%s6439 + $0x120] sm:$0xff]
      %v6477 = vld [vmem:[%s6439 + $0x128] sm:$0xff]
      %v6478 = vld [vmem:[%s6439 + $0x130] sm:$0xff]
      %v6479 = vld [vmem:[%s6439 + $0x138] sm:$0xff]
      %v6480 = vunpack.c.l.b16 %v6378
      %v6481 = vunpack.c.h.b16 %v6378
      %v6482 = vunpack.c.l.b16 %v6382
      %v6483 = vunpack.c.l.b16 %v6386
      %v6484 = vunpack.c.h.b16 %v6386
      %v6485 = vunpack.c.l.b16 %v6390
      %v6486 = vunpack.c.l.b16 %v6394
      %v6487 = vunpack.c.h.b16 %v6394
      %v6488 = vunpack.c.l.b16 %v6398
      %v6489 = vunpack.c.l.b16 %v6402
      %v6490 = vunpack.c.h.b16 %v6402
      %v6491 = vunpack.c.l.b16 %v6406
      %v6492 = vunpack.c.l.b16 %v6410
      %v6493 = vunpack.c.h.b16 %v6410
      %v6494 = vunpack.c.l.b16 %v6414
      %v6495 = vunpack.c.l.b16 %v6418
      %v6496 = vunpack.c.h.b16 %v6418
      %v6497 = vunpack.c.l.b16 %v6422
      %v6498 = vunpack.c.l.b16 %v6426
      %v6499 = vunpack.c.h.b16 %v6426
      %v6500 = vunpack.c.l.b16 %v6430
      %v6501 = vunpack.c.l.b16 %v6434
      %v6502 = vunpack.c.h.b16 %v6434
      %v6503 = vunpack.c.l.b16 %v6438
      %v6504 = vpack.c.b16 %v6483, %v6480
      %v6505 = vpack.c.b16 %v6484, %v6481
      %v6506 = vpack.c.b16 %v6485, %v6482
      %v6507 = vpack.c.b16 %v6489, %v6486
      %v6508 = vpack.c.b16 %v6490, %v6487
      %v6509 = vpack.c.b16 %v6491, %v6488
      %v6510 = vpack.c.b16 %v6495, %v6492
      %v6511 = vpack.c.b16 %v6496, %v6493
      %v6512 = vpack.c.b16 %v6497, %v6494
      %v6513 = vpack.c.b16 %v6501, %v6498
      %v6514 = vpack.c.b16 %v6502, %v6499
      %v6515 = vpack.c.b16 %v6503, %v6500
      %v6564 = vunpack.c.l.b16 %v6440
      %v6565 = vunpack.c.h.b16 %v6440
      %v6566 = vunpack.c.l.b16 %v6441
      %v6567 = vunpack.c.h.b16 %v6441
      %v6568 = vunpack.c.l.b16 %v6442
      %v6569 = vunpack.c.h.b16 %v6442
      %v6570 = vunpack.c.l.b16 %v6443
      %v6571 = vunpack.c.h.b16 %v6443
      %v6572 = vunpack.c.l.b16 %v6444
      %v6573 = vunpack.c.h.b16 %v6444
      %v6574 = vunpack.c.l.b16 %v6445
      %v6575 = vunpack.c.h.b16 %v6445
      %v6576 = vunpack.c.l.b16 %v6446
      %v6577 = vunpack.c.h.b16 %v6446
      %v6578 = vunpack.c.l.b16 %v6447
      %v6579 = vunpack.c.h.b16 %v6447
      %v6580 = vunpack.c.l.b16 %v6448
      %v6581 = vunpack.c.h.b16 %v6448
      %v6582 = vunpack.c.l.b16 %v6449
      %v6583 = vunpack.c.h.b16 %v6449
      %v6584 = vunpack.c.l.b16 %v6450
      %v6585 = vunpack.c.h.b16 %v6450
      %v6586 = vunpack.c.l.b16 %v6451
      %v6587 = vunpack.c.h.b16 %v6451
      %v6588 = vunpack.c.l.b16 %v6452
      %v6589 = vunpack.c.h.b16 %v6452
      %v6590 = vunpack.c.l.b16 %v6453
      %v6591 = vunpack.c.h.b16 %v6453
      %v6592 = vunpack.c.l.b16 %v6454
      %v6593 = vunpack.c.h.b16 %v6454
      %v6594 = vunpack.c.l.b16 %v6455
      %v6595 = vunpack.c.h.b16 %v6455
      %v6596 = vunpack.c.l.b16 %v6456
      %v6597 = vunpack.c.h.b16 %v6456
      %v6598 = vunpack.c.l.b16 %v6457
      %v6599 = vunpack.c.h.b16 %v6457
      %v6600 = vunpack.c.l.b16 %v6458
      %v6601 = vunpack.c.h.b16 %v6458
      %v6602 = vunpack.c.l.b16 %v6459
      %v6603 = vunpack.c.h.b16 %v6459
      %v6604 = vunpack.c.l.b16 %v6460
      %v6605 = vunpack.c.h.b16 %v6460
      %v6606 = vunpack.c.l.b16 %v6461
      %v6607 = vunpack.c.h.b16 %v6461
      %v6608 = vunpack.c.l.b16 %v6462
      %v6609 = vunpack.c.h.b16 %v6462
      %v6610 = vunpack.c.l.b16 %v6463
      %v6611 = vunpack.c.h.b16 %v6463
      %v6612 = vunpack.c.l.b16 %v6464
      %v6613 = vunpack.c.h.b16 %v6464
      %v6614 = vunpack.c.l.b16 %v6465
      %v6615 = vunpack.c.h.b16 %v6465
      %v6616 = vunpack.c.l.b16 %v6466
      %v6617 = vunpack.c.h.b16 %v6466
      %v6618 = vunpack.c.l.b16 %v6467
      %v6619 = vunpack.c.h.b16 %v6467
      %v6620 = vunpack.c.l.b16 %v6468
      %v6621 = vunpack.c.h.b16 %v6468
      %v6622 = vunpack.c.l.b16 %v6469
      %v6623 = vunpack.c.h.b16 %v6469
      %v6624 = vunpack.c.l.b16 %v6470
      %v6625 = vunpack.c.h.b16 %v6470
      %v6626 = vunpack.c.l.b16 %v6471
      %v6627 = vunpack.c.h.b16 %v6471
      %v6628 = vunpack.c.l.b16 %v6472
      %v6629 = vunpack.c.h.b16 %v6472
      %v6630 = vunpack.c.l.b16 %v6473
      %v6631 = vunpack.c.h.b16 %v6473
      %v6632 = vunpack.c.l.b16 %v6474
      %v6633 = vunpack.c.h.b16 %v6474
      %v6634 = vunpack.c.l.b16 %v6475
      %v6635 = vunpack.c.h.b16 %v6475
      %v6636 = vunpack.c.l.b16 %v6476
      %v6637 = vunpack.c.h.b16 %v6476
      %v6638 = vunpack.c.l.b16 %v6477
      %v6639 = vunpack.c.h.b16 %v6477
      %v6640 = vunpack.c.l.b16 %v6478
      %v6641 = vunpack.c.h.b16 %v6478
      %v6642 = vunpack.c.l.b16 %v6479
      %v6643 = vunpack.c.h.b16 %v6479
      %v6644 = vpack.c.b16 %v6566, %v6564
      %v6645 = vpack.c.b16 %v6567, %v6565
      %v6646 = vpack.c.b16 %v6570, %v6568
      %v6647 = vpack.c.b16 %v6571, %v6569
      %v6648 = vpack.c.b16 %v6574, %v6572
      %v6649 = vpack.c.b16 %v6575, %v6573
      %v6650 = vpack.c.b16 %v6578, %v6576
      %v6651 = vpack.c.b16 %v6579, %v6577
      %v6652 = vpack.c.b16 %v6582, %v6580
      %v6653 = vpack.c.b16 %v6583, %v6581
      %v6654 = vpack.c.b16 %v6586, %v6584
      %v6655 = vpack.c.b16 %v6587, %v6585
      %v6656 = vpack.c.b16 %v6590, %v6588
      %v6657 = vpack.c.b16 %v6591, %v6589
      %v6658 = vpack.c.b16 %v6594, %v6592
      %v6659 = vpack.c.b16 %v6595, %v6593
      %v6660 = vpack.c.b16 %v6598, %v6596
      %v6661 = vpack.c.b16 %v6599, %v6597
      %v6662 = vpack.c.b16 %v6602, %v6600
      %v6663 = vpack.c.b16 %v6603, %v6601
      %v6664 = vpack.c.b16 %v6606, %v6604
      %v6665 = vpack.c.b16 %v6607, %v6605
      %v6666 = vpack.c.b16 %v6610, %v6608
      %v6667 = vpack.c.b16 %v6611, %v6609
      %v6668 = vpack.c.b16 %v6614, %v6612
      %v6669 = vpack.c.b16 %v6615, %v6613
      %v6670 = vpack.c.b16 %v6618, %v6616
      %v6671 = vpack.c.b16 %v6619, %v6617
      %v6672 = vpack.c.b16 %v6622, %v6620
      %v6673 = vpack.c.b16 %v6623, %v6621
      %v6674 = vpack.c.b16 %v6626, %v6624
      %v6675 = vpack.c.b16 %v6627, %v6625
      %v6676 = vpack.c.b16 %v6630, %v6628
      %v6677 = vpack.c.b16 %v6631, %v6629
      %v6678 = vpack.c.b16 %v6634, %v6632
      %v6679 = vpack.c.b16 %v6635, %v6633
      %v6680 = vpack.c.b16 %v6638, %v6636
      %v6681 = vpack.c.b16 %v6639, %v6637
      %v6682 = vpack.c.b16 %v6642, %v6640
      %v6683 = vpack.c.b16 %v6643, %v6641
      %v6725 = vsel %vm486, %v6506, 0
      %v6728 = vsel %vm486, %v6509, 0
      %v6731 = vsel %vm486, %v6512, 0
      %v6734 = vsel %vm486, %v6515, 0
      %6736 = vmatpush.bf16.msra.mxu0 %v6658
      %6737 = vmatpush.bf16.msra.mxu0 %v6656
      %6738 = vmatpush.bf16.msra.mxu0 %v6654
      %6739 = vmatpush.bf16.msra.mxu0 %v6652
      %6740 = vmatpush.bf16.msra.mxu0 %v6650
      %6741 = vmatpush.bf16.msra.mxu0 %v6648
      %6742 = vmatpush.bf16.msra.mxu0 %v6646
      %6743 = vmatpush.bf16.msra.mxu0 %v6644
      %6744 = vmatmul.bf16.gmra.mxu0 %v6504
      %v6745 = vpop.f32.mrf.mxu0
      %v6746 = vadd.f32 0.0, %v6745
      %v6747 = vpop.f32.mrf.mxu0
      %v6748 = vadd.f32 0.0, %v6747
      %6749 = vmatmul.bf16.gmra.mxu0 %v6507
      %v6750 = vpop.f32.mrf.mxu0
      %v6751 = vadd.f32 0.0, %v6750
      %v6752 = vpop.f32.mrf.mxu0
      %v6753 = vadd.f32 0.0, %v6752
      %6754 = vmatmul.bf16.gmra.mxu0 %v6510
      %v6755 = vpop.f32.mrf.mxu0
      %v6756 = vadd.f32 0.0, %v6755
      %v6757 = vpop.f32.mrf.mxu0
      %v6758 = vadd.f32 0.0, %v6757
      %6759 = vmatmul.bf16.gmra.mxu0 %v6513
      %v6760 = vpop.f32.mrf.mxu0
      %v6761 = vadd.f32 0.0, %v6760
      %v6762 = vpop.f32.mrf.mxu0
      %v6763 = vadd.f32 0.0, %v6762
      %6764 = vdwg.mxu0
      %6765 = vmatpush.bf16.msra.mxu0 %v6674
      %6766 = vmatpush.bf16.msra.mxu0 %v6672
      %6767 = vmatpush.bf16.msra.mxu0 %v6670
      %6768 = vmatpush.bf16.msra.mxu0 %v6668
      %6769 = vmatpush.bf16.msra.mxu0 %v6666
      %6770 = vmatpush.bf16.msra.mxu0 %v6664
      %6771 = vmatpush.bf16.msra.mxu0 %v6662
      %6772 = vmatpush.bf16.msra.mxu0 %v6660
      %6773 = vmatmul.bf16.gmra.mxu0 %v6505
      %v6774 = vpop.f32.mrf.mxu0
      %v6775 = vadd.f32 %v6746, %v6774
      %v6776 = vpop.f32.mrf.mxu0
      %v6777 = vadd.f32 %v6748, %v6776
      %6778 = vmatmul.bf16.gmra.mxu0 %v6508
      %v6779 = vpop.f32.mrf.mxu0
      %v6780 = vadd.f32 %v6751, %v6779
      %v6781 = vpop.f32.mrf.mxu0
      %v6782 = vadd.f32 %v6753, %v6781
      %6783 = vmatmul.bf16.gmra.mxu0 %v6511
      %v6784 = vpop.f32.mrf.mxu0
      %v6785 = vadd.f32 %v6756, %v6784
      %v6786 = vpop.f32.mrf.mxu0
      %v6787 = vadd.f32 %v6758, %v6786
      %6788 = vmatmul.bf16.gmra.mxu0 %v6514
      %v6789 = vpop.f32.mrf.mxu0
      %v6790 = vadd.f32 %v6761, %v6789
      %v6791 = vpop.f32.mrf.mxu0
      %v6792 = vadd.f32 %v6763, %v6791
      %6793 = vdwg.mxu0
      %6794 = vmatpush.bf16.msra.mxu0 0
      %6795 = vmatpush.bf16.msra.mxu0 0
      %6796 = vmatpush.bf16.msra.mxu0 0
      %6797 = vmatpush.bf16.msra.mxu0 0
      %6798 = vmatpush.bf16.msra.mxu0 %v6682
      %6799 = vmatpush.bf16.msra.mxu0 %v6680
      %6800 = vmatpush.bf16.msra.mxu0 %v6678
      %6801 = vmatpush.bf16.msra.mxu0 %v6676
      %6802 = vmatmul.bf16.gmra.mxu0 %v6725
      %v6803 = vpop.f32.mrf.mxu0
      %v6804 = vadd.f32 %v6775, %v6803
      %v6805 = vpop.f32.mrf.mxu0
      %v6806 = vadd.f32 %v6777, %v6805
      %6807 = vmatmul.bf16.gmra.mxu0 %v6728
      %v6808 = vpop.f32.mrf.mxu0
      %v6809 = vadd.f32 %v6780, %v6808
      %v6810 = vpop.f32.mrf.mxu0
      %v6811 = vadd.f32 %v6782, %v6810
      %6812 = vmatmul.bf16.gmra.mxu0 %v6731
      %v6813 = vpop.f32.mrf.mxu0
      %v6814 = vadd.f32 %v6785, %v6813
      %v6815 = vpop.f32.mrf.mxu0
      %v6816 = vadd.f32 %v6787, %v6815
      %6817 = vmatmul.bf16.gmra.mxu0 %v6734
      %v6818 = vpop.f32.mrf.mxu0
      %v6819 = vadd.f32 %v6790, %v6818
      %v6820 = vpop.f32.mrf.mxu0
      %v6821 = vadd.f32 %v6792, %v6820
      %6822 = vdwg.mxu0
      %6823 = vmatpush.bf16.msra.mxu0 %v6659
      %6824 = vmatpush.bf16.msra.mxu0 %v6657
      %6825 = vmatpush.bf16.msra.mxu0 %v6655
      %6826 = vmatpush.bf16.msra.mxu0 %v6653
      %6827 = vmatpush.bf16.msra.mxu0 %v6651
      %6828 = vmatpush.bf16.msra.mxu0 %v6649
      %6829 = vmatpush.bf16.msra.mxu0 %v6647
      %6830 = vmatpush.bf16.msra.mxu0 %v6645
      %6831 = vmatmul.bf16.gmra.mxu0 %v6504
      %v6832 = vpop.f32.mrf.mxu0
      %v6833 = vadd.f32 0.0, %v6832
      %v6834 = vpop.f32.mrf.mxu0
      %v6835 = vadd.f32 0.0, %v6834
      %6836 = vmatmul.bf16.gmra.mxu0 %v6507
      %v6837 = vpop.f32.mrf.mxu0
      %v6838 = vadd.f32 0.0, %v6837
      %v6839 = vpop.f32.mrf.mxu0
      %v6840 = vadd.f32 0.0, %v6839
      %6841 = vmatmul.bf16.gmra.mxu0 %v6510
      %v6842 = vpop.f32.mrf.mxu0
      %v6843 = vadd.f32 0.0, %v6842
      %v6844 = vpop.f32.mrf.mxu0
      %v6845 = vadd.f32 0.0, %v6844
      %6846 = vmatmul.bf16.gmra.mxu0 %v6513
      %v6847 = vpop.f32.mrf.mxu0
      %v6848 = vadd.f32 0.0, %v6847
      %v6849 = vpop.f32.mrf.mxu0
      %v6850 = vadd.f32 0.0, %v6849
      %6851 = vdwg.mxu0
      %6852 = vmatpush.bf16.msra.mxu0 %v6675
      %6853 = vmatpush.bf16.msra.mxu0 %v6673
      %6854 = vmatpush.bf16.msra.mxu0 %v6671
      %6855 = vmatpush.bf16.msra.mxu0 %v6669
      %6856 = vmatpush.bf16.msra.mxu0 %v6667
      %6857 = vmatpush.bf16.msra.mxu0 %v6665
      %6858 = vmatpush.bf16.msra.mxu0 %v6663
      %6859 = vmatpush.bf16.msra.mxu0 %v6661
      %6860 = vmatmul.bf16.gmra.mxu0 %v6505
      %v6861 = vpop.f32.mrf.mxu0
      %v6862 = vadd.f32 %v6833, %v6861
      %v6863 = vpop.f32.mrf.mxu0
      %v6864 = vadd.f32 %v6835, %v6863
      %6865 = vmatmul.bf16.gmra.mxu0 %v6508
      %v6866 = vpop.f32.mrf.mxu0
      %v6867 = vadd.f32 %v6838, %v6866
      %v6868 = vpop.f32.mrf.mxu0
      %v6869 = vadd.f32 %v6840, %v6868
      %6870 = vmatmul.bf16.gmra.mxu0 %v6511
      %v6871 = vpop.f32.mrf.mxu0
      %v6872 = vadd.f32 %v6843, %v6871
      %v6873 = vpop.f32.mrf.mxu0
      %v6874 = vadd.f32 %v6845, %v6873
      %6875 = vmatmul.bf16.gmra.mxu0 %v6514
      %v6876 = vpop.f32.mrf.mxu0
      %v6877 = vadd.f32 %v6848, %v6876
      %v6878 = vpop.f32.mrf.mxu0
      %v6879 = vadd.f32 %v6850, %v6878
      %6880 = vdwg.mxu0
      %6881 = vmatpush.bf16.msra.mxu0 0
      %6882 = vmatpush.bf16.msra.mxu0 0
      %6883 = vmatpush.bf16.msra.mxu0 0
      %6884 = vmatpush.bf16.msra.mxu0 0
      %6885 = vmatpush.bf16.msra.mxu0 %v6683
      %6886 = vmatpush.bf16.msra.mxu0 %v6681
      %6887 = vmatpush.bf16.msra.mxu0 %v6679
      %6888 = vmatpush.bf16.msra.mxu0 %v6677
      %6889 = vmatmul.bf16.gmra.mxu0 %v6725
      %v6890 = vpop.f32.mrf.mxu0
      %v6891 = vadd.f32 %v6862, %v6890
      %v6892 = vpop.f32.mrf.mxu0
      %v6893 = vadd.f32 %v6864, %v6892
      %6894 = vmatmul.bf16.gmra.mxu0 %v6728
      %v6895 = vpop.f32.mrf.mxu0
      %v6896 = vadd.f32 %v6867, %v6895
      %v6897 = vpop.f32.mrf.mxu0
      %v6898 = vadd.f32 %v6869, %v6897
      %6899 = vmatmul.bf16.gmra.mxu0 %v6731
      %v6900 = vpop.f32.mrf.mxu0
      %v6901 = vadd.f32 %v6872, %v6900
      %v6902 = vpop.f32.mrf.mxu0
      %v6903 = vadd.f32 %v6874, %v6902
      %6904 = vmatmul.bf16.gmra.mxu0 %v6734
      %v6905 = vpop.f32.mrf.mxu0
      %v6906 = vadd.f32 %v6877, %v6905
      %v6907 = vpop.f32.mrf.mxu0
      %v6908 = vadd.f32 %v6879, %v6907
      %6909 = vdwg.mxu0
      %v6910 = vadd.f32 %v6157, %v6804
      %v6911 = vadd.f32 %v6244, %v6891
      %v6912 = vadd.f32 %v6159, %v6806
      %v6913 = vadd.f32 %v6246, %v6893
      %v6914 = vadd.f32 %v6162, %v6809
      %v6915 = vadd.f32 %v6249, %v6896
      %v6916 = vadd.f32 %v6164, %v6811
      %v6917 = vadd.f32 %v6251, %v6898
      %v6918 = vadd.f32 %v6167, %v6814
      %v6919 = vadd.f32 %v6254, %v6901
      %v6920 = vadd.f32 %v6169, %v6816
      %v6921 = vadd.f32 %v6256, %v6903
      %v6922 = vadd.f32 %v6172, %v6819
      %v6923 = vadd.f32 %v6259, %v6906
      %v6924 = vadd.f32 %v6174, %v6821
      %v6925 = vadd.f32 %v6261, %v6908
      %v6926 = vld [vmem:[%s4906] sm:$0xff]
      %v6927 = vld [vmem:[%s4906 + $0x8] sm:$0xff]
      %v6928 = vld [vmem:[%s4906 + $0x10] sm:$0xff]
      %v6929 = vld [vmem:[%s4906 + $0x30] sm:$0xff]
      %v6930 = vld [vmem:[%s4906 + $0x38] sm:$0xff]
      %v6931 = vld [vmem:[%s4906 + $0x40] sm:$0xff]
      %v6932 = vld [vmem:[%s4906 + $0x60] sm:$0xff]
      %v6933 = vld [vmem:[%s4906 + $0x68] sm:$0xff]
      %v6934 = vld [vmem:[%s4906 + $0x70] sm:$0xff]
      %v6935 = vld [vmem:[%s4906 + $0x90] sm:$0xff]
      %v6936 = vld [vmem:[%s4906 + $0x98] sm:$0xff]
      %v6937 = vld [vmem:[%s4906 + $0xa0] sm:$0xff]
      %v6938 = vld [vmem:[%s4906 + $0xc0] sm:$0xff]
      %v6939 = vld [vmem:[%s4906 + $0xc8] sm:$0xff]
      %v6940 = vld [vmem:[%s4906 + $0xd0] sm:$0xff]
      %v6941 = vld [vmem:[%s4906 + $0xf0] sm:$0xff]
      %v6942 = vld [vmem:[%s4906 + $0xf8] sm:$0xff]
      %v6943 = vld [vmem:[%s4906 + $0x100] sm:$0xff]
      %v6944 = vld [vmem:[%s4906 + $0x120] sm:$0xff]
      %v6945 = vld [vmem:[%s4906 + $0x128] sm:$0xff]
      %v6946 = vld [vmem:[%s4906 + $0x130] sm:$0xff]
      %v6947 = vld [vmem:[%s4906 + $0x150] sm:$0xff]
      %v6948 = vld [vmem:[%s4906 + $0x158] sm:$0xff]
      %v6949 = vld [vmem:[%s4906 + $0x160] sm:$0xff]
      %v6950 = vpack.c.bf16 %v6927, %v6926
      %v6951 = vpack.c.bf16 %v6928, %v6928
      %v6952 = vpack.c.bf16 %v6930, %v6929
      %v6953 = vpack.c.bf16 %v6931, %v6931
      %v6954 = vpack.c.bf16 %v6933, %v6932
      %v6955 = vpack.c.bf16 %v6934, %v6934
      %v6956 = vpack.c.bf16 %v6936, %v6935
      %v6957 = vpack.c.bf16 %v6937, %v6937
      %v6958 = vpack.c.bf16 %v6939, %v6938
      %v6959 = vpack.c.bf16 %v6940, %v6940
      %v6960 = vpack.c.bf16 %v6942, %v6941
      %v6961 = vpack.c.bf16 %v6943, %v6943
      %v6962 = vpack.c.bf16 %v6945, %v6944
      %v6963 = vpack.c.bf16 %v6946, %v6946
      %v6964 = vpack.c.bf16 %v6948, %v6947
      %v6965 = vpack.c.bf16 %v6949, %v6949
      %s6966 = scalar_lea.vmem %s5, 960
      %v6967 = vld [vmem:[%s6966] sm:$0xff]
      %v6968 = vld [vmem:[%s6966 + $0x8] sm:$0xff]
      %v6969 = vld [vmem:[%s6966 + $0x10] sm:$0xff]
      %v6970 = vld [vmem:[%s6966 + $0x18] sm:$0xff]
      %v6971 = vld [vmem:[%s6966 + $0x20] sm:$0xff]
      %v6972 = vld [vmem:[%s6966 + $0x28] sm:$0xff]
      %v6973 = vld [vmem:[%s6966 + $0x30] sm:$0xff]
      %v6974 = vld [vmem:[%s6966 + $0x38] sm:$0xff]
      %v6975 = vld [vmem:[%s6966 + $0x40] sm:$0xff]
      %v6976 = vld [vmem:[%s6966 + $0x48] sm:$0xff]
      %v6977 = vld [vmem:[%s6966 + $0x50] sm:$0xff]
      %v6978 = vld [vmem:[%s6966 + $0x58] sm:$0xff]
      %v6979 = vld [vmem:[%s6966 + $0x60] sm:$0xff]
      %v6980 = vld [vmem:[%s6966 + $0x68] sm:$0xff]
      %v6981 = vld [vmem:[%s6966 + $0x70] sm:$0xff]
      %v6982 = vld [vmem:[%s6966 + $0x78] sm:$0xff]
      %v6983 = vld [vmem:[%s6966 + $0x80] sm:$0xff]
      %v6984 = vld [vmem:[%s6966 + $0x88] sm:$0xff]
      %v6985 = vld [vmem:[%s6966 + $0x90] sm:$0xff]
      %v6986 = vld [vmem:[%s6966 + $0x98] sm:$0xff]
      %v6987 = vld [vmem:[%s6966 + $0xa0] sm:$0xff]
      %v6988 = vld [vmem:[%s6966 + $0xa8] sm:$0xff]
      %v6989 = vld [vmem:[%s6966 + $0xb0] sm:$0xff]
      %v6990 = vld [vmem:[%s6966 + $0xb8] sm:$0xff]
      %v6991 = vld [vmem:[%s6966 + $0xc0] sm:$0xff]
      %v6992 = vld [vmem:[%s6966 + $0xc8] sm:$0xff]
      %v6993 = vld [vmem:[%s6966 + $0xd0] sm:$0xff]
      %v6994 = vld [vmem:[%s6966 + $0xd8] sm:$0xff]
      %v6995 = vld [vmem:[%s6966 + $0xe0] sm:$0xff]
      %v6996 = vld [vmem:[%s6966 + $0xe8] sm:$0xff]
      %v6997 = vld [vmem:[%s6966 + $0xf0] sm:$0xff]
      %v6998 = vld [vmem:[%s6966 + $0xf8] sm:$0xff]
      %v6999 = vld [vmem:[%s6966 + $0x100] sm:$0xff]
      %v7000 = vld [vmem:[%s6966 + $0x108] sm:$0xff]
      %v7001 = vld [vmem:[%s6966 + $0x110] sm:$0xff]
      %v7002 = vld [vmem:[%s6966 + $0x118] sm:$0xff]
      %v7003 = vld [vmem:[%s6966 + $0x120] sm:$0xff]
      %v7004 = vld [vmem:[%s6966 + $0x128] sm:$0xff]
      %v7005 = vld [vmem:[%s6966 + $0x130] sm:$0xff]
      %v7006 = vld [vmem:[%s6966 + $0x138] sm:$0xff]
      %v7023 = vunpack.c.l.b16 %v6950
      %v7024 = vunpack.c.h.b16 %v6950
      %v7025 = vunpack.c.l.b16 %v6951
      %v7026 = vunpack.c.l.b16 %v6952
      %v7027 = vunpack.c.h.b16 %v6952
      %v7028 = vunpack.c.l.b16 %v6953
      %v7029 = vunpack.c.l.b16 %v6954
      %v7030 = vunpack.c.h.b16 %v6954
      %v7031 = vunpack.c.l.b16 %v6955
      %v7032 = vunpack.c.l.b16 %v6956
      %v7033 = vunpack.c.h.b16 %v6956
      %v7034 = vunpack.c.l.b16 %v6957
      %v7035 = vunpack.c.l.b16 %v6958
      %v7036 = vunpack.c.h.b16 %v6958
      %v7037 = vunpack.c.l.b16 %v6959
      %v7038 = vunpack.c.l.b16 %v6960
      %v7039 = vunpack.c.h.b16 %v6960
      %v7040 = vunpack.c.l.b16 %v6961
      %v7041 = vunpack.c.l.b16 %v6962
      %v7042 = vunpack.c.h.b16 %v6962
      %v7043 = vunpack.c.l.b16 %v6963
      %v7044 = vunpack.c.l.b16 %v6964
      %v7045 = vunpack.c.h.b16 %v6964
      %v7046 = vunpack.c.l.b16 %v6965
      %v7047 = vpack.c.b16 %v7026, %v7023
      %v7048 = vpack.c.b16 %v7027, %v7024
      %v7049 = vpack.c.b16 %v7028, %v7025
      %v7050 = vpack.c.b16 %v7032, %v7029
      %v7051 = vpack.c.b16 %v7033, %v7030
      %v7052 = vpack.c.b16 %v7034, %v7031
      %v7053 = vpack.c.b16 %v7038, %v7035
      %v7054 = vpack.c.b16 %v7039, %v7036
      %v7055 = vpack.c.b16 %v7040, %v7037
      %v7056 = vpack.c.b16 %v7044, %v7041
      %v7057 = vpack.c.b16 %v7045, %v7042
      %v7058 = vpack.c.b16 %v7046, %v7043
      %v7107 = vunpack.c.l.b16 %v6967
      %v7108 = vunpack.c.h.b16 %v6967
      %v7109 = vunpack.c.l.b16 %v6968
      %v7110 = vunpack.c.h.b16 %v6968
      %v7111 = vunpack.c.l.b16 %v6969
      %v7112 = vunpack.c.h.b16 %v6969
      %v7113 = vunpack.c.l.b16 %v6970
      %v7114 = vunpack.c.h.b16 %v6970
      %v7115 = vunpack.c.l.b16 %v6971
      %v7116 = vunpack.c.h.b16 %v6971
      %v7117 = vunpack.c.l.b16 %v6972
      %v7118 = vunpack.c.h.b16 %v6972
      %v7119 = vunpack.c.l.b16 %v6973
      %v7120 = vunpack.c.h.b16 %v6973
      %v7121 = vunpack.c.l.b16 %v6974
      %v7122 = vunpack.c.h.b16 %v6974
      %v7123 = vunpack.c.l.b16 %v6975
      %v7124 = vunpack.c.h.b16 %v6975
      %v7125 = vunpack.c.l.b16 %v6976
      %v7126 = vunpack.c.h.b16 %v6976
      %v7127 = vunpack.c.l.b16 %v6977
      %v7128 = vunpack.c.h.b16 %v6977
      %v7129 = vunpack.c.l.b16 %v6978
      %v7130 = vunpack.c.h.b16 %v6978
      %v7131 = vunpack.c.l.b16 %v6979
      %v7132 = vunpack.c.h.b16 %v6979
      %v7133 = vunpack.c.l.b16 %v6980
      %v7134 = vunpack.c.h.b16 %v6980
      %v7135 = vunpack.c.l.b16 %v6981
      %v7136 = vunpack.c.h.b16 %v6981
      %v7137 = vunpack.c.l.b16 %v6982
      %v7138 = vunpack.c.h.b16 %v6982
      %v7139 = vunpack.c.l.b16 %v6983
      %v7140 = vunpack.c.h.b16 %v6983
      %v7141 = vunpack.c.l.b16 %v6984
      %v7142 = vunpack.c.h.b16 %v6984
      %v7143 = vunpack.c.l.b16 %v6985
      %v7144 = vunpack.c.h.b16 %v6985
      %v7145 = vunpack.c.l.b16 %v6986
      %v7146 = vunpack.c.h.b16 %v6986
      %v7147 = vunpack.c.l.b16 %v6987
      %v7148 = vunpack.c.h.b16 %v6987
      %v7149 = vunpack.c.l.b16 %v6988
      %v7150 = vunpack.c.h.b16 %v6988
      %v7151 = vunpack.c.l.b16 %v6989
      %v7152 = vunpack.c.h.b16 %v6989
      %v7153 = vunpack.c.l.b16 %v6990
      %v7154 = vunpack.c.h.b16 %v6990
      %v7155 = vunpack.c.l.b16 %v6991
      %v7156 = vunpack.c.h.b16 %v6991
      %v7157 = vunpack.c.l.b16 %v6992
      %v7158 = vunpack.c.h.b16 %v6992
      %v7159 = vunpack.c.l.b16 %v6993
      %v7160 = vunpack.c.h.b16 %v6993
      %v7161 = vunpack.c.l.b16 %v6994
      %v7162 = vunpack.c.h.b16 %v6994
      %v7163 = vunpack.c.l.b16 %v6995
      %v7164 = vunpack.c.h.b16 %v6995
      %v7165 = vunpack.c.l.b16 %v6996
      %v7166 = vunpack.c.h.b16 %v6996
      %v7167 = vunpack.c.l.b16 %v6997
      %v7168 = vunpack.c.h.b16 %v6997
      %v7169 = vunpack.c.l.b16 %v6998
      %v7170 = vunpack.c.h.b16 %v6998
      %v7171 = vunpack.c.l.b16 %v6999
      %v7172 = vunpack.c.h.b16 %v6999
      %v7173 = vunpack.c.l.b16 %v7000
      %v7174 = vunpack.c.h.b16 %v7000
      %v7175 = vunpack.c.l.b16 %v7001
      %v7176 = vunpack.c.h.b16 %v7001
      %v7177 = vunpack.c.l.b16 %v7002
      %v7178 = vunpack.c.h.b16 %v7002
      %v7179 = vunpack.c.l.b16 %v7003
      %v7180 = vunpack.c.h.b16 %v7003
      %v7181 = vunpack.c.l.b16 %v7004
      %v7182 = vunpack.c.h.b16 %v7004
      %v7183 = vunpack.c.l.b16 %v7005
      %v7184 = vunpack.c.h.b16 %v7005
      %v7185 = vunpack.c.l.b16 %v7006
      %v7186 = vunpack.c.h.b16 %v7006
      %v7187 = vpack.c.b16 %v7109, %v7107
      %v7188 = vpack.c.b16 %v7110, %v7108
      %v7189 = vpack.c.b16 %v7113, %v7111
      %v7190 = vpack.c.b16 %v7114, %v7112
      %v7191 = vpack.c.b16 %v7117, %v7115
      %v7192 = vpack.c.b16 %v7118, %v7116
      %v7193 = vpack.c.b16 %v7121, %v7119
      %v7194 = vpack.c.b16 %v7122, %v7120
      %v7195 = vpack.c.b16 %v7125, %v7123
      %v7196 = vpack.c.b16 %v7126, %v7124
      %v7197 = vpack.c.b16 %v7129, %v7127
      %v7198 = vpack.c.b16 %v7130, %v7128
      %v7199 = vpack.c.b16 %v7133, %v7131
      %v7200 = vpack.c.b16 %v7134, %v7132
      %v7201 = vpack.c.b16 %v7137, %v7135
      %v7202 = vpack.c.b16 %v7138, %v7136
      %v7203 = vpack.c.b16 %v7141, %v7139
      %v7204 = vpack.c.b16 %v7142, %v7140
      %v7205 = vpack.c.b16 %v7145, %v7143
      %v7206 = vpack.c.b16 %v7146, %v7144
      %v7207 = vpack.c.b16 %v7149, %v7147
      %v7208 = vpack.c.b16 %v7150, %v7148
      %v7209 = vpack.c.b16 %v7153, %v7151
      %v7210 = vpack.c.b16 %v7154, %v7152
      %v7211 = vpack.c.b16 %v7157, %v7155
      %v7212 = vpack.c.b16 %v7158, %v7156
      %v7213 = vpack.c.b16 %v7161, %v7159
      %v7214 = vpack.c.b16 %v7162, %v7160
      %v7215 = vpack.c.b16 %v7165, %v7163
      %v7216 = vpack.c.b16 %v7166, %v7164
      %v7217 = vpack.c.b16 %v7169, %v7167
      %v7218 = vpack.c.b16 %v7170, %v7168
      %v7219 = vpack.c.b16 %v7173, %v7171
      %v7220 = vpack.c.b16 %v7174, %v7172
      %v7221 = vpack.c.b16 %v7177, %v7175
      %v7222 = vpack.c.b16 %v7178, %v7176
      %v7223 = vpack.c.b16 %v7181, %v7179
      %v7224 = vpack.c.b16 %v7182, %v7180
      %v7225 = vpack.c.b16 %v7185, %v7183
      %v7226 = vpack.c.b16 %v7186, %v7184
      %v7268 = vsel %vm486, %v7049, 0
      %v7271 = vsel %vm486, %v7052, 0
      %v7274 = vsel %vm486, %v7055, 0
      %v7277 = vsel %vm486, %v7058, 0
      %7279 = vmatpush.bf16.msra.mxu0 %v7201
      %7280 = vmatpush.bf16.msra.mxu0 %v7199
      %7281 = vmatpush.bf16.msra.mxu0 %v7197
      %7282 = vmatpush.bf16.msra.mxu0 %v7195
      %7283 = vmatpush.bf16.msra.mxu0 %v7193
      %7284 = vmatpush.bf16.msra.mxu0 %v7191
      %7285 = vmatpush.bf16.msra.mxu0 %v7189
      %7286 = vmatpush.bf16.msra.mxu0 %v7187
      %7287 = vmatmul.bf16.gmra.mxu0 %v7047
      %v7288 = vpop.f32.mrf.mxu0
      %v7289 = vadd.f32 0.0, %v7288
      %v7290 = vpop.f32.mrf.mxu0
      %v7291 = vadd.f32 0.0, %v7290
      %7292 = vmatmul.bf16.gmra.mxu0 %v7050
      %v7293 = vpop.f32.mrf.mxu0
      %v7294 = vadd.f32 0.0, %v7293
      %v7295 = vpop.f32.mrf.mxu0
      %v7296 = vadd.f32 0.0, %v7295
      %7297 = vmatmul.bf16.gmra.mxu0 %v7053
      %v7298 = vpop.f32.mrf.mxu0
      %v7299 = vadd.f32 0.0, %v7298
      %v7300 = vpop.f32.mrf.mxu0
      %v7301 = vadd.f32 0.0, %v7300
      %7302 = vmatmul.bf16.gmra.mxu0 %v7056
      %v7303 = vpop.f32.mrf.mxu0
      %v7304 = vadd.f32 0.0, %v7303
      %v7305 = vpop.f32.mrf.mxu0
      %v7306 = vadd.f32 0.0, %v7305
      %7307 = vdwg.mxu0
      %7308 = vmatpush.bf16.msra.mxu0 %v7217
      %7309 = vmatpush.bf16.msra.mxu0 %v7215
      %7310 = vmatpush.bf16.msra.mxu0 %v7213
      %7311 = vmatpush.bf16.msra.mxu0 %v7211
      %7312 = vmatpush.bf16.msra.mxu0 %v7209
      %7313 = vmatpush.bf16.msra.mxu0 %v7207
      %7314 = vmatpush.bf16.msra.mxu0 %v7205
      %7315 = vmatpush.bf16.msra.mxu0 %v7203
      %7316 = vmatmul.bf16.gmra.mxu0 %v7048
      %v7317 = vpop.f32.mrf.mxu0
      %v7318 = vadd.f32 %v7289, %v7317
      %v7319 = vpop.f32.mrf.mxu0
      %v7320 = vadd.f32 %v7291, %v7319
      %7321 = vmatmul.bf16.gmra.mxu0 %v7051
      %v7322 = vpop.f32.mrf.mxu0
      %v7323 = vadd.f32 %v7294, %v7322
      %v7324 = vpop.f32.mrf.mxu0
      %v7325 = vadd.f32 %v7296, %v7324
      %7326 = vmatmul.bf16.gmra.mxu0 %v7054
      %v7327 = vpop.f32.mrf.mxu0
      %v7328 = vadd.f32 %v7299, %v7327
      %v7329 = vpop.f32.mrf.mxu0
      %v7330 = vadd.f32 %v7301, %v7329
      %7331 = vmatmul.bf16.gmra.mxu0 %v7057
      %v7332 = vpop.f32.mrf.mxu0
      %v7333 = vadd.f32 %v7304, %v7332
      %v7334 = vpop.f32.mrf.mxu0
      %v7335 = vadd.f32 %v7306, %v7334
      %7336 = vdwg.mxu0
      %7337 = vmatpush.bf16.msra.mxu0 0
      %7338 = vmatpush.bf16.msra.mxu0 0
      %7339 = vmatpush.bf16.msra.mxu0 0
      %7340 = vmatpush.bf16.msra.mxu0 0
      %7341 = vmatpush.bf16.msra.mxu0 %v7225
      %7342 = vmatpush.bf16.msra.mxu0 %v7223
      %7343 = vmatpush.bf16.msra.mxu0 %v7221
      %7344 = vmatpush.bf16.msra.mxu0 %v7219
      %7345 = vmatmul.bf16.gmra.mxu0 %v7268
      %v7346 = vpop.f32.mrf.mxu0
      %v7347 = vadd.f32 %v7318, %v7346
      %v7348 = vpop.f32.mrf.mxu0
      %v7349 = vadd.f32 %v7320, %v7348
      %7350 = vmatmul.bf16.gmra.mxu0 %v7271
      %v7351 = vpop.f32.mrf.mxu0
      %v7352 = vadd.f32 %v7323, %v7351
      %v7353 = vpop.f32.mrf.mxu0
      %v7354 = vadd.f32 %v7325, %v7353
      %7355 = vmatmul.bf16.gmra.mxu0 %v7274
      %v7356 = vpop.f32.mrf.mxu0
      %v7357 = vadd.f32 %v7328, %v7356
      %v7358 = vpop.f32.mrf.mxu0
      %v7359 = vadd.f32 %v7330, %v7358
      %7360 = vmatmul.bf16.gmra.mxu0 %v7277
      %v7361 = vpop.f32.mrf.mxu0
      %v7362 = vadd.f32 %v7333, %v7361
      %v7363 = vpop.f32.mrf.mxu0
      %v7364 = vadd.f32 %v7335, %v7363
      %7365 = vdwg.mxu0
      %7366 = vmatpush.bf16.msra.mxu0 %v7202
      %7367 = vmatpush.bf16.msra.mxu0 %v7200
      %7368 = vmatpush.bf16.msra.mxu0 %v7198
      %7369 = vmatpush.bf16.msra.mxu0 %v7196
      %7370 = vmatpush.bf16.msra.mxu0 %v7194
      %7371 = vmatpush.bf16.msra.mxu0 %v7192
      %7372 = vmatpush.bf16.msra.mxu0 %v7190
      %7373 = vmatpush.bf16.msra.mxu0 %v7188
      %7374 = vmatmul.bf16.gmra.mxu0 %v7047
      %v7375 = vpop.f32.mrf.mxu0
      %v7376 = vadd.f32 0.0, %v7375
      %v7377 = vpop.f32.mrf.mxu0
      %v7378 = vadd.f32 0.0, %v7377
      %7379 = vmatmul.bf16.gmra.mxu0 %v7050
      %v7380 = vpop.f32.mrf.mxu0
      %v7381 = vadd.f32 0.0, %v7380
      %v7382 = vpop.f32.mrf.mxu0
      %v7383 = vadd.f32 0.0, %v7382
      %7384 = vmatmul.bf16.gmra.mxu0 %v7053
      %v7385 = vpop.f32.mrf.mxu0
      %v7386 = vadd.f32 0.0, %v7385
      %v7387 = vpop.f32.mrf.mxu0
      %v7388 = vadd.f32 0.0, %v7387
      %7389 = vmatmul.bf16.gmra.mxu0 %v7056
      %v7390 = vpop.f32.mrf.mxu0
      %v7391 = vadd.f32 0.0, %v7390
      %v7392 = vpop.f32.mrf.mxu0
      %v7393 = vadd.f32 0.0, %v7392
      %7394 = vdwg.mxu0
      %7395 = vmatpush.bf16.msra.mxu0 %v7218
      %7396 = vmatpush.bf16.msra.mxu0 %v7216
      %7397 = vmatpush.bf16.msra.mxu0 %v7214
      %7398 = vmatpush.bf16.msra.mxu0 %v7212
      %7399 = vmatpush.bf16.msra.mxu0 %v7210
      %7400 = vmatpush.bf16.msra.mxu0 %v7208
      %7401 = vmatpush.bf16.msra.mxu0 %v7206
      %7402 = vmatpush.bf16.msra.mxu0 %v7204
      %7403 = vmatmul.bf16.gmra.mxu0 %v7048
      %v7404 = vpop.f32.mrf.mxu0
      %v7405 = vadd.f32 %v7376, %v7404
      %v7406 = vpop.f32.mrf.mxu0
      %v7407 = vadd.f32 %v7378, %v7406
      %7408 = vmatmul.bf16.gmra.mxu0 %v7051
      %v7409 = vpop.f32.mrf.mxu0
      %v7410 = vadd.f32 %v7381, %v7409
      %v7411 = vpop.f32.mrf.mxu0
      %v7412 = vadd.f32 %v7383, %v7411
      %7413 = vmatmul.bf16.gmra.mxu0 %v7054
      %v7414 = vpop.f32.mrf.mxu0
      %v7415 = vadd.f32 %v7386, %v7414
      %v7416 = vpop.f32.mrf.mxu0
      %v7417 = vadd.f32 %v7388, %v7416
      %7418 = vmatmul.bf16.gmra.mxu0 %v7057
      %v7419 = vpop.f32.mrf.mxu0
      %v7420 = vadd.f32 %v7391, %v7419
      %v7421 = vpop.f32.mrf.mxu0
      %v7422 = vadd.f32 %v7393, %v7421
      %7423 = vdwg.mxu0
      %7424 = vmatpush.bf16.msra.mxu0 0
      %7425 = vmatpush.bf16.msra.mxu0 0
      %7426 = vmatpush.bf16.msra.mxu0 0
      %7427 = vmatpush.bf16.msra.mxu0 0
      %7428 = vmatpush.bf16.msra.mxu0 %v7226
      %7429 = vmatpush.bf16.msra.mxu0 %v7224
      %7430 = vmatpush.bf16.msra.mxu0 %v7222
      %7431 = vmatpush.bf16.msra.mxu0 %v7220
      %7432 = vmatmul.bf16.gmra.mxu0 %v7268
      %v7433 = vpop.f32.mrf.mxu0
      %v7434 = vadd.f32 %v7405, %v7433
      %v7435 = vpop.f32.mrf.mxu0
      %v7436 = vadd.f32 %v7407, %v7435
      %7437 = vmatmul.bf16.gmra.mxu0 %v7271
      %v7438 = vpop.f32.mrf.mxu0
      %v7439 = vadd.f32 %v7410, %v7438
      %v7440 = vpop.f32.mrf.mxu0
      %v7441 = vadd.f32 %v7412, %v7440
      %7442 = vmatmul.bf16.gmra.mxu0 %v7274
      %v7443 = vpop.f32.mrf.mxu0
      %v7444 = vadd.f32 %v7415, %v7443
      %v7445 = vpop.f32.mrf.mxu0
      %v7446 = vadd.f32 %v7417, %v7445
      %7447 = vmatmul.bf16.gmra.mxu0 %v7277
      %v7448 = vpop.f32.mrf.mxu0
      %v7449 = vadd.f32 %v7420, %v7448
      %v7450 = vpop.f32.mrf.mxu0
      %v7451 = vadd.f32 %v7422, %v7450
      %7452 = vdwg.mxu0
      %v7453 = vadd.f32 %v6910, %v7347
      %v7454 = vadd.f32 %v6911, %v7434
      %v7455 = vadd.f32 %v6912, %v7349
      %v7456 = vadd.f32 %v6913, %v7436
      %v7457 = vadd.f32 %v6914, %v7352
      %v7458 = vadd.f32 %v6915, %v7439
      %v7459 = vadd.f32 %v6916, %v7354
      %v7460 = vadd.f32 %v6917, %v7441
      %v7461 = vadd.f32 %v6918, %v7357
      %v7462 = vadd.f32 %v6919, %v7444
      %v7463 = vadd.f32 %v6920, %v7359
      %v7464 = vadd.f32 %v6921, %v7446
      %v7465 = vadd.f32 %v6922, %v7362
      %v7466 = vadd.f32 %v6923, %v7449
      %v7467 = vadd.f32 %v6924, %v7364
      %v7468 = vadd.f32 %v6925, %v7451
      %v7469 = vld [vmem:[%s4906] sm:$0xfe]
      %v7470 = vld [vmem:[%s4906 + $0x8] sm:$0xfe]
      %v7471 = vld [vmem:[%s4906 + $0x10] sm:$0xfe]
      %v7472 = vld [vmem:[%s4906 + $0x18] sm:$0x1]
      %v7473 = vld [vmem:[%s4906 + $0x20] sm:$0x1]
      %v7474 = vld [vmem:[%s4906 + $0x28] sm:$0x1]
      %v7475 = vld [vmem:[%s4906 + $0x30] sm:$0xfe]
      %v7476 = vld [vmem:[%s4906 + $0x38] sm:$0xfe]
      %v7477 = vld [vmem:[%s4906 + $0x40] sm:$0xfe]
      %v7478 = vld [vmem:[%s4906 + $0x48] sm:$0x1]
      %v7479 = vld [vmem:[%s4906 + $0x50] sm:$0x1]
      %v7480 = vld [vmem:[%s4906 + $0x58] sm:$0x1]
      %v7481 = vld [vmem:[%s4906 + $0x60] sm:$0xfe]
      %v7482 = vld [vmem:[%s4906 + $0x68] sm:$0xfe]
      %v7483 = vld [vmem:[%s4906 + $0x70] sm:$0xfe]
      %v7484 = vld [vmem:[%s4906 + $0x78] sm:$0x1]
      %v7485 = vld [vmem:[%s4906 + $0x80] sm:$0x1]
      %v7486 = vld [vmem:[%s4906 + $0x88] sm:$0x1]
      %v7487 = vld [vmem:[%s4906 + $0x90] sm:$0xfe]
      %v7488 = vld [vmem:[%s4906 + $0x98] sm:$0xfe]
      %v7489 = vld [vmem:[%s4906 + $0xa0] sm:$0xfe]
      %v7490 = vld [vmem:[%s4906 + $0xa8] sm:$0x1]
      %v7491 = vld [vmem:[%s4906 + $0xb0] sm:$0x1]
      %v7492 = vld [vmem:[%s4906 + $0xb8] sm:$0x1]
      %v7493 = vld [vmem:[%s4906 + $0xc0] sm:$0xfe]
      %v7494 = vld [vmem:[%s4906 + $0xc8] sm:$0xfe]
      %v7495 = vld [vmem:[%s4906 + $0xd0] sm:$0xfe]
      %v7496 = vld [vmem:[%s4906 + $0xd8] sm:$0x1]
      %v7497 = vld [vmem:[%s4906 + $0xe0] sm:$0x1]
      %v7498 = vld [vmem:[%s4906 + $0xe8] sm:$0x1]
      %v7499 = vld [vmem:[%s4906 + $0xf0] sm:$0xfe]
      %v7500 = vld [vmem:[%s4906 + $0xf8] sm:$0xfe]
      %v7501 = vld [vmem:[%s4906 + $0x100] sm:$0xfe]
      %v7502 = vld [vmem:[%s4906 + $0x108] sm:$0x1]
      %v7503 = vld [vmem:[%s4906 + $0x110] sm:$0x1]
      %v7504 = vld [vmem:[%s4906 + $0x118] sm:$0x1]
      %v7505 = vld [vmem:[%s4906 + $0x120] sm:$0xfe]
      %v7506 = vld [vmem:[%s4906 + $0x128] sm:$0xfe]
      %v7507 = vld [vmem:[%s4906 + $0x130] sm:$0xfe]
      %v7508 = vld [vmem:[%s4906 + $0x138] sm:$0x1]
      %v7509 = vld [vmem:[%s4906 + $0x140] sm:$0x1]
      %v7510 = vld [vmem:[%s4906 + $0x148] sm:$0x1]
      %v7511 = vld [vmem:[%s4906 + $0x150] sm:$0xfe]
      %v7512 = vld [vmem:[%s4906 + $0x158] sm:$0xfe]
      %v7513 = vld [vmem:[%s4906 + $0x160] sm:$0xfe]
      %v7514 = vld [vmem:[%s4906 + $0x168] sm:$0x1]
      %v7515 = vld [vmem:[%s4906 + $0x170] sm:$0x1]
      %v7516 = vld [vmem:[%s4906 + $0x178] sm:$0x1]
      %v7517 = vpack.c.bf16 %v7470, %v7469
      %v7518 = vpack.c.bf16 %v7471, %v7471
      %v7519 = vpack.c.bf16 %v7473, %v7472
      %v7520 = vpack.c.bf16 %v7474, %v7474
      %v7521 = vpack.c.bf16 %v7476, %v7475
      %v7522 = vpack.c.bf16 %v7477, %v7477
      %v7523 = vpack.c.bf16 %v7479, %v7478
      %v7524 = vpack.c.bf16 %v7480, %v7480
      %v7525 = vpack.c.bf16 %v7482, %v7481
      %v7526 = vpack.c.bf16 %v7483, %v7483
      %v7527 = vpack.c.bf16 %v7485, %v7484
      %v7528 = vpack.c.bf16 %v7486, %v7486
      %v7529 = vpack.c.bf16 %v7488, %v7487
      %v7530 = vpack.c.bf16 %v7489, %v7489
      %v7531 = vpack.c.bf16 %v7491, %v7490
      %v7532 = vpack.c.bf16 %v7492, %v7492
      %v7533 = vpack.c.bf16 %v7494, %v7493
      %v7534 = vpack.c.bf16 %v7495, %v7495
      %v7535 = vpack.c.bf16 %v7497, %v7496
      %v7536 = vpack.c.bf16 %v7498, %v7498
      %v7537 = vpack.c.bf16 %v7500, %v7499
      %v7538 = vpack.c.bf16 %v7501, %v7501
      %v7539 = vpack.c.bf16 %v7503, %v7502
      %v7540 = vpack.c.bf16 %v7504, %v7504
      %v7541 = vpack.c.bf16 %v7506, %v7505
      %v7542 = vpack.c.bf16 %v7507, %v7507
      %v7543 = vpack.c.bf16 %v7509, %v7508
      %v7544 = vpack.c.bf16 %v7510, %v7510
      %v7545 = vpack.c.bf16 %v7512, %v7511
      %v7546 = vpack.c.bf16 %v7513, %v7513
      %v7547 = vpack.c.bf16 %v7515, %v7514
      %v7548 = vpack.c.bf16 %v7516, %v7516
      %v7550 = vshrl.u32 %v7517, 16
      %v7552 = vrot.slane %v7550, 4
      %v7553 = vshll.u32 %v7517, 16
      %v7555 = vrot.slane %v7553, 5
      %v7556 = vor.u32 %v7552, %v7555
      %v7557 = vrot.slane %v7556, 4
      %v7559 = vshll.u32 %v7519, 16
      %v7561 = vrot.slane %v7559, 5
      %v7562 = vsel %vm762, %v7557, %v7561
      %v7564 = vshrl.u32 %v7518, 16
      %v7566 = vrot.slane %v7564, 4
      %v7567 = vshll.u32 %v7518, 16
      %v7569 = vrot.slane %v7567, 5
      %v7570 = vor.u32 %v7566, %v7569
      %v7571 = vrot.slane %v7570, 4
      %v7573 = vshll.u32 %v7520, 16
      %v7575 = vrot.slane %v7573, 5
      %v7576 = vsel %vm762, %v7571, %v7575
      %v7578 = vshrl.u32 %v7521, 16
      %v7580 = vrot.slane %v7578, 4
      %v7581 = vshll.u32 %v7521, 16
      %v7583 = vrot.slane %v7581, 5
      %v7584 = vor.u32 %v7580, %v7583
      %v7585 = vrot.slane %v7584, 4
      %v7587 = vshll.u32 %v7523, 16
      %v7589 = vrot.slane %v7587, 5
      %v7590 = vsel %vm762, %v7585, %v7589
      %v7592 = vshrl.u32 %v7522, 16
      %v7594 = vrot.slane %v7592, 4
      %v7595 = vshll.u32 %v7522, 16
      %v7597 = vrot.slane %v7595, 5
      %v7598 = vor.u32 %v7594, %v7597
      %v7599 = vrot.slane %v7598, 4
      %v7601 = vshll.u32 %v7524, 16
      %v7603 = vrot.slane %v7601, 5
      %v7604 = vsel %vm762, %v7599, %v7603
      %v7606 = vshrl.u32 %v7525, 16
      %v7608 = vrot.slane %v7606, 4
      %v7609 = vshll.u32 %v7525, 16
      %v7611 = vrot.slane %v7609, 5
      %v7612 = vor.u32 %v7608, %v7611
      %v7613 = vrot.slane %v7612, 4
      %v7615 = vshll.u32 %v7527, 16
      %v7617 = vrot.slane %v7615, 5
      %v7618 = vsel %vm762, %v7613, %v7617
      %v7620 = vshrl.u32 %v7526, 16
      %v7622 = vrot.slane %v7620, 4
      %v7623 = vshll.u32 %v7526, 16
      %v7625 = vrot.slane %v7623, 5
      %v7626 = vor.u32 %v7622, %v7625
      %v7627 = vrot.slane %v7626, 4
      %v7629 = vshll.u32 %v7528, 16
      %v7631 = vrot.slane %v7629, 5
      %v7632 = vsel %vm762, %v7627, %v7631
      %v7634 = vshrl.u32 %v7529, 16
      %v7636 = vrot.slane %v7634, 4
      %v7637 = vshll.u32 %v7529, 16
      %v7639 = vrot.slane %v7637, 5
      %v7640 = vor.u32 %v7636, %v7639
      %v7641 = vrot.slane %v7640, 4
      %v7643 = vshll.u32 %v7531, 16
      %v7645 = vrot.slane %v7643, 5
      %v7646 = vsel %vm762, %v7641, %v7645
      %v7648 = vshrl.u32 %v7530, 16
      %v7650 = vrot.slane %v7648, 4
      %v7651 = vshll.u32 %v7530, 16
      %v7653 = vrot.slane %v7651, 5
      %v7654 = vor.u32 %v7650, %v7653
      %v7655 = vrot.slane %v7654, 4
      %v7657 = vshll.u32 %v7532, 16
      %v7659 = vrot.slane %v7657, 5
      %v7660 = vsel %vm762, %v7655, %v7659
      %v7662 = vshrl.u32 %v7533, 16
      %v7664 = vrot.slane %v7662, 4
      %v7665 = vshll.u32 %v7533, 16
      %v7667 = vrot.slane %v7665, 5
      %v7668 = vor.u32 %v7664, %v7667
      %v7669 = vrot.slane %v7668, 4
      %v7671 = vshll.u32 %v7535, 16
      %v7673 = vrot.slane %v7671, 5
      %v7674 = vsel %vm762, %v7669, %v7673
      %v7676 = vshrl.u32 %v7534, 16
      %v7678 = vrot.slane %v7676, 4
      %v7679 = vshll.u32 %v7534, 16
      %v7681 = vrot.slane %v7679, 5
      %v7682 = vor.u32 %v7678, %v7681
      %v7683 = vrot.slane %v7682, 4
      %v7685 = vshll.u32 %v7536, 16
      %v7687 = vrot.slane %v7685, 5
      %v7688 = vsel %vm762, %v7683, %v7687
      %v7690 = vshrl.u32 %v7537, 16
      %v7692 = vrot.slane %v7690, 4
      %v7693 = vshll.u32 %v7537, 16
      %v7695 = vrot.slane %v7693, 5
      %v7696 = vor.u32 %v7692, %v7695
      %v7697 = vrot.slane %v7696, 4
      %v7699 = vshll.u32 %v7539, 16
      %v7701 = vrot.slane %v7699, 5
      %v7702 = vsel %vm762, %v7697, %v7701
      %v7704 = vshrl.u32 %v7538, 16
      %v7706 = vrot.slane %v7704, 4
      %v7707 = vshll.u32 %v7538, 16
      %v7709 = vrot.slane %v7707, 5
      %v7710 = vor.u32 %v7706, %v7709
      %v7711 = vrot.slane %v7710, 4
      %v7713 = vshll.u32 %v7540, 16
      %v7715 = vrot.slane %v7713, 5
      %v7716 = vsel %vm762, %v7711, %v7715
      %v7718 = vshrl.u32 %v7541, 16
      %v7720 = vrot.slane %v7718, 4
      %v7721 = vshll.u32 %v7541, 16
      %v7723 = vrot.slane %v7721, 5
      %v7724 = vor.u32 %v7720, %v7723
      %v7725 = vrot.slane %v7724, 4
      %v7727 = vshll.u32 %v7543, 16
      %v7729 = vrot.slane %v7727, 5
      %v7730 = vsel %vm762, %v7725, %v7729
      %v7732 = vshrl.u32 %v7542, 16
      %v7734 = vrot.slane %v7732, 4
      %v7735 = vshll.u32 %v7542, 16
      %v7737 = vrot.slane %v7735, 5
      %v7738 = vor.u32 %v7734, %v7737
      %v7739 = vrot.slane %v7738, 4
      %v7741 = vshll.u32 %v7544, 16
      %v7743 = vrot.slane %v7741, 5
      %v7744 = vsel %vm762, %v7739, %v7743
      %v7746 = vshrl.u32 %v7545, 16
      %v7748 = vrot.slane %v7746, 4
      %v7749 = vshll.u32 %v7545, 16
      %v7751 = vrot.slane %v7749, 5
      %v7752 = vor.u32 %v7748, %v7751
      %v7753 = vrot.slane %v7752, 4
      %v7755 = vshll.u32 %v7547, 16
      %v7757 = vrot.slane %v7755, 5
      %v7758 = vsel %vm762, %v7753, %v7757
      %v7760 = vshrl.u32 %v7546, 16
      %v7762 = vrot.slane %v7760, 4
      %v7763 = vshll.u32 %v7546, 16
      %v7765 = vrot.slane %v7763, 5
      %v7766 = vor.u32 %v7762, %v7765
      %v7767 = vrot.slane %v7766, 4
      %v7769 = vshll.u32 %v7548, 16
      %v7771 = vrot.slane %v7769, 5
      %v7772 = vsel %vm762, %v7767, %v7771
      %s7773 = scalar_lea.vmem %s5, 1280
      %v7774 = vld [vmem:[%s7773] sm:$0xff]
      %v7775 = vld [vmem:[%s7773 + $0x8] sm:$0xff]
      %v7776 = vld [vmem:[%s7773 + $0x10] sm:$0xff]
      %v7777 = vld [vmem:[%s7773 + $0x18] sm:$0xff]
      %v7778 = vld [vmem:[%s7773 + $0x20] sm:$0xff]
      %v7779 = vld [vmem:[%s7773 + $0x28] sm:$0xff]
      %v7780 = vld [vmem:[%s7773 + $0x30] sm:$0xff]
      %v7781 = vld [vmem:[%s7773 + $0x38] sm:$0xff]
      %v7782 = vld [vmem:[%s7773 + $0x40] sm:$0xff]
      %v7783 = vld [vmem:[%s7773 + $0x48] sm:$0xff]
      %v7784 = vld [vmem:[%s7773 + $0x50] sm:$0xff]
      %v7785 = vld [vmem:[%s7773 + $0x58] sm:$0xff]
      %v7786 = vld [vmem:[%s7773 + $0x60] sm:$0xff]
      %v7787 = vld [vmem:[%s7773 + $0x68] sm:$0xff]
      %v7788 = vld [vmem:[%s7773 + $0x70] sm:$0xff]
      %v7789 = vld [vmem:[%s7773 + $0x78] sm:$0xff]
      %v7790 = vld [vmem:[%s7773 + $0x80] sm:$0xff]
      %v7791 = vld [vmem:[%s7773 + $0x88] sm:$0xff]
      %v7792 = vld [vmem:[%s7773 + $0x90] sm:$0xff]
      %v7793 = vld [vmem:[%s7773 + $0x98] sm:$0xff]
      %v7794 = vld [vmem:[%s7773 + $0xa0] sm:$0xff]
      %v7795 = vld [vmem:[%s7773 + $0xa8] sm:$0xff]
      %v7796 = vld [vmem:[%s7773 + $0xb0] sm:$0xff]
      %v7797 = vld [vmem:[%s7773 + $0xb8] sm:$0xff]
      %v7798 = vld [vmem:[%s7773 + $0xc0] sm:$0xff]
      %v7799 = vld [vmem:[%s7773 + $0xc8] sm:$0xff]
      %v7800 = vld [vmem:[%s7773 + $0xd0] sm:$0xff]
      %v7801 = vld [vmem:[%s7773 + $0xd8] sm:$0xff]
      %v7802 = vld [vmem:[%s7773 + $0xe0] sm:$0xff]
      %v7803 = vld [vmem:[%s7773 + $0xe8] sm:$0xff]
      %v7804 = vld [vmem:[%s7773 + $0xf0] sm:$0xff]
      %v7805 = vld [vmem:[%s7773 + $0xf8] sm:$0xff]
      %v7806 = vld [vmem:[%s7773 + $0x100] sm:$0xff]
      %v7807 = vld [vmem:[%s7773 + $0x108] sm:$0xff]
      %v7808 = vld [vmem:[%s7773 + $0x110] sm:$0xff]
      %v7809 = vld [vmem:[%s7773 + $0x118] sm:$0xff]
      %v7810 = vld [vmem:[%s7773 + $0x120] sm:$0xff]
      %v7811 = vld [vmem:[%s7773 + $0x128] sm:$0xff]
      %v7812 = vld [vmem:[%s7773 + $0x130] sm:$0xff]
      %v7813 = vld [vmem:[%s7773 + $0x138] sm:$0xff]
      %v7814 = vunpack.c.l.b16 %v7562
      %v7815 = vunpack.c.h.b16 %v7562
      %v7816 = vunpack.c.l.b16 %v7576
      %v7817 = vunpack.c.l.b16 %v7590
      %v7818 = vunpack.c.h.b16 %v7590
      %v7819 = vunpack.c.l.b16 %v7604
      %v7820 = vunpack.c.l.b16 %v7618
      %v7821 = vunpack.c.h.b16 %v7618
      %v7822 = vunpack.c.l.b16 %v7632
      %v7823 = vunpack.c.l.b16 %v7646
      %v7824 = vunpack.c.h.b16 %v7646
      %v7825 = vunpack.c.l.b16 %v7660
      %v7826 = vunpack.c.l.b16 %v7674
      %v7827 = vunpack.c.h.b16 %v7674
      %v7828 = vunpack.c.l.b16 %v7688
      %v7829 = vunpack.c.l.b16 %v7702
      %v7830 = vunpack.c.h.b16 %v7702
      %v7831 = vunpack.c.l.b16 %v7716
      %v7832 = vunpack.c.l.b16 %v7730
      %v7833 = vunpack.c.h.b16 %v7730
      %v7834 = vunpack.c.l.b16 %v7744
      %v7835 = vunpack.c.l.b16 %v7758
      %v7836 = vunpack.c.h.b16 %v7758
      %v7837 = vunpack.c.l.b16 %v7772
      %v7838 = vpack.c.b16 %v7817, %v7814
      %v7839 = vpack.c.b16 %v7818, %v7815
      %v7840 = vpack.c.b16 %v7819, %v7816
      %v7841 = vpack.c.b16 %v7823, %v7820
      %v7842 = vpack.c.b16 %v7824, %v7821
      %v7843 = vpack.c.b16 %v7825, %v7822
      %v7844 = vpack.c.b16 %v7829, %v7826
      %v7845 = vpack.c.b16 %v7830, %v7827
      %v7846 = vpack.c.b16 %v7831, %v7828
      %v7847 = vpack.c.b16 %v7835, %v7832
      %v7848 = vpack.c.b16 %v7836, %v7833
      %v7849 = vpack.c.b16 %v7837, %v7834
      %v7898 = vunpack.c.l.b16 %v7774
      %v7899 = vunpack.c.h.b16 %v7774
      %v7900 = vunpack.c.l.b16 %v7775
      %v7901 = vunpack.c.h.b16 %v7775
      %v7902 = vunpack.c.l.b16 %v7776
      %v7903 = vunpack.c.h.b16 %v7776
      %v7904 = vunpack.c.l.b16 %v7777
      %v7905 = vunpack.c.h.b16 %v7777
      %v7906 = vunpack.c.l.b16 %v7778
      %v7907 = vunpack.c.h.b16 %v7778
      %v7908 = vunpack.c.l.b16 %v7779
      %v7909 = vunpack.c.h.b16 %v7779
      %v7910 = vunpack.c.l.b16 %v7780
      %v7911 = vunpack.c.h.b16 %v7780
      %v7912 = vunpack.c.l.b16 %v7781
      %v7913 = vunpack.c.h.b16 %v7781
      %v7914 = vunpack.c.l.b16 %v7782
      %v7915 = vunpack.c.h.b16 %v7782
      %v7916 = vunpack.c.l.b16 %v7783
      %v7917 = vunpack.c.h.b16 %v7783
      %v7918 = vunpack.c.l.b16 %v7784
      %v7919 = vunpack.c.h.b16 %v7784
      %v7920 = vunpack.c.l.b16 %v7785
      %v7921 = vunpack.c.h.b16 %v7785
      %v7922 = vunpack.c.l.b16 %v7786
      %v7923 = vunpack.c.h.b16 %v7786
      %v7924 = vunpack.c.l.b16 %v7787
      %v7925 = vunpack.c.h.b16 %v7787
      %v7926 = vunpack.c.l.b16 %v7788
      %v7927 = vunpack.c.h.b16 %v7788
      %v7928 = vunpack.c.l.b16 %v7789
      %v7929 = vunpack.c.h.b16 %v7789
      %v7930 = vunpack.c.l.b16 %v7790
      %v7931 = vunpack.c.h.b16 %v7790
      %v7932 = vunpack.c.l.b16 %v7791
      %v7933 = vunpack.c.h.b16 %v7791
      %v7934 = vunpack.c.l.b16 %v7792
      %v7935 = vunpack.c.h.b16 %v7792
      %v7936 = vunpack.c.l.b16 %v7793
      %v7937 = vunpack.c.h.b16 %v7793
      %v7938 = vunpack.c.l.b16 %v7794
      %v7939 = vunpack.c.h.b16 %v7794
      %v7940 = vunpack.c.l.b16 %v7795
      %v7941 = vunpack.c.h.b16 %v7795
      %v7942 = vunpack.c.l.b16 %v7796
      %v7943 = vunpack.c.h.b16 %v7796
      %v7944 = vunpack.c.l.b16 %v7797
      %v7945 = vunpack.c.h.b16 %v7797
      %v7946 = vunpack.c.l.b16 %v7798
      %v7947 = vunpack.c.h.b16 %v7798
      %v7948 = vunpack.c.l.b16 %v7799
      %v7949 = vunpack.c.h.b16 %v7799
      %v7950 = vunpack.c.l.b16 %v7800
      %v7951 = vunpack.c.h.b16 %v7800
      %v7952 = vunpack.c.l.b16 %v7801
      %v7953 = vunpack.c.h.b16 %v7801
      %v7954 = vunpack.c.l.b16 %v7802
      %v7955 = vunpack.c.h.b16 %v7802
      %v7956 = vunpack.c.l.b16 %v7803
      %v7957 = vunpack.c.h.b16 %v7803
      %v7958 = vunpack.c.l.b16 %v7804
      %v7959 = vunpack.c.h.b16 %v7804
      %v7960 = vunpack.c.l.b16 %v7805
      %v7961 = vunpack.c.h.b16 %v7805
      %v7962 = vunpack.c.l.b16 %v7806
      %v7963 = vunpack.c.h.b16 %v7806
      %v7964 = vunpack.c.l.b16 %v7807
      %v7965 = vunpack.c.h.b16 %v7807
      %v7966 = vunpack.c.l.b16 %v7808
      %v7967 = vunpack.c.h.b16 %v7808
      %v7968 = vunpack.c.l.b16 %v7809
      %v7969 = vunpack.c.h.b16 %v7809
      %v7970 = vunpack.c.l.b16 %v7810
      %v7971 = vunpack.c.h.b16 %v7810
      %v7972 = vunpack.c.l.b16 %v7811
      %v7973 = vunpack.c.h.b16 %v7811
      %v7974 = vunpack.c.l.b16 %v7812
      %v7975 = vunpack.c.h.b16 %v7812
      %v7976 = vunpack.c.l.b16 %v7813
      %v7977 = vunpack.c.h.b16 %v7813
      %v7978 = vpack.c.b16 %v7900, %v7898
      %v7979 = vpack.c.b16 %v7901, %v7899
      %v7980 = vpack.c.b16 %v7904, %v7902
      %v7981 = vpack.c.b16 %v7905, %v7903
      %v7982 = vpack.c.b16 %v7908, %v7906
      %v7983 = vpack.c.b16 %v7909, %v7907
      %v7984 = vpack.c.b16 %v7912, %v7910
      %v7985 = vpack.c.b16 %v7913, %v7911
      %v7986 = vpack.c.b16 %v7916, %v7914
      %v7987 = vpack.c.b16 %v7917, %v7915
      %v7988 = vpack.c.b16 %v7920, %v7918
      %v7989 = vpack.c.b16 %v7921, %v7919
      %v7990 = vpack.c.b16 %v7924, %v7922
      %v7991 = vpack.c.b16 %v7925, %v7923
      %v7992 = vpack.c.b16 %v7928, %v7926
      %v7993 = vpack.c.b16 %v7929, %v7927
      %v7994 = vpack.c.b16 %v7932, %v7930
      %v7995 = vpack.c.b16 %v7933, %v7931
      %v7996 = vpack.c.b16 %v7936, %v7934
      %v7997 = vpack.c.b16 %v7937, %v7935
      %v7998 = vpack.c.b16 %v7940, %v7938
      %v7999 = vpack.c.b16 %v7941, %v7939
      %v8000 = vpack.c.b16 %v7944, %v7942
      %v8001 = vpack.c.b16 %v7945, %v7943
      %v8002 = vpack.c.b16 %v7948, %v7946
      %v8003 = vpack.c.b16 %v7949, %v7947
      %v8004 = vpack.c.b16 %v7952, %v7950
      %v8005 = vpack.c.b16 %v7953, %v7951
      %v8006 = vpack.c.b16 %v7956, %v7954
      %v8007 = vpack.c.b16 %v7957, %v7955
      %v8008 = vpack.c.b16 %v7960, %v7958
      %v8009 = vpack.c.b16 %v7961, %v7959
      %v8010 = vpack.c.b16 %v7964, %v7962
      %v8011 = vpack.c.b16 %v7965, %v7963
      %v8012 = vpack.c.b16 %v7968, %v7966
      %v8013 = vpack.c.b16 %v7969, %v7967
      %v8014 = vpack.c.b16 %v7972, %v7970
      %v8015 = vpack.c.b16 %v7973, %v7971
      %v8016 = vpack.c.b16 %v7976, %v7974
      %v8017 = vpack.c.b16 %v7977, %v7975
      %v8059 = vsel %vm486, %v7840, 0
      %v8062 = vsel %vm486, %v7843, 0
      %v8065 = vsel %vm486, %v7846, 0
      %v8068 = vsel %vm486, %v7849, 0
      %8070 = vmatpush.bf16.msra.mxu0 %v7992
      %8071 = vmatpush.bf16.msra.mxu0 %v7990
      %8072 = vmatpush.bf16.msra.mxu0 %v7988
      %8073 = vmatpush.bf16.msra.mxu0 %v7986
      %8074 = vmatpush.bf16.msra.mxu0 %v7984
      %8075 = vmatpush.bf16.msra.mxu0 %v7982
      %8076 = vmatpush.bf16.msra.mxu0 %v7980
      %8077 = vmatpush.bf16.msra.mxu0 %v7978
      %8078 = vmatmul.bf16.gmra.mxu0 %v7838
      %v8079 = vpop.f32.mrf.mxu0
      %v8080 = vadd.f32 0.0, %v8079
      %v8081 = vpop.f32.mrf.mxu0
      %v8082 = vadd.f32 0.0, %v8081
      %8083 = vmatmul.bf16.gmra.mxu0 %v7841
      %v8084 = vpop.f32.mrf.mxu0
      %v8085 = vadd.f32 0.0, %v8084
      %v8086 = vpop.f32.mrf.mxu0
      %v8087 = vadd.f32 0.0, %v8086
      %8088 = vmatmul.bf16.gmra.mxu0 %v7844
      %v8089 = vpop.f32.mrf.mxu0
      %v8090 = vadd.f32 0.0, %v8089
      %v8091 = vpop.f32.mrf.mxu0
      %v8092 = vadd.f32 0.0, %v8091
      %8093 = vmatmul.bf16.gmra.mxu0 %v7847
      %v8094 = vpop.f32.mrf.mxu0
      %v8095 = vadd.f32 0.0, %v8094
      %v8096 = vpop.f32.mrf.mxu0
      %v8097 = vadd.f32 0.0, %v8096
      %8098 = vdwg.mxu0
      %8099 = vmatpush.bf16.msra.mxu0 %v8008
      %8100 = vmatpush.bf16.msra.mxu0 %v8006
      %8101 = vmatpush.bf16.msra.mxu0 %v8004
      %8102 = vmatpush.bf16.msra.mxu0 %v8002
      %8103 = vmatpush.bf16.msra.mxu0 %v8000
      %8104 = vmatpush.bf16.msra.mxu0 %v7998
      %8105 = vmatpush.bf16.msra.mxu0 %v7996
      %8106 = vmatpush.bf16.msra.mxu0 %v7994
      %8107 = vmatmul.bf16.gmra.mxu0 %v7839
      %v8108 = vpop.f32.mrf.mxu0
      %v8109 = vadd.f32 %v8080, %v8108
      %v8110 = vpop.f32.mrf.mxu0
      %v8111 = vadd.f32 %v8082, %v8110
      %8112 = vmatmul.bf16.gmra.mxu0 %v7842
      %v8113 = vpop.f32.mrf.mxu0
      %v8114 = vadd.f32 %v8085, %v8113
      %v8115 = vpop.f32.mrf.mxu0
      %v8116 = vadd.f32 %v8087, %v8115
      %8117 = vmatmul.bf16.gmra.mxu0 %v7845
      %v8118 = vpop.f32.mrf.mxu0
      %v8119 = vadd.f32 %v8090, %v8118
      %v8120 = vpop.f32.mrf.mxu0
      %v8121 = vadd.f32 %v8092, %v8120
      %8122 = vmatmul.bf16.gmra.mxu0 %v7848
      %v8123 = vpop.f32.mrf.mxu0
      %v8124 = vadd.f32 %v8095, %v8123
      %v8125 = vpop.f32.mrf.mxu0
      %v8126 = vadd.f32 %v8097, %v8125
      %8127 = vdwg.mxu0
      %8128 = vmatpush.bf16.msra.mxu0 0
      %8129 = vmatpush.bf16.msra.mxu0 0
      %8130 = vmatpush.bf16.msra.mxu0 0
      %8131 = vmatpush.bf16.msra.mxu0 0
      %8132 = vmatpush.bf16.msra.mxu0 %v8016
      %8133 = vmatpush.bf16.msra.mxu0 %v8014
      %8134 = vmatpush.bf16.msra.mxu0 %v8012
      %8135 = vmatpush.bf16.msra.mxu0 %v8010
      %8136 = vmatmul.bf16.gmra.mxu0 %v8059
      %v8137 = vpop.f32.mrf.mxu0
      %v8138 = vadd.f32 %v8109, %v8137
      %v8139 = vpop.f32.mrf.mxu0
      %v8140 = vadd.f32 %v8111, %v8139
      %8141 = vmatmul.bf16.gmra.mxu0 %v8062
      %v8142 = vpop.f32.mrf.mxu0
      %v8143 = vadd.f32 %v8114, %v8142
      %v8144 = vpop.f32.mrf.mxu0
      %v8145 = vadd.f32 %v8116, %v8144
      %8146 = vmatmul.bf16.gmra.mxu0 %v8065
      %v8147 = vpop.f32.mrf.mxu0
      %v8148 = vadd.f32 %v8119, %v8147
      %v8149 = vpop.f32.mrf.mxu0
      %v8150 = vadd.f32 %v8121, %v8149
      %8151 = vmatmul.bf16.gmra.mxu0 %v8068
      %v8152 = vpop.f32.mrf.mxu0
      %v8153 = vadd.f32 %v8124, %v8152
      %v8154 = vpop.f32.mrf.mxu0
      %v8155 = vadd.f32 %v8126, %v8154
      %8156 = vdwg.mxu0
      %8157 = vmatpush.bf16.msra.mxu0 %v7993
      %8158 = vmatpush.bf16.msra.mxu0 %v7991
      %8159 = vmatpush.bf16.msra.mxu0 %v7989
      %8160 = vmatpush.bf16.msra.mxu0 %v7987
      %8161 = vmatpush.bf16.msra.mxu0 %v7985
      %8162 = vmatpush.bf16.msra.mxu0 %v7983
      %8163 = vmatpush.bf16.msra.mxu0 %v7981
      %8164 = vmatpush.bf16.msra.mxu0 %v7979
      %8165 = vmatmul.bf16.gmra.mxu0 %v7838
      %v8166 = vpop.f32.mrf.mxu0
      %v8167 = vadd.f32 0.0, %v8166
      %v8168 = vpop.f32.mrf.mxu0
      %v8169 = vadd.f32 0.0, %v8168
      %8170 = vmatmul.bf16.gmra.mxu0 %v7841
      %v8171 = vpop.f32.mrf.mxu0
      %v8172 = vadd.f32 0.0, %v8171
      %v8173 = vpop.f32.mrf.mxu0
      %v8174 = vadd.f32 0.0, %v8173
      %8175 = vmatmul.bf16.gmra.mxu0 %v7844
      %v8176 = vpop.f32.mrf.mxu0
      %v8177 = vadd.f32 0.0, %v8176
      %v8178 = vpop.f32.mrf.mxu0
      %v8179 = vadd.f32 0.0, %v8178
      %8180 = vmatmul.bf16.gmra.mxu0 %v7847
      %v8181 = vpop.f32.mrf.mxu0
      %v8182 = vadd.f32 0.0, %v8181
      %v8183 = vpop.f32.mrf.mxu0
      %v8184 = vadd.f32 0.0, %v8183
      %8185 = vdwg.mxu0
      %8186 = vmatpush.bf16.msra.mxu0 %v8009
      %8187 = vmatpush.bf16.msra.mxu0 %v8007
      %8188 = vmatpush.bf16.msra.mxu0 %v8005
      %8189 = vmatpush.bf16.msra.mxu0 %v8003
      %8190 = vmatpush.bf16.msra.mxu0 %v8001
      %8191 = vmatpush.bf16.msra.mxu0 %v7999
      %8192 = vmatpush.bf16.msra.mxu0 %v7997
      %8193 = vmatpush.bf16.msra.mxu0 %v7995
      %8194 = vmatmul.bf16.gmra.mxu0 %v7839
      %v8195 = vpop.f32.mrf.mxu0
      %v8196 = vadd.f32 %v8167, %v8195
      %v8197 = vpop.f32.mrf.mxu0
      %v8198 = vadd.f32 %v8169, %v8197
      %8199 = vmatmul.bf16.gmra.mxu0 %v7842
      %v8200 = vpop.f32.mrf.mxu0
      %v8201 = vadd.f32 %v8172, %v8200
      %v8202 = vpop.f32.mrf.mxu0
      %v8203 = vadd.f32 %v8174, %v8202
      %8204 = vmatmul.bf16.gmra.mxu0 %v7845
      %v8205 = vpop.f32.mrf.mxu0
      %v8206 = vadd.f32 %v8177, %v8205
      %v8207 = vpop.f32.mrf.mxu0
      %v8208 = vadd.f32 %v8179, %v8207
      %8209 = vmatmul.bf16.gmra.mxu0 %v7848
      %v8210 = vpop.f32.mrf.mxu0
      %v8211 = vadd.f32 %v8182, %v8210
      %v8212 = vpop.f32.mrf.mxu0
      %v8213 = vadd.f32 %v8184, %v8212
      %8214 = vdwg.mxu0
      %8215 = vmatpush.bf16.msra.mxu0 0
      %8216 = vmatpush.bf16.msra.mxu0 0
      %8217 = vmatpush.bf16.msra.mxu0 0
      %8218 = vmatpush.bf16.msra.mxu0 0
      %8219 = vmatpush.bf16.msra.mxu0 %v8017
      %8220 = vmatpush.bf16.msra.mxu0 %v8015
      %8221 = vmatpush.bf16.msra.mxu0 %v8013
      %8222 = vmatpush.bf16.msra.mxu0 %v8011
      %8223 = vmatmul.bf16.gmra.mxu0 %v8059
      %v8224 = vpop.f32.mrf.mxu0
      %v8225 = vadd.f32 %v8196, %v8224
      %v8226 = vpop.f32.mrf.mxu0
      %v8227 = vadd.f32 %v8198, %v8226
      %8228 = vmatmul.bf16.gmra.mxu0 %v8062
      %v8229 = vpop.f32.mrf.mxu0
      %v8230 = vadd.f32 %v8201, %v8229
      %v8231 = vpop.f32.mrf.mxu0
      %v8232 = vadd.f32 %v8203, %v8231
      %8233 = vmatmul.bf16.gmra.mxu0 %v8065
      %v8234 = vpop.f32.mrf.mxu0
      %v8235 = vadd.f32 %v8206, %v8234
      %v8236 = vpop.f32.mrf.mxu0
      %v8237 = vadd.f32 %v8208, %v8236
      %8238 = vmatmul.bf16.gmra.mxu0 %v8068
      %v8239 = vpop.f32.mrf.mxu0
      %v8240 = vadd.f32 %v8211, %v8239
      %v8241 = vpop.f32.mrf.mxu0
      %v8242 = vadd.f32 %v8213, %v8241
      %8243 = vdwg.mxu0
      %v8244 = vadd.f32 %v7453, %v8138
      %v8245 = vadd.f32 %v7454, %v8225
      %v8246 = vadd.f32 %v7455, %v8140
      %v8247 = vadd.f32 %v7456, %v8227
      %v8248 = vadd.f32 %v7457, %v8143
      %v8249 = vadd.f32 %v7458, %v8230
      %v8250 = vadd.f32 %v7459, %v8145
      %v8251 = vadd.f32 %v7460, %v8232
      %v8252 = vadd.f32 %v7461, %v8148
      %v8253 = vadd.f32 %v7462, %v8235
      %v8254 = vadd.f32 %v7463, %v8150
      %v8255 = vadd.f32 %v7464, %v8237
      %v8256 = vadd.f32 %v7465, %v8153
      %v8257 = vadd.f32 %v7466, %v8240
      %v8258 = vadd.f32 %v7467, %v8155
      %v8259 = vadd.f32 %v7468, %v8242
      %v8260 = vld [vmem:[%s4906] sm:$0xfc]
      %v8261 = vld [vmem:[%s4906 + $0x8] sm:$0xfc]
      %v8262 = vld [vmem:[%s4906 + $0x10] sm:$0xfc]
      %v8263 = vld [vmem:[%s4906 + $0x18] sm:$0x3]
      %v8264 = vld [vmem:[%s4906 + $0x20] sm:$0x3]
      %v8265 = vld [vmem:[%s4906 + $0x28] sm:$0x3]
      %v8266 = vld [vmem:[%s4906 + $0x30] sm:$0xfc]
      %v8267 = vld [vmem:[%s4906 + $0x38] sm:$0xfc]
      %v8268 = vld [vmem:[%s4906 + $0x40] sm:$0xfc]
      %v8269 = vld [vmem:[%s4906 + $0x48] sm:$0x3]
      %v8270 = vld [vmem:[%s4906 + $0x50] sm:$0x3]
      %v8271 = vld [vmem:[%s4906 + $0x58] sm:$0x3]
      %v8272 = vld [vmem:[%s4906 + $0x60] sm:$0xfc]
      %v8273 = vld [vmem:[%s4906 + $0x68] sm:$0xfc]
      %v8274 = vld [vmem:[%s4906 + $0x70] sm:$0xfc]
      %v8275 = vld [vmem:[%s4906 + $0x78] sm:$0x3]
      %v8276 = vld [vmem:[%s4906 + $0x80] sm:$0x3]
      %v8277 = vld [vmem:[%s4906 + $0x88] sm:$0x3]
      %v8278 = vld [vmem:[%s4906 + $0x90] sm:$0xfc]
      %v8279 = vld [vmem:[%s4906 + $0x98] sm:$0xfc]
      %v8280 = vld [vmem:[%s4906 + $0xa0] sm:$0xfc]
      %v8281 = vld [vmem:[%s4906 + $0xa8] sm:$0x3]
      %v8282 = vld [vmem:[%s4906 + $0xb0] sm:$0x3]
      %v8283 = vld [vmem:[%s4906 + $0xb8] sm:$0x3]
      %v8284 = vld [vmem:[%s4906 + $0xc0] sm:$0xfc]
      %v8285 = vld [vmem:[%s4906 + $0xc8] sm:$0xfc]
      %v8286 = vld [vmem:[%s4906 + $0xd0] sm:$0xfc]
      %v8287 = vld [vmem:[%s4906 + $0xd8] sm:$0x3]
      %v8288 = vld [vmem:[%s4906 + $0xe0] sm:$0x3]
      %v8289 = vld [vmem:[%s4906 + $0xe8] sm:$0x3]
      %v8290 = vld [vmem:[%s4906 + $0xf0] sm:$0xfc]
      %v8291 = vld [vmem:[%s4906 + $0xf8] sm:$0xfc]
      %v8292 = vld [vmem:[%s4906 + $0x100] sm:$0xfc]
      %v8293 = vld [vmem:[%s4906 + $0x108] sm:$0x3]
      %v8294 = vld [vmem:[%s4906 + $0x110] sm:$0x3]
      %v8295 = vld [vmem:[%s4906 + $0x118] sm:$0x3]
      %v8296 = vld [vmem:[%s4906 + $0x120] sm:$0xfc]
      %v8297 = vld [vmem:[%s4906 + $0x128] sm:$0xfc]
      %v8298 = vld [vmem:[%s4906 + $0x130] sm:$0xfc]
      %v8299 = vld [vmem:[%s4906 + $0x138] sm:$0x3]
      %v8300 = vld [vmem:[%s4906 + $0x140] sm:$0x3]
      %v8301 = vld [vmem:[%s4906 + $0x148] sm:$0x3]
      %v8302 = vld [vmem:[%s4906 + $0x150] sm:$0xfc]
      %v8303 = vld [vmem:[%s4906 + $0x158] sm:$0xfc]
      %v8304 = vld [vmem:[%s4906 + $0x160] sm:$0xfc]
      %v8305 = vld [vmem:[%s4906 + $0x168] sm:$0x3]
      %v8306 = vld [vmem:[%s4906 + $0x170] sm:$0x3]
      %v8307 = vld [vmem:[%s4906 + $0x178] sm:$0x3]
      %v8308 = vpack.c.bf16 %v8261, %v8260
      %v8309 = vpack.c.bf16 %v8262, %v8262
      %v8310 = vpack.c.bf16 %v8264, %v8263
      %v8311 = vpack.c.bf16 %v8265, %v8265
      %v8312 = vpack.c.bf16 %v8267, %v8266
      %v8313 = vpack.c.bf16 %v8268, %v8268
      %v8314 = vpack.c.bf16 %v8270, %v8269
      %v8315 = vpack.c.bf16 %v8271, %v8271
      %v8316 = vpack.c.bf16 %v8273, %v8272
      %v8317 = vpack.c.bf16 %v8274, %v8274
      %v8318 = vpack.c.bf16 %v8276, %v8275
      %v8319 = vpack.c.bf16 %v8277, %v8277
      %v8320 = vpack.c.bf16 %v8279, %v8278
      %v8321 = vpack.c.bf16 %v8280, %v8280
      %v8322 = vpack.c.bf16 %v8282, %v8281
      %v8323 = vpack.c.bf16 %v8283, %v8283
      %v8324 = vpack.c.bf16 %v8285, %v8284
      %v8325 = vpack.c.bf16 %v8286, %v8286
      %v8326 = vpack.c.bf16 %v8288, %v8287
      %v8327 = vpack.c.bf16 %v8289, %v8289
      %v8328 = vpack.c.bf16 %v8291, %v8290
      %v8329 = vpack.c.bf16 %v8292, %v8292
      %v8330 = vpack.c.bf16 %v8294, %v8293
      %v8331 = vpack.c.bf16 %v8295, %v8295
      %v8332 = vpack.c.bf16 %v8297, %v8296
      %v8333 = vpack.c.bf16 %v8298, %v8298
      %v8334 = vpack.c.bf16 %v8300, %v8299
      %v8335 = vpack.c.bf16 %v8301, %v8301
      %v8336 = vpack.c.bf16 %v8303, %v8302
      %v8337 = vpack.c.bf16 %v8304, %v8304
      %v8338 = vpack.c.bf16 %v8306, %v8305
      %v8339 = vpack.c.bf16 %v8307, %v8307
      %v8372 = vrot.slane %v8308, 5
      %v8373 = vrot.slane %v8372, 4
      %v8374 = vrot.slane %v8310, 5
      %v8375 = vsel %vm1482, %v8373, %v8374
      %v8376 = vrot.slane %v8309, 5
      %v8377 = vrot.slane %v8376, 4
      %v8378 = vrot.slane %v8311, 5
      %v8379 = vsel %vm1482, %v8377, %v8378
      %v8380 = vrot.slane %v8312, 5
      %v8381 = vrot.slane %v8380, 4
      %v8382 = vrot.slane %v8314, 5
      %v8383 = vsel %vm1482, %v8381, %v8382
      %v8384 = vrot.slane %v8313, 5
      %v8385 = vrot.slane %v8384, 4
      %v8386 = vrot.slane %v8315, 5
      %v8387 = vsel %vm1482, %v8385, %v8386
      %v8388 = vrot.slane %v8316, 5
      %v8389 = vrot.slane %v8388, 4
      %v8390 = vrot.slane %v8318, 5
      %v8391 = vsel %vm1482, %v8389, %v8390
      %v8392 = vrot.slane %v8317, 5
      %v8393 = vrot.slane %v8392, 4
      %v8394 = vrot.slane %v8319, 5
      %v8395 = vsel %vm1482, %v8393, %v8394
      %v8396 = vrot.slane %v8320, 5
      %v8397 = vrot.slane %v8396, 4
      %v8398 = vrot.slane %v8322, 5
      %v8399 = vsel %vm1482, %v8397, %v8398
      %v8400 = vrot.slane %v8321, 5
      %v8401 = vrot.slane %v8400, 4
      %v8402 = vrot.slane %v8323, 5
      %v8403 = vsel %vm1482, %v8401, %v8402
      %v8404 = vrot.slane %v8324, 5
      %v8405 = vrot.slane %v8404, 4
      %v8406 = vrot.slane %v8326, 5
      %v8407 = vsel %vm1482, %v8405, %v8406
      %v8408 = vrot.slane %v8325, 5
      %v8409 = vrot.slane %v8408, 4
      %v8410 = vrot.slane %v8327, 5
      %v8411 = vsel %vm1482, %v8409, %v8410
      %v8412 = vrot.slane %v8328, 5
      %v8413 = vrot.slane %v8412, 4
      %v8414 = vrot.slane %v8330, 5
      %v8415 = vsel %vm1482, %v8413, %v8414
      %v8416 = vrot.slane %v8329, 5
      %v8417 = vrot.slane %v8416, 4
      %v8418 = vrot.slane %v8331, 5
      %v8419 = vsel %vm1482, %v8417, %v8418
      %v8420 = vrot.slane %v8332, 5
      %v8421 = vrot.slane %v8420, 4
      %v8422 = vrot.slane %v8334, 5
      %v8423 = vsel %vm1482, %v8421, %v8422
      %v8424 = vrot.slane %v8333, 5
      %v8425 = vrot.slane %v8424, 4
      %v8426 = vrot.slane %v8335, 5
      %v8427 = vsel %vm1482, %v8425, %v8426
      %v8428 = vrot.slane %v8336, 5
      %v8429 = vrot.slane %v8428, 4
      %v8430 = vrot.slane %v8338, 5
      %v8431 = vsel %vm1482, %v8429, %v8430
      %v8432 = vrot.slane %v8337, 5
      %v8433 = vrot.slane %v8432, 4
      %v8434 = vrot.slane %v8339, 5
      %v8435 = vsel %vm1482, %v8433, %v8434
      %s8436 = scalar_lea.vmem %s5, 1600
      %v8437 = vld [vmem:[%s8436] sm:$0xff]
      %v8438 = vld [vmem:[%s8436 + $0x8] sm:$0xff]
      %v8439 = vld [vmem:[%s8436 + $0x10] sm:$0xff]
      %v8440 = vld [vmem:[%s8436 + $0x18] sm:$0xff]
      %v8441 = vld [vmem:[%s8436 + $0x20] sm:$0xff]
      %v8442 = vld [vmem:[%s8436 + $0x28] sm:$0xff]
      %v8443 = vld [vmem:[%s8436 + $0x30] sm:$0xff]
      %v8444 = vld [vmem:[%s8436 + $0x38] sm:$0xff]
      %v8445 = vld [vmem:[%s8436 + $0x40] sm:$0xff]
      %v8446 = vld [vmem:[%s8436 + $0x48] sm:$0xff]
      %v8447 = vld [vmem:[%s8436 + $0x50] sm:$0xff]
      %v8448 = vld [vmem:[%s8436 + $0x58] sm:$0xff]
      %v8449 = vld [vmem:[%s8436 + $0x60] sm:$0xff]
      %v8450 = vld [vmem:[%s8436 + $0x68] sm:$0xff]
      %v8451 = vld [vmem:[%s8436 + $0x70] sm:$0xff]
      %v8452 = vld [vmem:[%s8436 + $0x78] sm:$0xff]
      %v8453 = vld [vmem:[%s8436 + $0x80] sm:$0xff]
      %v8454 = vld [vmem:[%s8436 + $0x88] sm:$0xff]
      %v8455 = vld [vmem:[%s8436 + $0x90] sm:$0xff]
      %v8456 = vld [vmem:[%s8436 + $0x98] sm:$0xff]
      %v8457 = vld [vmem:[%s8436 + $0xa0] sm:$0xff]
      %v8458 = vld [vmem:[%s8436 + $0xa8] sm:$0xff]
      %v8459 = vld [vmem:[%s8436 + $0xb0] sm:$0xff]
      %v8460 = vld [vmem:[%s8436 + $0xb8] sm:$0xff]
      %v8461 = vld [vmem:[%s8436 + $0xc0] sm:$0xff]
      %v8462 = vld [vmem:[%s8436 + $0xc8] sm:$0xff]
      %v8463 = vld [vmem:[%s8436 + $0xd0] sm:$0xff]
      %v8464 = vld [vmem:[%s8436 + $0xd8] sm:$0xff]
      %v8465 = vld [vmem:[%s8436 + $0xe0] sm:$0xff]
      %v8466 = vld [vmem:[%s8436 + $0xe8] sm:$0xff]
      %v8467 = vld [vmem:[%s8436 + $0xf0] sm:$0xff]
      %v8468 = vld [vmem:[%s8436 + $0xf8] sm:$0xff]
      %v8469 = vld [vmem:[%s8436 + $0x100] sm:$0xff]
      %v8470 = vld [vmem:[%s8436 + $0x108] sm:$0xff]
      %v8471 = vld [vmem:[%s8436 + $0x110] sm:$0xff]
      %v8472 = vld [vmem:[%s8436 + $0x118] sm:$0xff]
      %v8473 = vld [vmem:[%s8436 + $0x120] sm:$0xff]
      %v8474 = vld [vmem:[%s8436 + $0x128] sm:$0xff]
      %v8475 = vld [vmem:[%s8436 + $0x130] sm:$0xff]
      %v8476 = vld [vmem:[%s8436 + $0x138] sm:$0xff]
      %v8477 = vunpack.c.l.b16 %v8375
      %v8478 = vunpack.c.h.b16 %v8375
      %v8479 = vunpack.c.l.b16 %v8379
      %v8480 = vunpack.c.l.b16 %v8383
      %v8481 = vunpack.c.h.b16 %v8383
      %v8482 = vunpack.c.l.b16 %v8387
      %v8483 = vunpack.c.l.b16 %v8391
      %v8484 = vunpack.c.h.b16 %v8391
      %v8485 = vunpack.c.l.b16 %v8395
      %v8486 = vunpack.c.l.b16 %v8399
      %v8487 = vunpack.c.h.b16 %v8399
      %v8488 = vunpack.c.l.b16 %v8403
      %v8489 = vunpack.c.l.b16 %v8407
      %v8490 = vunpack.c.h.b16 %v8407
      %v8491 = vunpack.c.l.b16 %v8411
      %v8492 = vunpack.c.l.b16 %v8415
      %v8493 = vunpack.c.h.b16 %v8415
      %v8494 = vunpack.c.l.b16 %v8419
      %v8495 = vunpack.c.l.b16 %v8423
      %v8496 = vunpack.c.h.b16 %v8423
      %v8497 = vunpack.c.l.b16 %v8427
      %v8498 = vunpack.c.l.b16 %v8431
      %v8499 = vunpack.c.h.b16 %v8431
      %v8500 = vunpack.c.l.b16 %v8435
      %v8501 = vpack.c.b16 %v8480, %v8477
      %v8502 = vpack.c.b16 %v8481, %v8478
      %v8503 = vpack.c.b16 %v8482, %v8479
      %v8504 = vpack.c.b16 %v8486, %v8483
      %v8505 = vpack.c.b16 %v8487, %v8484
      %v8506 = vpack.c.b16 %v8488, %v8485
      %v8507 = vpack.c.b16 %v8492, %v8489
      %v8508 = vpack.c.b16 %v8493, %v8490
      %v8509 = vpack.c.b16 %v8494, %v8491
      %v8510 = vpack.c.b16 %v8498, %v8495
      %v8511 = vpack.c.b16 %v8499, %v8496
      %v8512 = vpack.c.b16 %v8500, %v8497
      %v8561 = vunpack.c.l.b16 %v8437
      %v8562 = vunpack.c.h.b16 %v8437
      %v8563 = vunpack.c.l.b16 %v8438
      %v8564 = vunpack.c.h.b16 %v8438
      %v8565 = vunpack.c.l.b16 %v8439
      %v8566 = vunpack.c.h.b16 %v8439
      %v8567 = vunpack.c.l.b16 %v8440
      %v8568 = vunpack.c.h.b16 %v8440
      %v8569 = vunpack.c.l.b16 %v8441
      %v8570 = vunpack.c.h.b16 %v8441
      %v8571 = vunpack.c.l.b16 %v8442
      %v8572 = vunpack.c.h.b16 %v8442
      %v8573 = vunpack.c.l.b16 %v8443
      %v8574 = vunpack.c.h.b16 %v8443
      %v8575 = vunpack.c.l.b16 %v8444
      %v8576 = vunpack.c.h.b16 %v8444
      %v8577 = vunpack.c.l.b16 %v8445
      %v8578 = vunpack.c.h.b16 %v8445
      %v8579 = vunpack.c.l.b16 %v8446
      %v8580 = vunpack.c.h.b16 %v8446
      %v8581 = vunpack.c.l.b16 %v8447
      %v8582 = vunpack.c.h.b16 %v8447
      %v8583 = vunpack.c.l.b16 %v8448
      %v8584 = vunpack.c.h.b16 %v8448
      %v8585 = vunpack.c.l.b16 %v8449
      %v8586 = vunpack.c.h.b16 %v8449
      %v8587 = vunpack.c.l.b16 %v8450
      %v8588 = vunpack.c.h.b16 %v8450
      %v8589 = vunpack.c.l.b16 %v8451
      %v8590 = vunpack.c.h.b16 %v8451
      %v8591 = vunpack.c.l.b16 %v8452
      %v8592 = vunpack.c.h.b16 %v8452
      %v8593 = vunpack.c.l.b16 %v8453
      %v8594 = vunpack.c.h.b16 %v8453
      %v8595 = vunpack.c.l.b16 %v8454
      %v8596 = vunpack.c.h.b16 %v8454
      %v8597 = vunpack.c.l.b16 %v8455
      %v8598 = vunpack.c.h.b16 %v8455
      %v8599 = vunpack.c.l.b16 %v8456
      %v8600 = vunpack.c.h.b16 %v8456
      %v8601 = vunpack.c.l.b16 %v8457
      %v8602 = vunpack.c.h.b16 %v8457
      %v8603 = vunpack.c.l.b16 %v8458
      %v8604 = vunpack.c.h.b16 %v8458
      %v8605 = vunpack.c.l.b16 %v8459
      %v8606 = vunpack.c.h.b16 %v8459
      %v8607 = vunpack.c.l.b16 %v8460
      %v8608 = vunpack.c.h.b16 %v8460
      %v8609 = vunpack.c.l.b16 %v8461
      %v8610 = vunpack.c.h.b16 %v8461
      %v8611 = vunpack.c.l.b16 %v8462
      %v8612 = vunpack.c.h.b16 %v8462
      %v8613 = vunpack.c.l.b16 %v8463
      %v8614 = vunpack.c.h.b16 %v8463
      %v8615 = vunpack.c.l.b16 %v8464
      %v8616 = vunpack.c.h.b16 %v8464
      %v8617 = vunpack.c.l.b16 %v8465
      %v8618 = vunpack.c.h.b16 %v8465
      %v8619 = vunpack.c.l.b16 %v8466
      %v8620 = vunpack.c.h.b16 %v8466
      %v8621 = vunpack.c.l.b16 %v8467
      %v8622 = vunpack.c.h.b16 %v8467
      %v8623 = vunpack.c.l.b16 %v8468
      %v8624 = vunpack.c.h.b16 %v8468
      %v8625 = vunpack.c.l.b16 %v8469
      %v8626 = vunpack.c.h.b16 %v8469
      %v8627 = vunpack.c.l.b16 %v8470
      %v8628 = vunpack.c.h.b16 %v8470
      %v8629 = vunpack.c.l.b16 %v8471
      %v8630 = vunpack.c.h.b16 %v8471
      %v8631 = vunpack.c.l.b16 %v8472
      %v8632 = vunpack.c.h.b16 %v8472
      %v8633 = vunpack.c.l.b16 %v8473
      %v8634 = vunpack.c.h.b16 %v8473
      %v8635 = vunpack.c.l.b16 %v8474
      %v8636 = vunpack.c.h.b16 %v8474
      %v8637 = vunpack.c.l.b16 %v8475
      %v8638 = vunpack.c.h.b16 %v8475
      %v8639 = vunpack.c.l.b16 %v8476
      %v8640 = vunpack.c.h.b16 %v8476
      %v8641 = vpack.c.b16 %v8563, %v8561
      %v8642 = vpack.c.b16 %v8564, %v8562
      %v8643 = vpack.c.b16 %v8567, %v8565
      %v8644 = vpack.c.b16 %v8568, %v8566
      %v8645 = vpack.c.b16 %v8571, %v8569
      %v8646 = vpack.c.b16 %v8572, %v8570
      %v8647 = vpack.c.b16 %v8575, %v8573
      %v8648 = vpack.c.b16 %v8576, %v8574
      %v8649 = vpack.c.b16 %v8579, %v8577
      %v8650 = vpack.c.b16 %v8580, %v8578
      %v8651 = vpack.c.b16 %v8583, %v8581
      %v8652 = vpack.c.b16 %v8584, %v8582
      %v8653 = vpack.c.b16 %v8587, %v8585
      %v8654 = vpack.c.b16 %v8588, %v8586
      %v8655 = vpack.c.b16 %v8591, %v8589
      %v8656 = vpack.c.b16 %v8592, %v8590
      %v8657 = vpack.c.b16 %v8595, %v8593
      %v8658 = vpack.c.b16 %v8596, %v8594
      %v8659 = vpack.c.b16 %v8599, %v8597
      %v8660 = vpack.c.b16 %v8600, %v8598
      %v8661 = vpack.c.b16 %v8603, %v8601
      %v8662 = vpack.c.b16 %v8604, %v8602
      %v8663 = vpack.c.b16 %v8607, %v8605
      %v8664 = vpack.c.b16 %v8608, %v8606
      %v8665 = vpack.c.b16 %v8611, %v8609
      %v8666 = vpack.c.b16 %v8612, %v8610
      %v8667 = vpack.c.b16 %v8615, %v8613
      %v8668 = vpack.c.b16 %v8616, %v8614
      %v8669 = vpack.c.b16 %v8619, %v8617
      %v8670 = vpack.c.b16 %v8620, %v8618
      %v8671 = vpack.c.b16 %v8623, %v8621
      %v8672 = vpack.c.b16 %v8624, %v8622
      %v8673 = vpack.c.b16 %v8627, %v8625
      %v8674 = vpack.c.b16 %v8628, %v8626
      %v8675 = vpack.c.b16 %v8631, %v8629
      %v8676 = vpack.c.b16 %v8632, %v8630
      %v8677 = vpack.c.b16 %v8635, %v8633
      %v8678 = vpack.c.b16 %v8636, %v8634
      %v8679 = vpack.c.b16 %v8639, %v8637
      %v8680 = vpack.c.b16 %v8640, %v8638
      %v8722 = vsel %vm486, %v8503, 0
      %v8725 = vsel %vm486, %v8506, 0
      %v8728 = vsel %vm486, %v8509, 0
      %v8731 = vsel %vm486, %v8512, 0
      %8733 = vmatpush.bf16.msra.mxu0 %v8655
      %8734 = vmatpush.bf16.msra.mxu0 %v8653
      %8735 = vmatpush.bf16.msra.mxu0 %v8651
      %8736 = vmatpush.bf16.msra.mxu0 %v8649
      %8737 = vmatpush.bf16.msra.mxu0 %v8647
      %8738 = vmatpush.bf16.msra.mxu0 %v8645
      %8739 = vmatpush.bf16.msra.mxu0 %v8643
      %8740 = vmatpush.bf16.msra.mxu0 %v8641
      %8741 = vmatmul.bf16.gmra.mxu0 %v8501
      %v8742 = vpop.f32.mrf.mxu0
      %v8743 = vadd.f32 0.0, %v8742
      %v8744 = vpop.f32.mrf.mxu0
      %v8745 = vadd.f32 0.0, %v8744
      %8746 = vmatmul.bf16.gmra.mxu0 %v8504
      %v8747 = vpop.f32.mrf.mxu0
      %v8748 = vadd.f32 0.0, %v8747
      %v8749 = vpop.f32.mrf.mxu0
      %v8750 = vadd.f32 0.0, %v8749
      %8751 = vmatmul.bf16.gmra.mxu0 %v8507
      %v8752 = vpop.f32.mrf.mxu0
      %v8753 = vadd.f32 0.0, %v8752
      %v8754 = vpop.f32.mrf.mxu0
      %v8755 = vadd.f32 0.0, %v8754
      %8756 = vmatmul.bf16.gmra.mxu0 %v8510
      %v8757 = vpop.f32.mrf.mxu0
      %v8758 = vadd.f32 0.0, %v8757
      %v8759 = vpop.f32.mrf.mxu0
      %v8760 = vadd.f32 0.0, %v8759
      %8761 = vdwg.mxu0
      %8762 = vmatpush.bf16.msra.mxu0 %v8671
      %8763 = vmatpush.bf16.msra.mxu0 %v8669
      %8764 = vmatpush.bf16.msra.mxu0 %v8667
      %8765 = vmatpush.bf16.msra.mxu0 %v8665
      %8766 = vmatpush.bf16.msra.mxu0 %v8663
      %8767 = vmatpush.bf16.msra.mxu0 %v8661
      %8768 = vmatpush.bf16.msra.mxu0 %v8659
      %8769 = vmatpush.bf16.msra.mxu0 %v8657
      %8770 = vmatmul.bf16.gmra.mxu0 %v8502
      %v8771 = vpop.f32.mrf.mxu0
      %v8772 = vadd.f32 %v8743, %v8771
      %v8773 = vpop.f32.mrf.mxu0
      %v8774 = vadd.f32 %v8745, %v8773
      %8775 = vmatmul.bf16.gmra.mxu0 %v8505
      %v8776 = vpop.f32.mrf.mxu0
      %v8777 = vadd.f32 %v8748, %v8776
      %v8778 = vpop.f32.mrf.mxu0
      %v8779 = vadd.f32 %v8750, %v8778
      %8780 = vmatmul.bf16.gmra.mxu0 %v8508
      %v8781 = vpop.f32.mrf.mxu0
      %v8782 = vadd.f32 %v8753, %v8781
      %v8783 = vpop.f32.mrf.mxu0
      %v8784 = vadd.f32 %v8755, %v8783
      %8785 = vmatmul.bf16.gmra.mxu0 %v8511
      %v8786 = vpop.f32.mrf.mxu0
      %v8787 = vadd.f32 %v8758, %v8786
      %v8788 = vpop.f32.mrf.mxu0
      %v8789 = vadd.f32 %v8760, %v8788
      %8790 = vdwg.mxu0
      %8791 = vmatpush.bf16.msra.mxu0 0
      %8792 = vmatpush.bf16.msra.mxu0 0
      %8793 = vmatpush.bf16.msra.mxu0 0
      %8794 = vmatpush.bf16.msra.mxu0 0
      %8795 = vmatpush.bf16.msra.mxu0 %v8679
      %8796 = vmatpush.bf16.msra.mxu0 %v8677
      %8797 = vmatpush.bf16.msra.mxu0 %v8675
      %8798 = vmatpush.bf16.msra.mxu0 %v8673
      %8799 = vmatmul.bf16.gmra.mxu0 %v8722
      %v8800 = vpop.f32.mrf.mxu0
      %v8801 = vadd.f32 %v8772, %v8800
      %v8802 = vpop.f32.mrf.mxu0
      %v8803 = vadd.f32 %v8774, %v8802
      %8804 = vmatmul.bf16.gmra.mxu0 %v8725
      %v8805 = vpop.f32.mrf.mxu0
      %v8806 = vadd.f32 %v8777, %v8805
      %v8807 = vpop.f32.mrf.mxu0
      %v8808 = vadd.f32 %v8779, %v8807
      %8809 = vmatmul.bf16.gmra.mxu0 %v8728
      %v8810 = vpop.f32.mrf.mxu0
      %v8811 = vadd.f32 %v8782, %v8810
      %v8812 = vpop.f32.mrf.mxu0
      %v8813 = vadd.f32 %v8784, %v8812
      %8814 = vmatmul.bf16.gmra.mxu0 %v8731
      %v8815 = vpop.f32.mrf.mxu0
      %v8816 = vadd.f32 %v8787, %v8815
      %v8817 = vpop.f32.mrf.mxu0
      %v8818 = vadd.f32 %v8789, %v8817
      %8819 = vdwg.mxu0
      %8820 = vmatpush.bf16.msra.mxu0 %v8656
      %8821 = vmatpush.bf16.msra.mxu0 %v8654
      %8822 = vmatpush.bf16.msra.mxu0 %v8652
      %8823 = vmatpush.bf16.msra.mxu0 %v8650
      %8824 = vmatpush.bf16.msra.mxu0 %v8648
      %8825 = vmatpush.bf16.msra.mxu0 %v8646
      %8826 = vmatpush.bf16.msra.mxu0 %v8644
      %8827 = vmatpush.bf16.msra.mxu0 %v8642
      %8828 = vmatmul.bf16.gmra.mxu0 %v8501
      %v8829 = vpop.f32.mrf.mxu0
      %v8830 = vadd.f32 0.0, %v8829
      %v8831 = vpop.f32.mrf.mxu0
      %v8832 = vadd.f32 0.0, %v8831
      %8833 = vmatmul.bf16.gmra.mxu0 %v8504
      %v8834 = vpop.f32.mrf.mxu0
      %v8835 = vadd.f32 0.0, %v8834
      %v8836 = vpop.f32.mrf.mxu0
      %v8837 = vadd.f32 0.0, %v8836
      %8838 = vmatmul.bf16.gmra.mxu0 %v8507
      %v8839 = vpop.f32.mrf.mxu0
      %v8840 = vadd.f32 0.0, %v8839
      %v8841 = vpop.f32.mrf.mxu0
      %v8842 = vadd.f32 0.0, %v8841
      %8843 = vmatmul.bf16.gmra.mxu0 %v8510
      %v8844 = vpop.f32.mrf.mxu0
      %v8845 = vadd.f32 0.0, %v8844
      %v8846 = vpop.f32.mrf.mxu0
      %v8847 = vadd.f32 0.0, %v8846
      %8848 = vdwg.mxu0
      %8849 = vmatpush.bf16.msra.mxu0 %v8672
      %8850 = vmatpush.bf16.msra.mxu0 %v8670
      %8851 = vmatpush.bf16.msra.mxu0 %v8668
      %8852 = vmatpush.bf16.msra.mxu0 %v8666
      %8853 = vmatpush.bf16.msra.mxu0 %v8664
      %8854 = vmatpush.bf16.msra.mxu0 %v8662
      %8855 = vmatpush.bf16.msra.mxu0 %v8660
      %8856 = vmatpush.bf16.msra.mxu0 %v8658
      %8857 = vmatmul.bf16.gmra.mxu0 %v8502
      %v8858 = vpop.f32.mrf.mxu0
      %v8859 = vadd.f32 %v8830, %v8858
      %v8860 = vpop.f32.mrf.mxu0
      %v8861 = vadd.f32 %v8832, %v8860
      %8862 = vmatmul.bf16.gmra.mxu0 %v8505
      %v8863 = vpop.f32.mrf.mxu0
      %v8864 = vadd.f32 %v8835, %v8863
      %v8865 = vpop.f32.mrf.mxu0
      %v8866 = vadd.f32 %v8837, %v8865
      %8867 = vmatmul.bf16.gmra.mxu0 %v8508
      %v8868 = vpop.f32.mrf.mxu0
      %v8869 = vadd.f32 %v8840, %v8868
      %v8870 = vpop.f32.mrf.mxu0
      %v8871 = vadd.f32 %v8842, %v8870
      %8872 = vmatmul.bf16.gmra.mxu0 %v8511
      %v8873 = vpop.f32.mrf.mxu0
      %v8874 = vadd.f32 %v8845, %v8873
      %v8875 = vpop.f32.mrf.mxu0
      %v8876 = vadd.f32 %v8847, %v8875
      %8877 = vdwg.mxu0
      %8878 = vmatpush.bf16.msra.mxu0 0
      %8879 = vmatpush.bf16.msra.mxu0 0
      %8880 = vmatpush.bf16.msra.mxu0 0
      %8881 = vmatpush.bf16.msra.mxu0 0
      %8882 = vmatpush.bf16.msra.mxu0 %v8680
      %8883 = vmatpush.bf16.msra.mxu0 %v8678
      %8884 = vmatpush.bf16.msra.mxu0 %v8676
      %8885 = vmatpush.bf16.msra.mxu0 %v8674
      %8886 = vmatmul.bf16.gmra.mxu0 %v8722
      %v8887 = vpop.f32.mrf.mxu0
      %v8888 = vadd.f32 %v8859, %v8887
      %v8889 = vpop.f32.mrf.mxu0
      %v8890 = vadd.f32 %v8861, %v8889
      %8891 = vmatmul.bf16.gmra.mxu0 %v8725
      %v8892 = vpop.f32.mrf.mxu0
      %v8893 = vadd.f32 %v8864, %v8892
      %v8894 = vpop.f32.mrf.mxu0
      %v8895 = vadd.f32 %v8866, %v8894
      %8896 = vmatmul.bf16.gmra.mxu0 %v8728
      %v8897 = vpop.f32.mrf.mxu0
      %v8898 = vadd.f32 %v8869, %v8897
      %v8899 = vpop.f32.mrf.mxu0
      %v8900 = vadd.f32 %v8871, %v8899
      %8901 = vmatmul.bf16.gmra.mxu0 %v8731
      %v8902 = vpop.f32.mrf.mxu0
      %v8903 = vadd.f32 %v8874, %v8902
      %v8904 = vpop.f32.mrf.mxu0
      %v8905 = vadd.f32 %v8876, %v8904
      %8906 = vdwg.mxu0
      %v8907 = vadd.f32 %v8244, %v8801
      %v8908 = vadd.f32 %v8245, %v8888
      %v8909 = vadd.f32 %v8246, %v8803
      %v8910 = vadd.f32 %v8247, %v8890
      %v8911 = vadd.f32 %v8248, %v8806
      %v8912 = vadd.f32 %v8249, %v8893
      %v8913 = vadd.f32 %v8250, %v8808
      %v8914 = vadd.f32 %v8251, %v8895
      %v8915 = vadd.f32 %v8252, %v8811
      %v8916 = vadd.f32 %v8253, %v8898
      %v8917 = vadd.f32 %v8254, %v8813
      %v8918 = vadd.f32 %v8255, %v8900
      %v8919 = vadd.f32 %v8256, %v8816
      %v8920 = vadd.f32 %v8257, %v8903
      %v8921 = vadd.f32 %v8258, %v8818
      %v8922 = vadd.f32 %v8259, %v8905
      %s8923 = scalar_lea.vmem [#allocation3], 96
      %v8924 = vld [vmem:[%s8923] sm:$0xff]
      %v8925 = vld [vmem:[%s8923 + $0x8] sm:$0xff]
      %v8926 = vld [vmem:[%s8923 + $0x10] sm:$0xff]
      %v8927 = vld [vmem:[%s8923 + $0x30] sm:$0xff]
      %v8928 = vld [vmem:[%s8923 + $0x38] sm:$0xff]
      %v8929 = vld [vmem:[%s8923 + $0x40] sm:$0xff]
      %v8930 = vld [vmem:[%s8923 + $0x60] sm:$0xff]
      %v8931 = vld [vmem:[%s8923 + $0x68] sm:$0xff]
      %v8932 = vld [vmem:[%s8923 + $0x70] sm:$0xff]
      %v8933 = vld [vmem:[%s8923 + $0x90] sm:$0xff]
      %v8934 = vld [vmem:[%s8923 + $0x98] sm:$0xff]
      %v8935 = vld [vmem:[%s8923 + $0xa0] sm:$0xff]
      %v8936 = vld [vmem:[%s8923 + $0xc0] sm:$0xff]
      %v8937 = vld [vmem:[%s8923 + $0xc8] sm:$0xff]
      %v8938 = vld [vmem:[%s8923 + $0xd0] sm:$0xff]
      %v8939 = vld [vmem:[%s8923 + $0xf0] sm:$0xff]
      %v8940 = vld [vmem:[%s8923 + $0xf8] sm:$0xff]
      %v8941 = vld [vmem:[%s8923 + $0x100] sm:$0xff]
      %v8942 = vld [vmem:[%s8923 + $0x120] sm:$0xff]
      %v8943 = vld [vmem:[%s8923 + $0x128] sm:$0xff]
      %v8944 = vld [vmem:[%s8923 + $0x130] sm:$0xff]
      %v8945 = vld [vmem:[%s8923 + $0x150] sm:$0xff]
      %v8946 = vld [vmem:[%s8923 + $0x158] sm:$0xff]
      %v8947 = vld [vmem:[%s8923 + $0x160] sm:$0xff]
      %v8948 = vpack.c.bf16 %v8925, %v8924
      %v8949 = vpack.c.bf16 %v8926, %v8926
      %v8950 = vpack.c.bf16 %v8928, %v8927
      %v8951 = vpack.c.bf16 %v8929, %v8929
      %v8952 = vpack.c.bf16 %v8931, %v8930
      %v8953 = vpack.c.bf16 %v8932, %v8932
      %v8954 = vpack.c.bf16 %v8934, %v8933
      %v8955 = vpack.c.bf16 %v8935, %v8935
      %v8956 = vpack.c.bf16 %v8937, %v8936
      %v8957 = vpack.c.bf16 %v8938, %v8938
      %v8958 = vpack.c.bf16 %v8940, %v8939
      %v8959 = vpack.c.bf16 %v8941, %v8941
      %v8960 = vpack.c.bf16 %v8943, %v8942
      %v8961 = vpack.c.bf16 %v8944, %v8944
      %v8962 = vpack.c.bf16 %v8946, %v8945
      %v8963 = vpack.c.bf16 %v8947, %v8947
      %s8964 = scalar_lea.vmem %s5, 1920
      %v8965 = vld [vmem:[%s8964] sm:$0xff]
      %v8966 = vld [vmem:[%s8964 + $0x8] sm:$0xff]
      %v8967 = vld [vmem:[%s8964 + $0x10] sm:$0xff]
      %v8968 = vld [vmem:[%s8964 + $0x18] sm:$0xff]
      %v8969 = vld [vmem:[%s8964 + $0x20] sm:$0xff]
      %v8970 = vld [vmem:[%s8964 + $0x28] sm:$0xff]
      %v8971 = vld [vmem:[%s8964 + $0x30] sm:$0xff]
      %v8972 = vld [vmem:[%s8964 + $0x38] sm:$0xff]
      %v8973 = vld [vmem:[%s8964 + $0x40] sm:$0xff]
      %v8974 = vld [vmem:[%s8964 + $0x48] sm:$0xff]
      %v8975 = vld [vmem:[%s8964 + $0x50] sm:$0xff]
      %v8976 = vld [vmem:[%s8964 + $0x58] sm:$0xff]
      %v8977 = vld [vmem:[%s8964 + $0x60] sm:$0xff]
      %v8978 = vld [vmem:[%s8964 + $0x68] sm:$0xff]
      %v8979 = vld [vmem:[%s8964 + $0x70] sm:$0xff]
      %v8980 = vld [vmem:[%s8964 + $0x78] sm:$0xff]
      %v8981 = vld [vmem:[%s8964 + $0x80] sm:$0xff]
      %v8982 = vld [vmem:[%s8964 + $0x88] sm:$0xff]
      %v8983 = vld [vmem:[%s8964 + $0x90] sm:$0xff]
      %v8984 = vld [vmem:[%s8964 + $0x98] sm:$0xff]
      %v8985 = vld [vmem:[%s8964 + $0xa0] sm:$0xff]
      %v8986 = vld [vmem:[%s8964 + $0xa8] sm:$0xff]
      %v8987 = vld [vmem:[%s8964 + $0xb0] sm:$0xff]
      %v8988 = vld [vmem:[%s8964 + $0xb8] sm:$0xff]
      %v8989 = vld [vmem:[%s8964 + $0xc0] sm:$0xff]
      %v8990 = vld [vmem:[%s8964 + $0xc8] sm:$0xff]
      %v8991 = vld [vmem:[%s8964 + $0xd0] sm:$0xff]
      %v8992 = vld [vmem:[%s8964 + $0xd8] sm:$0xff]
      %v8993 = vld [vmem:[%s8964 + $0xe0] sm:$0xff]
      %v8994 = vld [vmem:[%s8964 + $0xe8] sm:$0xff]
      %v8995 = vld [vmem:[%s8964 + $0xf0] sm:$0xff]
      %v8996 = vld [vmem:[%s8964 + $0xf8] sm:$0xff]
      %v8997 = vld [vmem:[%s8964 + $0x100] sm:$0xff]
      %v8998 = vld [vmem:[%s8964 + $0x108] sm:$0xff]
      %v8999 = vld [vmem:[%s8964 + $0x110] sm:$0xff]
      %v9000 = vld [vmem:[%s8964 + $0x118] sm:$0xff]
      %v9001 = vld [vmem:[%s8964 + $0x120] sm:$0xff]
      %v9002 = vld [vmem:[%s8964 + $0x128] sm:$0xff]
      %v9003 = vld [vmem:[%s8964 + $0x130] sm:$0xff]
      %v9004 = vld [vmem:[%s8964 + $0x138] sm:$0xff]
      %v9021 = vunpack.c.l.b16 %v8948
      %v9022 = vunpack.c.h.b16 %v8948
      %v9023 = vunpack.c.l.b16 %v8949
      %v9024 = vunpack.c.l.b16 %v8950
      %v9025 = vunpack.c.h.b16 %v8950
      %v9026 = vunpack.c.l.b16 %v8951
      %v9027 = vunpack.c.l.b16 %v8952
      %v9028 = vunpack.c.h.b16 %v8952
      %v9029 = vunpack.c.l.b16 %v8953
      %v9030 = vunpack.c.l.b16 %v8954
      %v9031 = vunpack.c.h.b16 %v8954
      %v9032 = vunpack.c.l.b16 %v8955
      %v9033 = vunpack.c.l.b16 %v8956
      %v9034 = vunpack.c.h.b16 %v8956
      %v9035 = vunpack.c.l.b16 %v8957
      %v9036 = vunpack.c.l.b16 %v8958
      %v9037 = vunpack.c.h.b16 %v8958
      %v9038 = vunpack.c.l.b16 %v8959
      %v9039 = vunpack.c.l.b16 %v8960
      %v9040 = vunpack.c.h.b16 %v8960
      %v9041 = vunpack.c.l.b16 %v8961
      %v9042 = vunpack.c.l.b16 %v8962
      %v9043 = vunpack.c.h.b16 %v8962
      %v9044 = vunpack.c.l.b16 %v8963
      %v9045 = vpack.c.b16 %v9024, %v9021
      %v9046 = vpack.c.b16 %v9025, %v9022
      %v9047 = vpack.c.b16 %v9026, %v9023
      %v9048 = vpack.c.b16 %v9030, %v9027
      %v9049 = vpack.c.b16 %v9031, %v9028
      %v9050 = vpack.c.b16 %v9032, %v9029
      %v9051 = vpack.c.b16 %v9036, %v9033
      %v9052 = vpack.c.b16 %v9037, %v9034
      %v9053 = vpack.c.b16 %v9038, %v9035
      %v9054 = vpack.c.b16 %v9042, %v9039
      %v9055 = vpack.c.b16 %v9043, %v9040
      %v9056 = vpack.c.b16 %v9044, %v9041
      %v9105 = vunpack.c.l.b16 %v8965
      %v9106 = vunpack.c.h.b16 %v8965
      %v9107 = vunpack.c.l.b16 %v8966
      %v9108 = vunpack.c.h.b16 %v8966
      %v9109 = vunpack.c.l.b16 %v8967
      %v9110 = vunpack.c.h.b16 %v8967
      %v9111 = vunpack.c.l.b16 %v8968
      %v9112 = vunpack.c.h.b16 %v8968
      %v9113 = vunpack.c.l.b16 %v8969
      %v9114 = vunpack.c.h.b16 %v8969
      %v9115 = vunpack.c.l.b16 %v8970
      %v9116 = vunpack.c.h.b16 %v8970
      %v9117 = vunpack.c.l.b16 %v8971
      %v9118 = vunpack.c.h.b16 %v8971
      %v9119 = vunpack.c.l.b16 %v8972
      %v9120 = vunpack.c.h.b16 %v8972
      %v9121 = vunpack.c.l.b16 %v8973
      %v9122 = vunpack.c.h.b16 %v8973
      %v9123 = vunpack.c.l.b16 %v8974
      %v9124 = vunpack.c.h.b16 %v8974
      %v9125 = vunpack.c.l.b16 %v8975
      %v9126 = vunpack.c.h.b16 %v8975
      %v9127 = vunpack.c.l.b16 %v8976
      %v9128 = vunpack.c.h.b16 %v8976
      %v9129 = vunpack.c.l.b16 %v8977
      %v9130 = vunpack.c.h.b16 %v8977
      %v9131 = vunpack.c.l.b16 %v8978
      %v9132 = vunpack.c.h.b16 %v8978
      %v9133 = vunpack.c.l.b16 %v8979
      %v9134 = vunpack.c.h.b16 %v8979
      %v9135 = vunpack.c.l.b16 %v8980
      %v9136 = vunpack.c.h.b16 %v8980
      %v9137 = vunpack.c.l.b16 %v8981
      %v9138 = vunpack.c.h.b16 %v8981
      %v9139 = vunpack.c.l.b16 %v8982
      %v9140 = vunpack.c.h.b16 %v8982
      %v9141 = vunpack.c.l.b16 %v8983
      %v9142 = vunpack.c.h.b16 %v8983
      %v9143 = vunpack.c.l.b16 %v8984
      %v9144 = vunpack.c.h.b16 %v8984
      %v9145 = vunpack.c.l.b16 %v8985
      %v9146 = vunpack.c.h.b16 %v8985
      %v9147 = vunpack.c.l.b16 %v8986
      %v9148 = vunpack.c.h.b16 %v8986
      %v9149 = vunpack.c.l.b16 %v8987
      %v9150 = vunpack.c.h.b16 %v8987
      %v9151 = vunpack.c.l.b16 %v8988
      %v9152 = vunpack.c.h.b16 %v8988
      %v9153 = vunpack.c.l.b16 %v8989
      %v9154 = vunpack.c.h.b16 %v8989
      %v9155 = vunpack.c.l.b16 %v8990
      %v9156 = vunpack.c.h.b16 %v8990
      %v9157 = vunpack.c.l.b16 %v8991
      %v9158 = vunpack.c.h.b16 %v8991
      %v9159 = vunpack.c.l.b16 %v8992
      %v9160 = vunpack.c.h.b16 %v8992
      %v9161 = vunpack.c.l.b16 %v8993
      %v9162 = vunpack.c.h.b16 %v8993
      %v9163 = vunpack.c.l.b16 %v8994
      %v9164 = vunpack.c.h.b16 %v8994
      %v9165 = vunpack.c.l.b16 %v8995
      %v9166 = vunpack.c.h.b16 %v8995
      %v9167 = vunpack.c.l.b16 %v8996
      %v9168 = vunpack.c.h.b16 %v8996
      %v9169 = vunpack.c.l.b16 %v8997
      %v9170 = vunpack.c.h.b16 %v8997
      %v9171 = vunpack.c.l.b16 %v8998
      %v9172 = vunpack.c.h.b16 %v8998
      %v9173 = vunpack.c.l.b16 %v8999
      %v9174 = vunpack.c.h.b16 %v8999
      %v9175 = vunpack.c.l.b16 %v9000
      %v9176 = vunpack.c.h.b16 %v9000
      %v9177 = vunpack.c.l.b16 %v9001
      %v9178 = vunpack.c.h.b16 %v9001
      %v9179 = vunpack.c.l.b16 %v9002
      %v9180 = vunpack.c.h.b16 %v9002
      %v9181 = vunpack.c.l.b16 %v9003
      %v9182 = vunpack.c.h.b16 %v9003
      %v9183 = vunpack.c.l.b16 %v9004
      %v9184 = vunpack.c.h.b16 %v9004
      %v9185 = vpack.c.b16 %v9107, %v9105
      %v9186 = vpack.c.b16 %v9108, %v9106
      %v9187 = vpack.c.b16 %v9111, %v9109
      %v9188 = vpack.c.b16 %v9112, %v9110
      %v9189 = vpack.c.b16 %v9115, %v9113
      %v9190 = vpack.c.b16 %v9116, %v9114
      %v9191 = vpack.c.b16 %v9119, %v9117
      %v9192 = vpack.c.b16 %v9120, %v9118
      %v9193 = vpack.c.b16 %v9123, %v9121
      %v9194 = vpack.c.b16 %v9124, %v9122
      %v9195 = vpack.c.b16 %v9127, %v9125
      %v9196 = vpack.c.b16 %v9128, %v9126
      %v9197 = vpack.c.b16 %v9131, %v9129
      %v9198 = vpack.c.b16 %v9132, %v9130
      %v9199 = vpack.c.b16 %v9135, %v9133
      %v9200 = vpack.c.b16 %v9136, %v9134
      %v9201 = vpack.c.b16 %v9139, %v9137
      %v9202 = vpack.c.b16 %v9140, %v9138
      %v9203 = vpack.c.b16 %v9143, %v9141
      %v9204 = vpack.c.b16 %v9144, %v9142
      %v9205 = vpack.c.b16 %v9147, %v9145
      %v9206 = vpack.c.b16 %v9148, %v9146
      %v9207 = vpack.c.b16 %v9151, %v9149
      %v9208 = vpack.c.b16 %v9152, %v9150
      %v9209 = vpack.c.b16 %v9155, %v9153
      %v9210 = vpack.c.b16 %v9156, %v9154
      %v9211 = vpack.c.b16 %v9159, %v9157
      %v9212 = vpack.c.b16 %v9160, %v9158
      %v9213 = vpack.c.b16 %v9163, %v9161
      %v9214 = vpack.c.b16 %v9164, %v9162
      %v9215 = vpack.c.b16 %v9167, %v9165
      %v9216 = vpack.c.b16 %v9168, %v9166
      %v9217 = vpack.c.b16 %v9171, %v9169
      %v9218 = vpack.c.b16 %v9172, %v9170
      %v9219 = vpack.c.b16 %v9175, %v9173
      %v9220 = vpack.c.b16 %v9176, %v9174
      %v9221 = vpack.c.b16 %v9179, %v9177
      %v9222 = vpack.c.b16 %v9180, %v9178
      %v9223 = vpack.c.b16 %v9183, %v9181
      %v9224 = vpack.c.b16 %v9184, %v9182
      %v9266 = vsel %vm486, %v9047, 0
      %v9269 = vsel %vm486, %v9050, 0
      %v9272 = vsel %vm486, %v9053, 0
      %v9275 = vsel %vm486, %v9056, 0
      %9277 = vmatpush.bf16.msra.mxu0 %v9199
      %9278 = vmatpush.bf16.msra.mxu0 %v9197
      %9279 = vmatpush.bf16.msra.mxu0 %v9195
      %9280 = vmatpush.bf16.msra.mxu0 %v9193
      %9281 = vmatpush.bf16.msra.mxu0 %v9191
      %9282 = vmatpush.bf16.msra.mxu0 %v9189
      %9283 = vmatpush.bf16.msra.mxu0 %v9187
      %9284 = vmatpush.bf16.msra.mxu0 %v9185
      %9285 = vmatmul.bf16.gmra.mxu0 %v9045
      %v9286 = vpop.f32.mrf.mxu0
      %v9287 = vadd.f32 0.0, %v9286
      %v9288 = vpop.f32.mrf.mxu0
      %v9289 = vadd.f32 0.0, %v9288
      %9290 = vmatmul.bf16.gmra.mxu0 %v9048
      %v9291 = vpop.f32.mrf.mxu0
      %v9292 = vadd.f32 0.0, %v9291
      %v9293 = vpop.f32.mrf.mxu0
      %v9294 = vadd.f32 0.0, %v9293
      %9295 = vmatmul.bf16.gmra.mxu0 %v9051
      %v9296 = vpop.f32.mrf.mxu0
      %v9297 = vadd.f32 0.0, %v9296
      %v9298 = vpop.f32.mrf.mxu0
      %v9299 = vadd.f32 0.0, %v9298
      %9300 = vmatmul.bf16.gmra.mxu0 %v9054
      %v9301 = vpop.f32.mrf.mxu0
      %v9302 = vadd.f32 0.0, %v9301
      %v9303 = vpop.f32.mrf.mxu0
      %v9304 = vadd.f32 0.0, %v9303
      %9305 = vdwg.mxu0
      %9306 = vmatpush.bf16.msra.mxu0 %v9215
      %9307 = vmatpush.bf16.msra.mxu0 %v9213
      %9308 = vmatpush.bf16.msra.mxu0 %v9211
      %9309 = vmatpush.bf16.msra.mxu0 %v9209
      %9310 = vmatpush.bf16.msra.mxu0 %v9207
      %9311 = vmatpush.bf16.msra.mxu0 %v9205
      %9312 = vmatpush.bf16.msra.mxu0 %v9203
      %9313 = vmatpush.bf16.msra.mxu0 %v9201
      %9314 = vmatmul.bf16.gmra.mxu0 %v9046
      %v9315 = vpop.f32.mrf.mxu0
      %v9316 = vadd.f32 %v9287, %v9315
      %v9317 = vpop.f32.mrf.mxu0
      %v9318 = vadd.f32 %v9289, %v9317
      %9319 = vmatmul.bf16.gmra.mxu0 %v9049
      %v9320 = vpop.f32.mrf.mxu0
      %v9321 = vadd.f32 %v9292, %v9320
      %v9322 = vpop.f32.mrf.mxu0
      %v9323 = vadd.f32 %v9294, %v9322
      %9324 = vmatmul.bf16.gmra.mxu0 %v9052
      %v9325 = vpop.f32.mrf.mxu0
      %v9326 = vadd.f32 %v9297, %v9325
      %v9327 = vpop.f32.mrf.mxu0
      %v9328 = vadd.f32 %v9299, %v9327
      %9329 = vmatmul.bf16.gmra.mxu0 %v9055
      %v9330 = vpop.f32.mrf.mxu0
      %v9331 = vadd.f32 %v9302, %v9330
      %v9332 = vpop.f32.mrf.mxu0
      %v9333 = vadd.f32 %v9304, %v9332
      %9334 = vdwg.mxu0
      %9335 = vmatpush.bf16.msra.mxu0 0
      %9336 = vmatpush.bf16.msra.mxu0 0
      %9337 = vmatpush.bf16.msra.mxu0 0
      %9338 = vmatpush.bf16.msra.mxu0 0
      %9339 = vmatpush.bf16.msra.mxu0 %v9223
      %9340 = vmatpush.bf16.msra.mxu0 %v9221
      %9341 = vmatpush.bf16.msra.mxu0 %v9219
      %9342 = vmatpush.bf16.msra.mxu0 %v9217
      %9343 = vmatmul.bf16.gmra.mxu0 %v9266
      %v9344 = vpop.f32.mrf.mxu0
      %v9345 = vadd.f32 %v9316, %v9344
      %v9346 = vpop.f32.mrf.mxu0
      %v9347 = vadd.f32 %v9318, %v9346
      %9348 = vmatmul.bf16.gmra.mxu0 %v9269
      %v9349 = vpop.f32.mrf.mxu0
      %v9350 = vadd.f32 %v9321, %v9349
      %v9351 = vpop.f32.mrf.mxu0
      %v9352 = vadd.f32 %v9323, %v9351
      %9353 = vmatmul.bf16.gmra.mxu0 %v9272
      %v9354 = vpop.f32.mrf.mxu0
      %v9355 = vadd.f32 %v9326, %v9354
      %v9356 = vpop.f32.mrf.mxu0
      %v9357 = vadd.f32 %v9328, %v9356
      %9358 = vmatmul.bf16.gmra.mxu0 %v9275
      %v9359 = vpop.f32.mrf.mxu0
      %v9360 = vadd.f32 %v9331, %v9359
      %v9361 = vpop.f32.mrf.mxu0
      %v9362 = vadd.f32 %v9333, %v9361
      %9363 = vdwg.mxu0
      %9364 = vmatpush.bf16.msra.mxu0 %v9200
      %9365 = vmatpush.bf16.msra.mxu0 %v9198
      %9366 = vmatpush.bf16.msra.mxu0 %v9196
      %9367 = vmatpush.bf16.msra.mxu0 %v9194
      %9368 = vmatpush.bf16.msra.mxu0 %v9192
      %9369 = vmatpush.bf16.msra.mxu0 %v9190
      %9370 = vmatpush.bf16.msra.mxu0 %v9188
      %9371 = vmatpush.bf16.msra.mxu0 %v9186
      %9372 = vmatmul.bf16.gmra.mxu0 %v9045
      %v9373 = vpop.f32.mrf.mxu0
      %v9374 = vadd.f32 0.0, %v9373
      %v9375 = vpop.f32.mrf.mxu0
      %v9376 = vadd.f32 0.0, %v9375
      %9377 = vmatmul.bf16.gmra.mxu0 %v9048
      %v9378 = vpop.f32.mrf.mxu0
      %v9379 = vadd.f32 0.0, %v9378
      %v9380 = vpop.f32.mrf.mxu0
      %v9381 = vadd.f32 0.0, %v9380
      %9382 = vmatmul.bf16.gmra.mxu0 %v9051
      %v9383 = vpop.f32.mrf.mxu0
      %v9384 = vadd.f32 0.0, %v9383
      %v9385 = vpop.f32.mrf.mxu0
      %v9386 = vadd.f32 0.0, %v9385
      %9387 = vmatmul.bf16.gmra.mxu0 %v9054
      %v9388 = vpop.f32.mrf.mxu0
      %v9389 = vadd.f32 0.0, %v9388
      %v9390 = vpop.f32.mrf.mxu0
      %v9391 = vadd.f32 0.0, %v9390
      %9392 = vdwg.mxu0
      %9393 = vmatpush.bf16.msra.mxu0 %v9216
      %9394 = vmatpush.bf16.msra.mxu0 %v9214
      %9395 = vmatpush.bf16.msra.mxu0 %v9212
      %9396 = vmatpush.bf16.msra.mxu0 %v9210
      %9397 = vmatpush.bf16.msra.mxu0 %v9208
      %9398 = vmatpush.bf16.msra.mxu0 %v9206
      %9399 = vmatpush.bf16.msra.mxu0 %v9204
      %9400 = vmatpush.bf16.msra.mxu0 %v9202
      %9401 = vmatmul.bf16.gmra.mxu0 %v9046
      %v9402 = vpop.f32.mrf.mxu0
      %v9403 = vadd.f32 %v9374, %v9402
      %v9404 = vpop.f32.mrf.mxu0
      %v9405 = vadd.f32 %v9376, %v9404
      %9406 = vmatmul.bf16.gmra.mxu0 %v9049
      %v9407 = vpop.f32.mrf.mxu0
      %v9408 = vadd.f32 %v9379, %v9407
      %v9409 = vpop.f32.mrf.mxu0
      %v9410 = vadd.f32 %v9381, %v9409
      %9411 = vmatmul.bf16.gmra.mxu0 %v9052
      %v9412 = vpop.f32.mrf.mxu0
      %v9413 = vadd.f32 %v9384, %v9412
      %v9414 = vpop.f32.mrf.mxu0
      %v9415 = vadd.f32 %v9386, %v9414
      %9416 = vmatmul.bf16.gmra.mxu0 %v9055
      %v9417 = vpop.f32.mrf.mxu0
      %v9418 = vadd.f32 %v9389, %v9417
      %v9419 = vpop.f32.mrf.mxu0
      %v9420 = vadd.f32 %v9391, %v9419
      %9421 = vdwg.mxu0
      %9422 = vmatpush.bf16.msra.mxu0 0
      %9423 = vmatpush.bf16.msra.mxu0 0
      %9424 = vmatpush.bf16.msra.mxu0 0
      %9425 = vmatpush.bf16.msra.mxu0 0
      %9426 = vmatpush.bf16.msra.mxu0 %v9224
      %9427 = vmatpush.bf16.msra.mxu0 %v9222
      %9428 = vmatpush.bf16.msra.mxu0 %v9220
      %9429 = vmatpush.bf16.msra.mxu0 %v9218
      %9430 = vmatmul.bf16.gmra.mxu0 %v9266
      %v9431 = vpop.f32.mrf.mxu0
      %v9432 = vadd.f32 %v9403, %v9431
      %v9433 = vpop.f32.mrf.mxu0
      %v9434 = vadd.f32 %v9405, %v9433
      %9435 = vmatmul.bf16.gmra.mxu0 %v9269
      %v9436 = vpop.f32.mrf.mxu0
      %v9437 = vadd.f32 %v9408, %v9436
      %v9438 = vpop.f32.mrf.mxu0
      %v9439 = vadd.f32 %v9410, %v9438
      %9440 = vmatmul.bf16.gmra.mxu0 %v9272
      %v9441 = vpop.f32.mrf.mxu0
      %v9442 = vadd.f32 %v9413, %v9441
      %v9443 = vpop.f32.mrf.mxu0
      %v9444 = vadd.f32 %v9415, %v9443
      %9445 = vmatmul.bf16.gmra.mxu0 %v9275
      %v9446 = vpop.f32.mrf.mxu0
      %v9447 = vadd.f32 %v9418, %v9446
      %v9448 = vpop.f32.mrf.mxu0
      %v9449 = vadd.f32 %v9420, %v9448
      %9450 = vdwg.mxu0
      %v9451 = vadd.f32 %v8907, %v9345
      %v9452 = vadd.f32 %v8908, %v9432
      %v9453 = vadd.f32 %v8909, %v9347
      %v9454 = vadd.f32 %v8910, %v9434
      %v9455 = vadd.f32 %v8911, %v9350
      %v9456 = vadd.f32 %v8912, %v9437
      %v9457 = vadd.f32 %v8913, %v9352
      %v9458 = vadd.f32 %v8914, %v9439
      %v9459 = vadd.f32 %v8915, %v9355
      %v9460 = vadd.f32 %v8916, %v9442
      %v9461 = vadd.f32 %v8917, %v9357
      %v9462 = vadd.f32 %v8918, %v9444
      %v9463 = vadd.f32 %v8919, %v9360
      %v9464 = vadd.f32 %v8920, %v9447
      %v9465 = vadd.f32 %v8921, %v9362
      %v9466 = vadd.f32 %v8922, %v9449
      %v9467 = vld [vmem:[%s8923] sm:$0xfe]
      %v9468 = vld [vmem:[%s8923 + $0x8] sm:$0xfe]
      %v9469 = vld [vmem:[%s8923 + $0x10] sm:$0xfe]
      %v9470 = vld [vmem:[%s8923 + $0x18] sm:$0x1]
      %v9471 = vld [vmem:[%s8923 + $0x20] sm:$0x1]
      %v9472 = vld [vmem:[%s8923 + $0x28] sm:$0x1]
      %v9473 = vld [vmem:[%s8923 + $0x30] sm:$0xfe]
      %v9474 = vld [vmem:[%s8923 + $0x38] sm:$0xfe]
      %v9475 = vld [vmem:[%s8923 + $0x40] sm:$0xfe]
      %v9476 = vld [vmem:[%s8923 + $0x48] sm:$0x1]
      %v9477 = vld [vmem:[%s8923 + $0x50] sm:$0x1]
      %v9478 = vld [vmem:[%s8923 + $0x58] sm:$0x1]
      %v9479 = vld [vmem:[%s8923 + $0x60] sm:$0xfe]
      %v9480 = vld [vmem:[%s8923 + $0x68] sm:$0xfe]
      %v9481 = vld [vmem:[%s8923 + $0x70] sm:$0xfe]
      %v9482 = vld [vmem:[%s8923 + $0x78] sm:$0x1]
      %v9483 = vld [vmem:[%s8923 + $0x80] sm:$0x1]
      %v9484 = vld [vmem:[%s8923 + $0x88] sm:$0x1]
      %v9485 = vld [vmem:[%s8923 + $0x90] sm:$0xfe]
      %v9486 = vld [vmem:[%s8923 + $0x98] sm:$0xfe]
      %v9487 = vld [vmem:[%s8923 + $0xa0] sm:$0xfe]
      %v9488 = vld [vmem:[%s8923 + $0xa8] sm:$0x1]
      %v9489 = vld [vmem:[%s8923 + $0xb0] sm:$0x1]
      %v9490 = vld [vmem:[%s8923 + $0xb8] sm:$0x1]
      %v9491 = vld [vmem:[%s8923 + $0xc0] sm:$0xfe]
      %v9492 = vld [vmem:[%s8923 + $0xc8] sm:$0xfe]
      %v9493 = vld [vmem:[%s8923 + $0xd0] sm:$0xfe]
      %v9494 = vld [vmem:[%s8923 + $0xd8] sm:$0x1]
      %v9495 = vld [vmem:[%s8923 + $0xe0] sm:$0x1]
      %v9496 = vld [vmem:[%s8923 + $0xe8] sm:$0x1]
      %v9497 = vld [vmem:[%s8923 + $0xf0] sm:$0xfe]
      %v9498 = vld [vmem:[%s8923 + $0xf8] sm:$0xfe]
      %v9499 = vld [vmem:[%s8923 + $0x100] sm:$0xfe]
      %v9500 = vld [vmem:[%s8923 + $0x108] sm:$0x1]
      %v9501 = vld [vmem:[%s8923 + $0x110] sm:$0x1]
      %v9502 = vld [vmem:[%s8923 + $0x118] sm:$0x1]
      %v9503 = vld [vmem:[%s8923 + $0x120] sm:$0xfe]
      %v9504 = vld [vmem:[%s8923 + $0x128] sm:$0xfe]
      %v9505 = vld [vmem:[%s8923 + $0x130] sm:$0xfe]
      %v9506 = vld [vmem:[%s8923 + $0x138] sm:$0x1]
      %v9507 = vld [vmem:[%s8923 + $0x140] sm:$0x1]
      %v9508 = vld [vmem:[%s8923 + $0x148] sm:$0x1]
      %v9509 = vld [vmem:[%s8923 + $0x150] sm:$0xfe]
      %v9510 = vld [vmem:[%s8923 + $0x158] sm:$0xfe]
      %v9511 = vld [vmem:[%s8923 + $0x160] sm:$0xfe]
      %v9512 = vld [vmem:[%s8923 + $0x168] sm:$0x1]
      %v9513 = vld [vmem:[%s8923 + $0x170] sm:$0x1]
      %v9514 = vld [vmem:[%s8923 + $0x178] sm:$0x1]
      %v9515 = vpack.c.bf16 %v9468, %v9467
      %v9516 = vpack.c.bf16 %v9469, %v9469
      %v9517 = vpack.c.bf16 %v9471, %v9470
      %v9518 = vpack.c.bf16 %v9472, %v9472
      %v9519 = vpack.c.bf16 %v9474, %v9473
      %v9520 = vpack.c.bf16 %v9475, %v9475
      %v9521 = vpack.c.bf16 %v9477, %v9476
      %v9522 = vpack.c.bf16 %v9478, %v9478
      %v9523 = vpack.c.bf16 %v9480, %v9479
      %v9524 = vpack.c.bf16 %v9481, %v9481
      %v9525 = vpack.c.bf16 %v9483, %v9482
      %v9526 = vpack.c.bf16 %v9484, %v9484
      %v9527 = vpack.c.bf16 %v9486, %v9485
      %v9528 = vpack.c.bf16 %v9487, %v9487
      %v9529 = vpack.c.bf16 %v9489, %v9488
      %v9530 = vpack.c.bf16 %v9490, %v9490
      %v9531 = vpack.c.bf16 %v9492, %v9491
      %v9532 = vpack.c.bf16 %v9493, %v9493
      %v9533 = vpack.c.bf16 %v9495, %v9494
      %v9534 = vpack.c.bf16 %v9496, %v9496
      %v9535 = vpack.c.bf16 %v9498, %v9497
      %v9536 = vpack.c.bf16 %v9499, %v9499
      %v9537 = vpack.c.bf16 %v9501, %v9500
      %v9538 = vpack.c.bf16 %v9502, %v9502
      %v9539 = vpack.c.bf16 %v9504, %v9503
      %v9540 = vpack.c.bf16 %v9505, %v9505
      %v9541 = vpack.c.bf16 %v9507, %v9506
      %v9542 = vpack.c.bf16 %v9508, %v9508
      %v9543 = vpack.c.bf16 %v9510, %v9509
      %v9544 = vpack.c.bf16 %v9511, %v9511
      %v9545 = vpack.c.bf16 %v9513, %v9512
      %v9546 = vpack.c.bf16 %v9514, %v9514
      %v9548 = vshrl.u32 %v9515, 16
      %v9550 = vrot.slane %v9548, 4
      %v9551 = vshll.u32 %v9515, 16
      %v9553 = vrot.slane %v9551, 5
      %v9554 = vor.u32 %v9550, %v9553
      %v9555 = vrot.slane %v9554, 4
      %v9557 = vshll.u32 %v9517, 16
      %v9559 = vrot.slane %v9557, 5
      %v9560 = vsel %vm762, %v9555, %v9559
      %v9562 = vshrl.u32 %v9516, 16
      %v9564 = vrot.slane %v9562, 4
      %v9565 = vshll.u32 %v9516, 16
      %v9567 = vrot.slane %v9565, 5
      %v9568 = vor.u32 %v9564, %v9567
      %v9569 = vrot.slane %v9568, 4
      %v9571 = vshll.u32 %v9518, 16
      %v9573 = vrot.slane %v9571, 5
      %v9574 = vsel %vm762, %v9569, %v9573
      %v9576 = vshrl.u32 %v9519, 16
      %v9578 = vrot.slane %v9576, 4
      %v9579 = vshll.u32 %v9519, 16
      %v9581 = vrot.slane %v9579, 5
      %v9582 = vor.u32 %v9578, %v9581
      %v9583 = vrot.slane %v9582, 4
      %v9585 = vshll.u32 %v9521, 16
      %v9587 = vrot.slane %v9585, 5
      %v9588 = vsel %vm762, %v9583, %v9587
      %v9590 = vshrl.u32 %v9520, 16
      %v9592 = vrot.slane %v9590, 4
      %v9593 = vshll.u32 %v9520, 16
      %v9595 = vrot.slane %v9593, 5
      %v9596 = vor.u32 %v9592, %v9595
      %v9597 = vrot.slane %v9596, 4
      %v9599 = vshll.u32 %v9522, 16
      %v9601 = vrot.slane %v9599, 5
      %v9602 = vsel %vm762, %v9597, %v9601
      %v9604 = vshrl.u32 %v9523, 16
      %v9606 = vrot.slane %v9604, 4
      %v9607 = vshll.u32 %v9523, 16
      %v9609 = vrot.slane %v9607, 5
      %v9610 = vor.u32 %v9606, %v9609
      %v9611 = vrot.slane %v9610, 4
      %v9613 = vshll.u32 %v9525, 16
      %v9615 = vrot.slane %v9613, 5
      %v9616 = vsel %vm762, %v9611, %v9615
      %v9618 = vshrl.u32 %v9524, 16
      %v9620 = vrot.slane %v9618, 4
      %v9621 = vshll.u32 %v9524, 16
      %v9623 = vrot.slane %v9621, 5
      %v9624 = vor.u32 %v9620, %v9623
      %v9625 = vrot.slane %v9624, 4
      %v9627 = vshll.u32 %v9526, 16
      %v9629 = vrot.slane %v9627, 5
      %v9630 = vsel %vm762, %v9625, %v9629
      %v9632 = vshrl.u32 %v9527, 16
      %v9634 = vrot.slane %v9632, 4
      %v9635 = vshll.u32 %v9527, 16
      %v9637 = vrot.slane %v9635, 5
      %v9638 = vor.u32 %v9634, %v9637
      %v9639 = vrot.slane %v9638, 4
      %v9641 = vshll.u32 %v9529, 16
      %v9643 = vrot.slane %v9641, 5
      %v9644 = vsel %vm762, %v9639, %v9643
      %v9646 = vshrl.u32 %v9528, 16
      %v9648 = vrot.slane %v9646, 4
      %v9649 = vshll.u32 %v9528, 16
      %v9651 = vrot.slane %v9649, 5
      %v9652 = vor.u32 %v9648, %v9651
      %v9653 = vrot.slane %v9652, 4
      %v9655 = vshll.u32 %v9530, 16
      %v9657 = vrot.slane %v9655, 5
      %v9658 = vsel %vm762, %v9653, %v9657
      %v9660 = vshrl.u32 %v9531, 16
      %v9662 = vrot.slane %v9660, 4
      %v9663 = vshll.u32 %v9531, 16
      %v9665 = vrot.slane %v9663, 5
      %v9666 = vor.u32 %v9662, %v9665
      %v9667 = vrot.slane %v9666, 4
      %v9669 = vshll.u32 %v9533, 16
      %v9671 = vrot.slane %v9669, 5
      %v9672 = vsel %vm762, %v9667, %v9671
      %v9674 = vshrl.u32 %v9532, 16
      %v9676 = vrot.slane %v9674, 4
      %v9677 = vshll.u32 %v9532, 16
      %v9679 = vrot.slane %v9677, 5
      %v9680 = vor.u32 %v9676, %v9679
      %v9681 = vrot.slane %v9680, 4
      %v9683 = vshll.u32 %v9534, 16
      %v9685 = vrot.slane %v9683, 5
      %v9686 = vsel %vm762, %v9681, %v9685
      %v9688 = vshrl.u32 %v9535, 16
      %v9690 = vrot.slane %v9688, 4
      %v9691 = vshll.u32 %v9535, 16
      %v9693 = vrot.slane %v9691, 5
      %v9694 = vor.u32 %v9690, %v9693
      %v9695 = vrot.slane %v9694, 4
      %v9697 = vshll.u32 %v9537, 16
      %v9699 = vrot.slane %v9697, 5
      %v9700 = vsel %vm762, %v9695, %v9699
      %v9702 = vshrl.u32 %v9536, 16
      %v9704 = vrot.slane %v9702, 4
      %v9705 = vshll.u32 %v9536, 16
      %v9707 = vrot.slane %v9705, 5
      %v9708 = vor.u32 %v9704, %v9707
      %v9709 = vrot.slane %v9708, 4
      %v9711 = vshll.u32 %v9538, 16
      %v9713 = vrot.slane %v9711, 5
      %v9714 = vsel %vm762, %v9709, %v9713
      %v9716 = vshrl.u32 %v9539, 16
      %v9718 = vrot.slane %v9716, 4
      %v9719 = vshll.u32 %v9539, 16
      %v9721 = vrot.slane %v9719, 5
      %v9722 = vor.u32 %v9718, %v9721
      %v9723 = vrot.slane %v9722, 4
      %v9725 = vshll.u32 %v9541, 16
      %v9727 = vrot.slane %v9725, 5
      %v9728 = vsel %vm762, %v9723, %v9727
      %v9730 = vshrl.u32 %v9540, 16
      %v9732 = vrot.slane %v9730, 4
      %v9733 = vshll.u32 %v9540, 16
      %v9735 = vrot.slane %v9733, 5
      %v9736 = vor.u32 %v9732, %v9735
      %v9737 = vrot.slane %v9736, 4
      %v9739 = vshll.u32 %v9542, 16
      %v9741 = vrot.slane %v9739, 5
      %v9742 = vsel %vm762, %v9737, %v9741
      %v9744 = vshrl.u32 %v9543, 16
      %v9746 = vrot.slane %v9744, 4
      %v9747 = vshll.u32 %v9543, 16
      %v9749 = vrot.slane %v9747, 5
      %v9750 = vor.u32 %v9746, %v9749
      %v9751 = vrot.slane %v9750, 4
      %v9753 = vshll.u32 %v9545, 16
      %v9755 = vrot.slane %v9753, 5
      %v9756 = vsel %vm762, %v9751, %v9755
      %v9758 = vshrl.u32 %v9544, 16
      %v9760 = vrot.slane %v9758, 4
      %v9761 = vshll.u32 %v9544, 16
      %v9763 = vrot.slane %v9761, 5
      %v9764 = vor.u32 %v9760, %v9763
      %v9765 = vrot.slane %v9764, 4
      %v9767 = vshll.u32 %v9546, 16
      %v9769 = vrot.slane %v9767, 5
      %v9770 = vsel %vm762, %v9765, %v9769
      %s9771 = scalar_lea.vmem %s5, 2240
      %v9772 = vld [vmem:[%s9771] sm:$0xff]
      %v9773 = vld [vmem:[%s9771 + $0x8] sm:$0xff]
      %v9774 = vld [vmem:[%s9771 + $0x10] sm:$0xff]
      %v9775 = vld [vmem:[%s9771 + $0x18] sm:$0xff]
      %v9776 = vld [vmem:[%s9771 + $0x20] sm:$0xff]
      %v9777 = vld [vmem:[%s9771 + $0x28] sm:$0xff]
      %v9778 = vld [vmem:[%s9771 + $0x30] sm:$0xff]
      %v9779 = vld [vmem:[%s9771 + $0x38] sm:$0xff]
      %v9780 = vld [vmem:[%s9771 + $0x40] sm:$0xff]
      %v9781 = vld [vmem:[%s9771 + $0x48] sm:$0xff]
      %v9782 = vld [vmem:[%s9771 + $0x50] sm:$0xff]
      %v9783 = vld [vmem:[%s9771 + $0x58] sm:$0xff]
      %v9784 = vld [vmem:[%s9771 + $0x60] sm:$0xff]
      %v9785 = vld [vmem:[%s9771 + $0x68] sm:$0xff]
      %v9786 = vld [vmem:[%s9771 + $0x70] sm:$0xff]
      %v9787 = vld [vmem:[%s9771 + $0x78] sm:$0xff]
      %v9788 = vld [vmem:[%s9771 + $0x80] sm:$0xff]
      %v9789 = vld [vmem:[%s9771 + $0x88] sm:$0xff]
      %v9790 = vld [vmem:[%s9771 + $0x90] sm:$0xff]
      %v9791 = vld [vmem:[%s9771 + $0x98] sm:$0xff]
      %v9792 = vld [vmem:[%s9771 + $0xa0] sm:$0xff]
      %v9793 = vld [vmem:[%s9771 + $0xa8] sm:$0xff]
      %v9794 = vld [vmem:[%s9771 + $0xb0] sm:$0xff]
      %v9795 = vld [vmem:[%s9771 + $0xb8] sm:$0xff]
      %v9796 = vld [vmem:[%s9771 + $0xc0] sm:$0xff]
      %v9797 = vld [vmem:[%s9771 + $0xc8] sm:$0xff]
      %v9798 = vld [vmem:[%s9771 + $0xd0] sm:$0xff]
      %v9799 = vld [vmem:[%s9771 + $0xd8] sm:$0xff]
      %v9800 = vld [vmem:[%s9771 + $0xe0] sm:$0xff]
      %v9801 = vld [vmem:[%s9771 + $0xe8] sm:$0xff]
      %v9802 = vld [vmem:[%s9771 + $0xf0] sm:$0xff]
      %v9803 = vld [vmem:[%s9771 + $0xf8] sm:$0xff]
      %v9804 = vld [vmem:[%s9771 + $0x100] sm:$0xff]
      %v9805 = vld [vmem:[%s9771 + $0x108] sm:$0xff]
      %v9806 = vld [vmem:[%s9771 + $0x110] sm:$0xff]
      %v9807 = vld [vmem:[%s9771 + $0x118] sm:$0xff]
      %v9808 = vld [vmem:[%s9771 + $0x120] sm:$0xff]
      %v9809 = vld [vmem:[%s9771 + $0x128] sm:$0xff]
      %v9810 = vld [vmem:[%s9771 + $0x130] sm:$0xff]
      %v9811 = vld [vmem:[%s9771 + $0x138] sm:$0xff]
      %v9812 = vunpack.c.l.b16 %v9560
      %v9813 = vunpack.c.h.b16 %v9560
      %v9814 = vunpack.c.l.b16 %v9574
      %v9815 = vunpack.c.l.b16 %v9588
      %v9816 = vunpack.c.h.b16 %v9588
      %v9817 = vunpack.c.l.b16 %v9602
      %v9818 = vunpack.c.l.b16 %v9616
      %v9819 = vunpack.c.h.b16 %v9616
      %v9820 = vunpack.c.l.b16 %v9630
      %v9821 = vunpack.c.l.b16 %v9644
      %v9822 = vunpack.c.h.b16 %v9644
      %v9823 = vunpack.c.l.b16 %v9658
      %v9824 = vunpack.c.l.b16 %v9672
      %v9825 = vunpack.c.h.b16 %v9672
      %v9826 = vunpack.c.l.b16 %v9686
      %v9827 = vunpack.c.l.b16 %v9700
      %v9828 = vunpack.c.h.b16 %v9700
      %v9829 = vunpack.c.l.b16 %v9714
      %v9830 = vunpack.c.l.b16 %v9728
      %v9831 = vunpack.c.h.b16 %v9728
      %v9832 = vunpack.c.l.b16 %v9742
      %v9833 = vunpack.c.l.b16 %v9756
      %v9834 = vunpack.c.h.b16 %v9756
      %v9835 = vunpack.c.l.b16 %v9770
      %v9836 = vpack.c.b16 %v9815, %v9812
      %v9837 = vpack.c.b16 %v9816, %v9813
      %v9838 = vpack.c.b16 %v9817, %v9814
      %v9839 = vpack.c.b16 %v9821, %v9818
      %v9840 = vpack.c.b16 %v9822, %v9819
      %v9841 = vpack.c.b16 %v9823, %v9820
      %v9842 = vpack.c.b16 %v9827, %v9824
      %v9843 = vpack.c.b16 %v9828, %v9825
      %v9844 = vpack.c.b16 %v9829, %v9826
      %v9845 = vpack.c.b16 %v9833, %v9830
      %v9846 = vpack.c.b16 %v9834, %v9831
      %v9847 = vpack.c.b16 %v9835, %v9832
      %v9896 = vunpack.c.l.b16 %v9772
      %v9897 = vunpack.c.h.b16 %v9772
      %v9898 = vunpack.c.l.b16 %v9773
      %v9899 = vunpack.c.h.b16 %v9773
      %v9900 = vunpack.c.l.b16 %v9774
      %v9901 = vunpack.c.h.b16 %v9774
      %v9902 = vunpack.c.l.b16 %v9775
      %v9903 = vunpack.c.h.b16 %v9775
      %v9904 = vunpack.c.l.b16 %v9776
      %v9905 = vunpack.c.h.b16 %v9776
      %v9906 = vunpack.c.l.b16 %v9777
      %v9907 = vunpack.c.h.b16 %v9777
      %v9908 = vunpack.c.l.b16 %v9778
      %v9909 = vunpack.c.h.b16 %v9778
      %v9910 = vunpack.c.l.b16 %v9779
      %v9911 = vunpack.c.h.b16 %v9779
      %v9912 = vunpack.c.l.b16 %v9780
      %v9913 = vunpack.c.h.b16 %v9780
      %v9914 = vunpack.c.l.b16 %v9781
      %v9915 = vunpack.c.h.b16 %v9781
      %v9916 = vunpack.c.l.b16 %v9782
      %v9917 = vunpack.c.h.b16 %v9782
      %v9918 = vunpack.c.l.b16 %v9783
      %v9919 = vunpack.c.h.b16 %v9783
      %v9920 = vunpack.c.l.b16 %v9784
      %v9921 = vunpack.c.h.b16 %v9784
      %v9922 = vunpack.c.l.b16 %v9785
      %v9923 = vunpack.c.h.b16 %v9785
      %v9924 = vunpack.c.l.b16 %v9786
      %v9925 = vunpack.c.h.b16 %v9786
      %v9926 = vunpack.c.l.b16 %v9787
      %v9927 = vunpack.c.h.b16 %v9787
      %v9928 = vunpack.c.l.b16 %v9788
      %v9929 = vunpack.c.h.b16 %v9788
      %v9930 = vunpack.c.l.b16 %v9789
      %v9931 = vunpack.c.h.b16 %v9789
      %v9932 = vunpack.c.l.b16 %v9790
      %v9933 = vunpack.c.h.b16 %v9790
      %v9934 = vunpack.c.l.b16 %v9791
      %v9935 = vunpack.c.h.b16 %v9791
      %v9936 = vunpack.c.l.b16 %v9792
      %v9937 = vunpack.c.h.b16 %v9792
      %v9938 = vunpack.c.l.b16 %v9793
      %v9939 = vunpack.c.h.b16 %v9793
      %v9940 = vunpack.c.l.b16 %v9794
      %v9941 = vunpack.c.h.b16 %v9794
      %v9942 = vunpack.c.l.b16 %v9795
      %v9943 = vunpack.c.h.b16 %v9795
      %v9944 = vunpack.c.l.b16 %v9796
      %v9945 = vunpack.c.h.b16 %v9796
      %v9946 = vunpack.c.l.b16 %v9797
      %v9947 = vunpack.c.h.b16 %v9797
      %v9948 = vunpack.c.l.b16 %v9798
      %v9949 = vunpack.c.h.b16 %v9798
      %v9950 = vunpack.c.l.b16 %v9799
      %v9951 = vunpack.c.h.b16 %v9799
      %v9952 = vunpack.c.l.b16 %v9800
      %v9953 = vunpack.c.h.b16 %v9800
      %v9954 = vunpack.c.l.b16 %v9801
      %v9955 = vunpack.c.h.b16 %v9801
      %v9956 = vunpack.c.l.b16 %v9802
      %v9957 = vunpack.c.h.b16 %v9802
      %v9958 = vunpack.c.l.b16 %v9803
      %v9959 = vunpack.c.h.b16 %v9803
      %v9960 = vunpack.c.l.b16 %v9804
      %v9961 = vunpack.c.h.b16 %v9804
      %v9962 = vunpack.c.l.b16 %v9805
      %v9963 = vunpack.c.h.b16 %v9805
      %v9964 = vunpack.c.l.b16 %v9806
      %v9965 = vunpack.c.h.b16 %v9806
      %v9966 = vunpack.c.l.b16 %v9807
      %v9967 = vunpack.c.h.b16 %v9807
      %v9968 = vunpack.c.l.b16 %v9808
      %v9969 = vunpack.c.h.b16 %v9808
      %v9970 = vunpack.c.l.b16 %v9809
      %v9971 = vunpack.c.h.b16 %v9809
      %v9972 = vunpack.c.l.b16 %v9810
      %v9973 = vunpack.c.h.b16 %v9810
      %v9974 = vunpack.c.l.b16 %v9811
      %v9975 = vunpack.c.h.b16 %v9811
      %v9976 = vpack.c.b16 %v9898, %v9896
      %v9977 = vpack.c.b16 %v9899, %v9897
      %v9978 = vpack.c.b16 %v9902, %v9900
      %v9979 = vpack.c.b16 %v9903, %v9901
      %v9980 = vpack.c.b16 %v9906, %v9904
      %v9981 = vpack.c.b16 %v9907, %v9905
      %v9982 = vpack.c.b16 %v9910, %v9908
      %v9983 = vpack.c.b16 %v9911, %v9909
      %v9984 = vpack.c.b16 %v9914, %v9912
      %v9985 = vpack.c.b16 %v9915, %v9913
      %v9986 = vpack.c.b16 %v9918, %v9916
      %v9987 = vpack.c.b16 %v9919, %v9917
      %v9988 = vpack.c.b16 %v9922, %v9920
      %v9989 = vpack.c.b16 %v9923, %v9921
      %v9990 = vpack.c.b16 %v9926, %v9924
      %v9991 = vpack.c.b16 %v9927, %v9925
      %v9992 = vpack.c.b16 %v9930, %v9928
      %v9993 = vpack.c.b16 %v9931, %v9929
      %v9994 = vpack.c.b16 %v9934, %v9932
      %v9995 = vpack.c.b16 %v9935, %v9933
      %v9996 = vpack.c.b16 %v9938, %v9936
      %v9997 = vpack.c.b16 %v9939, %v9937
      %v9998 = vpack.c.b16 %v9942, %v9940
      %v9999 = vpack.c.b16 %v9943, %v9941
      %v10000 = vpack.c.b16 %v9946, %v9944
      %v10001 = vpack.c.b16 %v9947, %v9945
      %v10002 = vpack.c.b16 %v9950, %v9948
      %v10003 = vpack.c.b16 %v9951, %v9949
      %v10004 = vpack.c.b16 %v9954, %v9952
      %v10005 = vpack.c.b16 %v9955, %v9953
      %v10006 = vpack.c.b16 %v9958, %v9956
      %v10007 = vpack.c.b16 %v9959, %v9957
      %v10008 = vpack.c.b16 %v9962, %v9960
      %v10009 = vpack.c.b16 %v9963, %v9961
      %v10010 = vpack.c.b16 %v9966, %v9964
      %v10011 = vpack.c.b16 %v9967, %v9965
      %v10012 = vpack.c.b16 %v9970, %v9968
      %v10013 = vpack.c.b16 %v9971, %v9969
      %v10014 = vpack.c.b16 %v9974, %v9972
      %v10015 = vpack.c.b16 %v9975, %v9973
      %v10057 = vsel %vm486, %v9838, 0
      %v10060 = vsel %vm486, %v9841, 0
      %v10063 = vsel %vm486, %v9844, 0
      %v10066 = vsel %vm486, %v9847, 0
      %10068 = vmatpush.bf16.msra.mxu0 %v9990
      %10069 = vmatpush.bf16.msra.mxu0 %v9988
      %10070 = vmatpush.bf16.msra.mxu0 %v9986
      %10071 = vmatpush.bf16.msra.mxu0 %v9984
      %10072 = vmatpush.bf16.msra.mxu0 %v9982
      %10073 = vmatpush.bf16.msra.mxu0 %v9980
      %10074 = vmatpush.bf16.msra.mxu0 %v9978
      %10075 = vmatpush.bf16.msra.mxu0 %v9976
      %10076 = vmatmul.bf16.gmra.mxu0 %v9836
      %v10077 = vpop.f32.mrf.mxu0
      %v10078 = vadd.f32 0.0, %v10077
      %v10079 = vpop.f32.mrf.mxu0
      %v10080 = vadd.f32 0.0, %v10079
      %10081 = vmatmul.bf16.gmra.mxu0 %v9839
      %v10082 = vpop.f32.mrf.mxu0
      %v10083 = vadd.f32 0.0, %v10082
      %v10084 = vpop.f32.mrf.mxu0
      %v10085 = vadd.f32 0.0, %v10084
      %10086 = vmatmul.bf16.gmra.mxu0 %v9842
      %v10087 = vpop.f32.mrf.mxu0
      %v10088 = vadd.f32 0.0, %v10087
      %v10089 = vpop.f32.mrf.mxu0
      %v10090 = vadd.f32 0.0, %v10089
      %10091 = vmatmul.bf16.gmra.mxu0 %v9845
      %v10092 = vpop.f32.mrf.mxu0
      %v10093 = vadd.f32 0.0, %v10092
      %v10094 = vpop.f32.mrf.mxu0
      %v10095 = vadd.f32 0.0, %v10094
      %10096 = vdwg.mxu0
      %10097 = vmatpush.bf16.msra.mxu0 %v10006
      %10098 = vmatpush.bf16.msra.mxu0 %v10004
      %10099 = vmatpush.bf16.msra.mxu0 %v10002
      %10100 = vmatpush.bf16.msra.mxu0 %v10000
      %10101 = vmatpush.bf16.msra.mxu0 %v9998
      %10102 = vmatpush.bf16.msra.mxu0 %v9996
      %10103 = vmatpush.bf16.msra.mxu0 %v9994
      %10104 = vmatpush.bf16.msra.mxu0 %v9992
      %10105 = vmatmul.bf16.gmra.mxu0 %v9837
      %v10106 = vpop.f32.mrf.mxu0
      %v10107 = vadd.f32 %v10078, %v10106
      %v10108 = vpop.f32.mrf.mxu0
      %v10109 = vadd.f32 %v10080, %v10108
      %10110 = vmatmul.bf16.gmra.mxu0 %v9840
      %v10111 = vpop.f32.mrf.mxu0
      %v10112 = vadd.f32 %v10083, %v10111
      %v10113 = vpop.f32.mrf.mxu0
      %v10114 = vadd.f32 %v10085, %v10113
      %10115 = vmatmul.bf16.gmra.mxu0 %v9843
      %v10116 = vpop.f32.mrf.mxu0
      %v10117 = vadd.f32 %v10088, %v10116
      %v10118 = vpop.f32.mrf.mxu0
      %v10119 = vadd.f32 %v10090, %v10118
      %10120 = vmatmul.bf16.gmra.mxu0 %v9846
      %v10121 = vpop.f32.mrf.mxu0
      %v10122 = vadd.f32 %v10093, %v10121
      %v10123 = vpop.f32.mrf.mxu0
      %v10124 = vadd.f32 %v10095, %v10123
      %10125 = vdwg.mxu0
      %10126 = vmatpush.bf16.msra.mxu0 0
      %10127 = vmatpush.bf16.msra.mxu0 0
      %10128 = vmatpush.bf16.msra.mxu0 0
      %10129 = vmatpush.bf16.msra.mxu0 0
      %10130 = vmatpush.bf16.msra.mxu0 %v10014
      %10131 = vmatpush.bf16.msra.mxu0 %v10012
      %10132 = vmatpush.bf16.msra.mxu0 %v10010
      %10133 = vmatpush.bf16.msra.mxu0 %v10008
      %10134 = vmatmul.bf16.gmra.mxu0 %v10057
      %v10135 = vpop.f32.mrf.mxu0
      %v10136 = vadd.f32 %v10107, %v10135
      %v10137 = vpop.f32.mrf.mxu0
      %v10138 = vadd.f32 %v10109, %v10137
      %10139 = vmatmul.bf16.gmra.mxu0 %v10060
      %v10140 = vpop.f32.mrf.mxu0
      %v10141 = vadd.f32 %v10112, %v10140
      %v10142 = vpop.f32.mrf.mxu0
      %v10143 = vadd.f32 %v10114, %v10142
      %10144 = vmatmul.bf16.gmra.mxu0 %v10063
      %v10145 = vpop.f32.mrf.mxu0
      %v10146 = vadd.f32 %v10117, %v10145
      %v10147 = vpop.f32.mrf.mxu0
      %v10148 = vadd.f32 %v10119, %v10147
      %10149 = vmatmul.bf16.gmra.mxu0 %v10066
      %v10150 = vpop.f32.mrf.mxu0
      %v10151 = vadd.f32 %v10122, %v10150
      %v10152 = vpop.f32.mrf.mxu0
      %v10153 = vadd.f32 %v10124, %v10152
      %10154 = vdwg.mxu0
      %10155 = vmatpush.bf16.msra.mxu0 %v9991
      %10156 = vmatpush.bf16.msra.mxu0 %v9989
      %10157 = vmatpush.bf16.msra.mxu0 %v9987
      %10158 = vmatpush.bf16.msra.mxu0 %v9985
      %10159 = vmatpush.bf16.msra.mxu0 %v9983
      %10160 = vmatpush.bf16.msra.mxu0 %v9981
      %10161 = vmatpush.bf16.msra.mxu0 %v9979
      %10162 = vmatpush.bf16.msra.mxu0 %v9977
      %10163 = vmatmul.bf16.gmra.mxu0 %v9836
      %v10164 = vpop.f32.mrf.mxu0
      %v10165 = vadd.f32 0.0, %v10164
      %v10166 = vpop.f32.mrf.mxu0
      %v10167 = vadd.f32 0.0, %v10166
      %10168 = vmatmul.bf16.gmra.mxu0 %v9839
      %v10169 = vpop.f32.mrf.mxu0
      %v10170 = vadd.f32 0.0, %v10169
      %v10171 = vpop.f32.mrf.mxu0
      %v10172 = vadd.f32 0.0, %v10171
      %10173 = vmatmul.bf16.gmra.mxu0 %v9842
      %v10174 = vpop.f32.mrf.mxu0
      %v10175 = vadd.f32 0.0, %v10174
      %v10176 = vpop.f32.mrf.mxu0
      %v10177 = vadd.f32 0.0, %v10176
      %10178 = vmatmul.bf16.gmra.mxu0 %v9845
      %v10179 = vpop.f32.mrf.mxu0
      %v10180 = vadd.f32 0.0, %v10179
      %v10181 = vpop.f32.mrf.mxu0
      %v10182 = vadd.f32 0.0, %v10181
      %10183 = vdwg.mxu0
      %10184 = vmatpush.bf16.msra.mxu0 %v10007
      %10185 = vmatpush.bf16.msra.mxu0 %v10005
      %10186 = vmatpush.bf16.msra.mxu0 %v10003
      %10187 = vmatpush.bf16.msra.mxu0 %v10001
      %10188 = vmatpush.bf16.msra.mxu0 %v9999
      %10189 = vmatpush.bf16.msra.mxu0 %v9997
      %10190 = vmatpush.bf16.msra.mxu0 %v9995
      %10191 = vmatpush.bf16.msra.mxu0 %v9993
      %10192 = vmatmul.bf16.gmra.mxu0 %v9837
      %v10193 = vpop.f32.mrf.mxu0
      %v10194 = vadd.f32 %v10165, %v10193
      %v10195 = vpop.f32.mrf.mxu0
      %v10196 = vadd.f32 %v10167, %v10195
      %10197 = vmatmul.bf16.gmra.mxu0 %v9840
      %v10198 = vpop.f32.mrf.mxu0
      %v10199 = vadd.f32 %v10170, %v10198
      %v10200 = vpop.f32.mrf.mxu0
      %v10201 = vadd.f32 %v10172, %v10200
      %10202 = vmatmul.bf16.gmra.mxu0 %v9843
      %v10203 = vpop.f32.mrf.mxu0
      %v10204 = vadd.f32 %v10175, %v10203
      %v10205 = vpop.f32.mrf.mxu0
      %v10206 = vadd.f32 %v10177, %v10205
      %10207 = vmatmul.bf16.gmra.mxu0 %v9846
      %v10208 = vpop.f32.mrf.mxu0
      %v10209 = vadd.f32 %v10180, %v10208
      %v10210 = vpop.f32.mrf.mxu0
      %v10211 = vadd.f32 %v10182, %v10210
      %10212 = vdwg.mxu0
      %10213 = vmatpush.bf16.msra.mxu0 0
      %10214 = vmatpush.bf16.msra.mxu0 0
      %10215 = vmatpush.bf16.msra.mxu0 0
      %10216 = vmatpush.bf16.msra.mxu0 0
      %10217 = vmatpush.bf16.msra.mxu0 %v10015
      %10218 = vmatpush.bf16.msra.mxu0 %v10013
      %10219 = vmatpush.bf16.msra.mxu0 %v10011
      %10220 = vmatpush.bf16.msra.mxu0 %v10009
      %10221 = vmatmul.bf16.gmra.mxu0 %v10057
      %v10222 = vpop.f32.mrf.mxu0
      %v10223 = vadd.f32 %v10194, %v10222
      %v10224 = vpop.f32.mrf.mxu0
      %v10225 = vadd.f32 %v10196, %v10224
      %10226 = vmatmul.bf16.gmra.mxu0 %v10060
      %v10227 = vpop.f32.mrf.mxu0
      %v10228 = vadd.f32 %v10199, %v10227
      %v10229 = vpop.f32.mrf.mxu0
      %v10230 = vadd.f32 %v10201, %v10229
      %10231 = vmatmul.bf16.gmra.mxu0 %v10063
      %v10232 = vpop.f32.mrf.mxu0
      %v10233 = vadd.f32 %v10204, %v10232
      %v10234 = vpop.f32.mrf.mxu0
      %v10235 = vadd.f32 %v10206, %v10234
      %10236 = vmatmul.bf16.gmra.mxu0 %v10066
      %v10237 = vpop.f32.mrf.mxu0
      %v10238 = vadd.f32 %v10209, %v10237
      %v10239 = vpop.f32.mrf.mxu0
      %v10240 = vadd.f32 %v10211, %v10239
      %10241 = vdwg.mxu0
      %v10242 = vadd.f32 %v9451, %v10136
      %v10243 = vadd.f32 %v9452, %v10223
      %v10244 = vadd.f32 %v9453, %v10138
      %v10245 = vadd.f32 %v9454, %v10225
      %v10246 = vadd.f32 %v9455, %v10141
      %v10247 = vadd.f32 %v9456, %v10228
      %v10248 = vadd.f32 %v9457, %v10143
      %v10249 = vadd.f32 %v9458, %v10230
      %v10250 = vadd.f32 %v9459, %v10146
      %v10251 = vadd.f32 %v9460, %v10233
      %v10252 = vadd.f32 %v9461, %v10148
      %v10253 = vadd.f32 %v9462, %v10235
      %v10254 = vadd.f32 %v9463, %v10151
      %v10255 = vadd.f32 %v9464, %v10238
      %v10256 = vadd.f32 %v9465, %v10153
      %v10257 = vadd.f32 %v9466, %v10240
      %v10258 = vld [vmem:[%s8923] sm:$0xfc]
      %v10259 = vld [vmem:[%s8923 + $0x8] sm:$0xfc]
      %v10260 = vld [vmem:[%s8923 + $0x10] sm:$0xfc]
      %v10261 = vld [vmem:[%s8923 + $0x18] sm:$0x3]
      %v10262 = vld [vmem:[%s8923 + $0x20] sm:$0x3]
      %v10263 = vld [vmem:[%s8923 + $0x28] sm:$0x3]
      %v10264 = vld [vmem:[%s8923 + $0x30] sm:$0xfc]
      %v10265 = vld [vmem:[%s8923 + $0x38] sm:$0xfc]
      %v10266 = vld [vmem:[%s8923 + $0x40] sm:$0xfc]
      %v10267 = vld [vmem:[%s8923 + $0x48] sm:$0x3]
      %v10268 = vld [vmem:[%s8923 + $0x50] sm:$0x3]
      %v10269 = vld [vmem:[%s8923 + $0x58] sm:$0x3]
      %v10270 = vld [vmem:[%s8923 + $0x60] sm:$0xfc]
      %v10271 = vld [vmem:[%s8923 + $0x68] sm:$0xfc]
      %v10272 = vld [vmem:[%s8923 + $0x70] sm:$0xfc]
      %v10273 = vld [vmem:[%s8923 + $0x78] sm:$0x3]
      %v10274 = vld [vmem:[%s8923 + $0x80] sm:$0x3]
      %v10275 = vld [vmem:[%s8923 + $0x88] sm:$0x3]
      %v10276 = vld [vmem:[%s8923 + $0x90] sm:$0xfc]
      %v10277 = vld [vmem:[%s8923 + $0x98] sm:$0xfc]
      %v10278 = vld [vmem:[%s8923 + $0xa0] sm:$0xfc]
      %v10279 = vld [vmem:[%s8923 + $0xa8] sm:$0x3]
      %v10280 = vld [vmem:[%s8923 + $0xb0] sm:$0x3]
      %v10281 = vld [vmem:[%s8923 + $0xb8] sm:$0x3]
      %v10282 = vld [vmem:[%s8923 + $0xc0] sm:$0xfc]
      %v10283 = vld [vmem:[%s8923 + $0xc8] sm:$0xfc]
      %v10284 = vld [vmem:[%s8923 + $0xd0] sm:$0xfc]
      %v10285 = vld [vmem:[%s8923 + $0xd8] sm:$0x3]
      %v10286 = vld [vmem:[%s8923 + $0xe0] sm:$0x3]
      %v10287 = vld [vmem:[%s8923 + $0xe8] sm:$0x3]
      %v10288 = vld [vmem:[%s8923 + $0xf0] sm:$0xfc]
      %v10289 = vld [vmem:[%s8923 + $0xf8] sm:$0xfc]
      %v10290 = vld [vmem:[%s8923 + $0x100] sm:$0xfc]
      %v10291 = vld [vmem:[%s8923 + $0x108] sm:$0x3]
      %v10292 = vld [vmem:[%s8923 + $0x110] sm:$0x3]
      %v10293 = vld [vmem:[%s8923 + $0x118] sm:$0x3]
      %v10294 = vld [vmem:[%s8923 + $0x120] sm:$0xfc]
      %v10295 = vld [vmem:[%s8923 + $0x128] sm:$0xfc]
      %v10296 = vld [vmem:[%s8923 + $0x130] sm:$0xfc]
      %v10297 = vld [vmem:[%s8923 + $0x138] sm:$0x3]
      %v10298 = vld [vmem:[%s8923 + $0x140] sm:$0x3]
      %v10299 = vld [vmem:[%s8923 + $0x148] sm:$0x3]
      %v10300 = vld [vmem:[%s8923 + $0x150] sm:$0xfc]
      %v10301 = vld [vmem:[%s8923 + $0x158] sm:$0xfc]
      %v10302 = vld [vmem:[%s8923 + $0x160] sm:$0xfc]
      %v10303 = vld [vmem:[%s8923 + $0x168] sm:$0x3]
      %v10304 = vld [vmem:[%s8923 + $0x170] sm:$0x3]
      %v10305 = vld [vmem:[%s8923 + $0x178] sm:$0x3]
      %v10306 = vpack.c.bf16 %v10259, %v10258
      %v10307 = vpack.c.bf16 %v10260, %v10260
      %v10308 = vpack.c.bf16 %v10262, %v10261
      %v10309 = vpack.c.bf16 %v10263, %v10263
      %v10310 = vpack.c.bf16 %v10265, %v10264
      %v10311 = vpack.c.bf16 %v10266, %v10266
      %v10312 = vpack.c.bf16 %v10268, %v10267
      %v10313 = vpack.c.bf16 %v10269, %v10269
      %v10314 = vpack.c.bf16 %v10271, %v10270
      %v10315 = vpack.c.bf16 %v10272, %v10272
      %v10316 = vpack.c.bf16 %v10274, %v10273
      %v10317 = vpack.c.bf16 %v10275, %v10275
      %v10318 = vpack.c.bf16 %v10277, %v10276
      %v10319 = vpack.c.bf16 %v10278, %v10278
      %v10320 = vpack.c.bf16 %v10280, %v10279
      %v10321 = vpack.c.bf16 %v10281, %v10281
      %v10322 = vpack.c.bf16 %v10283, %v10282
      %v10323 = vpack.c.bf16 %v10284, %v10284
      %v10324 = vpack.c.bf16 %v10286, %v10285
      %v10325 = vpack.c.bf16 %v10287, %v10287
      %v10326 = vpack.c.bf16 %v10289, %v10288
      %v10327 = vpack.c.bf16 %v10290, %v10290
      %v10328 = vpack.c.bf16 %v10292, %v10291
      %v10329 = vpack.c.bf16 %v10293, %v10293
      %v10330 = vpack.c.bf16 %v10295, %v10294
      %v10331 = vpack.c.bf16 %v10296, %v10296
      %v10332 = vpack.c.bf16 %v10298, %v10297
      %v10333 = vpack.c.bf16 %v10299, %v10299
      %v10334 = vpack.c.bf16 %v10301, %v10300
      %v10335 = vpack.c.bf16 %v10302, %v10302
      %v10336 = vpack.c.bf16 %v10304, %v10303
      %v10337 = vpack.c.bf16 %v10305, %v10305
      %v10370 = vrot.slane %v10306, 5
      %v10371 = vrot.slane %v10370, 4
      %v10372 = vrot.slane %v10308, 5
      %v10373 = vsel %vm1482, %v10371, %v10372
      %v10374 = vrot.slane %v10307, 5
      %v10375 = vrot.slane %v10374, 4
      %v10376 = vrot.slane %v10309, 5
      %v10377 = vsel %vm1482, %v10375, %v10376
      %v10378 = vrot.slane %v10310, 5
      %v10379 = vrot.slane %v10378, 4
      %v10380 = vrot.slane %v10312, 5
      %v10381 = vsel %vm1482, %v10379, %v10380
      %v10382 = vrot.slane %v10311, 5
      %v10383 = vrot.slane %v10382, 4
      %v10384 = vrot.slane %v10313, 5
      %v10385 = vsel %vm1482, %v10383, %v10384
      %v10386 = vrot.slane %v10314, 5
      %v10387 = vrot.slane %v10386, 4
      %v10388 = vrot.slane %v10316, 5
      %v10389 = vsel %vm1482, %v10387, %v10388
      %v10390 = vrot.slane %v10315, 5
      %v10391 = vrot.slane %v10390, 4
      %v10392 = vrot.slane %v10317, 5
      %v10393 = vsel %vm1482, %v10391, %v10392
      %v10394 = vrot.slane %v10318, 5
      %v10395 = vrot.slane %v10394, 4
      %v10396 = vrot.slane %v10320, 5
      %v10397 = vsel %vm1482, %v10395, %v10396
      %v10398 = vrot.slane %v10319, 5
      %v10399 = vrot.slane %v10398, 4
      %v10400 = vrot.slane %v10321, 5
      %v10401 = vsel %vm1482, %v10399, %v10400
      %v10402 = vrot.slane %v10322, 5
      %v10403 = vrot.slane %v10402, 4
      %v10404 = vrot.slane %v10324, 5
      %v10405 = vsel %vm1482, %v10403, %v10404
      %v10406 = vrot.slane %v10323, 5
      %v10407 = vrot.slane %v10406, 4
      %v10408 = vrot.slane %v10325, 5
      %v10409 = vsel %vm1482, %v10407, %v10408
      %v10410 = vrot.slane %v10326, 5
      %v10411 = vrot.slane %v10410, 4
      %v10412 = vrot.slane %v10328, 5
      %v10413 = vsel %vm1482, %v10411, %v10412
      %v10414 = vrot.slane %v10327, 5
      %v10415 = vrot.slane %v10414, 4
      %v10416 = vrot.slane %v10329, 5
      %v10417 = vsel %vm1482, %v10415, %v10416
      %v10418 = vrot.slane %v10330, 5
      %v10419 = vrot.slane %v10418, 4
      %v10420 = vrot.slane %v10332, 5
      %v10421 = vsel %vm1482, %v10419, %v10420
      %v10422 = vrot.slane %v10331, 5
      %v10423 = vrot.slane %v10422, 4
      %v10424 = vrot.slane %v10333, 5
      %v10425 = vsel %vm1482, %v10423, %v10424
      %v10426 = vrot.slane %v10334, 5
      %v10427 = vrot.slane %v10426, 4
      %v10428 = vrot.slane %v10336, 5
      %v10429 = vsel %vm1482, %v10427, %v10428
      %v10430 = vrot.slane %v10335, 5
      %v10431 = vrot.slane %v10430, 4
      %v10432 = vrot.slane %v10337, 5
      %v10433 = vsel %vm1482, %v10431, %v10432
      %s10434 = scalar_lea.vmem %s5, 2560
      %v10435 = vld [vmem:[%s10434] sm:$0xff]
      %v10436 = vld [vmem:[%s10434 + $0x8] sm:$0xff]
      %v10437 = vld [vmem:[%s10434 + $0x10] sm:$0xff]
      %v10438 = vld [vmem:[%s10434 + $0x18] sm:$0xff]
      %v10439 = vld [vmem:[%s10434 + $0x20] sm:$0xff]
      %v10440 = vld [vmem:[%s10434 + $0x28] sm:$0xff]
      %v10441 = vld [vmem:[%s10434 + $0x30] sm:$0xff]
      %v10442 = vld [vmem:[%s10434 + $0x38] sm:$0xff]
      %v10443 = vld [vmem:[%s10434 + $0x40] sm:$0xff]
      %v10444 = vld [vmem:[%s10434 + $0x48] sm:$0xff]
      %v10445 = vld [vmem:[%s10434 + $0x50] sm:$0xff]
      %v10446 = vld [vmem:[%s10434 + $0x58] sm:$0xff]
      %v10447 = vld [vmem:[%s10434 + $0x60] sm:$0xff]
      %v10448 = vld [vmem:[%s10434 + $0x68] sm:$0xff]
      %v10449 = vld [vmem:[%s10434 + $0x70] sm:$0xff]
      %v10450 = vld [vmem:[%s10434 + $0x78] sm:$0xff]
      %v10451 = vld [vmem:[%s10434 + $0x80] sm:$0xff]
      %v10452 = vld [vmem:[%s10434 + $0x88] sm:$0xff]
      %v10453 = vld [vmem:[%s10434 + $0x90] sm:$0xff]
      %v10454 = vld [vmem:[%s10434 + $0x98] sm:$0xff]
      %v10455 = vld [vmem:[%s10434 + $0xa0] sm:$0xff]
      %v10456 = vld [vmem:[%s10434 + $0xa8] sm:$0xff]
      %v10457 = vld [vmem:[%s10434 + $0xb0] sm:$0xff]
      %v10458 = vld [vmem:[%s10434 + $0xb8] sm:$0xff]
      %v10459 = vld [vmem:[%s10434 + $0xc0] sm:$0xff]
      %v10460 = vld [vmem:[%s10434 + $0xc8] sm:$0xff]
      %v10461 = vld [vmem:[%s10434 + $0xd0] sm:$0xff]
      %v10462 = vld [vmem:[%s10434 + $0xd8] sm:$0xff]
      %v10463 = vld [vmem:[%s10434 + $0xe0] sm:$0xff]
      %v10464 = vld [vmem:[%s10434 + $0xe8] sm:$0xff]
      %v10465 = vld [vmem:[%s10434 + $0xf0] sm:$0xff]
      %v10466 = vld [vmem:[%s10434 + $0xf8] sm:$0xff]
      %v10467 = vld [vmem:[%s10434 + $0x100] sm:$0xff]
      %v10468 = vld [vmem:[%s10434 + $0x108] sm:$0xff]
      %v10469 = vld [vmem:[%s10434 + $0x110] sm:$0xff]
      %v10470 = vld [vmem:[%s10434 + $0x118] sm:$0xff]
      %v10471 = vld [vmem:[%s10434 + $0x120] sm:$0xff]
      %v10472 = vld [vmem:[%s10434 + $0x128] sm:$0xff]
      %v10473 = vld [vmem:[%s10434 + $0x130] sm:$0xff]
      %v10474 = vld [vmem:[%s10434 + $0x138] sm:$0xff]
      %v10475 = vunpack.c.l.b16 %v10373
      %v10476 = vunpack.c.h.b16 %v10373
      %v10477 = vunpack.c.l.b16 %v10377
      %v10478 = vunpack.c.l.b16 %v10381
      %v10479 = vunpack.c.h.b16 %v10381
      %v10480 = vunpack.c.l.b16 %v10385
      %v10481 = vunpack.c.l.b16 %v10389
      %v10482 = vunpack.c.h.b16 %v10389
      %v10483 = vunpack.c.l.b16 %v10393
      %v10484 = vunpack.c.l.b16 %v10397
      %v10485 = vunpack.c.h.b16 %v10397
      %v10486 = vunpack.c.l.b16 %v10401
      %v10487 = vunpack.c.l.b16 %v10405
      %v10488 = vunpack.c.h.b16 %v10405
      %v10489 = vunpack.c.l.b16 %v10409
      %v10490 = vunpack.c.l.b16 %v10413
      %v10491 = vunpack.c.h.b16 %v10413
      %v10492 = vunpack.c.l.b16 %v10417
      %v10493 = vunpack.c.l.b16 %v10421
      %v10494 = vunpack.c.h.b16 %v10421
      %v10495 = vunpack.c.l.b16 %v10425
      %v10496 = vunpack.c.l.b16 %v10429
      %v10497 = vunpack.c.h.b16 %v10429
      %v10498 = vunpack.c.l.b16 %v10433
      %v10499 = vpack.c.b16 %v10478, %v10475
      %v10500 = vpack.c.b16 %v10479, %v10476
      %v10501 = vpack.c.b16 %v10480, %v10477
      %v10502 = vpack.c.b16 %v10484, %v10481
      %v10503 = vpack.c.b16 %v10485, %v10482
      %v10504 = vpack.c.b16 %v10486, %v10483
      %v10505 = vpack.c.b16 %v10490, %v10487
      %v10506 = vpack.c.b16 %v10491, %v10488
      %v10507 = vpack.c.b16 %v10492, %v10489
      %v10508 = vpack.c.b16 %v10496, %v10493
      %v10509 = vpack.c.b16 %v10497, %v10494
      %v10510 = vpack.c.b16 %v10498, %v10495
      %v10559 = vunpack.c.l.b16 %v10435
      %v10560 = vunpack.c.h.b16 %v10435
      %v10561 = vunpack.c.l.b16 %v10436
      %v10562 = vunpack.c.h.b16 %v10436
      %v10563 = vunpack.c.l.b16 %v10437
      %v10564 = vunpack.c.h.b16 %v10437
      %v10565 = vunpack.c.l.b16 %v10438
      %v10566 = vunpack.c.h.b16 %v10438
      %v10567 = vunpack.c.l.b16 %v10439
      %v10568 = vunpack.c.h.b16 %v10439
      %v10569 = vunpack.c.l.b16 %v10440
      %v10570 = vunpack.c.h.b16 %v10440
      %v10571 = vunpack.c.l.b16 %v10441
      %v10572 = vunpack.c.h.b16 %v10441
      %v10573 = vunpack.c.l.b16 %v10442
      %v10574 = vunpack.c.h.b16 %v10442
      %v10575 = vunpack.c.l.b16 %v10443
      %v10576 = vunpack.c.h.b16 %v10443
      %v10577 = vunpack.c.l.b16 %v10444
      %v10578 = vunpack.c.h.b16 %v10444
      %v10579 = vunpack.c.l.b16 %v10445
      %v10580 = vunpack.c.h.b16 %v10445
      %v10581 = vunpack.c.l.b16 %v10446
      %v10582 = vunpack.c.h.b16 %v10446
      %v10583 = vunpack.c.l.b16 %v10447
      %v10584 = vunpack.c.h.b16 %v10447
      %v10585 = vunpack.c.l.b16 %v10448
      %v10586 = vunpack.c.h.b16 %v10448
      %v10587 = vunpack.c.l.b16 %v10449
      %v10588 = vunpack.c.h.b16 %v10449
      %v10589 = vunpack.c.l.b16 %v10450
      %v10590 = vunpack.c.h.b16 %v10450
      %v10591 = vunpack.c.l.b16 %v10451
      %v10592 = vunpack.c.h.b16 %v10451
      %v10593 = vunpack.c.l.b16 %v10452
      %v10594 = vunpack.c.h.b16 %v10452
      %v10595 = vunpack.c.l.b16 %v10453
      %v10596 = vunpack.c.h.b16 %v10453
      %v10597 = vunpack.c.l.b16 %v10454
      %v10598 = vunpack.c.h.b16 %v10454
      %v10599 = vunpack.c.l.b16 %v10455
      %v10600 = vunpack.c.h.b16 %v10455
      %v10601 = vunpack.c.l.b16 %v10456
      %v10602 = vunpack.c.h.b16 %v10456
      %v10603 = vunpack.c.l.b16 %v10457
      %v10604 = vunpack.c.h.b16 %v10457
      %v10605 = vunpack.c.l.b16 %v10458
      %v10606 = vunpack.c.h.b16 %v10458
      %v10607 = vunpack.c.l.b16 %v10459
      %v10608 = vunpack.c.h.b16 %v10459
      %v10609 = vunpack.c.l.b16 %v10460
      %v10610 = vunpack.c.h.b16 %v10460
      %v10611 = vunpack.c.l.b16 %v10461
      %v10612 = vunpack.c.h.b16 %v10461
      %v10613 = vunpack.c.l.b16 %v10462
      %v10614 = vunpack.c.h.b16 %v10462
      %v10615 = vunpack.c.l.b16 %v10463
      %v10616 = vunpack.c.h.b16 %v10463
      %v10617 = vunpack.c.l.b16 %v10464
      %v10618 = vunpack.c.h.b16 %v10464
      %v10619 = vunpack.c.l.b16 %v10465
      %v10620 = vunpack.c.h.b16 %v10465
      %v10621 = vunpack.c.l.b16 %v10466
      %v10622 = vunpack.c.h.b16 %v10466
      %v10623 = vunpack.c.l.b16 %v10467
      %v10624 = vunpack.c.h.b16 %v10467
      %v10625 = vunpack.c.l.b16 %v10468
      %v10626 = vunpack.c.h.b16 %v10468
      %v10627 = vunpack.c.l.b16 %v10469
      %v10628 = vunpack.c.h.b16 %v10469
      %v10629 = vunpack.c.l.b16 %v10470
      %v10630 = vunpack.c.h.b16 %v10470
      %v10631 = vunpack.c.l.b16 %v10471
      %v10632 = vunpack.c.h.b16 %v10471
      %v10633 = vunpack.c.l.b16 %v10472
      %v10634 = vunpack.c.h.b16 %v10472
      %v10635 = vunpack.c.l.b16 %v10473
      %v10636 = vunpack.c.h.b16 %v10473
      %v10637 = vunpack.c.l.b16 %v10474
      %v10638 = vunpack.c.h.b16 %v10474
      %v10639 = vpack.c.b16 %v10561, %v10559
      %v10640 = vpack.c.b16 %v10562, %v10560
      %v10641 = vpack.c.b16 %v10565, %v10563
      %v10642 = vpack.c.b16 %v10566, %v10564
      %v10643 = vpack.c.b16 %v10569, %v10567
      %v10644 = vpack.c.b16 %v10570, %v10568
      %v10645 = vpack.c.b16 %v10573, %v10571
      %v10646 = vpack.c.b16 %v10574, %v10572
      %v10647 = vpack.c.b16 %v10577, %v10575
      %v10648 = vpack.c.b16 %v10578, %v10576
      %v10649 = vpack.c.b16 %v10581, %v10579
      %v10650 = vpack.c.b16 %v10582, %v10580
      %v10651 = vpack.c.b16 %v10585, %v10583
      %v10652 = vpack.c.b16 %v10586, %v10584
      %v10653 = vpack.c.b16 %v10589, %v10587
      %v10654 = vpack.c.b16 %v10590, %v10588
      %v10655 = vpack.c.b16 %v10593, %v10591
      %v10656 = vpack.c.b16 %v10594, %v10592
      %v10657 = vpack.c.b16 %v10597, %v10595
      %v10658 = vpack.c.b16 %v10598, %v10596
      %v10659 = vpack.c.b16 %v10601, %v10599
      %v10660 = vpack.c.b16 %v10602, %v10600
      %v10661 = vpack.c.b16 %v10605, %v10603
      %v10662 = vpack.c.b16 %v10606, %v10604
      %v10663 = vpack.c.b16 %v10609, %v10607
      %v10664 = vpack.c.b16 %v10610, %v10608
      %v10665 = vpack.c.b16 %v10613, %v10611
      %v10666 = vpack.c.b16 %v10614, %v10612
      %v10667 = vpack.c.b16 %v10617, %v10615
      %v10668 = vpack.c.b16 %v10618, %v10616
      %v10669 = vpack.c.b16 %v10621, %v10619
      %v10670 = vpack.c.b16 %v10622, %v10620
      %v10671 = vpack.c.b16 %v10625, %v10623
      %v10672 = vpack.c.b16 %v10626, %v10624
      %v10673 = vpack.c.b16 %v10629, %v10627
      %v10674 = vpack.c.b16 %v10630, %v10628
      %v10675 = vpack.c.b16 %v10633, %v10631
      %v10676 = vpack.c.b16 %v10634, %v10632
      %v10677 = vpack.c.b16 %v10637, %v10635
      %v10678 = vpack.c.b16 %v10638, %v10636
      %v10720 = vsel %vm486, %v10501, 0
      %v10723 = vsel %vm486, %v10504, 0
      %v10726 = vsel %vm486, %v10507, 0
      %v10729 = vsel %vm486, %v10510, 0
      %10731 = vmatpush.bf16.msra.mxu0 %v10653
      %10732 = vmatpush.bf16.msra.mxu0 %v10651
      %10733 = vmatpush.bf16.msra.mxu0 %v10649
      %10734 = vmatpush.bf16.msra.mxu0 %v10647
      %10735 = vmatpush.bf16.msra.mxu0 %v10645
      %10736 = vmatpush.bf16.msra.mxu0 %v10643
      %10737 = vmatpush.bf16.msra.mxu0 %v10641
      %10738 = vmatpush.bf16.msra.mxu0 %v10639
      %10739 = vmatmul.bf16.gmra.mxu0 %v10499
      %v10740 = vpop.f32.mrf.mxu0
      %v10741 = vadd.f32 0.0, %v10740
      %v10742 = vpop.f32.mrf.mxu0
      %v10743 = vadd.f32 0.0, %v10742
      %10744 = vmatmul.bf16.gmra.mxu0 %v10502
      %v10745 = vpop.f32.mrf.mxu0
      %v10746 = vadd.f32 0.0, %v10745
      %v10747 = vpop.f32.mrf.mxu0
      %v10748 = vadd.f32 0.0, %v10747
      %10749 = vmatmul.bf16.gmra.mxu0 %v10505
      %v10750 = vpop.f32.mrf.mxu0
      %v10751 = vadd.f32 0.0, %v10750
      %v10752 = vpop.f32.mrf.mxu0
      %v10753 = vadd.f32 0.0, %v10752
      %10754 = vmatmul.bf16.gmra.mxu0 %v10508
      %v10755 = vpop.f32.mrf.mxu0
      %v10756 = vadd.f32 0.0, %v10755
      %v10757 = vpop.f32.mrf.mxu0
      %v10758 = vadd.f32 0.0, %v10757
      %10759 = vdwg.mxu0
      %10760 = vmatpush.bf16.msra.mxu0 %v10669
      %10761 = vmatpush.bf16.msra.mxu0 %v10667
      %10762 = vmatpush.bf16.msra.mxu0 %v10665
      %10763 = vmatpush.bf16.msra.mxu0 %v10663
      %10764 = vmatpush.bf16.msra.mxu0 %v10661
      %10765 = vmatpush.bf16.msra.mxu0 %v10659
      %10766 = vmatpush.bf16.msra.mxu0 %v10657
      %10767 = vmatpush.bf16.msra.mxu0 %v10655
      %10768 = vmatmul.bf16.gmra.mxu0 %v10500
      %v10769 = vpop.f32.mrf.mxu0
      %v10770 = vadd.f32 %v10741, %v10769
      %v10771 = vpop.f32.mrf.mxu0
      %v10772 = vadd.f32 %v10743, %v10771
      %10773 = vmatmul.bf16.gmra.mxu0 %v10503
      %v10774 = vpop.f32.mrf.mxu0
      %v10775 = vadd.f32 %v10746, %v10774
      %v10776 = vpop.f32.mrf.mxu0
      %v10777 = vadd.f32 %v10748, %v10776
      %10778 = vmatmul.bf16.gmra.mxu0 %v10506
      %v10779 = vpop.f32.mrf.mxu0
      %v10780 = vadd.f32 %v10751, %v10779
      %v10781 = vpop.f32.mrf.mxu0
      %v10782 = vadd.f32 %v10753, %v10781
      %10783 = vmatmul.bf16.gmra.mxu0 %v10509
      %v10784 = vpop.f32.mrf.mxu0
      %v10785 = vadd.f32 %v10756, %v10784
      %v10786 = vpop.f32.mrf.mxu0
      %v10787 = vadd.f32 %v10758, %v10786
      %10788 = vdwg.mxu0
      %10789 = vmatpush.bf16.msra.mxu0 0
      %10790 = vmatpush.bf16.msra.mxu0 0
      %10791 = vmatpush.bf16.msra.mxu0 0
      %10792 = vmatpush.bf16.msra.mxu0 0
      %10793 = vmatpush.bf16.msra.mxu0 %v10677
      %10794 = vmatpush.bf16.msra.mxu0 %v10675
      %10795 = vmatpush.bf16.msra.mxu0 %v10673
      %10796 = vmatpush.bf16.msra.mxu0 %v10671
      %10797 = vmatmul.bf16.gmra.mxu0 %v10720
      %v10798 = vpop.f32.mrf.mxu0
      %v10799 = vadd.f32 %v10770, %v10798
      %v10800 = vpop.f32.mrf.mxu0
      %v10801 = vadd.f32 %v10772, %v10800
      %10802 = vmatmul.bf16.gmra.mxu0 %v10723
      %v10803 = vpop.f32.mrf.mxu0
      %v10804 = vadd.f32 %v10775, %v10803
      %v10805 = vpop.f32.mrf.mxu0
      %v10806 = vadd.f32 %v10777, %v10805
      %10807 = vmatmul.bf16.gmra.mxu0 %v10726
      %v10808 = vpop.f32.mrf.mxu0
      %v10809 = vadd.f32 %v10780, %v10808
      %v10810 = vpop.f32.mrf.mxu0
      %v10811 = vadd.f32 %v10782, %v10810
      %10812 = vmatmul.bf16.gmra.mxu0 %v10729
      %v10813 = vpop.f32.mrf.mxu0
      %v10814 = vadd.f32 %v10785, %v10813
      %v10815 = vpop.f32.mrf.mxu0
      %v10816 = vadd.f32 %v10787, %v10815
      %10817 = vdwg.mxu0
      %10818 = vmatpush.bf16.msra.mxu0 %v10654
      %10819 = vmatpush.bf16.msra.mxu0 %v10652
      %10820 = vmatpush.bf16.msra.mxu0 %v10650
      %10821 = vmatpush.bf16.msra.mxu0 %v10648
      %10822 = vmatpush.bf16.msra.mxu0 %v10646
      %10823 = vmatpush.bf16.msra.mxu0 %v10644
      %10824 = vmatpush.bf16.msra.mxu0 %v10642
      %10825 = vmatpush.bf16.msra.mxu0 %v10640
      %10826 = vmatmul.bf16.gmra.mxu0 %v10499
      %v10827 = vpop.f32.mrf.mxu0
      %v10828 = vadd.f32 0.0, %v10827
      %v10829 = vpop.f32.mrf.mxu0
      %v10830 = vadd.f32 0.0, %v10829
      %10831 = vmatmul.bf16.gmra.mxu0 %v10502
      %v10832 = vpop.f32.mrf.mxu0
      %v10833 = vadd.f32 0.0, %v10832
      %v10834 = vpop.f32.mrf.mxu0
      %v10835 = vadd.f32 0.0, %v10834
      %10836 = vmatmul.bf16.gmra.mxu0 %v10505
      %v10837 = vpop.f32.mrf.mxu0
      %v10838 = vadd.f32 0.0, %v10837
      %v10839 = vpop.f32.mrf.mxu0
      %v10840 = vadd.f32 0.0, %v10839
      %10841 = vmatmul.bf16.gmra.mxu0 %v10508
      %v10842 = vpop.f32.mrf.mxu0
      %v10843 = vadd.f32 0.0, %v10842
      %v10844 = vpop.f32.mrf.mxu0
      %v10845 = vadd.f32 0.0, %v10844
      %10846 = vdwg.mxu0
      %10847 = vmatpush.bf16.msra.mxu0 %v10670
      %10848 = vmatpush.bf16.msra.mxu0 %v10668
      %10849 = vmatpush.bf16.msra.mxu0 %v10666
      %10850 = vmatpush.bf16.msra.mxu0 %v10664
      %10851 = vmatpush.bf16.msra.mxu0 %v10662
      %10852 = vmatpush.bf16.msra.mxu0 %v10660
      %10853 = vmatpush.bf16.msra.mxu0 %v10658
      %10854 = vmatpush.bf16.msra.mxu0 %v10656
      %10855 = vmatmul.bf16.gmra.mxu0 %v10500
      %v10856 = vpop.f32.mrf.mxu0
      %v10857 = vadd.f32 %v10828, %v10856
      %v10858 = vpop.f32.mrf.mxu0
      %v10859 = vadd.f32 %v10830, %v10858
      %10860 = vmatmul.bf16.gmra.mxu0 %v10503
      %v10861 = vpop.f32.mrf.mxu0
      %v10862 = vadd.f32 %v10833, %v10861
      %v10863 = vpop.f32.mrf.mxu0
      %v10864 = vadd.f32 %v10835, %v10863
      %10865 = vmatmul.bf16.gmra.mxu0 %v10506
      %v10866 = vpop.f32.mrf.mxu0
      %v10867 = vadd.f32 %v10838, %v10866
      %v10868 = vpop.f32.mrf.mxu0
      %v10869 = vadd.f32 %v10840, %v10868
      %10870 = vmatmul.bf16.gmra.mxu0 %v10509
      %v10871 = vpop.f32.mrf.mxu0
      %v10872 = vadd.f32 %v10843, %v10871
      %v10873 = vpop.f32.mrf.mxu0
      %v10874 = vadd.f32 %v10845, %v10873
      %10875 = vdwg.mxu0
      %10876 = vmatpush.bf16.msra.mxu0 0
      %10877 = vmatpush.bf16.msra.mxu0 0
      %10878 = vmatpush.bf16.msra.mxu0 0
      %10879 = vmatpush.bf16.msra.mxu0 0
      %10880 = vmatpush.bf16.msra.mxu0 %v10678
      %10881 = vmatpush.bf16.msra.mxu0 %v10676
      %10882 = vmatpush.bf16.msra.mxu0 %v10674
      %10883 = vmatpush.bf16.msra.mxu0 %v10672
      %10884 = vmatmul.bf16.gmra.mxu0 %v10720
      %v10885 = vpop.f32.mrf.mxu0
      %v10886 = vadd.f32 %v10857, %v10885
      %v10887 = vpop.f32.mrf.mxu0
      %v10888 = vadd.f32 %v10859, %v10887
      %10889 = vmatmul.bf16.gmra.mxu0 %v10723
      %v10890 = vpop.f32.mrf.mxu0
      %v10891 = vadd.f32 %v10862, %v10890
      %v10892 = vpop.f32.mrf.mxu0
      %v10893 = vadd.f32 %v10864, %v10892
      %10894 = vmatmul.bf16.gmra.mxu0 %v10726
      %v10895 = vpop.f32.mrf.mxu0
      %v10896 = vadd.f32 %v10867, %v10895
      %v10897 = vpop.f32.mrf.mxu0
      %v10898 = vadd.f32 %v10869, %v10897
      %10899 = vmatmul.bf16.gmra.mxu0 %v10729
      %v10900 = vpop.f32.mrf.mxu0
      %v10901 = vadd.f32 %v10872, %v10900
      %v10902 = vpop.f32.mrf.mxu0
      %v10903 = vadd.f32 %v10874, %v10902
      %10904 = vdwg.mxu0
      %v10905 = vadd.f32 %v10242, %v10799
      %v10906 = vadd.f32 %v10243, %v10886
      %v10907 = vadd.f32 %v10244, %v10801
      %v10908 = vadd.f32 %v10245, %v10888
      %v10909 = vadd.f32 %v10246, %v10804
      %v10910 = vadd.f32 %v10247, %v10891
      %v10911 = vadd.f32 %v10248, %v10806
      %v10912 = vadd.f32 %v10249, %v10893
      %v10913 = vadd.f32 %v10250, %v10809
      %v10914 = vadd.f32 %v10251, %v10896
      %v10915 = vadd.f32 %v10252, %v10811
      %v10916 = vadd.f32 %v10253, %v10898
      %v10917 = vadd.f32 %v10254, %v10814
      %v10918 = vadd.f32 %v10255, %v10901
      %v10919 = vadd.f32 %v10256, %v10816
      %v10920 = vadd.f32 %v10257, %v10903
      %v10922 = vperm.slane %v4959, 0
      %v10923 = vperm.slane %v4959, 1
      %v10926 = vadd.f32 %v10905, %v10922
      %v10927 = vadd.f32 %v10906, %v10923
      %v10928 = vadd.f32 %v10907, %v10922
      %v10929 = vadd.f32 %v10908, %v10923
      %v10930 = vadd.f32 %v10909, %v10922
      %v10931 = vadd.f32 %v10910, %v10923
      %v10932 = vadd.f32 %v10911, %v10922
      %v10933 = vadd.f32 %v10912, %v10923
      %v10934 = vadd.f32 %v10913, %v10922
      %v10935 = vadd.f32 %v10914, %v10923
      %v10936 = vadd.f32 %v10915, %v10922
      %v10937 = vadd.f32 %v10916, %v10923
      %v10938 = vadd.f32 %v10917, %v10922
      %v10939 = vadd.f32 %v10918, %v10923
      %v10940 = vadd.f32 %v10919, %v10922
      %v10941 = vadd.f32 %v10920, %v10923
      %v10942 = vadd.f32 %v10926, %v10928
      %v10943 = vadd.f32 %v10942, %v10930
      %v10944 = vadd.f32 %v10943, %v10932
      %v10945 = vadd.f32 %v10944, %v10934
      %v10946 = vadd.f32 %v10945, %v10936
      %v10947 = vadd.f32 %v10946, %v10938
      %v10948 = vadd.f32 %v10947, %v10940
      %v10949 = vrot.slane %v10948, 4
      %v10950 = vadd.f32 %v10948, %v10949
      %v10951 = vrot.slane %v10950, 2
      %v10952 = vadd.f32 %v10950, %v10951
      %v10953 = vrot.slane %v10952, 1
      %v10954 = vadd.f32 %v10952, %v10953
      %v10955 = vadd.f32 %v10927, %v10929
      %v10956 = vadd.f32 %v10955, %v10931
      %v10957 = vadd.f32 %v10956, %v10933
      %v10958 = vadd.f32 %v10957, %v10935
      %v10959 = vadd.f32 %v10958, %v10937
      %v10960 = vadd.f32 %v10959, %v10939
      %v10961 = vadd.f32 %v10960, %v10941
      %v10962 = vrot.slane %v10961, 4
      %v10963 = vadd.f32 %v10961, %v10962
      %v10964 = vrot.slane %v10963, 2
      %v10965 = vadd.f32 %v10963, %v10964
      %v10966 = vrot.slane %v10965, 1
      %v10967 = vadd.f32 %v10965, %v10966
      %10968 = vmatpush.msra.mxu0 %v646
      %10969 = vmatpush.msra.mxu0 %v645
      %10970 = vmatpush.msra.mxu0 %v644
      %10971 = vmatpush.msra.mxu0 %v643
      %10972 = vmatpush.msra.mxu0 %v642
      %10973 = vmatpush.msra.mxu0 %v641
      %10974 = vmatpush.msra.mxu0 %v640
      %10975 = vmatpush.msra.mxu0 %v639
      %10976 = vmatpush.msra.mxu0 %v638
      %10977 = vmatpush.msra.mxu0 %v637
      %10978 = vmatpush.msra.mxu0 %v636
      %10979 = vmatpush.msra.mxu0 %v635
      %10980 = vmatpush.msra.mxu0 %v634
      %10981 = vmatpush.msra.mxu0 %v633
      %10982 = vmatpush.msra.mxu0 %v632
      %10983 = vmatpush.msra.mxu0 %v631
      %10984 = vmatmul.f32.gmra.mxu0 %v10954
      %v10985 = vpop.f32.mrf.mxu0
      %v10986 = vadd.f32 0.0, %v10985
      %10987 = vdwg.mxu0
      %10988 = vmatpush.msra.mxu0 %v662
      %10989 = vmatpush.msra.mxu0 %v661
      %10990 = vmatpush.msra.mxu0 %v660
      %10991 = vmatpush.msra.mxu0 %v659
      %10992 = vmatpush.msra.mxu0 %v658
      %10993 = vmatpush.msra.mxu0 %v657
      %10994 = vmatpush.msra.mxu0 %v656
      %10995 = vmatpush.msra.mxu0 %v655
      %10996 = vmatpush.msra.mxu0 %v654
      %10997 = vmatpush.msra.mxu0 %v653
      %10998 = vmatpush.msra.mxu0 %v652
      %10999 = vmatpush.msra.mxu0 %v651
      %11000 = vmatpush.msra.mxu0 %v650
      %11001 = vmatpush.msra.mxu0 %v649
      %11002 = vmatpush.msra.mxu0 %v648
      %11003 = vmatpush.msra.mxu0 %v647
      %11004 = vmatmul.f32.gmra.mxu0 %v10967
      %v11005 = vpop.f32.mrf.mxu0
      %v11006 = vadd.f32 %v10986, %v11005
      %11007 = vdwg.mxu0
      %v11008 = vmul.f32 %v11006, 0.00048828125
      %v11010 = vsel %vm4231, %v11008, 0
      %11012 = vmatpush.msra.mxu0 0.0
      %11013 = vmatpush.msra.mxu0 0.0
      %11014 = vmatpush.msra.mxu0 0.0
      %11015 = vmatpush.msra.mxu0 0.0
      %11016 = vmatpush.msra.mxu0 0.0
      %11017 = vmatpush.msra.mxu0 0.0
      %11018 = vmatpush.msra.mxu0 0.0
      %11019 = vmatpush.msra.mxu0 0.0
      %11020 = vmatpush.msra.mxu0 0.0
      %11021 = vmatpush.msra.mxu0 0.0
      %11022 = vmatpush.msra.mxu0 0.0
      %11023 = vmatpush.msra.mxu0 0.0
      %11024 = vmatpush.msra.mxu0 0.0
      %11025 = vmatpush.msra.mxu0 0.0
      %11026 = vmatpush.msra.mxu0 0.0
      %11027 = vmatpush.msra.mxu0 %v663
      %11028 = vmatmul.f32.gmra.mxu0 %v11010
      %v11029 = vpop.f32.mrf.mxu0
      %v11030 = vadd.f32 0.0, %v11029
      %11031 = vdwg.mxu0
      %11032 = vmatpush.msra.mxu0 0.0
      %11033 = vmatpush.msra.mxu0 0.0
      %11034 = vmatpush.msra.mxu0 0.0
      %11035 = vmatpush.msra.mxu0 0.0
      %11036 = vmatpush.msra.mxu0 0.0
      %11037 = vmatpush.msra.mxu0 0.0
      %11038 = vmatpush.msra.mxu0 0.0
      %11039 = vmatpush.msra.mxu0 0.0
      %11040 = vmatpush.msra.mxu0 0.0
      %11041 = vmatpush.msra.mxu0 0.0
      %11042 = vmatpush.msra.mxu0 0.0
      %11043 = vmatpush.msra.mxu0 0.0
      %11044 = vmatpush.msra.mxu0 0.0
      %11045 = vmatpush.msra.mxu0 0.0
      %11046 = vmatpush.msra.mxu0 0.0
      %11047 = vmatpush.msra.mxu0 %v664
      %11048 = vmatmul.f32.gmra.mxu0 %v11010
      %v11049 = vpop.f32.mrf.mxu0
      %v11050 = vadd.f32 0.0, %v11049
      %11051 = vdwg.mxu0
      %v11052 = vperm.slane %v11030, 0
      %v11053 = vperm.slane %v11050, 0
      %v11054 = vsub.f32 %v10926, %v11052
      %v11055 = vsub.f32 %v10927, %v11053
      %v11056 = vsub.f32 %v10928, %v11052
      %v11057 = vsub.f32 %v10929, %v11053
      %v11058 = vsub.f32 %v10930, %v11052
      %v11059 = vsub.f32 %v10931, %v11053
      %v11060 = vsub.f32 %v10932, %v11052
      %v11061 = vsub.f32 %v10933, %v11053
      %v11062 = vsub.f32 %v10934, %v11052
      %v11063 = vsub.f32 %v10935, %v11053
      %v11064 = vsub.f32 %v10936, %v11052
      %v11065 = vsub.f32 %v10937, %v11053
      %v11066 = vsub.f32 %v10938, %v11052
      %v11067 = vsub.f32 %v10939, %v11053
      %v11068 = vsub.f32 %v10940, %v11052
      %v11069 = vsub.f32 %v10941, %v11053
      %v11070 = vmul.f32 %v11054, %v11054
      %v11071 = vmul.f32 %v11055, %v11055
      %v11072 = vmul.f32 %v11056, %v11056
      %v11073 = vmul.f32 %v11057, %v11057
      %v11074 = vmul.f32 %v11058, %v11058
      %v11075 = vmul.f32 %v11059, %v11059
      %v11076 = vmul.f32 %v11060, %v11060
      %v11077 = vmul.f32 %v11061, %v11061
      %v11078 = vmul.f32 %v11062, %v11062
      %v11079 = vmul.f32 %v11063, %v11063
      %v11080 = vmul.f32 %v11064, %v11064
      %v11081 = vmul.f32 %v11065, %v11065
      %v11082 = vmul.f32 %v11066, %v11066
      %v11083 = vmul.f32 %v11067, %v11067
      %v11084 = vmul.f32 %v11068, %v11068
      %v11085 = vmul.f32 %v11069, %v11069
      %v11086 = vadd.f32 %v11070, %v11072
      %v11087 = vadd.f32 %v11086, %v11074
      %v11088 = vadd.f32 %v11087, %v11076
      %v11089 = vadd.f32 %v11088, %v11078
      %v11090 = vadd.f32 %v11089, %v11080
      %v11091 = vadd.f32 %v11090, %v11082
      %v11092 = vadd.f32 %v11091, %v11084
      %v11093 = vrot.slane %v11092, 4
      %v11094 = vadd.f32 %v11092, %v11093
      %v11095 = vrot.slane %v11094, 2
      %v11096 = vadd.f32 %v11094, %v11095
      %v11097 = vrot.slane %v11096, 1
      %v11098 = vadd.f32 %v11096, %v11097
      %v11099 = vadd.f32 %v11071, %v11073
      %v11100 = vadd.f32 %v11099, %v11075
      %v11101 = vadd.f32 %v11100, %v11077
      %v11102 = vadd.f32 %v11101, %v11079
      %v11103 = vadd.f32 %v11102, %v11081
      %v11104 = vadd.f32 %v11103, %v11083
      %v11105 = vadd.f32 %v11104, %v11085
      %v11106 = vrot.slane %v11105, 4
      %v11107 = vadd.f32 %v11105, %v11106
      %v11108 = vrot.slane %v11107, 2
      %v11109 = vadd.f32 %v11107, %v11108
      %v11110 = vrot.slane %v11109, 1
      %v11111 = vadd.f32 %v11109, %v11110
      %11112 = vmatpush.msra.mxu0 %v646
      %11113 = vmatpush.msra.mxu0 %v645
      %11114 = vmatpush.msra.mxu0 %v644
      %11115 = vmatpush.msra.mxu0 %v643
      %11116 = vmatpush.msra.mxu0 %v642
      %11117 = vmatpush.msra.mxu0 %v641
      %11118 = vmatpush.msra.mxu0 %v640
      %11119 = vmatpush.msra.mxu0 %v639
      %11120 = vmatpush.msra.mxu0 %v638
      %11121 = vmatpush.msra.mxu0 %v637
      %11122 = vmatpush.msra.mxu0 %v636
      %11123 = vmatpush.msra.mxu0 %v635
      %11124 = vmatpush.msra.mxu0 %v634
      %11125 = vmatpush.msra.mxu0 %v633
      %11126 = vmatpush.msra.mxu0 %v632
      %11127 = vmatpush.msra.mxu0 %v631
      %11128 = vmatmul.f32.gmra.mxu0 %v11098
      %v11129 = vpop.f32.mrf.mxu0
      %v11130 = vadd.f32 0.0, %v11129
      %11131 = vdwg.mxu0
      %11132 = vmatpush.msra.mxu0 %v662
      %11133 = vmatpush.msra.mxu0 %v661
      %11134 = vmatpush.msra.mxu0 %v660
      %11135 = vmatpush.msra.mxu0 %v659
      %11136 = vmatpush.msra.mxu0 %v658
      %11137 = vmatpush.msra.mxu0 %v657
      %11138 = vmatpush.msra.mxu0 %v656
      %11139 = vmatpush.msra.mxu0 %v655
      %11140 = vmatpush.msra.mxu0 %v654
      %11141 = vmatpush.msra.mxu0 %v653
      %11142 = vmatpush.msra.mxu0 %v652
      %11143 = vmatpush.msra.mxu0 %v651
      %11144 = vmatpush.msra.mxu0 %v650
      %11145 = vmatpush.msra.mxu0 %v649
      %11146 = vmatpush.msra.mxu0 %v648
      %11147 = vmatpush.msra.mxu0 %v647
      %11148 = vmatmul.f32.gmra.mxu0 %v11111
      %v11149 = vpop.f32.mrf.mxu0
      %v11150 = vadd.f32 %v11130, %v11149
      %11151 = vdwg.mxu0
      %v11152 = vmul.f32 %v11150, 0.00048828125
      %v11153 = vadd.f32 %v11152, 1e-05
      %v11154 = vrsqrt.pop %v11153
      %v11155 = vmul.f32 %v11154, %v11153
      %v11156 = vmul.f32 %v11155, %v11154
      %v11157 = vmul.f32 0.5, %v11156
      %v11158 = vsub.f32 1.5, %v11157
      %v11159 = vmul.f32 %v11154, %v11158
      %vm11160 = vweird.f32 %v11153
      %vm11161 = vweird.f32 %v11154
      %vm11162 = vmor %vm11160, %vm11161
      %v11163 = vsel %vm11162, %v11154, %v11159
      %v11165 = vsel %vm4231, %v11163, 0
      %11167 = vmatpush.msra.mxu0 0.0
      %11168 = vmatpush.msra.mxu0 0.0
      %11169 = vmatpush.msra.mxu0 0.0
      %11170 = vmatpush.msra.mxu0 0.0
      %11171 = vmatpush.msra.mxu0 0.0
      %11172 = vmatpush.msra.mxu0 0.0
      %11173 = vmatpush.msra.mxu0 0.0
      %11174 = vmatpush.msra.mxu0 0.0
      %11175 = vmatpush.msra.mxu0 0.0
      %11176 = vmatpush.msra.mxu0 0.0
      %11177 = vmatpush.msra.mxu0 0.0
      %11178 = vmatpush.msra.mxu0 0.0
      %11179 = vmatpush.msra.mxu0 0.0
      %11180 = vmatpush.msra.mxu0 0.0
      %11181 = vmatpush.msra.mxu0 0.0
      %11182 = vmatpush.msra.mxu0 %v663
      %11183 = vmatmul.f32.gmra.mxu0 %v11165
      %v11184 = vpop.f32.mrf.mxu0
      %v11185 = vadd.f32 0.0, %v11184
      %11186 = vdwg.mxu0
      %11187 = vmatpush.msra.mxu0 0.0
      %11188 = vmatpush.msra.mxu0 0.0
      %11189 = vmatpush.msra.mxu0 0.0
      %11190 = vmatpush.msra.mxu0 0.0
      %11191 = vmatpush.msra.mxu0 0.0
      %11192 = vmatpush.msra.mxu0 0.0
      %11193 = vmatpush.msra.mxu0 0.0
      %11194 = vmatpush.msra.mxu0 0.0
      %11195 = vmatpush.msra.mxu0 0.0
      %11196 = vmatpush.msra.mxu0 0.0
      %11197 = vmatpush.msra.mxu0 0.0
      %11198 = vmatpush.msra.mxu0 0.0
      %11199 = vmatpush.msra.mxu0 0.0
      %11200 = vmatpush.msra.mxu0 0.0
      %11201 = vmatpush.msra.mxu0 0.0
      %11202 = vmatpush.msra.mxu0 %v664
      %11203 = vmatmul.f32.gmra.mxu0 %v11165
      %v11204 = vpop.f32.mrf.mxu0
      %v11205 = vadd.f32 0.0, %v11204
      %11206 = vdwg.mxu0
      %v11207 = vperm.slane %v11185, 0
      %v11208 = vperm.slane %v11205, 0
      %v11209 = vmul.f32 %v11054, %v11207
      %v11210 = vmul.f32 %v11055, %v11208
      %v11211 = vmul.f32 %v11056, %v11207
      %v11212 = vmul.f32 %v11057, %v11208
      %v11213 = vmul.f32 %v11058, %v11207
      %v11214 = vmul.f32 %v11059, %v11208
      %v11215 = vmul.f32 %v11060, %v11207
      %v11216 = vmul.f32 %v11061, %v11208
      %v11217 = vmul.f32 %v11062, %v11207
      %v11218 = vmul.f32 %v11063, %v11208
      %v11219 = vmul.f32 %v11064, %v11207
      %v11220 = vmul.f32 %v11065, %v11208
      %v11221 = vmul.f32 %v11066, %v11207
      %v11222 = vmul.f32 %v11067, %v11208
      %v11223 = vmul.f32 %v11068, %v11207
      %v11224 = vmul.f32 %v11069, %v11208
      %v11226 = vperm.slane %v4960, 0
      %v11227 = vperm.slane %v4960, 1
      %v11230 = vmul.f32 %v11209, %v11226
      %v11231 = vmul.f32 %v11210, %v11227
      %v11232 = vmul.f32 %v11211, %v11226
      %v11233 = vmul.f32 %v11212, %v11227
      %v11234 = vmul.f32 %v11213, %v11226
      %v11235 = vmul.f32 %v11214, %v11227
      %v11236 = vmul.f32 %v11215, %v11226
      %v11237 = vmul.f32 %v11216, %v11227
      %v11238 = vmul.f32 %v11217, %v11226
      %v11239 = vmul.f32 %v11218, %v11227
      %v11240 = vmul.f32 %v11219, %v11226
      %v11241 = vmul.f32 %v11220, %v11227
      %v11242 = vmul.f32 %v11221, %v11226
      %v11243 = vmul.f32 %v11222, %v11227
      %v11244 = vmul.f32 %v11223, %v11226
      %v11245 = vmul.f32 %v11224, %v11227
      %v11247 = vperm.slane %v4961, 0
      %v11248 = vperm.slane %v4961, 1
      %v11251 = vadd.f32 %v11230, %v11247
      %v11252 = vadd.f32 %v11231, %v11248
      %v11253 = vadd.f32 %v11232, %v11247
      %v11254 = vadd.f32 %v11233, %v11248
      %v11255 = vadd.f32 %v11234, %v11247
      %v11256 = vadd.f32 %v11235, %v11248
      %v11257 = vadd.f32 %v11236, %v11247
      %v11258 = vadd.f32 %v11237, %v11248
      %v11259 = vadd.f32 %v11238, %v11247
      %v11260 = vadd.f32 %v11239, %v11248
      %v11261 = vadd.f32 %v11240, %v11247
      %v11262 = vadd.f32 %v11241, %v11248
      %v11263 = vadd.f32 %v11242, %v11247
      %v11264 = vadd.f32 %v11243, %v11248
      %v11265 = vadd.f32 %v11244, %v11247
      %v11266 = vadd.f32 %v11245, %v11248
      %v11267 = vxor.u32 %v11251, 2147483648
      %v11268 = vxor.u32 %v11252, 2147483648
      %v11269 = vxor.u32 %v11253, 2147483648
      %v11270 = vxor.u32 %v11254, 2147483648
      %v11271 = vxor.u32 %v11255, 2147483648
      %v11272 = vxor.u32 %v11256, 2147483648
      %v11273 = vxor.u32 %v11257, 2147483648
      %v11274 = vxor.u32 %v11258, 2147483648
      %v11275 = vxor.u32 %v11259, 2147483648
      %v11276 = vxor.u32 %v11260, 2147483648
      %v11277 = vxor.u32 %v11261, 2147483648
      %v11278 = vxor.u32 %v11262, 2147483648
      %v11279 = vxor.u32 %v11263, 2147483648
      %v11280 = vxor.u32 %v11264, 2147483648
      %v11281 = vxor.u32 %v11265, 2147483648
      %v11282 = vxor.u32 %v11266, 2147483648
      %v11283 = vmul.f32 %v11267, 1.442695
      %v11284 = vpow.pop %v11283
      %v11285 = vmul.f32 %v11268, 1.442695
      %v11286 = vpow.pop %v11285
      %v11287 = vmul.f32 %v11269, 1.442695
      %v11288 = vpow.pop %v11287
      %v11289 = vmul.f32 %v11270, 1.442695
      %v11290 = vpow.pop %v11289
      %v11291 = vmul.f32 %v11271, 1.442695
      %v11292 = vpow.pop %v11291
      %v11293 = vmul.f32 %v11272, 1.442695
      %v11294 = vpow.pop %v11293
      %v11295 = vmul.f32 %v11273, 1.442695
      %v11296 = vpow.pop %v11295
      %v11297 = vmul.f32 %v11274, 1.442695
      %v11298 = vpow.pop %v11297
      %v11299 = vmul.f32 %v11275, 1.442695
      %v11300 = vpow.pop %v11299
      %v11301 = vmul.f32 %v11276, 1.442695
      %v11302 = vpow.pop %v11301
      %v11303 = vmul.f32 %v11277, 1.442695
      %v11304 = vpow.pop %v11303
      %v11305 = vmul.f32 %v11278, 1.442695
      %v11306 = vpow.pop %v11305
      %v11307 = vmul.f32 %v11279, 1.442695
      %v11308 = vpow.pop %v11307
      %v11309 = vmul.f32 %v11280, 1.442695
      %v11310 = vpow.pop %v11309
      %v11311 = vmul.f32 %v11281, 1.442695
      %v11312 = vpow.pop %v11311
      %v11313 = vmul.f32 %v11282, 1.442695
      %v11314 = vpow.pop %v11313
      %v11315 = vadd.f32 %v11284, 1.0
      %v11316 = vadd.f32 %v11286, 1.0
      %v11317 = vadd.f32 %v11288, 1.0
      %v11318 = vadd.f32 %v11290, 1.0
      %v11319 = vadd.f32 %v11292, 1.0
      %v11320 = vadd.f32 %v11294, 1.0
      %v11321 = vadd.f32 %v11296, 1.0
      %v11322 = vadd.f32 %v11298, 1.0
      %v11323 = vadd.f32 %v11300, 1.0
      %v11324 = vadd.f32 %v11302, 1.0
      %v11325 = vadd.f32 %v11304, 1.0
      %v11326 = vadd.f32 %v11306, 1.0
      %v11327 = vadd.f32 %v11308, 1.0
      %v11328 = vadd.f32 %v11310, 1.0
      %v11329 = vadd.f32 %v11312, 1.0
      %v11330 = vadd.f32 %v11314, 1.0
      %v11331 = vrcp.pop %v11315
      %v11332 = vmul.f32 %v11315, %v11331
      %v11333 = vsub.f32 1.0, %v11332
      %v11334 = vmul.f32 %v11331, %v11333
      %v11335 = vadd.f32 %v11331, %v11334
      %vm11336 = vweird.f32 %v11315
      %vm11337 = vweird.f32 %v11331
      %vm11338 = vmor %vm11336, %vm11337
      %v11339 = vsel %vm11338, %v11331, %v11335
      %v11340 = vand.u32 2147483647, %v11315
      %vm11341 = vcmp.eq.f32.partialorder %v11340, 8.507059e+37
      %v11342 = vand.u32 %v11315, 2147483648
      %v11343 = vor.u32 1.1754944e-38, %v11342
      %v11344 = vsel %vm11341, %v11343, %v11339
      %v11345 = vmul.f32 1.0, %v11344
      %v11346 = vrcp.pop %v11316
      %v11347 = vmul.f32 %v11316, %v11346
      %v11348 = vsub.f32 1.0, %v11347
      %v11349 = vmul.f32 %v11346, %v11348
      %v11350 = vadd.f32 %v11346, %v11349
      %vm11351 = vweird.f32 %v11316
      %vm11352 = vweird.f32 %v11346
      %vm11353 = vmor %vm11351, %vm11352
      %v11354 = vsel %vm11353, %v11346, %v11350
      %v11355 = vand.u32 2147483647, %v11316
      %vm11356 = vcmp.eq.f32.partialorder %v11355, 8.507059e+37
      %v11357 = vand.u32 %v11316, 2147483648
      %v11358 = vor.u32 1.1754944e-38, %v11357
      %v11359 = vsel %vm11356, %v11358, %v11354
      %v11360 = vmul.f32 1.0, %v11359
      %v11361 = vrcp.pop %v11317
      %v11362 = vmul.f32 %v11317, %v11361
      %v11363 = vsub.f32 1.0, %v11362
      %v11364 = vmul.f32 %v11361, %v11363
      %v11365 = vadd.f32 %v11361, %v11364
      %vm11366 = vweird.f32 %v11317
      %vm11367 = vweird.f32 %v11361
      %vm11368 = vmor %vm11366, %vm11367
      %v11369 = vsel %vm11368, %v11361, %v11365
      %v11370 = vand.u32 2147483647, %v11317
      %vm11371 = vcmp.eq.f32.partialorder %v11370, 8.507059e+37
      %v11372 = vand.u32 %v11317, 2147483648
      %v11373 = vor.u32 1.1754944e-38, %v11372
      %v11374 = vsel %vm11371, %v11373, %v11369
      %v11375 = vmul.f32 1.0, %v11374
      %v11376 = vrcp.pop %v11318
      %v11377 = vmul.f32 %v11318, %v11376
      %v11378 = vsub.f32 1.0, %v11377
      %v11379 = vmul.f32 %v11376, %v11378
      %v11380 = vadd.f32 %v11376, %v11379
      %vm11381 = vweird.f32 %v11318
      %vm11382 = vweird.f32 %v11376
      %vm11383 = vmor %vm11381, %vm11382
      %v11384 = vsel %vm11383, %v11376, %v11380
      %v11385 = vand.u32 2147483647, %v11318
      %vm11386 = vcmp.eq.f32.partialorder %v11385, 8.507059e+37
      %v11387 = vand.u32 %v11318, 2147483648
      %v11388 = vor.u32 1.1754944e-38, %v11387
      %v11389 = vsel %vm11386, %v11388, %v11384
      %v11390 = vmul.f32 1.0, %v11389
      %v11391 = vrcp.pop %v11319
      %v11392 = vmul.f32 %v11319, %v11391
      %v11393 = vsub.f32 1.0, %v11392
      %v11394 = vmul.f32 %v11391, %v11393
      %v11395 = vadd.f32 %v11391, %v11394
      %vm11396 = vweird.f32 %v11319
      %vm11397 = vweird.f32 %v11391
      %vm11398 = vmor %vm11396, %vm11397
      %v11399 = vsel %vm11398, %v11391, %v11395
      %v11400 = vand.u32 2147483647, %v11319
      %vm11401 = vcmp.eq.f32.partialorder %v11400, 8.507059e+37
      %v11402 = vand.u32 %v11319, 2147483648
      %v11403 = vor.u32 1.1754944e-38, %v11402
      %v11404 = vsel %vm11401, %v11403, %v11399
      %v11405 = vmul.f32 1.0, %v11404
      %v11406 = vrcp.pop %v11320
      %v11407 = vmul.f32 %v11320, %v11406
      %v11408 = vsub.f32 1.0, %v11407
      %v11409 = vmul.f32 %v11406, %v11408
      %v11410 = vadd.f32 %v11406, %v11409
      %vm11411 = vweird.f32 %v11320
      %vm11412 = vweird.f32 %v11406
      %vm11413 = vmor %vm11411, %vm11412
      %v11414 = vsel %vm11413, %v11406, %v11410
      %v11415 = vand.u32 2147483647, %v11320
      %vm11416 = vcmp.eq.f32.partialorder %v11415, 8.507059e+37
      %v11417 = vand.u32 %v11320, 2147483648
      %v11418 = vor.u32 1.1754944e-38, %v11417
      %v11419 = vsel %vm11416, %v11418, %v11414
      %v11420 = vmul.f32 1.0, %v11419
      %v11421 = vrcp.pop %v11321
      %v11422 = vmul.f32 %v11321, %v11421
      %v11423 = vsub.f32 1.0, %v11422
      %v11424 = vmul.f32 %v11421, %v11423
      %v11425 = vadd.f32 %v11421, %v11424
      %vm11426 = vweird.f32 %v11321
      %vm11427 = vweird.f32 %v11421
      %vm11428 = vmor %vm11426, %vm11427
      %v11429 = vsel %vm11428, %v11421, %v11425
      %v11430 = vand.u32 2147483647, %v11321
      %vm11431 = vcmp.eq.f32.partialorder %v11430, 8.507059e+37
      %v11432 = vand.u32 %v11321, 2147483648
      %v11433 = vor.u32 1.1754944e-38, %v11432
      %v11434 = vsel %vm11431, %v11433, %v11429
      %v11435 = vmul.f32 1.0, %v11434
      %v11436 = vrcp.pop %v11322
      %v11437 = vmul.f32 %v11322, %v11436
      %v11438 = vsub.f32 1.0, %v11437
      %v11439 = vmul.f32 %v11436, %v11438
      %v11440 = vadd.f32 %v11436, %v11439
      %vm11441 = vweird.f32 %v11322
      %vm11442 = vweird.f32 %v11436
      %vm11443 = vmor %vm11441, %vm11442
      %v11444 = vsel %vm11443, %v11436, %v11440
      %v11445 = vand.u32 2147483647, %v11322
      %vm11446 = vcmp.eq.f32.partialorder %v11445, 8.507059e+37
      %v11447 = vand.u32 %v11322, 2147483648
      %v11448 = vor.u32 1.1754944e-38, %v11447
      %v11449 = vsel %vm11446, %v11448, %v11444
      %v11450 = vmul.f32 1.0, %v11449
      %v11451 = vrcp.pop %v11323
      %v11452 = vmul.f32 %v11323, %v11451
      %v11453 = vsub.f32 1.0, %v11452
      %v11454 = vmul.f32 %v11451, %v11453
      %v11455 = vadd.f32 %v11451, %v11454
      %vm11456 = vweird.f32 %v11323
      %vm11457 = vweird.f32 %v11451
      %vm11458 = vmor %vm11456, %vm11457
      %v11459 = vsel %vm11458, %v11451, %v11455
      %v11460 = vand.u32 2147483647, %v11323
      %vm11461 = vcmp.eq.f32.partialorder %v11460, 8.507059e+37
      %v11462 = vand.u32 %v11323, 2147483648
      %v11463 = vor.u32 1.1754944e-38, %v11462
      %v11464 = vsel %vm11461, %v11463, %v11459
      %v11465 = vmul.f32 1.0, %v11464
      %v11466 = vrcp.pop %v11324
      %v11467 = vmul.f32 %v11324, %v11466
      %v11468 = vsub.f32 1.0, %v11467
      %v11469 = vmul.f32 %v11466, %v11468
      %v11470 = vadd.f32 %v11466, %v11469
      %vm11471 = vweird.f32 %v11324
      %vm11472 = vweird.f32 %v11466
      %vm11473 = vmor %vm11471, %vm11472
      %v11474 = vsel %vm11473, %v11466, %v11470
      %v11475 = vand.u32 2147483647, %v11324
      %vm11476 = vcmp.eq.f32.partialorder %v11475, 8.507059e+37
      %v11477 = vand.u32 %v11324, 2147483648
      %v11478 = vor.u32 1.1754944e-38, %v11477
      %v11479 = vsel %vm11476, %v11478, %v11474
      %v11480 = vmul.f32 1.0, %v11479
      %v11481 = vrcp.pop %v11325
      %v11482 = vmul.f32 %v11325, %v11481
      %v11483 = vsub.f32 1.0, %v11482
      %v11484 = vmul.f32 %v11481, %v11483
      %v11485 = vadd.f32 %v11481, %v11484
      %vm11486 = vweird.f32 %v11325
      %vm11487 = vweird.f32 %v11481
      %vm11488 = vmor %vm11486, %vm11487
      %v11489 = vsel %vm11488, %v11481, %v11485
      %v11490 = vand.u32 2147483647, %v11325
      %vm11491 = vcmp.eq.f32.partialorder %v11490, 8.507059e+37
      %v11492 = vand.u32 %v11325, 2147483648
      %v11493 = vor.u32 1.1754944e-38, %v11492
      %v11494 = vsel %vm11491, %v11493, %v11489
      %v11495 = vmul.f32 1.0, %v11494
      %v11496 = vrcp.pop %v11326
      %v11497 = vmul.f32 %v11326, %v11496
      %v11498 = vsub.f32 1.0, %v11497
      %v11499 = vmul.f32 %v11496, %v11498
      %v11500 = vadd.f32 %v11496, %v11499
      %vm11501 = vweird.f32 %v11326
      %vm11502 = vweird.f32 %v11496
      %vm11503 = vmor %vm11501, %vm11502
      %v11504 = vsel %vm11503, %v11496, %v11500
      %v11505 = vand.u32 2147483647, %v11326
      %vm11506 = vcmp.eq.f32.partialorder %v11505, 8.507059e+37
      %v11507 = vand.u32 %v11326, 2147483648
      %v11508 = vor.u32 1.1754944e-38, %v11507
      %v11509 = vsel %vm11506, %v11508, %v11504
      %v11510 = vmul.f32 1.0, %v11509
      %v11511 = vrcp.pop %v11327
      %v11512 = vmul.f32 %v11327, %v11511
      %v11513 = vsub.f32 1.0, %v11512
      %v11514 = vmul.f32 %v11511, %v11513
      %v11515 = vadd.f32 %v11511, %v11514
      %vm11516 = vweird.f32 %v11327
      %vm11517 = vweird.f32 %v11511
      %vm11518 = vmor %vm11516, %vm11517
      %v11519 = vsel %vm11518, %v11511, %v11515
      %v11520 = vand.u32 2147483647, %v11327
      %vm11521 = vcmp.eq.f32.partialorder %v11520, 8.507059e+37
      %v11522 = vand.u32 %v11327, 2147483648
      %v11523 = vor.u32 1.1754944e-38, %v11522
      %v11524 = vsel %vm11521, %v11523, %v11519
      %v11525 = vmul.f32 1.0, %v11524
      %v11526 = vrcp.pop %v11328
      %v11527 = vmul.f32 %v11328, %v11526
      %v11528 = vsub.f32 1.0, %v11527
      %v11529 = vmul.f32 %v11526, %v11528
      %v11530 = vadd.f32 %v11526, %v11529
      %vm11531 = vweird.f32 %v11328
      %vm11532 = vweird.f32 %v11526
      %vm11533 = vmor %vm11531, %vm11532
      %v11534 = vsel %vm11533, %v11526, %v11530
      %v11535 = vand.u32 2147483647, %v11328
      %vm11536 = vcmp.eq.f32.partialorder %v11535, 8.507059e+37
      %v11537 = vand.u32 %v11328, 2147483648
      %v11538 = vor.u32 1.1754944e-38, %v11537
      %v11539 = vsel %vm11536, %v11538, %v11534
      %v11540 = vmul.f32 1.0, %v11539
      %v11541 = vrcp.pop %v11329
      %v11542 = vmul.f32 %v11329, %v11541
      %v11543 = vsub.f32 1.0, %v11542
      %v11544 = vmul.f32 %v11541, %v11543
      %v11545 = vadd.f32 %v11541, %v11544
      %vm11546 = vweird.f32 %v11329
      %vm11547 = vweird.f32 %v11541
      %vm11548 = vmor %vm11546, %vm11547
      %v11549 = vsel %vm11548, %v11541, %v11545
      %v11550 = vand.u32 2147483647, %v11329
      %vm11551 = vcmp.eq.f32.partialorder %v11550, 8.507059e+37
      %v11552 = vand.u32 %v11329, 2147483648
      %v11553 = vor.u32 1.1754944e-38, %v11552
      %v11554 = vsel %vm11551, %v11553, %v11549
      %v11555 = vmul.f32 1.0, %v11554
      %v11556 = vrcp.pop %v11330
      %v11557 = vmul.f32 %v11330, %v11556
      %v11558 = vsub.f32 1.0, %v11557
      %v11559 = vmul.f32 %v11556, %v11558
      %v11560 = vadd.f32 %v11556, %v11559
      %vm11561 = vweird.f32 %v11330
      %vm11562 = vweird.f32 %v11556
      %vm11563 = vmor %vm11561, %vm11562
      %v11564 = vsel %vm11563, %v11556, %v11560
      %v11565 = vand.u32 2147483647, %v11330
      %vm11566 = vcmp.eq.f32.partialorder %v11565, 8.507059e+37
      %v11567 = vand.u32 %v11330, 2147483648
      %v11568 = vor.u32 1.1754944e-38, %v11567
      %v11569 = vsel %vm11566, %v11568, %v11564
      %v11570 = vmul.f32 1.0, %v11569
      %v11571 = vmul.f32 %v11251, %v11345
      %v11572 = vmul.f32 %v11252, %v11360
      %v11573 = vmul.f32 %v11253, %v11375
      %v11574 = vmul.f32 %v11254, %v11390
      %v11575 = vmul.f32 %v11255, %v11405
      %v11576 = vmul.f32 %v11256, %v11420
      %v11577 = vmul.f32 %v11257, %v11435
      %v11578 = vmul.f32 %v11258, %v11450
      %v11579 = vmul.f32 %v11259, %v11465
      %v11580 = vmul.f32 %v11260, %v11480
      %v11581 = vmul.f32 %v11261, %v11495
      %v11582 = vmul.f32 %v11262, %v11510
      %v11583 = vmul.f32 %v11263, %v11525
      %v11584 = vmul.f32 %v11264, %v11540
      %v11585 = vmul.f32 %v11265, %v11555
      %v11586 = vmul.f32 %v11266, %v11570
      %v11587 = vpack.c.bf16 %v547, %v546
      %v11588 = vpack.c.bf16 %v549, %v548
      %v11589 = vpack.c.bf16 %v551, %v550
      %v11590 = vpack.c.bf16 %v553, %v552
      %v11591 = vld [vmem:[%s11] sm:$0xff]
      %v11592 = vld [vmem:[%s11 + $0x8] sm:$0xff]
      %v11593 = vld [vmem:[%s11 + $0x10] sm:$0xff]
      %v11594 = vld [vmem:[%s11 + $0x18] sm:$0xff]
      %v11595 = vld [vmem:[%s11 + $0x20] sm:$0xff]
      %v11596 = vld [vmem:[%s11 + $0x28] sm:$0xff]
      %v11597 = vld [vmem:[%s11 + $0x30] sm:$0xff]
      %v11598 = vld [vmem:[%s11 + $0x38] sm:$0xff]
      %v11599 = vld [vmem:[%s11 + $0x40] sm:$0xff]
      %v11600 = vld [vmem:[%s11 + $0x48] sm:$0xff]
      %v11601 = vld [vmem:[%s11 + $0x50] sm:$0xff]
      %v11602 = vld [vmem:[%s11 + $0x58] sm:$0xff]
      %v11603 = vld [vmem:[%s11 + $0x60] sm:$0xff]
      %v11604 = vld [vmem:[%s11 + $0x68] sm:$0xff]
      %v11605 = vld [vmem:[%s11 + $0x70] sm:$0xff]
      %v11606 = vld [vmem:[%s11 + $0x78] sm:$0xff]
      %v11607 = vld [vmem:[%s12] sm:$0x3]
      %v11609 = vperm.slane %v11607, 0
      %v11610 = vperm.slane %v11607, 1
      %v11629 = vunpack.c.l.b16 %v11591
      %v11630 = vunpack.c.h.b16 %v11591
      %v11631 = vunpack.c.l.b16 %v11592
      %v11632 = vunpack.c.h.b16 %v11592
      %v11633 = vunpack.c.l.b16 %v11593
      %v11634 = vunpack.c.h.b16 %v11593
      %v11635 = vunpack.c.l.b16 %v11594
      %v11636 = vunpack.c.h.b16 %v11594
      %v11637 = vunpack.c.l.b16 %v11595
      %v11638 = vunpack.c.h.b16 %v11595
      %v11639 = vunpack.c.l.b16 %v11596
      %v11640 = vunpack.c.h.b16 %v11596
      %v11641 = vunpack.c.l.b16 %v11597
      %v11642 = vunpack.c.h.b16 %v11597
      %v11643 = vunpack.c.l.b16 %v11598
      %v11644 = vunpack.c.h.b16 %v11598
      %v11645 = vunpack.c.l.b16 %v11599
      %v11646 = vunpack.c.h.b16 %v11599
      %v11647 = vunpack.c.l.b16 %v11600
      %v11648 = vunpack.c.h.b16 %v11600
      %v11649 = vunpack.c.l.b16 %v11601
      %v11650 = vunpack.c.h.b16 %v11601
      %v11651 = vunpack.c.l.b16 %v11602
      %v11652 = vunpack.c.h.b16 %v11602
      %v11653 = vunpack.c.l.b16 %v11603
      %v11654 = vunpack.c.h.b16 %v11603
      %v11655 = vunpack.c.l.b16 %v11604
      %v11656 = vunpack.c.h.b16 %v11604
      %v11657 = vunpack.c.l.b16 %v11605
      %v11658 = vunpack.c.h.b16 %v11605
      %v11659 = vunpack.c.l.b16 %v11606
      %v11660 = vunpack.c.h.b16 %v11606
      %v11661 = vpack.c.b16 %v11631, %v11629
      %v11662 = vpack.c.b16 %v11632, %v11630
      %v11663 = vpack.c.b16 %v11635, %v11633
      %v11664 = vpack.c.b16 %v11636, %v11634
      %v11665 = vpack.c.b16 %v11639, %v11637
      %v11666 = vpack.c.b16 %v11640, %v11638
      %v11667 = vpack.c.b16 %v11643, %v11641
      %v11668 = vpack.c.b16 %v11644, %v11642
      %v11669 = vpack.c.b16 %v11647, %v11645
      %v11670 = vpack.c.b16 %v11648, %v11646
      %v11671 = vpack.c.b16 %v11651, %v11649
      %v11672 = vpack.c.b16 %v11652, %v11650
      %v11673 = vpack.c.b16 %v11655, %v11653
      %v11674 = vpack.c.b16 %v11656, %v11654
      %v11675 = vpack.c.b16 %v11659, %v11657
      %v11676 = vpack.c.b16 %v11660, %v11658
      %11693 = vmatpush.bf16.msra.mxu0 %v11675
      %11694 = vmatpush.bf16.msra.mxu0 %v11673
      %11695 = vmatpush.bf16.msra.mxu0 %v11671
      %11696 = vmatpush.bf16.msra.mxu0 %v11669
      %11697 = vmatpush.bf16.msra.mxu0 %v11667
      %11698 = vmatpush.bf16.msra.mxu0 %v11665
      %11699 = vmatpush.bf16.msra.mxu0 %v11663
      %11700 = vmatpush.bf16.msra.mxu0 %v11661
      %11701 = vmatmul.bf16.gmra.mxu0 %v11587
      %v11702 = vpop.f32.mrf.mxu0
      %v11703 = vadd.f32 %v11609, %v11702
      %v11704 = vpop.f32.mrf.mxu0
      %v11705 = vadd.f32 %v11609, %v11704
      %11706 = vmatmul.bf16.gmra.mxu0 %v11588
      %v11707 = vpop.f32.mrf.mxu0
      %v11708 = vadd.f32 %v11609, %v11707
      %v11709 = vpop.f32.mrf.mxu0
      %v11710 = vadd.f32 %v11609, %v11709
      %11711 = vmatmul.bf16.gmra.mxu0 %v11589
      %v11712 = vpop.f32.mrf.mxu0
      %v11713 = vadd.f32 %v11609, %v11712
      %v11714 = vpop.f32.mrf.mxu0
      %v11715 = vadd.f32 %v11609, %v11714
      %11716 = vmatmul.bf16.gmra.mxu0 %v11590
      %v11717 = vpop.f32.mrf.mxu0
      %v11718 = vadd.f32 %v11609, %v11717
      %v11719 = vpop.f32.mrf.mxu0
      %v11720 = vadd.f32 %v11609, %v11719
      %11721 = vdwg.mxu0
      %11722 = vmatpush.bf16.msra.mxu0 %v11676
      %11723 = vmatpush.bf16.msra.mxu0 %v11674
      %11724 = vmatpush.bf16.msra.mxu0 %v11672
      %11725 = vmatpush.bf16.msra.mxu0 %v11670
      %11726 = vmatpush.bf16.msra.mxu0 %v11668
      %11727 = vmatpush.bf16.msra.mxu0 %v11666
      %11728 = vmatpush.bf16.msra.mxu0 %v11664
      %11729 = vmatpush.bf16.msra.mxu0 %v11662
      %11730 = vmatmul.bf16.gmra.mxu0 %v11587
      %v11731 = vpop.f32.mrf.mxu0
      %v11732 = vadd.f32 %v11610, %v11731
      %v11733 = vpop.f32.mrf.mxu0
      %v11734 = vadd.f32 %v11610, %v11733
      %11735 = vmatmul.bf16.gmra.mxu0 %v11588
      %v11736 = vpop.f32.mrf.mxu0
      %v11737 = vadd.f32 %v11610, %v11736
      %v11738 = vpop.f32.mrf.mxu0
      %v11739 = vadd.f32 %v11610, %v11738
      %11740 = vmatmul.bf16.gmra.mxu0 %v11589
      %v11741 = vpop.f32.mrf.mxu0
      %v11742 = vadd.f32 %v11610, %v11741
      %v11743 = vpop.f32.mrf.mxu0
      %v11744 = vadd.f32 %v11610, %v11743
      %11745 = vmatmul.bf16.gmra.mxu0 %v11590
      %v11746 = vpop.f32.mrf.mxu0
      %v11747 = vadd.f32 %v11610, %v11746
      %v11748 = vpop.f32.mrf.mxu0
      %v11749 = vadd.f32 %v11610, %v11748
      %11750 = vdwg.mxu0
      %v11751 = vadd.f32 %v11571, %v11703
      %v11752 = vadd.f32 %v11572, %v11732
      %v11753 = vadd.f32 %v11573, %v11705
      %v11754 = vadd.f32 %v11574, %v11734
      %v11755 = vadd.f32 %v11575, %v11708
      %v11756 = vadd.f32 %v11576, %v11737
      %v11757 = vadd.f32 %v11577, %v11710
      %v11758 = vadd.f32 %v11578, %v11739
      %v11759 = vadd.f32 %v11579, %v11713
      %v11760 = vadd.f32 %v11580, %v11742
      %v11761 = vadd.f32 %v11581, %v11715
      %v11762 = vadd.f32 %v11582, %v11744
      %v11763 = vadd.f32 %v11583, %v11718
      %v11764 = vadd.f32 %v11584, %v11747
      %v11765 = vadd.f32 %v11585, %v11720
      %v11766 = vadd.f32 %v11586, %v11749
      %11767 = vst [vmem:[%s440] sm:$0xff] %v11751
      %11768 = vst [vmem:[%s440 + $0x8] sm:$0xff] %v11752
      %11769 = vst [vmem:[%s440 + $0x10] sm:$0xff] %v11753
      %11770 = vst [vmem:[%s440 + $0x18] sm:$0xff] %v11754
      %11771 = vst [vmem:[%s440 + $0x20] sm:$0xff] %v11755
      %11772 = vst [vmem:[%s440 + $0x28] sm:$0xff] %v11756
      %11773 = vst [vmem:[%s440 + $0x30] sm:$0xff] %v11757
      %11774 = vst [vmem:[%s440 + $0x38] sm:$0xff] %v11758
      %11775 = vst [vmem:[%s440 + $0x40] sm:$0xff] %v11759
      %11776 = vst [vmem:[%s440 + $0x48] sm:$0xff] %v11760
      %11777 = vst [vmem:[%s440 + $0x50] sm:$0xff] %v11761
      %11778 = vst [vmem:[%s440 + $0x58] sm:$0xff] %v11762
      %11779 = vst [vmem:[%s440 + $0x60] sm:$0xff] %v11763
      %11780 = vst [vmem:[%s440 + $0x68] sm:$0xff] %v11764
      %11781 = vst [vmem:[%s440 + $0x70] sm:$0xff] %v11765
      %11782 = vst [vmem:[%s440 + $0x78] sm:$0xff] %v11766
      %p11783 = scmp.lt.s32.totalorder %s24, 1
      %s11784 = scalar_select %p11783, %s24, 1
      %s11785 = smul.addr %s11784, 16
      %s11786 = smul.addr %s11785, 8
      %s11787 = scalar_lea.vmem %s13, %s11786
      // Predicated region
      $region73: #{resnet_block.1} parent=71 // pred_check
        %p11788 = pneg %p320
      $region74: #{resnet_block.1} parent=71 // pred_check_branch
        %11790 = sbr.rel (%p11788) target = $region76
      $region75: #{resnet_block.1} parent=71 // pred_region
        _
      $region76: #{resnet_block.1} parent=71 // pred_fallthru
        _
    $region72: #{resnet_block.1} parent=5 // pred_fallthru
      _
    %p11791 = scmp.le.s32.totalorder 2, %s19
    // Predicated region
    $region77: #{resnet_block.1} parent=5 // pred_check
      %p11792 = pneg %p11791
    $region78: #{resnet_block.1} parent=5 // pred_check_branch
      %11794 = sbr.rel (%p11792) target = $region80
    $region79: #{resnet_block.1} parent=5 // pred_region
      %s11795 = ssub.s32 %s19, 2
      // Predicated region
      $region81: #{resnet_block.1} parent=79 // pred_check
        %p11796 = pneg %p326
      $region82: #{resnet_block.1} parent=79 // pred_check_branch
        %11798 = sbr.rel (%p11796) target = $region84
      $region83: #{resnet_block.1} parent=79 // pred_region
        %p11799 = scmp.lt.s32.totalorder %s25, 1
        %s11800 = scalar_select %p11799, %s25, 1
        %s11801 = smul.addr %s11800, 16
        %s11802 = smul.addr %s11801, 8
        %s11803 = scalar_lea.vmem %s13, %s11802
      $region84: #{resnet_block.1} parent=79 // pred_fallthru
        _
    $region80: #{resnet_block.1} parent=5 // pred_fallthru
      _
  $region6: #{resnet_block.1} parent=0 // loop_footer
    %s23 = sadd.s32 1, %s19
  $region7: #{resnet_block.1} parent=0 // loop_footer_branch
    %18 = sbr.rel target = $region3
  $region8: #{resnet_block.1} parent=0 // loop_exit
    _

</llo_original>
